<compile_context>
chip_gen: v5e
topology: v5e:2x2
jax: 0.10.0
libtpu: 0.0.40
codegen_flags: <defaults>
</compile_context>

<pallas_src>
import jax
import jax.numpy as jnp
from jax import lax
from jax.experimental import pallas as pl
from jax.experimental.pallas import tpu as pltpu

MATMUL_DTYPE = jnp.bfloat16        # matmul operands / inter-layer activations


def _vmem_limit_bytes():
    """Generation-aware scoped-VMEM limit (~half of physical VMEM).
    v5e/v6e (128 MiB) -> 64 MiB; v7x (64 MiB) -> 32 MiB; safe fallback 32 MiB."""
    cap = None
    try:
        info = pltpu.get_tpu_info()
        cap = getattr(info, "vmem_capacity_bytes", None)
    except Exception:
        cap = None
    if not cap:
        cap = 64 * 1024 * 1024                       # conservative (v7x-sized)
    return int(min(max(cap // 2, 32 * 1024 * 1024), 96 * 1024 * 1024))


VMEM_LIMIT = _vmem_limit_bytes()
# Lane (M) tile cap for the conv matmuls, derived from the VMEM budget.
TM_CAP = 16384 if VMEM_LIMIT >= 64 * 1024 * 1024 else 8192


# ----------------------------- Pallas kernels -----------------------------

def _conv1_pool_relu_kernel(cols_ref, w_ref, b_ref, o_ref):
    """Fused conv1 + bias + maxpool2x2 + ReLU.

    cols_ref : (4, K, tm) bf16 — phase-major im2col (phase r = pooling-window
               element r of each pooled output position).
    w_ref    : (Cout, K) bf16;  b_ref: (Cout, 1) f32;  o_ref: (Cout, tm) bf16.
    """
    y = jnp.dot(w_ref[...], cols_ref[0], preferred_element_type=jnp.float32)
    for r in range(1, 4):
        y = jnp.maximum(
            y, jnp.dot(w_ref[...], cols_ref[r],
                       preferred_element_type=jnp.float32))
    o_ref[...] = jnp.maximum(y + b_ref[...], 0.0).astype(o_ref.dtype)


def _matmul_bias_kernel(w_ref, x_ref, b_ref, o_ref):
    # out(Cout, tm) = W(Cout, K) @ cols(K, tm) + b(Cout, 1); f32 accumulate.
    y = jnp.dot(w_ref[...], x_ref[...], preferred_element_type=jnp.float32)
    o_ref[...] = (y + b_ref[...]).astype(o_ref.dtype)


def _tail_kernel(v00_ref, v01_ref, v10_ref, v11_ref,
                 w1_ref, b1_ref, w2_ref, b2_ref, o_ref):
    """Fused maxpool2x2 + ReLU + fc1 + ReLU + fc2 + log_softmax, computed
    transposed (batch on the lane axis): h(50,tn)=W1@x, logits(4,tn)=W2@h."""
    x = jnp.maximum(jnp.maximum(v00_ref[...], v01_ref[...]),
                    jnp.maximum(v10_ref[...], v11_ref[...]))
    x = jnp.maximum(x, 0.0)                                       # (720, tn) bf16
    h = jnp.dot(w1_ref[...], x, preferred_element_type=jnp.float32) + b1_ref[...]
    h = jnp.maximum(h, 0.0).astype(w2_ref.dtype)                  # (50, tn)
    logits = (jnp.dot(w2_ref[...], h, preferred_element_type=jnp.float32)
              + b2_ref[...])                                      # (4, tn) f32
    m = jnp.max(logits, axis=0, keepdims=True)
    s = logits - m
    lse = jnp.log(jnp.sum(jnp.exp(s), axis=0, keepdims=True))
    o_ref[...] = (s - lse).astype(o_ref.dtype)


# ----------------------------- wrappers ------------------------------------

def _choose_tm(m, cap):
    if m <= cap:
        return m                         # single full-dim block (always legal)
    return (cap // 128) * 128            # lane-aligned tile; edge block masked


def pallas_conv1_pool_relu(cols1, w2d, b):
    """cols1 (4, K, M) bf16 -> pooled+ReLU conv1 activations (Cout, M) bf16."""
    _, k, m = cols1.shape
    cout = w2d.shape[0]
    tm = _choose_tm(m, TM_CAP)
    grid = (pl.cdiv(m, tm),)
    flops = 2 * cout * k * 4 * m
    bytes_accessed = int(cols1.size * 2 + cout * m * 2 + w2d.size * 2 + b.size * 4)
    return pl.pallas_call(
        _conv1_pool_relu_kernel,
        out_shape=jax.ShapeDtypeStruct((cout, m), MATMUL_DTYPE),
        grid_spec=pltpu.PrefetchScalarGridSpec(
            num_scalar_prefetch=0,
            grid=grid,
            in_specs=[
                pl.BlockSpec((4, k, tm), lambda i: (0, 0, i)),
                pl.BlockSpec((cout, k), lambda i: (0, 0)),
                pl.BlockSpec((cout, 1), lambda i: (0, 0)),
            ],
            out_specs=pl.BlockSpec((cout, tm), lambda i: (0, i)),
        ),
        compiler_params=pltpu.CompilerParams(
            dimension_semantics=("parallel",),
            vmem_limit_bytes=VMEM_LIMIT),
        cost_estimate=pl.CostEstimate(flops=flops, transcendentals=0,
                                      bytes_accessed=bytes_accessed),
    )(cols1, w2d, b)


def pallas_matmul_bias(w2d, cols, b, out_dtype=MATMUL_DTYPE):
    """out(Cout, M) = w2d(Cout, K) @ cols(K, M) + b(Cout, 1).  M (= N*OH*OW)
    is the lane-dense output axis, tiled in multiples of 128 (cdiv grid)."""
    cout, k = w2d.shape
    m = cols.shape[1]
    tm = _choose_tm(m, TM_CAP)
    grid = (pl.cdiv(m, tm),)
    flops = 2 * cout * k * m
    in_item = jnp.dtype(cols.dtype).itemsize
    out_item = jnp.dtype(out_dtype).itemsize
    bytes_accessed = int(cols.size * in_item + w2d.size * 2 + b.size * 4
                         + cout * m * out_item)
    return pl.pallas_call(
        _matmul_bias_kernel,
        out_shape=jax.ShapeDtypeStruct((cout, m), out_dtype),
        grid_spec=pltpu.PrefetchScalarGridSpec(
            num_scalar_prefetch=0,
            grid=grid,
            in_specs=[
                pl.BlockSpec((cout, k), lambda i: (0, 0)),
                pl.BlockSpec((k, tm), lambda i: (0, i)),
                pl.BlockSpec((cout, 1), lambda i: (0, 0)),
            ],
            out_specs=pl.BlockSpec((cout, tm), lambda i: (0, i)),
        ),
        compiler_params=pltpu.CompilerParams(
            dimension_semantics=("parallel",),
            vmem_limit_bytes=VMEM_LIMIT),
        cost_estimate=pl.CostEstimate(flops=flops, transcendentals=0,
                                      bytes_accessed=bytes_accessed),
    )(w2d, cols, b)


def pallas_tail(v00, v01, v10, v11, w1, b1, w2, b2):
    """Fused tail over a 'parallel' batch grid (weights stay resident)."""
    kdim, n = v00.shape                                   # (720, N)
    n_cls = w2.shape[0]
    tn = n if n <= 512 else 512                           # 512 is a 128-multiple
    grid = (pl.cdiv(n, tn),)
    return pl.pallas_call(
        _tail_kernel,
        out_shape=jax.ShapeDtypeStruct((n_cls, n), jnp.float32),
        grid_spec=pltpu.PrefetchScalarGridSpec(
            num_scalar_prefetch=0,
            grid=grid,
            in_specs=[pl.BlockSpec((kdim, tn), lambda i: (0, i))] * 4 + [
                pl.BlockSpec(w1.shape, lambda i: (0, 0)),
                pl.BlockSpec(b1.shape, lambda i: (0, 0)),
                pl.BlockSpec(w2.shape, lambda i: (0, 0)),
                pl.BlockSpec(b2.shape, lambda i: (0, 0)),
            ],
            out_specs=pl.BlockSpec((n_cls, tn), lambda i: (0, i)),
        ),
        compiler_params=pltpu.CompilerParams(
            dimension_semantics=("parallel",),
            vmem_limit_bytes=VMEM_LIMIT),
    )(v00, v01, v10, v11, w1, b1, w2, b2)


# --------------------------- XLA-side layout glue ---------------------------

def _conv1_pool_cols(x):
    """Phase-major im2col for the fused conv1+pool kernel.
    x (N, 1, 224, 224) bf16 -> cols (4, 25, N*55*55) with
    cols[2*rh+rw, 5*ki+kj, (n,ph,pw)] = x[n, 0, 4*ph+2*rh+ki, 4*pw+2*rw+kj]."""
    n = x.shape[0]
    po = 55                                              # pooled spatial size
    phases = []
    for rh in range(2):
        for rw in range(2):
            taps = []
            for ki in range(5):
                for kj in range(5):
                    i0, j0 = 2 * rh + ki, 2 * rw + kj
                    t = lax.slice(
                        x, (0, 0, i0, j0),
                        (n, 1, i0 + 4 * (po - 1) + 1, j0 + 4 * (po - 1) + 1),
                        (1, 1, 4, 4))                    # (N, 1, 55, 55)
                    taps.append(t.reshape(n, po * po))
            phases.append(jnp.stack(taps, axis=0))       # (25, N, 3025)
    cols = jnp.stack(phases, axis=0)                     # (4, 25, N, 3025)
    return cols.reshape(4, 25, n * po * po)


def _im2col_cnhw(x, kh, kw, stride):
    """x (C, N, H, W) -> cols (C*kh*kw, N*OH*OW); row order (c, ki, kj) matches
    torch weight.reshape(Cout, Cin*kh*kw); column order (n, oh, ow)."""
    c, n, h, w = x.shape
    oh = (h - kh) // stride + 1
    ow = (w - kw) // stride + 1
    taps = []
    for ki in range(kh):
        for kj in range(kw):
            t = lax.slice(
                x, (0, 0, ki, kj),
                (c, n, ki + stride * (oh - 1) + 1, kj + stride * (ow - 1) + 1),
                (1, 1, stride, stride))                  # (C, N, OH, OW)
            taps.append(t)
    cols = jnp.stack(taps, axis=1)                       # (C, kh*kw, N, OH, OW)
    return cols.reshape(c * kh * kw, n * oh * ow), oh, ow


def _tail_pool_views(y2b):
    """y2b (20, N, 13, 13) -> four (720, N) 2x2-window views, flattened in
    torch NCHW .view(-1, 720) order (c, h, w), with batch on the lane axis."""
    c, n, h, w = y2b.shape
    oh, ow = h // 2, w // 2                              # 6, 6 (floor)
    views = []
    for i in range(2):
        for j in range(2):
            v = lax.slice(y2b, (0, 0, i, j),
                          (c, n, i + 2 * (oh - 1) + 1, j + 2 * (ow - 1) + 1),
                          (1, 1, 2, 2))                  # (C, N, 6, 6)
            views.append(v.transpose(0, 2, 3, 1).reshape(c * oh * ow, n))
    return views


# ----------------------------- Net1 forward --------------------------------

def prepare_params(params, matmul_dtype=MATMUL_DTYPE):
    """One-time, outside-jit weight preprocessing (reshape / cast)."""
    def conv_w(w):                                       # (Cout,Cin,KH,KW)->(Cout,K)
        return w.reshape(w.shape[0], -1).astype(matmul_dtype)

    def col(b):
        return b.reshape(-1, 1).astype(jnp.float32)

    return {
        "conv1_w2d": conv_w(params["conv1_w"]),   "conv1_b": col(params["conv1_b"]),
        "conv2a_w2d": conv_w(params["conv2a_w"]), "conv2a_b": col(params["conv2a_b"]),
        "conv2b_w2d": conv_w(params["conv2b_w"]), "conv2b_b": col(params["conv2b_b"]),
        "fc1_w": params["fc1_w"].astype(matmul_dtype),   "fc1_b": col(params["fc1_b"]),
        "fc2_w": params["fc2_w"].astype(matmul_dtype),   "fc2_b": col(params["fc2_b"]),
    }


def net1_forward(p, x_nchw):
    n = x_nchw.shape[0]
    x = x_nchw.astype(MATMUL_DTYPE)                      # bf16 once, at the boundary

    # conv1 + maxpool(2) + ReLU fully fused in one kernel (phase-major im2col).
    cols1 = _conv1_pool_cols(x)                                        # (4,25,N*3025)
    a1 = pallas_conv1_pool_relu(cols1, p["conv1_w2d"], p["conv1_b"])   # (10, N*3025)
    a1 = a1.reshape(10, n, 55, 55)                                     # CNHW, bf16

    # conv2a, conv2b (no activation between them, per the reference module).
    cols2a, oh, ow = _im2col_cnhw(a1, 3, 3, 2)                         # (90, N*729)
    a2a = pallas_matmul_bias(p["conv2a_w2d"], cols2a, p["conv2a_b"])   # (20, N*729)
    a2a = a2a.reshape(20, n, oh, ow)                                   # (20,N,27,27)

    cols2b, oh, ow = _im2col_cnhw(a2a, 3, 3, 2)                        # (180, N*169)
    a2b = pallas_matmul_bias(p["conv2b_w2d"], cols2b, p["conv2b_b"])   # (20, N*169)
    a2b = a2b.reshape(20, n, oh, ow)                                   # (20,N,13,13)

    # conv2_drop (Dropout2d) / F.dropout are identity in eval mode.
    # TODO(synk): training-mode dropout not implemented; inference semantics only.

    # Fused tail: maxpool(2) + ReLU + fc1 + ReLU + fc2 + log_softmax, transposed.
    v00, v01, v10, v11 = _tail_pool_views(a2b)                         # 4x (720, N)
    logp_t = pallas_tail(v00, v01, v10, v11,
                         p["fc1_w"], p["fc1_b"], p["fc2_w"], p["fc2_b"])  # (4, N)
    return logp_t.T                                                    # (N, 4) f32


# ----------------------------- reference (validation) -----------------------

def reference_forward(params, x_nchw):
    """Pure-JAX reference with the same bf16-operand / f32-accumulate numerics."""
    f = MATMUL_DTYPE

    def conv(x, w, b, stride):
        y = lax.conv_general_dilated(
            x.astype(f), w.astype(f), (stride, stride), "VALID",
            dimension_numbers=("NCHW", "OIHW", "NCHW"),
            preferred_element_type=jnp.float32)
        return y + b.reshape(1, -1, 1, 1).astype(jnp.float32)

    def pool2(x):
        x = x.astype(jnp.float32)
        return lax.reduce_window(x, -jnp.inf, lax.max,
                                 (1, 1, 2, 2), (1, 1, 2, 2), "VALID")

    a1 = jnp.maximum(pool2(conv(x_nchw, params["conv1_w"], params["conv1_b"], 2)), 0.0)
    a2a = conv(a1.astype(f), params["conv2a_w"], params["conv2a_b"], 2).astype(f)
    a2b = conv(a2a, params["conv2b_w"], params["conv2b_b"], 2).astype(f)
    xp = jnp.maximum(pool2(a2b), 0.0).astype(f)                 # (N, 20, 6, 6)
    xf = xp.reshape(xp.shape[0], -1)                            # (N, 720)
    h = jnp.dot(xf, params["fc1_w"].astype(f).T,
                preferred_element_type=jnp.float32) + params["fc1_b"]
    h = jnp.maximum(h, 0.0).astype(f)
    logits = jnp.dot(h, params["fc2_w"].astype(f).T,
                     preferred_element_type=jnp.float32) + params["fc2_b"]
    return jax.nn.log_softmax(logits, axis=-1)


def _init_params(key):
    # Deterministic PyTorch-style uniform(-1/sqrt(fan_in), 1/sqrt(fan_in)).
    def uni(k, shape, fan_in):
        bound = 1.0 / (fan_in ** 0.5)
        return jax.random.uniform(k, shape, jnp.float32, -bound, bound)

    ks = jax.random.split(key, 10)
    return {
        "conv1_w":  uni(ks[0], (10, 1, 5, 5), 1 * 5 * 5),
        "conv1_b":  uni(ks[1], (10,),         1 * 5 * 5),
        "conv2a_w": uni(ks[2], (20, 10, 3, 3), 10 * 3 * 3),
        "conv2a_b": uni(ks[3], (20,),          10 * 3 * 3),
        "conv2b_w": uni(ks[4], (20, 20, 3, 3), 20 * 3 * 3),
        "conv2b_b": uni(ks[5], (20,),          20 * 3 * 3),
        "fc1_w":    uni(ks[6], (50, 720), 720),
        "fc1_b":    uni(ks[7], (50,),     720),
        "fc2_w":    uni(ks[8], (4, 50), 50),
        "fc2_b":    uni(ks[9], (4,),    50),
    }


if __name__ == "__main__":
    key = jax.random.PRNGKey(0)
    pkey, xkey = jax.random.split(key)
    params = _init_params(pkey)
    prepped = prepare_params(params)            # hoisted weight prep (outside jit)
    # Smallest input consistent with the 720-dim flatten is 224x224.
    x = jax.random.normal(xkey, (2, 1, 224, 224), dtype=jnp.float32)

    fwd = jax.jit(net1_forward)
    out = jax.block_until_ready(fwd(prepped, x))
    assert out.shape == (2, 4), out.shape

    # log_softmax rows must exponentiate-sum to 1.
    assert bool(jnp.allclose(jnp.sum(jnp.exp(out), axis=-1), 1.0, atol=1e-3))

    # Validate against a pure-JAX reference with matching numerics.
    ref = jax.block_until_ready(jax.jit(reference_forward)(params, x))
    max_err = float(jnp.max(jnp.abs(out - ref)))
    assert max_err < 3e-2, f"max |pallas - ref| = {max_err}"

    print("KERNEL_OK")
</pallas_src>

<mosaic_0001>
module attributes {stable_mosaic.version = 11 : i64} {
  func.func @_conv1_pool_relu_kernel(%arg0: i32, %arg1: memref<4x25x6050xbf16, #tpu.memory_space<vmem>>, %arg2: memref<10x25xbf16, #tpu.memory_space<vmem>>, %arg3: memref<10x1xf32, #tpu.memory_space<vmem>>, %arg4: memref<10x6050xbf16, #tpu.memory_space<vmem>>) attributes {dimension_semantics = [#tpu.dimension_semantics<parallel>], iteration_bounds = array<i64: 1>, scalar_prefetch = 0 : i64, scratch_operands = 0 : i64, tpu.core_type = #tpu.core_type<tc>, window_params = [{transform_indices = @transform_0, window_bounds = array<i64: 4, 25, 6050>}, {pipeline_mode = #tpu.pipeline_mode<synchronous>, transform_indices = @transform_1, window_bounds = array<i64: 10, 25>}, {pipeline_mode = #tpu.pipeline_mode<synchronous>, transform_indices = @transform_2, window_bounds = array<i64: 10, 1>}, {transform_indices = @transform_3, window_bounds = array<i64: 10, 6050>}]} {
    %c0 = arith.constant 0 : index
    %c0_0 = arith.constant 0 : index
    %0 = vector.load %arg2[%c0, %c0_0] : memref<10x25xbf16, #tpu.memory_space<vmem>>, vector<10x25xbf16>
    %c0_1 = arith.constant 0 : index
    %c0_2 = arith.constant 0 : index
    %c0_3 = arith.constant 0 : index
    %1 = vector.load %arg1[%c0_1, %c0_2, %c0_3] : memref<4x25x6050xbf16, #tpu.memory_space<vmem>>, vector<1x25x6050xbf16>
    %2 = vector.shape_cast %1 : vector<1x25x6050xbf16> to vector<25x6050xbf16>
    %cst = arith.constant dense<0.000000e+00> : vector<10x6050xf32>
    %3 = tpu.matmul %0, %2, %cst {dimension_numbers = #tpu.dot_dimension_numbers<[1], [0], [0], [1], [0, 0, 1, 1], [], []>} : vector<10x25xbf16>, vector<25x6050xbf16>, vector<10x6050xf32> -> vector<10x6050xf32>
    %c0_4 = arith.constant 0 : index
    %c0_5 = arith.constant 0 : index
    %4 = vector.load %arg2[%c0_4, %c0_5] : memref<10x25xbf16, #tpu.memory_space<vmem>>, vector<10x25xbf16>
    %c1 = arith.constant 1 : index
    %c0_6 = arith.constant 0 : index
    %c0_7 = arith.constant 0 : index
    %5 = vector.load %arg1[%c1, %c0_6, %c0_7] : memref<4x25x6050xbf16, #tpu.memory_space<vmem>>, vector<1x25x6050xbf16>
    %6 = vector.shape_cast %5 : vector<1x25x6050xbf16> to vector<25x6050xbf16>
    %cst_8 = arith.constant dense<0.000000e+00> : vector<10x6050xf32>
    %7 = tpu.matmul %4, %6, %cst_8 {dimension_numbers = #tpu.dot_dimension_numbers<[1], [0], [0], [1], [0, 0, 1, 1], [], []>} : vector<10x25xbf16>, vector<25x6050xbf16>, vector<10x6050xf32> -> vector<10x6050xf32>
    %8 = arith.maximumf %3, %7 : vector<10x6050xf32>
    %c0_9 = arith.constant 0 : index
    %c0_10 = arith.constant 0 : index
    %9 = vector.load %arg2[%c0_9, %c0_10] : memref<10x25xbf16, #tpu.memory_space<vmem>>, vector<10x25xbf16>
    %c2 = arith.constant 2 : index
    %c0_11 = arith.constant 0 : index
    %c0_12 = arith.constant 0 : index
    %10 = vector.load %arg1[%c2, %c0_11, %c0_12] : memref<4x25x6050xbf16, #tpu.memory_space<vmem>>, vector<1x25x6050xbf16>
    %11 = vector.shape_cast %10 : vector<1x25x6050xbf16> to vector<25x6050xbf16>
    %cst_13 = arith.constant dense<0.000000e+00> : vector<10x6050xf32>
    %12 = tpu.matmul %9, %11, %cst_13 {dimension_numbers = #tpu.dot_dimension_numbers<[1], [0], [0], [1], [0, 0, 1, 1], [], []>} : vector<10x25xbf16>, vector<25x6050xbf16>, vector<10x6050xf32> -> vector<10x6050xf32>
    %13 = arith.maximumf %8, %12 : vector<10x6050xf32>
    %c0_14 = arith.constant 0 : index
    %c0_15 = arith.constant 0 : index
    %14 = vector.load %arg2[%c0_14, %c0_15] : memref<10x25xbf16, #tpu.memory_space<vmem>>, vector<10x25xbf16>
    %c3 = arith.constant 3 : index
    %c0_16 = arith.constant 0 : index
    %c0_17 = arith.constant 0 : index
    %15 = vector.load %arg1[%c3, %c0_16, %c0_17] : memref<4x25x6050xbf16, #tpu.memory_space<vmem>>, vector<1x25x6050xbf16>
    %16 = vector.shape_cast %15 : vector<1x25x6050xbf16> to vector<25x6050xbf16>
    %cst_18 = arith.constant dense<0.000000e+00> : vector<10x6050xf32>
    %17 = tpu.matmul %14, %16, %cst_18 {dimension_numbers = #tpu.dot_dimension_numbers<[1], [0], [0], [1], [0, 0, 1, 1], [], []>} : vector<10x25xbf16>, vector<25x6050xbf16>, vector<10x6050xf32> -> vector<10x6050xf32>
    %18 = arith.maximumf %13, %17 : vector<10x6050xf32>
    %c0_19 = arith.constant 0 : index
    %c0_20 = arith.constant 0 : index
    %19 = vector.load %arg3[%c0_19, %c0_20] : memref<10x1xf32, #tpu.memory_space<vmem>>, vector<10x1xf32>
    %20 = vector.broadcast %19 : vector<10x1xf32> to vector<10x6050xf32>
    %21 = arith.addf %18, %20 : vector<10x6050xf32>
    %cst_21 = arith.constant 0.000000e+00 : f32
    %22 = vector.broadcast %cst_21 : f32 to vector<10x6050xf32>
    %23 = arith.maximumf %21, %22 : vector<10x6050xf32>
    %24 = arith.truncf %23 : vector<10x6050xf32> to vector<10x6050xbf16>
    %c0_22 = arith.constant 0 : index
    %c0_23 = arith.constant 0 : index
    %25 = vector.load %arg4[%c0_22, %c0_23] : memref<10x6050xbf16, #tpu.memory_space<vmem>>, vector<10x6050xbf16>
    tpu.vector_store %arg4[%c0_22, %c0_23], %24 {strides = array<i32>} : memref<10x6050xbf16, #tpu.memory_space<vmem>>, vector<10x6050xbf16>,
    return
  }
  func.func @transform_0(%arg0: i32) -> (i32, i32, i32) {
    %c0_i32 = arith.constant 0 : i32
    %c0_i32_0 = arith.constant 0 : i32
    %c0_i32_1 = arith.constant 0 : i32
    return %c0_i32, %c0_i32_0, %arg0 : i32, i32, i32
  }
  func.func @transform_1(%arg0: i32) -> (i32, i32) {
    %c0_i32 = arith.constant 0 : i32
    %c0_i32_0 = arith.constant 0 : i32
    %c0_i32_1 = arith.constant 0 : i32
    return %c0_i32, %c0_i32_0 : i32, i32
  }
  func.func @transform_2(%arg0: i32) -> (i32, i32) {
    %c0_i32 = arith.constant 0 : i32
    %c0_i32_0 = arith.constant 0 : i32
    %c0_i32_1 = arith.constant 0 : i32
    return %c0_i32, %c0_i32_0 : i32, i32
  }
  func.func @transform_3(%arg0: i32) -> (i32, i32) {
    %c0_i32 = arith.constant 0 : i32
    %c0_i32_0 = arith.constant 0 : i32
    return %c0_i32, %arg0 : i32, i32
  }
}

module attributes {stable_mosaic.version = 11 : i64} {
  func.func @_matmul_bias_kernel(%arg0: i32, %arg1: memref<20x90xbf16, #tpu.memory_space<vmem>>, %arg2: memref<90x1458xbf16, #tpu.memory_space<vmem>>, %arg3: memref<20x1xf32, #tpu.memory_space<vmem>>, %arg4: memref<20x1458xbf16, #tpu.memory_space<vmem>>) attributes {dimension_semantics = [#tpu.dimension_semantics<parallel>], iteration_bounds = array<i64: 1>, scalar_prefetch = 0 : i64, scratch_operands = 0 : i64, tpu.core_type = #tpu.core_type<tc>, window_params = [{pipeline_mode = #tpu.pipeline_mode<synchronous>, transform_indices = @transform_0, window_bounds = array<i64: 20, 90>}, {transform_indices = @transform_1, window_bounds = array<i64: 90, 1458>}, {pipeline_mode = #tpu.pipeline_mode<synchronous>, transform_indices = @transform_2, window_bounds = array<i64: 20, 1>}, {transform_indices = @transform_3, window_bounds = array<i64: 20, 1458>}]} {
    %c0 = arith.constant 0 : index
    %c0_0 = arith.constant 0 : index
    %0 = vector.load %arg1[%c0, %c0_0] : memref<20x90xbf16, #tpu.memory_space<vmem>>, vector<20x90xbf16>
    %c0_1 = arith.constant 0 : index
    %c0_2 = arith.constant 0 : index
    %1 = vector.load %arg2[%c0_1, %c0_2] : memref<90x1458xbf16, #tpu.memory_space<vmem>>, vector<90x1458xbf16>
    %cst = arith.constant dense<0.000000e+00> : vector<20x1458xf32>
    %2 = tpu.matmul %0, %1, %cst {dimension_numbers = #tpu.dot_dimension_numbers<[1], [0], [0], [1], [0, 0, 1, 1], [], []>} : vector<20x90xbf16>, vector<90x1458xbf16>, vector<20x1458xf32> -> vector<20x1458xf32>
    %c0_3 = arith.constant 0 : index
    %c0_4 = arith.constant 0 : index
    %3 = vector.load %arg3[%c0_3, %c0_4] : memref<20x1xf32, #tpu.memory_space<vmem>>, vector<20x1xf32>
    %4 = vector.broadcast %3 : vector<20x1xf32> to vector<20x1458xf32>
    %5 = arith.addf %2, %4 : vector<20x1458xf32>
    %6 = arith.truncf %5 : vector<20x1458xf32> to vector<20x1458xbf16>
    %c0_5 = arith.constant 0 : index
    %c0_6 = arith.constant 0 : index
    %7 = vector.load %arg4[%c0_5, %c0_6] : memref<20x1458xbf16, #tpu.memory_space<vmem>>, vector<20x1458xbf16>
    tpu.vector_store %arg4[%c0_5, %c0_6], %6 {strides = array<i32>} : memref<20x1458xbf16, #tpu.memory_space<vmem>>, vector<20x1458xbf16>,
    return
  }
  func.func @transform_0(%arg0: i32) -> (i32, i32) {
    %c0_i32 = arith.constant 0 : i32
    %c0_i32_0 = arith.constant 0 : i32
    %c0_i32_1 = arith.constant 0 : i32
    return %c0_i32, %c0_i32_0 : i32, i32
  }
  func.func @transform_1(%arg0: i32) -> (i32, i32) {
    %c0_i32 = arith.constant 0 : i32
    %c0_i32_0 = arith.constant 0 : i32
    return %c0_i32, %arg0 : i32, i32
  }
  func.func @transform_2(%arg0: i32) -> (i32, i32) {
    %c0_i32 = arith.constant 0 : i32
    %c0_i32_0 = arith.constant 0 : i32
    %c0_i32_1 = arith.constant 0 : i32
    return %c0_i32, %c0_i32_0 : i32, i32
  }
  func.func @transform_3(%arg0: i32) -> (i32, i32) {
    %c0_i32 = arith.constant 0 : i32
    %c0_i32_0 = arith.constant 0 : i32
    return %c0_i32, %arg0 : i32, i32
  }
}

module attributes {stable_mosaic.version = 11 : i64} {
  func.func @_matmul_bias_kernel(%arg0: i32, %arg1: memref<20x180xbf16, #tpu.memory_space<vmem>>, %arg2: memref<180x338xbf16, #tpu.memory_space<vmem>>, %arg3: memref<20x1xf32, #tpu.memory_space<vmem>>, %arg4: memref<20x338xbf16, #tpu.memory_space<vmem>>) attributes {dimension_semantics = [#tpu.dimension_semantics<parallel>], iteration_bounds = array<i64: 1>, scalar_prefetch = 0 : i64, scratch_operands = 0 : i64, tpu.core_type = #tpu.core_type<tc>, window_params = [{pipeline_mode = #tpu.pipeline_mode<synchronous>, transform_indices = @transform_0, window_bounds = array<i64: 20, 180>}, {transform_indices = @transform_1, window_bounds = array<i64: 180, 338>}, {pipeline_mode = #tpu.pipeline_mode<synchronous>, transform_indices = @transform_2, window_bounds = array<i64: 20, 1>}, {transform_indices = @transform_3, window_bounds = array<i64: 20, 338>}]} {
    %c0 = arith.constant 0 : index
    %c0_0 = arith.constant 0 : index
    %0 = vector.load %arg1[%c0, %c0_0] : memref<20x180xbf16, #tpu.memory_space<vmem>>, vector<20x180xbf16>
    %c0_1 = arith.constant 0 : index
    %c0_2 = arith.constant 0 : index
    %1 = vector.load %arg2[%c0_1, %c0_2] : memref<180x338xbf16, #tpu.memory_space<vmem>>, vector<180x338xbf16>
    %cst = arith.constant dense<0.000000e+00> : vector<20x338xf32>
    %2 = tpu.matmul %0, %1, %cst {dimension_numbers = #tpu.dot_dimension_numbers<[1], [0], [0], [1], [0, 0, 1, 1], [], []>} : vector<20x180xbf16>, vector<180x338xbf16>, vector<20x338xf32> -> vector<20x338xf32>
    %c0_3 = arith.constant 0 : index
    %c0_4 = arith.constant 0 : index
    %3 = vector.load %arg3[%c0_3, %c0_4] : memref<20x1xf32, #tpu.memory_space<vmem>>, vector<20x1xf32>
    %4 = vector.broadcast %3 : vector<20x1xf32> to vector<20x338xf32>
    %5 = arith.addf %2, %4 : vector<20x338xf32>
    %6 = arith.truncf %5 : vector<20x338xf32> to vector<20x338xbf16>
    %c0_5 = arith.constant 0 : index
    %c0_6 = arith.constant 0 : index
    %7 = vector.load %arg4[%c0_5, %c0_6] : memref<20x338xbf16, #tpu.memory_space<vmem>>, vector<20x338xbf16>
    tpu.vector_store %arg4[%c0_5, %c0_6], %6 {strides = array<i32>} : memref<20x338xbf16, #tpu.memory_space<vmem>>, vector<20x338xbf16>,
    return
  }
  func.func @transform_0(%arg0: i32) -> (i32, i32) {
    %c0_i32 = arith.constant 0 : i32
    %c0_i32_0 = arith.constant 0 : i32
    %c0_i32_1 = arith.constant 0 : i32
    return %c0_i32, %c0_i32_0 : i32, i32
  }
  func.func @transform_1(%arg0: i32) -> (i32, i32) {
    %c0_i32 = arith.constant 0 : i32
    %c0_i32_0 = arith.constant 0 : i32
    return %c0_i32, %arg0 : i32, i32
  }
  func.func @transform_2(%arg0: i32) -> (i32, i32) {
    %c0_i32 = arith.constant 0 : i32
    %c0_i32_0 = arith.constant 0 : i32
    %c0_i32_1 = arith.constant 0 : i32
    return %c0_i32, %c0_i32_0 : i32, i32
  }
  func.func @transform_3(%arg0: i32) -> (i32, i32) {
    %c0_i32 = arith.constant 0 : i32
    %c0_i32_0 = arith.constant 0 : i32
    return %c0_i32, %arg0 : i32, i32
  }
}

module attributes {stable_mosaic.version = 11 : i64} {
  func.func @_tail_kernel(%arg0: i32, %arg1: memref<720x2xbf16, #tpu.memory_space<vmem>>, %arg2: memref<720x2xbf16, #tpu.memory_space<vmem>>, %arg3: memref<720x2xbf16, #tpu.memory_space<vmem>>, %arg4: memref<720x2xbf16, #tpu.memory_space<vmem>>, %arg5: memref<50x720xbf16, #tpu.memory_space<vmem>>, %arg6: memref<50x1xf32, #tpu.memory_space<vmem>>, %arg7: memref<4x50xbf16, #tpu.memory_space<vmem>>, %arg8: memref<4x1xf32, #tpu.memory_space<vmem>>, %arg9: memref<4x2xf32, #tpu.memory_space<vmem>>) attributes {dimension_semantics = [#tpu.dimension_semantics<parallel>], iteration_bounds = array<i64: 1>, scalar_prefetch = 0 : i64, scratch_operands = 0 : i64, tpu.core_type = #tpu.core_type<tc>, window_params = [{transform_indices = @transform_0, window_bounds = array<i64: 720, 2>}, {transform_indices = @transform_1, window_bounds = array<i64: 720, 2>}, {transform_indices = @transform_2, window_bounds = array<i64: 720, 2>}, {transform_indices = @transform_3, window_bounds = array<i64: 720, 2>}, {pipeline_mode = #tpu.pipeline_mode<synchronous>, transform_indices = @transform_4, window_bounds = array<i64: 50, 720>}, {pipeline_mode = #tpu.pipeline_mode<synchronous>, transform_indices = @transform_5, window_bounds = array<i64: 50, 1>}, {pipeline_mode = #tpu.pipeline_mode<synchronous>, transform_indices = @transform_6, window_bounds = array<i64: 4, 50>}, {pipeline_mode = #tpu.pipeline_mode<synchronous>, transform_indices = @transform_7, window_bounds = array<i64: 4, 1>}, {transform_indices = @transform_8, window_bounds = array<i64: 4, 2>}]} {
    %c0 = arith.constant 0 : index
    %c0_0 = arith.constant 0 : index
    %0 = vector.load %arg1[%c0, %c0_0] : memref<720x2xbf16, #tpu.memory_space<vmem>>, vector<720x2xbf16>
    %c0_1 = arith.constant 0 : index
    %c0_2 = arith.constant 0 : index
    %1 = vector.load %arg2[%c0_1, %c0_2] : memref<720x2xbf16, #tpu.memory_space<vmem>>, vector<720x2xbf16>
    %2 = arith.maximumf %0, %1 : vector<720x2xbf16>
    %c0_3 = arith.constant 0 : index
    %c0_4 = arith.constant 0 : index
    %3 = vector.load %arg3[%c0_3, %c0_4] : memref<720x2xbf16, #tpu.memory_space<vmem>>, vector<720x2xbf16>
    %c0_5 = arith.constant 0 : index
    %c0_6 = arith.constant 0 : index
    %4 = vector.load %arg4[%c0_5, %c0_6] : memref<720x2xbf16, #tpu.memory_space<vmem>>, vector<720x2xbf16>
    %5 = arith.maximumf %3, %4 : vector<720x2xbf16>
    %6 = arith.maximumf %2, %5 : vector<720x2xbf16>
    %cst = arith.constant 0.000000e+00 : bf16
    %7 = vector.broadcast %cst : bf16 to vector<720x2xbf16>
    %8 = arith.maximumf %6, %7 : vector<720x2xbf16>
    %c0_7 = arith.constant 0 : index
    %c0_8 = arith.constant 0 : index
    %9 = vector.load %arg5[%c0_7, %c0_8] : memref<50x720xbf16, #tpu.memory_space<vmem>>, vector<50x720xbf16>
    %cst_9 = arith.constant dense<0.000000e+00> : vector<50x2xf32>
    %10 = tpu.matmul %9, %8, %cst_9 {dimension_numbers = #tpu.dot_dimension_numbers<[1], [0], [0], [1], [0, 0, 1, 1], [], []>} : vector<50x720xbf16>, vector<720x2xbf16>, vector<50x2xf32> -> vector<50x2xf32>
    %c0_10 = arith.constant 0 : index
    %c0_11 = arith.constant 0 : index
    %11 = vector.load %arg6[%c0_10, %c0_11] : memref<50x1xf32, #tpu.memory_space<vmem>>, vector<50x1xf32>
    %12 = vector.broadcast %11 : vector<50x1xf32> to vector<50x2xf32>
    %13 = arith.addf %10, %12 : vector<50x2xf32>
    %cst_12 = arith.constant 0.000000e+00 : f32
    %14 = vector.broadcast %cst_12 : f32 to vector<50x2xf32>
    %15 = arith.maximumf %13, %14 : vector<50x2xf32>
    %16 = arith.truncf %15 : vector<50x2xf32> to vector<50x2xbf16>
    %c0_13 = arith.constant 0 : index
    %c0_14 = arith.constant 0 : index
    %17 = vector.load %arg7[%c0_13, %c0_14] : memref<4x50xbf16, #tpu.memory_space<vmem>>, vector<4x50xbf16>
    %cst_15 = arith.constant dense<0.000000e+00> : vector<4x2xf32>
    %18 = tpu.matmul %17, %16, %cst_15 {dimension_numbers = #tpu.dot_dimension_numbers<[1], [0], [0], [1], [0, 0, 1, 1], [], []>} : vector<4x50xbf16>, vector<50x2xbf16>, vector<4x2xf32> -> vector<4x2xf32>
    %c0_16 = arith.constant 0 : index
    %c0_17 = arith.constant 0 : index
    %19 = vector.load %arg8[%c0_16, %c0_17] : memref<4x1xf32, #tpu.memory_space<vmem>>, vector<4x1xf32>
    %20 = vector.broadcast %19 : vector<4x1xf32> to vector<4x2xf32>
    %21 = arith.addf %18, %20 : vector<4x2xf32>
    %cst_18 = arith.constant dense<0xFF800000> : vector<2xf32>
    %22 = vector.multi_reduction <maximumf>, %21, %cst_18 [0] : vector<4x2xf32> to vector<2xf32>
    %23 = vector.shape_cast %22 : vector<2xf32> to vector<1x2xf32>
    %24 = vector.broadcast %23 : vector<1x2xf32> to vector<4x2xf32>
    %25 = arith.subf %21, %24 : vector<4x2xf32>
    %26 = math.exp %25 : vector<4x2xf32>
    %cst_19 = arith.constant dense<0.000000e+00> : vector<2xf32>
    %27 = vector.multi_reduction <add>, %26, %cst_19 [0] : vector<4x2xf32> to vector<2xf32>
    %28 = vector.shape_cast %27 : vector<2xf32> to vector<1x2xf32>
    %29 = math.log %28 : vector<1x2xf32>
    %30 = vector.broadcast %29 : vector<1x2xf32> to vector<4x2xf32>
    %31 = arith.subf %25, %30 : vector<4x2xf32>
    %c0_20 = arith.constant 0 : index
    %c0_21 = arith.constant 0 : index
    %32 = vector.load %arg9[%c0_20, %c0_21] : memref<4x2xf32, #tpu.memory_space<vmem>>, vector<4x2xf32>
    tpu.vector_store %arg9[%c0_20, %c0_21], %31 {strides = array<i32>} : memref<4x2xf32, #tpu.memory_space<vmem>>, vector<4x2xf32>,
    return
  }
  func.func @transform_0(%arg0: i32) -> (i32, i32) {
    %c0_i32 = arith.constant 0 : i32
    %c0_i32_0 = arith.constant 0 : i32
    return %c0_i32, %arg0 : i32, i32
  }
  func.func @transform_1(%arg0: i32) -> (i32, i32) {
    %c0_i32 = arith.constant 0 : i32
    %c0_i32_0 = arith.constant 0 : i32
    return %c0_i32, %arg0 : i32, i32
  }
  func.func @transform_2(%arg0: i32) -> (i32, i32) {
    %c0_i32 = arith.constant 0 : i32
    %c0_i32_0 = arith.constant 0 : i32
    return %c0_i32, %arg0 : i32, i32
  }
  func.func @transform_3(%arg0: i32) -> (i32, i32) {
    %c0_i32 = arith.constant 0 : i32
    %c0_i32_0 = arith.constant 0 : i32
    return %c0_i32, %arg0 : i32, i32
  }
  func.func @transform_4(%arg0: i32) -> (i32, i32) {
    %c0_i32 = arith.constant 0 : i32
    %c0_i32_0 = arith.constant 0 : i32
    %c0_i32_1 = arith.constant 0 : i32
    return %c0_i32, %c0_i32_0 : i32, i32
  }
  func.func @transform_5(%arg0: i32) -> (i32, i32) {
    %c0_i32 = arith.constant 0 : i32
    %c0_i32_0 = arith.constant 0 : i32
    %c0_i32_1 = arith.constant 0 : i32
    return %c0_i32, %c0_i32_0 : i32, i32
  }
  func.func @transform_6(%arg0: i32) -> (i32, i32) {
    %c0_i32 = arith.constant 0 : i32
    %c0_i32_0 = arith.constant 0 : i32
    %c0_i32_1 = arith.constant 0 : i32
    return %c0_i32, %c0_i32_0 : i32, i32
  }
  func.func @transform_7(%arg0: i32) -> (i32, i32) {
    %c0_i32 = arith.constant 0 : i32
    %c0_i32_0 = arith.constant 0 : i32
    %c0_i32_1 = arith.constant 0 : i32
    return %c0_i32, %c0_i32_0 : i32, i32
  }
  func.func @transform_8(%arg0: i32) -> (i32, i32) {
    %c0_i32 = arith.constant 0 : i32
    %c0_i32_0 = arith.constant 0 : i32
    return %c0_i32, %arg0 : i32, i32
  }
}

</mosaic_0001>

<llo_original>
// kernel: net1_forward.4
$region0: #{net1_forward.4}
  #allocation0 [shape = 'u32[]', space=smem, size = 0x4, offset = 0x4, fixed_abs, tag = 'smem constant byte address 0x4 - core index']
  #allocation1 [shape = 'u32[72,128]{1,0:T(1,128)}', space=vmem, size = 0x9000, scoped, tag = 'internal scratch']
  %s0 = inlined_call_operand.vmem [shape: bf16[4,25,6050], index: 0, kind: input, shape index: {}]
  %s1 = inlined_call_operand.vmem [shape: bf16[10,25], index: 1, kind: input, shape index: {}]
  %s2 = inlined_call_operand.vmem [shape: f32[10,1], index: 2, kind: input, shape index: {}]
  %s3 = inlined_call_operand.vmem [shape: bf16[10,6050], index: 3, kind: output, shape index: {}]
  %s4 = sld [smem:[#allocation0]]
  $region22: #{net1_forward.4} parent=0
    _
  %s6 = ssub.s32 1, %s4
  %s7 = scalar_select 0, %s6, %s4
  // Predicated region
  $region2: #{net1_forward.4} parent=0 // pred_check
    _
  $region3: #{net1_forward.4} parent=0 // pred_check_branch
    %9 = sbr.rel (0) target = $region5
  $region4: #{net1_forward.4} parent=0 // pred_region
    _
  $region5: #{net1_forward.4} parent=0 // pred_fallthru
    _
  // Predicated region
  $region6: #{net1_forward.4} parent=0 // pred_check
    _
  $region7: #{net1_forward.4} parent=0 // pred_check_branch
    %11 = sbr.rel (0) target = $region9
  $region8: #{net1_forward.4} parent=0 // pred_region
    _
  $region9: #{net1_forward.4} parent=0 // pred_fallthru
    _
  // Predicated region
  $region10: #{net1_forward.4} parent=0 // pred_check
    _
  $region11: #{net1_forward.4} parent=0 // pred_check_branch
    %13 = sbr.rel (0) target = $region13
  $region12: #{net1_forward.4} parent=0 // pred_region
    _
  $region13: #{net1_forward.4} parent=0 // pred_fallthru
    _
  %v15 = vld [vmem:[%s1] sm:$0xf]
  %v16 = vld [vmem:[%s1 + $0x4] sm:$0x1]
  %v17 = vld [vmem:[%s0] sm:$0xff]
  %v18 = vld [vmem:[%s0 + $0x8] sm:$0xff]
  %v19 = vld [vmem:[%s0 + $0x10] sm:$0xff]
  %v20 = vld [vmem:[%s0 + $0x18] sm:$0xff]
  %v21 = vld [vmem:[%s0 + $0x20] sm:$0xff]
  %v22 = vld [vmem:[%s0 + $0x28] sm:$0xff]
  %v23 = vld [vmem:[%s0 + $0x30] sm:$0xff]
  %v24 = vld [vmem:[%s0 + $0x38] sm:$0xff]
  %v25 = vld [vmem:[%s0 + $0x40] sm:$0xff]
  %v26 = vld [vmem:[%s0 + $0x48] sm:$0xff]
  %v27 = vld [vmem:[%s0 + $0x50] sm:$0xff]
  %v28 = vld [vmem:[%s0 + $0x58] sm:$0xff]
  %v29 = vld [vmem:[%s0 + $0x60] sm:$0xff]
  %v30 = vld [vmem:[%s0 + $0x68] sm:$0xff]
  %v31 = vld [vmem:[%s0 + $0x70] sm:$0xff]
  %v32 = vld [vmem:[%s0 + $0x78] sm:$0xff]
  %v33 = vld [vmem:[%s0 + $0x80] sm:$0xff]
  %v34 = vld [vmem:[%s0 + $0x88] sm:$0xff]
  %v35 = vld [vmem:[%s0 + $0x90] sm:$0xff]
  %v36 = vld [vmem:[%s0 + $0x98] sm:$0xff]
  %v37 = vld [vmem:[%s0 + $0xa0] sm:$0xff]
  %v38 = vld [vmem:[%s0 + $0xa8] sm:$0xff]
  %v39 = vld [vmem:[%s0 + $0xb0] sm:$0xff]
  %v40 = vld [vmem:[%s0 + $0xb8] sm:$0xff]
  %v41 = vld [vmem:[%s0 + $0xc0] sm:$0xff]
  %v42 = vld [vmem:[%s0 + $0xc8] sm:$0xff]
  %v43 = vld [vmem:[%s0 + $0xd0] sm:$0xff]
  %v44 = vld [vmem:[%s0 + $0xd8] sm:$0xff]
  %v45 = vld [vmem:[%s0 + $0xe0] sm:$0xff]
  %v46 = vld [vmem:[%s0 + $0xe8] sm:$0xff]
  %v47 = vld [vmem:[%s0 + $0xf0] sm:$0xff]
  %v48 = vld [vmem:[%s0 + $0xf8] sm:$0xff]
  %v49 = vld [vmem:[%s0 + $0x100] sm:$0xff]
  %v50 = vld [vmem:[%s0 + $0x108] sm:$0xff]
  %v51 = vld [vmem:[%s0 + $0x110] sm:$0xff]
  %v52 = vld [vmem:[%s0 + $0x118] sm:$0xff]
  %v53 = vld [vmem:[%s0 + $0x120] sm:$0xff]
  %v54 = vld [vmem:[%s0 + $0x128] sm:$0xff]
  %v55 = vld [vmem:[%s0 + $0x130] sm:$0xff]
  %v56 = vld [vmem:[%s0 + $0x138] sm:$0xff]
  %v57 = vld [vmem:[%s0 + $0x140] sm:$0xff]
  %v58 = vld [vmem:[%s0 + $0x148] sm:$0xff]
  %v59 = vld [vmem:[%s0 + $0x150] sm:$0xff]
  %v60 = vld [vmem:[%s0 + $0x158] sm:$0xff]
  %v61 = vld [vmem:[%s0 + $0x160] sm:$0xff]
  %v62 = vld [vmem:[%s0 + $0x168] sm:$0xff]
  %v63 = vld [vmem:[%s0 + $0x170] sm:$0xff]
  %v64 = vld [vmem:[%s0 + $0x178] sm:$0xff]
  %v65 = vld [vmem:[%s0 + $0x180] sm:$0xff]
  %v66 = vld [vmem:[%s0 + $0x188] sm:$0xff]
  %v67 = vld [vmem:[%s0 + $0x190] sm:$0xff]
  %v68 = vld [vmem:[%s0 + $0x198] sm:$0xff]
  %v69 = vld [vmem:[%s0 + $0x1a0] sm:$0xff]
  %v70 = vld [vmem:[%s0 + $0x1a8] sm:$0xff]
  %v71 = vld [vmem:[%s0 + $0x1b0] sm:$0xff]
  %v72 = vld [vmem:[%s0 + $0x1b8] sm:$0xff]
  %v73 = vld [vmem:[%s0 + $0x1c0] sm:$0xff]
  %v74 = vld [vmem:[%s0 + $0x1c8] sm:$0xff]
  %v75 = vld [vmem:[%s0 + $0x1d0] sm:$0xff]
  %v76 = vld [vmem:[%s0 + $0x1d8] sm:$0xff]
  %v77 = vld [vmem:[%s0 + $0x1e0] sm:$0xff]
  %v78 = vld [vmem:[%s0 + $0x1e8] sm:$0xff]
  %v79 = vld [vmem:[%s0 + $0x1f0] sm:$0xff]
  %v80 = vld [vmem:[%s0 + $0x1f8] sm:$0xff]
  %v81 = vld [vmem:[%s0 + $0x200] sm:$0xff]
  %v82 = vld [vmem:[%s0 + $0x208] sm:$0xff]
  %v83 = vld [vmem:[%s0 + $0x210] sm:$0xff]
  %v84 = vld [vmem:[%s0 + $0x218] sm:$0xff]
  %v85 = vld [vmem:[%s0 + $0x220] sm:$0xff]
  %v86 = vld [vmem:[%s0 + $0x228] sm:$0xff]
  %v87 = vld [vmem:[%s0 + $0x230] sm:$0xff]
  %v88 = vld [vmem:[%s0 + $0x238] sm:$0xff]
  %v89 = vld [vmem:[%s0 + $0x240] sm:$0x11]
  %v90 = vld [vmem:[%s0 + $0x248] sm:$0x11]
  %v91 = vld [vmem:[%s0 + $0x250] sm:$0x11]
  %v92 = vld [vmem:[%s0 + $0x258] sm:$0x11]
  %v93 = vld [vmem:[%s0 + $0x260] sm:$0x11]
  %v94 = vld [vmem:[%s0 + $0x268] sm:$0x11]
  %v95 = vld [vmem:[%s0 + $0x270] sm:$0x11]
  %v96 = vld [vmem:[%s0 + $0x278] sm:$0x11]
  %v97 = vld [vmem:[%s0 + $0x280] sm:$0x11]
  %v98 = vld [vmem:[%s0 + $0x288] sm:$0x11]
  %v99 = vld [vmem:[%s0 + $0x290] sm:$0x11]
  %v100 = vld [vmem:[%s0 + $0x298] sm:$0x11]
  %v101 = vld [vmem:[%s0 + $0x2a0] sm:$0x11]
  %v102 = vld [vmem:[%s0 + $0x2a8] sm:$0x11]
  %v103 = vld [vmem:[%s0 + $0x2b0] sm:$0x11]
  %v104 = vld [vmem:[%s0 + $0x2b8] sm:$0x11]
  %v105 = vld [vmem:[%s0 + $0x2c0] sm:$0x11]
  %v106 = vld [vmem:[%s0 + $0x2c8] sm:$0x11]
  %v107 = vld [vmem:[%s0 + $0x2d0] sm:$0x11]
  %v108 = vld [vmem:[%s0 + $0x2d8] sm:$0x11]
  %v109 = vld [vmem:[%s0 + $0x2e0] sm:$0x11]
  %v110 = vld [vmem:[%s0 + $0x2e8] sm:$0x11]
  %v111 = vld [vmem:[%s0 + $0x2f0] sm:$0x11]
  %v112 = vld [vmem:[%s0 + $0x2f8] sm:$0x11]
  %v115 = vunpack.c.l.b16 %v15
  %v116 = vunpack.c.l.b16 %v16
  %v117 = vpack.c.b16 %v116, %v115
  %v214 = vunpack.c.l.b16 %v17
  %v215 = vunpack.c.h.b16 %v17
  %v216 = vunpack.c.l.b16 %v18
  %v217 = vunpack.c.h.b16 %v18
  %v218 = vunpack.c.l.b16 %v19
  %v219 = vunpack.c.h.b16 %v19
  %v220 = vunpack.c.l.b16 %v20
  %v221 = vunpack.c.h.b16 %v20
  %v222 = vunpack.c.l.b16 %v21
  %v223 = vunpack.c.h.b16 %v21
  %v224 = vunpack.c.l.b16 %v22
  %v225 = vunpack.c.h.b16 %v22
  %v226 = vunpack.c.l.b16 %v23
  %v227 = vunpack.c.h.b16 %v23
  %v228 = vunpack.c.l.b16 %v24
  %v229 = vunpack.c.h.b16 %v24
  %v230 = vunpack.c.l.b16 %v25
  %v231 = vunpack.c.h.b16 %v25
  %v232 = vunpack.c.l.b16 %v26
  %v233 = vunpack.c.h.b16 %v26
  %v234 = vunpack.c.l.b16 %v27
  %v235 = vunpack.c.h.b16 %v27
  %v236 = vunpack.c.l.b16 %v28
  %v237 = vunpack.c.h.b16 %v28
  %v238 = vunpack.c.l.b16 %v29
  %v239 = vunpack.c.h.b16 %v29
  %v240 = vunpack.c.l.b16 %v30
  %v241 = vunpack.c.h.b16 %v30
  %v242 = vunpack.c.l.b16 %v31
  %v243 = vunpack.c.h.b16 %v31
  %v244 = vunpack.c.l.b16 %v32
  %v245 = vunpack.c.h.b16 %v32
  %v246 = vunpack.c.l.b16 %v33
  %v247 = vunpack.c.h.b16 %v33
  %v248 = vunpack.c.l.b16 %v34
  %v249 = vunpack.c.h.b16 %v34
  %v250 = vunpack.c.l.b16 %v35
  %v251 = vunpack.c.h.b16 %v35
  %v252 = vunpack.c.l.b16 %v36
  %v253 = vunpack.c.h.b16 %v36
  %v254 = vunpack.c.l.b16 %v37
  %v255 = vunpack.c.h.b16 %v37
  %v256 = vunpack.c.l.b16 %v38
  %v257 = vunpack.c.h.b16 %v38
  %v258 = vunpack.c.l.b16 %v39
  %v259 = vunpack.c.h.b16 %v39
  %v260 = vunpack.c.l.b16 %v40
  %v261 = vunpack.c.h.b16 %v40
  %v262 = vunpack.c.l.b16 %v41
  %v263 = vunpack.c.h.b16 %v41
  %v264 = vunpack.c.l.b16 %v42
  %v265 = vunpack.c.h.b16 %v42
  %v266 = vunpack.c.l.b16 %v43
  %v267 = vunpack.c.h.b16 %v43
  %v268 = vunpack.c.l.b16 %v44
  %v269 = vunpack.c.h.b16 %v44
  %v270 = vunpack.c.l.b16 %v45
  %v271 = vunpack.c.h.b16 %v45
  %v272 = vunpack.c.l.b16 %v46
  %v273 = vunpack.c.h.b16 %v46
  %v274 = vunpack.c.l.b16 %v47
  %v275 = vunpack.c.h.b16 %v47
  %v276 = vunpack.c.l.b16 %v48
  %v277 = vunpack.c.h.b16 %v48
  %v278 = vunpack.c.l.b16 %v49
  %v279 = vunpack.c.h.b16 %v49
  %v280 = vunpack.c.l.b16 %v50
  %v281 = vunpack.c.h.b16 %v50
  %v282 = vunpack.c.l.b16 %v51
  %v283 = vunpack.c.h.b16 %v51
  %v284 = vunpack.c.l.b16 %v52
  %v285 = vunpack.c.h.b16 %v52
  %v286 = vunpack.c.l.b16 %v53
  %v287 = vunpack.c.h.b16 %v53
  %v288 = vunpack.c.l.b16 %v54
  %v289 = vunpack.c.h.b16 %v54
  %v290 = vunpack.c.l.b16 %v55
  %v291 = vunpack.c.h.b16 %v55
  %v292 = vunpack.c.l.b16 %v56
  %v293 = vunpack.c.h.b16 %v56
  %v294 = vunpack.c.l.b16 %v57
  %v295 = vunpack.c.h.b16 %v57
  %v296 = vunpack.c.l.b16 %v58
  %v297 = vunpack.c.h.b16 %v58
  %v298 = vunpack.c.l.b16 %v59
  %v299 = vunpack.c.h.b16 %v59
  %v300 = vunpack.c.l.b16 %v60
  %v301 = vunpack.c.h.b16 %v60
  %v302 = vunpack.c.l.b16 %v61
  %v303 = vunpack.c.h.b16 %v61
  %v304 = vunpack.c.l.b16 %v62
  %v305 = vunpack.c.h.b16 %v62
  %v306 = vunpack.c.l.b16 %v63
  %v307 = vunpack.c.h.b16 %v63
  %v308 = vunpack.c.l.b16 %v64
  %v309 = vunpack.c.h.b16 %v64
  %v310 = vunpack.c.l.b16 %v65
  %v311 = vunpack.c.h.b16 %v65
  %v312 = vunpack.c.l.b16 %v66
  %v313 = vunpack.c.h.b16 %v66
  %v314 = vunpack.c.l.b16 %v67
  %v315 = vunpack.c.h.b16 %v67
  %v316 = vunpack.c.l.b16 %v68
  %v317 = vunpack.c.h.b16 %v68
  %v318 = vunpack.c.l.b16 %v69
  %v319 = vunpack.c.h.b16 %v69
  %v320 = vunpack.c.l.b16 %v70
  %v321 = vunpack.c.h.b16 %v70
  %v322 = vunpack.c.l.b16 %v71
  %v323 = vunpack.c.h.b16 %v71
  %v324 = vunpack.c.l.b16 %v72
  %v325 = vunpack.c.h.b16 %v72
  %v326 = vunpack.c.l.b16 %v73
  %v327 = vunpack.c.h.b16 %v73
  %v328 = vunpack.c.l.b16 %v74
  %v329 = vunpack.c.h.b16 %v74
  %v330 = vunpack.c.l.b16 %v75
  %v331 = vunpack.c.h.b16 %v75
  %v332 = vunpack.c.l.b16 %v76
  %v333 = vunpack.c.h.b16 %v76
  %v334 = vunpack.c.l.b16 %v77
  %v335 = vunpack.c.h.b16 %v77
  %v336 = vunpack.c.l.b16 %v78
  %v337 = vunpack.c.h.b16 %v78
  %v338 = vunpack.c.l.b16 %v79
  %v339 = vunpack.c.h.b16 %v79
  %v340 = vunpack.c.l.b16 %v80
  %v341 = vunpack.c.h.b16 %v80
  %v342 = vunpack.c.l.b16 %v81
  %v343 = vunpack.c.h.b16 %v81
  %v344 = vunpack.c.l.b16 %v82
  %v345 = vunpack.c.h.b16 %v82
  %v346 = vunpack.c.l.b16 %v83
  %v347 = vunpack.c.h.b16 %v83
  %v348 = vunpack.c.l.b16 %v84
  %v349 = vunpack.c.h.b16 %v84
  %v350 = vunpack.c.l.b16 %v85
  %v351 = vunpack.c.h.b16 %v85
  %v352 = vunpack.c.l.b16 %v86
  %v353 = vunpack.c.h.b16 %v86
  %v354 = vunpack.c.l.b16 %v87
  %v355 = vunpack.c.h.b16 %v87
  %v356 = vunpack.c.l.b16 %v88
  %v357 = vunpack.c.h.b16 %v88
  %v358 = vunpack.c.l.b16 %v89
  %v359 = vunpack.c.h.b16 %v89
  %v360 = vunpack.c.l.b16 %v90
  %v361 = vunpack.c.h.b16 %v90
  %v362 = vunpack.c.l.b16 %v91
  %v363 = vunpack.c.h.b16 %v91
  %v364 = vunpack.c.l.b16 %v92
  %v365 = vunpack.c.h.b16 %v92
  %v366 = vunpack.c.l.b16 %v93
  %v367 = vunpack.c.h.b16 %v93
  %v368 = vunpack.c.l.b16 %v94
  %v369 = vunpack.c.h.b16 %v94
  %v370 = vunpack.c.l.b16 %v95
  %v371 = vunpack.c.h.b16 %v95
  %v372 = vunpack.c.l.b16 %v96
  %v373 = vunpack.c.h.b16 %v96
  %v374 = vunpack.c.l.b16 %v97
  %v375 = vunpack.c.h.b16 %v97
  %v376 = vunpack.c.l.b16 %v98
  %v377 = vunpack.c.h.b16 %v98
  %v378 = vunpack.c.l.b16 %v99
  %v379 = vunpack.c.h.b16 %v99
  %v380 = vunpack.c.l.b16 %v100
  %v381 = vunpack.c.h.b16 %v100
  %v382 = vunpack.c.l.b16 %v101
  %v383 = vunpack.c.h.b16 %v101
  %v384 = vunpack.c.l.b16 %v102
  %v385 = vunpack.c.h.b16 %v102
  %v386 = vunpack.c.l.b16 %v103
  %v387 = vunpack.c.h.b16 %v103
  %v388 = vunpack.c.l.b16 %v104
  %v389 = vunpack.c.h.b16 %v104
  %v390 = vunpack.c.l.b16 %v105
  %v391 = vunpack.c.h.b16 %v105
  %v392 = vunpack.c.l.b16 %v106
  %v393 = vunpack.c.h.b16 %v106
  %v394 = vunpack.c.l.b16 %v107
  %v395 = vunpack.c.h.b16 %v107
  %v396 = vunpack.c.l.b16 %v108
  %v397 = vunpack.c.h.b16 %v108
  %v398 = vunpack.c.l.b16 %v109
  %v399 = vunpack.c.h.b16 %v109
  %v400 = vunpack.c.l.b16 %v110
  %v401 = vunpack.c.h.b16 %v110
  %v402 = vunpack.c.l.b16 %v111
  %v403 = vunpack.c.h.b16 %v111
  %v404 = vunpack.c.l.b16 %v112
  %v405 = vunpack.c.h.b16 %v112
  %v406 = vpack.c.b16 %v262, %v214
  %v407 = vpack.c.b16 %v263, %v215
  %v408 = vpack.c.b16 %v264, %v216
  %v409 = vpack.c.b16 %v265, %v217
  %v410 = vpack.c.b16 %v266, %v218
  %v411 = vpack.c.b16 %v267, %v219
  %v412 = vpack.c.b16 %v268, %v220
  %v413 = vpack.c.b16 %v269, %v221
  %v414 = vpack.c.b16 %v270, %v222
  %v415 = vpack.c.b16 %v271, %v223
  %v416 = vpack.c.b16 %v272, %v224
  %v417 = vpack.c.b16 %v273, %v225
  %v418 = vpack.c.b16 %v274, %v226
  %v419 = vpack.c.b16 %v275, %v227
  %v420 = vpack.c.b16 %v276, %v228
  %v421 = vpack.c.b16 %v277, %v229
  %v422 = vpack.c.b16 %v278, %v230
  %v423 = vpack.c.b16 %v279, %v231
  %v424 = vpack.c.b16 %v280, %v232
  %v425 = vpack.c.b16 %v281, %v233
  %v426 = vpack.c.b16 %v282, %v234
  %v427 = vpack.c.b16 %v283, %v235
  %v428 = vpack.c.b16 %v284, %v236
  %v429 = vpack.c.b16 %v285, %v237
  %v430 = vpack.c.b16 %v286, %v238
  %v431 = vpack.c.b16 %v287, %v239
  %v432 = vpack.c.b16 %v288, %v240
  %v433 = vpack.c.b16 %v289, %v241
  %v434 = vpack.c.b16 %v290, %v242
  %v435 = vpack.c.b16 %v291, %v243
  %v436 = vpack.c.b16 %v292, %v244
  %v437 = vpack.c.b16 %v293, %v245
  %v438 = vpack.c.b16 %v294, %v246
  %v439 = vpack.c.b16 %v295, %v247
  %v440 = vpack.c.b16 %v296, %v248
  %v441 = vpack.c.b16 %v297, %v249
  %v442 = vpack.c.b16 %v298, %v250
  %v443 = vpack.c.b16 %v299, %v251
  %v444 = vpack.c.b16 %v300, %v252
  %v445 = vpack.c.b16 %v301, %v253
  %v446 = vpack.c.b16 %v302, %v254
  %v447 = vpack.c.b16 %v303, %v255
  %v448 = vpack.c.b16 %v304, %v256
  %v449 = vpack.c.b16 %v305, %v257
  %v450 = vpack.c.b16 %v306, %v258
  %v451 = vpack.c.b16 %v307, %v259
  %v452 = vpack.c.b16 %v308, %v260
  %v453 = vpack.c.b16 %v309, %v261
  %v454 = vpack.c.b16 %v358, %v310
  %v455 = vpack.c.b16 %v359, %v311
  %v456 = vpack.c.b16 %v360, %v312
  %v457 = vpack.c.b16 %v361, %v313
  %v458 = vpack.c.b16 %v362, %v314
  %v459 = vpack.c.b16 %v363, %v315
  %v460 = vpack.c.b16 %v364, %v316
  %v461 = vpack.c.b16 %v365, %v317
  %v462 = vpack.c.b16 %v366, %v318
  %v463 = vpack.c.b16 %v367, %v319
  %v464 = vpack.c.b16 %v368, %v320
  %v465 = vpack.c.b16 %v369, %v321
  %v466 = vpack.c.b16 %v370, %v322
  %v467 = vpack.c.b16 %v371, %v323
  %v468 = vpack.c.b16 %v372, %v324
  %v469 = vpack.c.b16 %v373, %v325
  %v470 = vpack.c.b16 %v374, %v326
  %v471 = vpack.c.b16 %v375, %v327
  %v472 = vpack.c.b16 %v376, %v328
  %v473 = vpack.c.b16 %v377, %v329
  %v474 = vpack.c.b16 %v378, %v330
  %v475 = vpack.c.b16 %v379, %v331
  %v476 = vpack.c.b16 %v380, %v332
  %v477 = vpack.c.b16 %v381, %v333
  %v478 = vpack.c.b16 %v382, %v334
  %v479 = vpack.c.b16 %v383, %v335
  %v480 = vpack.c.b16 %v384, %v336
  %v481 = vpack.c.b16 %v385, %v337
  %v482 = vpack.c.b16 %v386, %v338
  %v483 = vpack.c.b16 %v387, %v339
  %v484 = vpack.c.b16 %v388, %v340
  %v485 = vpack.c.b16 %v389, %v341
  %v486 = vpack.c.b16 %v390, %v342
  %v487 = vpack.c.b16 %v391, %v343
  %v488 = vpack.c.b16 %v392, %v344
  %v489 = vpack.c.b16 %v393, %v345
  %v490 = vpack.c.b16 %v394, %v346
  %v491 = vpack.c.b16 %v395, %v347
  %v492 = vpack.c.b16 %v396, %v348
  %v493 = vpack.c.b16 %v397, %v349
  %v494 = vpack.c.b16 %v398, %v350
  %v495 = vpack.c.b16 %v399, %v351
  %v496 = vpack.c.b16 %v400, %v352
  %v497 = vpack.c.b16 %v401, %v353
  %v498 = vpack.c.b16 %v402, %v354
  %v499 = vpack.c.b16 %v403, %v355
  %v500 = vpack.c.b16 %v404, %v356
  %v501 = vpack.c.b16 %v405, %v357
  %vm550 = vcmask 203776
  %v552 = vsel %vm550, %v117, 0
  %vm554 = vcmask 1043456
  %vm555 = vcmask 1044480
  %v556 = vsel %vm554, 4294967295, 65535
  %v557 = vsel %vm555, %v556, 0
  %v559 = vand.u32 %v454, %v557
  %v562 = vand.u32 %v455, %v557
  %v565 = vand.u32 %v456, %v557
  %v568 = vand.u32 %v457, %v557
  %v571 = vand.u32 %v458, %v557
  %v574 = vand.u32 %v459, %v557
  %v577 = vand.u32 %v460, %v557
  %v580 = vand.u32 %v461, %v557
  %v583 = vand.u32 %v462, %v557
  %v586 = vand.u32 %v463, %v557
  %v589 = vand.u32 %v464, %v557
  %v592 = vand.u32 %v465, %v557
  %v595 = vand.u32 %v466, %v557
  %v598 = vand.u32 %v467, %v557
  %v601 = vand.u32 %v468, %v557
  %v604 = vand.u32 %v469, %v557
  %v607 = vand.u32 %v470, %v557
  %v610 = vand.u32 %v471, %v557
  %v613 = vand.u32 %v472, %v557
  %v616 = vand.u32 %v473, %v557
  %v619 = vand.u32 %v474, %v557
  %v622 = vand.u32 %v475, %v557
  %v625 = vand.u32 %v476, %v557
  %v628 = vand.u32 %v477, %v557
  %v631 = vand.u32 %v478, %v557
  %v634 = vand.u32 %v479, %v557
  %v637 = vand.u32 %v480, %v557
  %v640 = vand.u32 %v481, %v557
  %v643 = vand.u32 %v482, %v557
  %v646 = vand.u32 %v483, %v557
  %v649 = vand.u32 %v484, %v557
  %v652 = vand.u32 %v485, %v557
  %v655 = vand.u32 %v486, %v557
  %v658 = vand.u32 %v487, %v557
  %v661 = vand.u32 %v488, %v557
  %v664 = vand.u32 %v489, %v557
  %v667 = vand.u32 %v490, %v557
  %v670 = vand.u32 %v491, %v557
  %v673 = vand.u32 %v492, %v557
  %v676 = vand.u32 %v493, %v557
  %v679 = vand.u32 %v494, %v557
  %v682 = vand.u32 %v495, %v557
  %v685 = vand.u32 %v496, %v557
  %v688 = vand.u32 %v497, %v557
  %v691 = vand.u32 %v498, %v557
  %v694 = vand.u32 %v499, %v557
  %v697 = vand.u32 %v500, %v557
  %v700 = vand.u32 %v501, %v557
  %702 = vmatpush.bf16.msra.mxu0 0
  %703 = vmatpush.bf16.msra.mxu0 0
  %704 = vmatpush.bf16.msra.mxu0 0
  %705 = vmatpush.bf16.msra.mxu0 0
  %706 = vmatpush.bf16.msra.mxu0 0
  %707 = vmatpush.bf16.msra.mxu0 0
  %708 = vmatpush.bf16.msra.mxu0 %v559
  %709 = vmatpush.bf16.msra.mxu0 %v406
  %710 = vmatmul.bf16.gmra.mxu0 %v552
  %v711 = vpop.f32.mrf.mxu0
  %v712 = vadd.f32 0.0, %v711
  %v713 = vpop.f32.mrf.mxu0
  %v714 = vadd.f32 0.0, %v713
  %715 = vdwg.mxu0
  %716 = vmatpush.bf16.msra.mxu0 0
  %717 = vmatpush.bf16.msra.mxu0 0
  %718 = vmatpush.bf16.msra.mxu0 0
  %719 = vmatpush.bf16.msra.mxu0 0
  %720 = vmatpush.bf16.msra.mxu0 0
  %721 = vmatpush.bf16.msra.mxu0 0
  %722 = vmatpush.bf16.msra.mxu0 %v562
  %723 = vmatpush.bf16.msra.mxu0 %v407
  %724 = vmatmul.bf16.gmra.mxu0 %v552
  %v725 = vpop.f32.mrf.mxu0
  %v726 = vadd.f32 0.0, %v725
  %v727 = vpop.f32.mrf.mxu0
  %v728 = vadd.f32 0.0, %v727
  %729 = vdwg.mxu0
  %730 = vmatpush.bf16.msra.mxu0 0
  %731 = vmatpush.bf16.msra.mxu0 0
  %732 = vmatpush.bf16.msra.mxu0 0
  %733 = vmatpush.bf16.msra.mxu0 0
  %734 = vmatpush.bf16.msra.mxu0 0
  %735 = vmatpush.bf16.msra.mxu0 0
  %736 = vmatpush.bf16.msra.mxu0 %v565
  %737 = vmatpush.bf16.msra.mxu0 %v408
  %738 = vmatmul.bf16.gmra.mxu0 %v552
  %v739 = vpop.f32.mrf.mxu0
  %v740 = vadd.f32 0.0, %v739
  %v741 = vpop.f32.mrf.mxu0
  %v742 = vadd.f32 0.0, %v741
  %743 = vdwg.mxu0
  %744 = vmatpush.bf16.msra.mxu0 0
  %745 = vmatpush.bf16.msra.mxu0 0
  %746 = vmatpush.bf16.msra.mxu0 0
  %747 = vmatpush.bf16.msra.mxu0 0
  %748 = vmatpush.bf16.msra.mxu0 0
  %749 = vmatpush.bf16.msra.mxu0 0
  %750 = vmatpush.bf16.msra.mxu0 %v568
  %751 = vmatpush.bf16.msra.mxu0 %v409
  %752 = vmatmul.bf16.gmra.mxu0 %v552
  %v753 = vpop.f32.mrf.mxu0
  %v754 = vadd.f32 0.0, %v753
  %v755 = vpop.f32.mrf.mxu0
  %v756 = vadd.f32 0.0, %v755
  %757 = vdwg.mxu0
  %758 = vmatpush.bf16.msra.mxu0 0
  %759 = vmatpush.bf16.msra.mxu0 0
  %760 = vmatpush.bf16.msra.mxu0 0
  %761 = vmatpush.bf16.msra.mxu0 0
  %762 = vmatpush.bf16.msra.mxu0 0
  %763 = vmatpush.bf16.msra.mxu0 0
  %764 = vmatpush.bf16.msra.mxu0 %v571
  %765 = vmatpush.bf16.msra.mxu0 %v410
  %766 = vmatmul.bf16.gmra.mxu0 %v552
  %v767 = vpop.f32.mrf.mxu0
  %v768 = vadd.f32 0.0, %v767
  %v769 = vpop.f32.mrf.mxu0
  %v770 = vadd.f32 0.0, %v769
  %771 = vdwg.mxu0
  %772 = vmatpush.bf16.msra.mxu0 0
  %773 = vmatpush.bf16.msra.mxu0 0
  %774 = vmatpush.bf16.msra.mxu0 0
  %775 = vmatpush.bf16.msra.mxu0 0
  %776 = vmatpush.bf16.msra.mxu0 0
  %777 = vmatpush.bf16.msra.mxu0 0
  %778 = vmatpush.bf16.msra.mxu0 %v574
  %779 = vmatpush.bf16.msra.mxu0 %v411
  %780 = vmatmul.bf16.gmra.mxu0 %v552
  %v781 = vpop.f32.mrf.mxu0
  %v782 = vadd.f32 0.0, %v781
  %v783 = vpop.f32.mrf.mxu0
  %v784 = vadd.f32 0.0, %v783
  %785 = vdwg.mxu0
  %786 = vmatpush.bf16.msra.mxu0 0
  %787 = vmatpush.bf16.msra.mxu0 0
  %788 = vmatpush.bf16.msra.mxu0 0
  %789 = vmatpush.bf16.msra.mxu0 0
  %790 = vmatpush.bf16.msra.mxu0 0
  %791 = vmatpush.bf16.msra.mxu0 0
  %792 = vmatpush.bf16.msra.mxu0 %v577
  %793 = vmatpush.bf16.msra.mxu0 %v412
  %794 = vmatmul.bf16.gmra.mxu0 %v552
  %v795 = vpop.f32.mrf.mxu0
  %v796 = vadd.f32 0.0, %v795
  %v797 = vpop.f32.mrf.mxu0
  %v798 = vadd.f32 0.0, %v797
  %799 = vdwg.mxu0
  %800 = vmatpush.bf16.msra.mxu0 0
  %801 = vmatpush.bf16.msra.mxu0 0
  %802 = vmatpush.bf16.msra.mxu0 0
  %803 = vmatpush.bf16.msra.mxu0 0
  %804 = vmatpush.bf16.msra.mxu0 0
  %805 = vmatpush.bf16.msra.mxu0 0
  %806 = vmatpush.bf16.msra.mxu0 %v580
  %807 = vmatpush.bf16.msra.mxu0 %v413
  %808 = vmatmul.bf16.gmra.mxu0 %v552
  %v809 = vpop.f32.mrf.mxu0
  %v810 = vadd.f32 0.0, %v809
  %v811 = vpop.f32.mrf.mxu0
  %v812 = vadd.f32 0.0, %v811
  %813 = vdwg.mxu0
  %814 = vmatpush.bf16.msra.mxu0 0
  %815 = vmatpush.bf16.msra.mxu0 0
  %816 = vmatpush.bf16.msra.mxu0 0
  %817 = vmatpush.bf16.msra.mxu0 0
  %818 = vmatpush.bf16.msra.mxu0 0
  %819 = vmatpush.bf16.msra.mxu0 0
  %820 = vmatpush.bf16.msra.mxu0 %v583
  %821 = vmatpush.bf16.msra.mxu0 %v414
  %822 = vmatmul.bf16.gmra.mxu0 %v552
  %v823 = vpop.f32.mrf.mxu0
  %v824 = vadd.f32 0.0, %v823
  %v825 = vpop.f32.mrf.mxu0
  %v826 = vadd.f32 0.0, %v825
  %827 = vdwg.mxu0
  %828 = vmatpush.bf16.msra.mxu0 0
  %829 = vmatpush.bf16.msra.mxu0 0
  %830 = vmatpush.bf16.msra.mxu0 0
  %831 = vmatpush.bf16.msra.mxu0 0
  %832 = vmatpush.bf16.msra.mxu0 0
  %833 = vmatpush.bf16.msra.mxu0 0
  %834 = vmatpush.bf16.msra.mxu0 %v586
  %835 = vmatpush.bf16.msra.mxu0 %v415
  %836 = vmatmul.bf16.gmra.mxu0 %v552
  %v837 = vpop.f32.mrf.mxu0
  %v838 = vadd.f32 0.0, %v837
  %v839 = vpop.f32.mrf.mxu0
  %v840 = vadd.f32 0.0, %v839
  %841 = vdwg.mxu0
  %842 = vmatpush.bf16.msra.mxu0 0
  %843 = vmatpush.bf16.msra.mxu0 0
  %844 = vmatpush.bf16.msra.mxu0 0
  %845 = vmatpush.bf16.msra.mxu0 0
  %846 = vmatpush.bf16.msra.mxu0 0
  %847 = vmatpush.bf16.msra.mxu0 0
  %848 = vmatpush.bf16.msra.mxu0 %v589
  %849 = vmatpush.bf16.msra.mxu0 %v416
  %850 = vmatmul.bf16.gmra.mxu0 %v552
  %v851 = vpop.f32.mrf.mxu0
  %v852 = vadd.f32 0.0, %v851
  %v853 = vpop.f32.mrf.mxu0
  %v854 = vadd.f32 0.0, %v853
  %855 = vdwg.mxu0
  %856 = vmatpush.bf16.msra.mxu0 0
  %857 = vmatpush.bf16.msra.mxu0 0
  %858 = vmatpush.bf16.msra.mxu0 0
  %859 = vmatpush.bf16.msra.mxu0 0
  %860 = vmatpush.bf16.msra.mxu0 0
  %861 = vmatpush.bf16.msra.mxu0 0
  %862 = vmatpush.bf16.msra.mxu0 %v592
  %863 = vmatpush.bf16.msra.mxu0 %v417
  %864 = vmatmul.bf16.gmra.mxu0 %v552
  %v865 = vpop.f32.mrf.mxu0
  %v866 = vadd.f32 0.0, %v865
  %v867 = vpop.f32.mrf.mxu0
  %v868 = vadd.f32 0.0, %v867
  %869 = vdwg.mxu0
  %870 = vmatpush.bf16.msra.mxu0 0
  %871 = vmatpush.bf16.msra.mxu0 0
  %872 = vmatpush.bf16.msra.mxu0 0
  %873 = vmatpush.bf16.msra.mxu0 0
  %874 = vmatpush.bf16.msra.mxu0 0
  %875 = vmatpush.bf16.msra.mxu0 0
  %876 = vmatpush.bf16.msra.mxu0 %v595
  %877 = vmatpush.bf16.msra.mxu0 %v418
  %878 = vmatmul.bf16.gmra.mxu0 %v552
  %v879 = vpop.f32.mrf.mxu0
  %v880 = vadd.f32 0.0, %v879
  %v881 = vpop.f32.mrf.mxu0
  %v882 = vadd.f32 0.0, %v881
  %883 = vdwg.mxu0
  %884 = vmatpush.bf16.msra.mxu0 0
  %885 = vmatpush.bf16.msra.mxu0 0
  %886 = vmatpush.bf16.msra.mxu0 0
  %887 = vmatpush.bf16.msra.mxu0 0
  %888 = vmatpush.bf16.msra.mxu0 0
  %889 = vmatpush.bf16.msra.mxu0 0
  %890 = vmatpush.bf16.msra.mxu0 %v598
  %891 = vmatpush.bf16.msra.mxu0 %v419
  %892 = vmatmul.bf16.gmra.mxu0 %v552
  %v893 = vpop.f32.mrf.mxu0
  %v894 = vadd.f32 0.0, %v893
  %v895 = vpop.f32.mrf.mxu0
  %v896 = vadd.f32 0.0, %v895
  %897 = vdwg.mxu0
  %898 = vmatpush.bf16.msra.mxu0 0
  %899 = vmatpush.bf16.msra.mxu0 0
  %900 = vmatpush.bf16.msra.mxu0 0
  %901 = vmatpush.bf16.msra.mxu0 0
  %902 = vmatpush.bf16.msra.mxu0 0
  %903 = vmatpush.bf16.msra.mxu0 0
  %904 = vmatpush.bf16.msra.mxu0 %v601
  %905 = vmatpush.bf16.msra.mxu0 %v420
  %906 = vmatmul.bf16.gmra.mxu0 %v552
  %v907 = vpop.f32.mrf.mxu0
  %v908 = vadd.f32 0.0, %v907
  %v909 = vpop.f32.mrf.mxu0
  %v910 = vadd.f32 0.0, %v909
  %911 = vdwg.mxu0
  %912 = vmatpush.bf16.msra.mxu0 0
  %913 = vmatpush.bf16.msra.mxu0 0
  %914 = vmatpush.bf16.msra.mxu0 0
  %915 = vmatpush.bf16.msra.mxu0 0
  %916 = vmatpush.bf16.msra.mxu0 0
  %917 = vmatpush.bf16.msra.mxu0 0
  %918 = vmatpush.bf16.msra.mxu0 %v604
  %919 = vmatpush.bf16.msra.mxu0 %v421
  %920 = vmatmul.bf16.gmra.mxu0 %v552
  %v921 = vpop.f32.mrf.mxu0
  %v922 = vadd.f32 0.0, %v921
  %v923 = vpop.f32.mrf.mxu0
  %v924 = vadd.f32 0.0, %v923
  %925 = vdwg.mxu0
  %926 = vmatpush.bf16.msra.mxu0 0
  %927 = vmatpush.bf16.msra.mxu0 0
  %928 = vmatpush.bf16.msra.mxu0 0
  %929 = vmatpush.bf16.msra.mxu0 0
  %930 = vmatpush.bf16.msra.mxu0 0
  %931 = vmatpush.bf16.msra.mxu0 0
  %932 = vmatpush.bf16.msra.mxu0 %v607
  %933 = vmatpush.bf16.msra.mxu0 %v422
  %934 = vmatmul.bf16.gmra.mxu0 %v552
  %v935 = vpop.f32.mrf.mxu0
  %v936 = vadd.f32 0.0, %v935
  %v937 = vpop.f32.mrf.mxu0
  %v938 = vadd.f32 0.0, %v937
  %939 = vdwg.mxu0
  %940 = vmatpush.bf16.msra.mxu0 0
  %941 = vmatpush.bf16.msra.mxu0 0
  %942 = vmatpush.bf16.msra.mxu0 0
  %943 = vmatpush.bf16.msra.mxu0 0
  %944 = vmatpush.bf16.msra.mxu0 0
  %945 = vmatpush.bf16.msra.mxu0 0
  %946 = vmatpush.bf16.msra.mxu0 %v610
  %947 = vmatpush.bf16.msra.mxu0 %v423
  %948 = vmatmul.bf16.gmra.mxu0 %v552
  %v949 = vpop.f32.mrf.mxu0
  %v950 = vadd.f32 0.0, %v949
  %v951 = vpop.f32.mrf.mxu0
  %v952 = vadd.f32 0.0, %v951
  %953 = vdwg.mxu0
  %954 = vmatpush.bf16.msra.mxu0 0
  %955 = vmatpush.bf16.msra.mxu0 0
  %956 = vmatpush.bf16.msra.mxu0 0
  %957 = vmatpush.bf16.msra.mxu0 0
  %958 = vmatpush.bf16.msra.mxu0 0
  %959 = vmatpush.bf16.msra.mxu0 0
  %960 = vmatpush.bf16.msra.mxu0 %v613
  %961 = vmatpush.bf16.msra.mxu0 %v424
  %962 = vmatmul.bf16.gmra.mxu0 %v552
  %v963 = vpop.f32.mrf.mxu0
  %v964 = vadd.f32 0.0, %v963
  %v965 = vpop.f32.mrf.mxu0
  %v966 = vadd.f32 0.0, %v965
  %967 = vdwg.mxu0
  %968 = vmatpush.bf16.msra.mxu0 0
  %969 = vmatpush.bf16.msra.mxu0 0
  %970 = vmatpush.bf16.msra.mxu0 0
  %971 = vmatpush.bf16.msra.mxu0 0
  %972 = vmatpush.bf16.msra.mxu0 0
  %973 = vmatpush.bf16.msra.mxu0 0
  %974 = vmatpush.bf16.msra.mxu0 %v616
  %975 = vmatpush.bf16.msra.mxu0 %v425
  %976 = vmatmul.bf16.gmra.mxu0 %v552
  %v977 = vpop.f32.mrf.mxu0
  %v978 = vadd.f32 0.0, %v977
  %v979 = vpop.f32.mrf.mxu0
  %v980 = vadd.f32 0.0, %v979
  %981 = vdwg.mxu0
  %982 = vmatpush.bf16.msra.mxu0 0
  %983 = vmatpush.bf16.msra.mxu0 0
  %984 = vmatpush.bf16.msra.mxu0 0
  %985 = vmatpush.bf16.msra.mxu0 0
  %986 = vmatpush.bf16.msra.mxu0 0
  %987 = vmatpush.bf16.msra.mxu0 0
  %988 = vmatpush.bf16.msra.mxu0 %v619
  %989 = vmatpush.bf16.msra.mxu0 %v426
  %990 = vmatmul.bf16.gmra.mxu0 %v552
  %v991 = vpop.f32.mrf.mxu0
  %v992 = vadd.f32 0.0, %v991
  %v993 = vpop.f32.mrf.mxu0
  %v994 = vadd.f32 0.0, %v993
  %995 = vdwg.mxu0
  %996 = vmatpush.bf16.msra.mxu0 0
  %997 = vmatpush.bf16.msra.mxu0 0
  %998 = vmatpush.bf16.msra.mxu0 0
  %999 = vmatpush.bf16.msra.mxu0 0
  %1000 = vmatpush.bf16.msra.mxu0 0
  %1001 = vmatpush.bf16.msra.mxu0 0
  %1002 = vmatpush.bf16.msra.mxu0 %v622
  %1003 = vmatpush.bf16.msra.mxu0 %v427
  %1004 = vmatmul.bf16.gmra.mxu0 %v552
  %v1005 = vpop.f32.mrf.mxu0
  %v1006 = vadd.f32 0.0, %v1005
  %v1007 = vpop.f32.mrf.mxu0
  %v1008 = vadd.f32 0.0, %v1007
  %1009 = vdwg.mxu0
  %1010 = vmatpush.bf16.msra.mxu0 0
  %1011 = vmatpush.bf16.msra.mxu0 0
  %1012 = vmatpush.bf16.msra.mxu0 0
  %1013 = vmatpush.bf16.msra.mxu0 0
  %1014 = vmatpush.bf16.msra.mxu0 0
  %1015 = vmatpush.bf16.msra.mxu0 0
  %1016 = vmatpush.bf16.msra.mxu0 %v625
  %1017 = vmatpush.bf16.msra.mxu0 %v428
  %1018 = vmatmul.bf16.gmra.mxu0 %v552
  %v1019 = vpop.f32.mrf.mxu0
  %v1020 = vadd.f32 0.0, %v1019
  %v1021 = vpop.f32.mrf.mxu0
  %v1022 = vadd.f32 0.0, %v1021
  %1023 = vdwg.mxu0
  %1024 = vmatpush.bf16.msra.mxu0 0
  %1025 = vmatpush.bf16.msra.mxu0 0
  %1026 = vmatpush.bf16.msra.mxu0 0
  %1027 = vmatpush.bf16.msra.mxu0 0
  %1028 = vmatpush.bf16.msra.mxu0 0
  %1029 = vmatpush.bf16.msra.mxu0 0
  %1030 = vmatpush.bf16.msra.mxu0 %v628
  %1031 = vmatpush.bf16.msra.mxu0 %v429
  %1032 = vmatmul.bf16.gmra.mxu0 %v552
  %v1033 = vpop.f32.mrf.mxu0
  %v1034 = vadd.f32 0.0, %v1033
  %v1035 = vpop.f32.mrf.mxu0
  %v1036 = vadd.f32 0.0, %v1035
  %1037 = vdwg.mxu0
  %1038 = vmatpush.bf16.msra.mxu0 0
  %1039 = vmatpush.bf16.msra.mxu0 0
  %1040 = vmatpush.bf16.msra.mxu0 0
  %1041 = vmatpush.bf16.msra.mxu0 0
  %1042 = vmatpush.bf16.msra.mxu0 0
  %1043 = vmatpush.bf16.msra.mxu0 0
  %1044 = vmatpush.bf16.msra.mxu0 %v631
  %1045 = vmatpush.bf16.msra.mxu0 %v430
  %1046 = vmatmul.bf16.gmra.mxu0 %v552
  %v1047 = vpop.f32.mrf.mxu0
  %v1048 = vadd.f32 0.0, %v1047
  %v1049 = vpop.f32.mrf.mxu0
  %v1050 = vadd.f32 0.0, %v1049
  %1051 = vdwg.mxu0
  %1052 = vmatpush.bf16.msra.mxu0 0
  %1053 = vmatpush.bf16.msra.mxu0 0
  %1054 = vmatpush.bf16.msra.mxu0 0
  %1055 = vmatpush.bf16.msra.mxu0 0
  %1056 = vmatpush.bf16.msra.mxu0 0
  %1057 = vmatpush.bf16.msra.mxu0 0
  %1058 = vmatpush.bf16.msra.mxu0 %v634
  %1059 = vmatpush.bf16.msra.mxu0 %v431
  %1060 = vmatmul.bf16.gmra.mxu0 %v552
  %v1061 = vpop.f32.mrf.mxu0
  %v1062 = vadd.f32 0.0, %v1061
  %v1063 = vpop.f32.mrf.mxu0
  %v1064 = vadd.f32 0.0, %v1063
  %1065 = vdwg.mxu0
  %1066 = vmatpush.bf16.msra.mxu0 0
  %1067 = vmatpush.bf16.msra.mxu0 0
  %1068 = vmatpush.bf16.msra.mxu0 0
  %1069 = vmatpush.bf16.msra.mxu0 0
  %1070 = vmatpush.bf16.msra.mxu0 0
  %1071 = vmatpush.bf16.msra.mxu0 0
  %1072 = vmatpush.bf16.msra.mxu0 %v637
  %1073 = vmatpush.bf16.msra.mxu0 %v432
  %1074 = vmatmul.bf16.gmra.mxu0 %v552
  %v1075 = vpop.f32.mrf.mxu0
  %v1076 = vadd.f32 0.0, %v1075
  %v1077 = vpop.f32.mrf.mxu0
  %v1078 = vadd.f32 0.0, %v1077
  %1079 = vdwg.mxu0
  %1080 = vmatpush.bf16.msra.mxu0 0
  %1081 = vmatpush.bf16.msra.mxu0 0
  %1082 = vmatpush.bf16.msra.mxu0 0
  %1083 = vmatpush.bf16.msra.mxu0 0
  %1084 = vmatpush.bf16.msra.mxu0 0
  %1085 = vmatpush.bf16.msra.mxu0 0
  %1086 = vmatpush.bf16.msra.mxu0 %v640
  %1087 = vmatpush.bf16.msra.mxu0 %v433
  %1088 = vmatmul.bf16.gmra.mxu0 %v552
  %v1089 = vpop.f32.mrf.mxu0
  %v1090 = vadd.f32 0.0, %v1089
  %v1091 = vpop.f32.mrf.mxu0
  %v1092 = vadd.f32 0.0, %v1091
  %1093 = vdwg.mxu0
  %1094 = vmatpush.bf16.msra.mxu0 0
  %1095 = vmatpush.bf16.msra.mxu0 0
  %1096 = vmatpush.bf16.msra.mxu0 0
  %1097 = vmatpush.bf16.msra.mxu0 0
  %1098 = vmatpush.bf16.msra.mxu0 0
  %1099 = vmatpush.bf16.msra.mxu0 0
  %1100 = vmatpush.bf16.msra.mxu0 %v643
  %1101 = vmatpush.bf16.msra.mxu0 %v434
  %1102 = vmatmul.bf16.gmra.mxu0 %v552
  %v1103 = vpop.f32.mrf.mxu0
  %v1104 = vadd.f32 0.0, %v1103
  %v1105 = vpop.f32.mrf.mxu0
  %v1106 = vadd.f32 0.0, %v1105
  %1107 = vdwg.mxu0
  %1108 = vmatpush.bf16.msra.mxu0 0
  %1109 = vmatpush.bf16.msra.mxu0 0
  %1110 = vmatpush.bf16.msra.mxu0 0
  %1111 = vmatpush.bf16.msra.mxu0 0
  %1112 = vmatpush.bf16.msra.mxu0 0
  %1113 = vmatpush.bf16.msra.mxu0 0
  %1114 = vmatpush.bf16.msra.mxu0 %v646
  %1115 = vmatpush.bf16.msra.mxu0 %v435
  %1116 = vmatmul.bf16.gmra.mxu0 %v552
  %v1117 = vpop.f32.mrf.mxu0
  %v1118 = vadd.f32 0.0, %v1117
  %v1119 = vpop.f32.mrf.mxu0
  %v1120 = vadd.f32 0.0, %v1119
  %1121 = vdwg.mxu0
  %1122 = vmatpush.bf16.msra.mxu0 0
  %1123 = vmatpush.bf16.msra.mxu0 0
  %1124 = vmatpush.bf16.msra.mxu0 0
  %1125 = vmatpush.bf16.msra.mxu0 0
  %1126 = vmatpush.bf16.msra.mxu0 0
  %1127 = vmatpush.bf16.msra.mxu0 0
  %1128 = vmatpush.bf16.msra.mxu0 %v649
  %1129 = vmatpush.bf16.msra.mxu0 %v436
  %1130 = vmatmul.bf16.gmra.mxu0 %v552
  %v1131 = vpop.f32.mrf.mxu0
  %v1132 = vadd.f32 0.0, %v1131
  %v1133 = vpop.f32.mrf.mxu0
  %v1134 = vadd.f32 0.0, %v1133
  %1135 = vdwg.mxu0
  %1136 = vmatpush.bf16.msra.mxu0 0
  %1137 = vmatpush.bf16.msra.mxu0 0
  %1138 = vmatpush.bf16.msra.mxu0 0
  %1139 = vmatpush.bf16.msra.mxu0 0
  %1140 = vmatpush.bf16.msra.mxu0 0
  %1141 = vmatpush.bf16.msra.mxu0 0
  %1142 = vmatpush.bf16.msra.mxu0 %v652
  %1143 = vmatpush.bf16.msra.mxu0 %v437
  %1144 = vmatmul.bf16.gmra.mxu0 %v552
  %v1145 = vpop.f32.mrf.mxu0
  %v1146 = vadd.f32 0.0, %v1145
  %v1147 = vpop.f32.mrf.mxu0
  %v1148 = vadd.f32 0.0, %v1147
  %1149 = vdwg.mxu0
  %1150 = vmatpush.bf16.msra.mxu0 0
  %1151 = vmatpush.bf16.msra.mxu0 0
  %1152 = vmatpush.bf16.msra.mxu0 0
  %1153 = vmatpush.bf16.msra.mxu0 0
  %1154 = vmatpush.bf16.msra.mxu0 0
  %1155 = vmatpush.bf16.msra.mxu0 0
  %1156 = vmatpush.bf16.msra.mxu0 %v655
  %1157 = vmatpush.bf16.msra.mxu0 %v438
  %1158 = vmatmul.bf16.gmra.mxu0 %v552
  %v1159 = vpop.f32.mrf.mxu0
  %v1160 = vadd.f32 0.0, %v1159
  %v1161 = vpop.f32.mrf.mxu0
  %v1162 = vadd.f32 0.0, %v1161
  %1163 = vdwg.mxu0
  %1164 = vmatpush.bf16.msra.mxu0 0
  %1165 = vmatpush.bf16.msra.mxu0 0
  %1166 = vmatpush.bf16.msra.mxu0 0
  %1167 = vmatpush.bf16.msra.mxu0 0
  %1168 = vmatpush.bf16.msra.mxu0 0
  %1169 = vmatpush.bf16.msra.mxu0 0
  %1170 = vmatpush.bf16.msra.mxu0 %v658
  %1171 = vmatpush.bf16.msra.mxu0 %v439
  %1172 = vmatmul.bf16.gmra.mxu0 %v552
  %v1173 = vpop.f32.mrf.mxu0
  %v1174 = vadd.f32 0.0, %v1173
  %v1175 = vpop.f32.mrf.mxu0
  %v1176 = vadd.f32 0.0, %v1175
  %1177 = vdwg.mxu0
  %1178 = vmatpush.bf16.msra.mxu0 0
  %1179 = vmatpush.bf16.msra.mxu0 0
  %1180 = vmatpush.bf16.msra.mxu0 0
  %1181 = vmatpush.bf16.msra.mxu0 0
  %1182 = vmatpush.bf16.msra.mxu0 0
  %1183 = vmatpush.bf16.msra.mxu0 0
  %1184 = vmatpush.bf16.msra.mxu0 %v661
  %1185 = vmatpush.bf16.msra.mxu0 %v440
  %1186 = vmatmul.bf16.gmra.mxu0 %v552
  %v1187 = vpop.f32.mrf.mxu0
  %v1188 = vadd.f32 0.0, %v1187
  %v1189 = vpop.f32.mrf.mxu0
  %v1190 = vadd.f32 0.0, %v1189
  %1191 = vdwg.mxu0
  %1192 = vmatpush.bf16.msra.mxu0 0
  %1193 = vmatpush.bf16.msra.mxu0 0
  %1194 = vmatpush.bf16.msra.mxu0 0
  %1195 = vmatpush.bf16.msra.mxu0 0
  %1196 = vmatpush.bf16.msra.mxu0 0
  %1197 = vmatpush.bf16.msra.mxu0 0
  %1198 = vmatpush.bf16.msra.mxu0 %v664
  %1199 = vmatpush.bf16.msra.mxu0 %v441
  %1200 = vmatmul.bf16.gmra.mxu0 %v552
  %v1201 = vpop.f32.mrf.mxu0
  %v1202 = vadd.f32 0.0, %v1201
  %v1203 = vpop.f32.mrf.mxu0
  %v1204 = vadd.f32 0.0, %v1203
  %1205 = vdwg.mxu0
  %1206 = vmatpush.bf16.msra.mxu0 0
  %1207 = vmatpush.bf16.msra.mxu0 0
  %1208 = vmatpush.bf16.msra.mxu0 0
  %1209 = vmatpush.bf16.msra.mxu0 0
  %1210 = vmatpush.bf16.msra.mxu0 0
  %1211 = vmatpush.bf16.msra.mxu0 0
  %1212 = vmatpush.bf16.msra.mxu0 %v667
  %1213 = vmatpush.bf16.msra.mxu0 %v442
  %1214 = vmatmul.bf16.gmra.mxu0 %v552
  %v1215 = vpop.f32.mrf.mxu0
  %v1216 = vadd.f32 0.0, %v1215
  %v1217 = vpop.f32.mrf.mxu0
  %v1218 = vadd.f32 0.0, %v1217
  %1219 = vdwg.mxu0
  %1220 = vmatpush.bf16.msra.mxu0 0
  %1221 = vmatpush.bf16.msra.mxu0 0
  %1222 = vmatpush.bf16.msra.mxu0 0
  %1223 = vmatpush.bf16.msra.mxu0 0
  %1224 = vmatpush.bf16.msra.mxu0 0
  %1225 = vmatpush.bf16.msra.mxu0 0
  %1226 = vmatpush.bf16.msra.mxu0 %v670
  %1227 = vmatpush.bf16.msra.mxu0 %v443
  %1228 = vmatmul.bf16.gmra.mxu0 %v552
  %v1229 = vpop.f32.mrf.mxu0
  %v1230 = vadd.f32 0.0, %v1229
  %v1231 = vpop.f32.mrf.mxu0
  %v1232 = vadd.f32 0.0, %v1231
  %1233 = vdwg.mxu0
  %1234 = vmatpush.bf16.msra.mxu0 0
  %1235 = vmatpush.bf16.msra.mxu0 0
  %1236 = vmatpush.bf16.msra.mxu0 0
  %1237 = vmatpush.bf16.msra.mxu0 0
  %1238 = vmatpush.bf16.msra.mxu0 0
  %1239 = vmatpush.bf16.msra.mxu0 0
  %1240 = vmatpush.bf16.msra.mxu0 %v673
  %1241 = vmatpush.bf16.msra.mxu0 %v444
  %1242 = vmatmul.bf16.gmra.mxu0 %v552
  %v1243 = vpop.f32.mrf.mxu0
  %v1244 = vadd.f32 0.0, %v1243
  %v1245 = vpop.f32.mrf.mxu0
  %v1246 = vadd.f32 0.0, %v1245
  %1247 = vdwg.mxu0
  %1248 = vmatpush.bf16.msra.mxu0 0
  %1249 = vmatpush.bf16.msra.mxu0 0
  %1250 = vmatpush.bf16.msra.mxu0 0
  %1251 = vmatpush.bf16.msra.mxu0 0
  %1252 = vmatpush.bf16.msra.mxu0 0
  %1253 = vmatpush.bf16.msra.mxu0 0
  %1254 = vmatpush.bf16.msra.mxu0 %v676
  %1255 = vmatpush.bf16.msra.mxu0 %v445
  %1256 = vmatmul.bf16.gmra.mxu0 %v552
  %v1257 = vpop.f32.mrf.mxu0
  %v1258 = vadd.f32 0.0, %v1257
  %v1259 = vpop.f32.mrf.mxu0
  %v1260 = vadd.f32 0.0, %v1259
  %1261 = vdwg.mxu0
  %1262 = vmatpush.bf16.msra.mxu0 0
  %1263 = vmatpush.bf16.msra.mxu0 0
  %1264 = vmatpush.bf16.msra.mxu0 0
  %1265 = vmatpush.bf16.msra.mxu0 0
  %1266 = vmatpush.bf16.msra.mxu0 0
  %1267 = vmatpush.bf16.msra.mxu0 0
  %1268 = vmatpush.bf16.msra.mxu0 %v679
  %1269 = vmatpush.bf16.msra.mxu0 %v446
  %1270 = vmatmul.bf16.gmra.mxu0 %v552
  %v1271 = vpop.f32.mrf.mxu0
  %v1272 = vadd.f32 0.0, %v1271
  %v1273 = vpop.f32.mrf.mxu0
  %v1274 = vadd.f32 0.0, %v1273
  %1275 = vdwg.mxu0
  %1276 = vmatpush.bf16.msra.mxu0 0
  %1277 = vmatpush.bf16.msra.mxu0 0
  %1278 = vmatpush.bf16.msra.mxu0 0
  %1279 = vmatpush.bf16.msra.mxu0 0
  %1280 = vmatpush.bf16.msra.mxu0 0
  %1281 = vmatpush.bf16.msra.mxu0 0
  %1282 = vmatpush.bf16.msra.mxu0 %v682
  %1283 = vmatpush.bf16.msra.mxu0 %v447
  %1284 = vmatmul.bf16.gmra.mxu0 %v552
  %v1285 = vpop.f32.mrf.mxu0
  %v1286 = vadd.f32 0.0, %v1285
  %v1287 = vpop.f32.mrf.mxu0
  %v1288 = vadd.f32 0.0, %v1287
  %1289 = vdwg.mxu0
  %1290 = vmatpush.bf16.msra.mxu0 0
  %1291 = vmatpush.bf16.msra.mxu0 0
  %1292 = vmatpush.bf16.msra.mxu0 0
  %1293 = vmatpush.bf16.msra.mxu0 0
  %1294 = vmatpush.bf16.msra.mxu0 0
  %1295 = vmatpush.bf16.msra.mxu0 0
  %1296 = vmatpush.bf16.msra.mxu0 %v685
  %1297 = vmatpush.bf16.msra.mxu0 %v448
  %1298 = vmatmul.bf16.gmra.mxu0 %v552
  %v1299 = vpop.f32.mrf.mxu0
  %v1300 = vadd.f32 0.0, %v1299
  %v1301 = vpop.f32.mrf.mxu0
  %v1302 = vadd.f32 0.0, %v1301
  %1303 = vdwg.mxu0
  %1304 = vmatpush.bf16.msra.mxu0 0
  %1305 = vmatpush.bf16.msra.mxu0 0
  %1306 = vmatpush.bf16.msra.mxu0 0
  %1307 = vmatpush.bf16.msra.mxu0 0
  %1308 = vmatpush.bf16.msra.mxu0 0
  %1309 = vmatpush.bf16.msra.mxu0 0
  %1310 = vmatpush.bf16.msra.mxu0 %v688
  %1311 = vmatpush.bf16.msra.mxu0 %v449
  %1312 = vmatmul.bf16.gmra.mxu0 %v552
  %v1313 = vpop.f32.mrf.mxu0
  %v1314 = vadd.f32 0.0, %v1313
  %v1315 = vpop.f32.mrf.mxu0
  %v1316 = vadd.f32 0.0, %v1315
  %1317 = vdwg.mxu0
  %1318 = vmatpush.bf16.msra.mxu0 0
  %1319 = vmatpush.bf16.msra.mxu0 0
  %1320 = vmatpush.bf16.msra.mxu0 0
  %1321 = vmatpush.bf16.msra.mxu0 0
  %1322 = vmatpush.bf16.msra.mxu0 0
  %1323 = vmatpush.bf16.msra.mxu0 0
  %1324 = vmatpush.bf16.msra.mxu0 %v691
  %1325 = vmatpush.bf16.msra.mxu0 %v450
  %1326 = vmatmul.bf16.gmra.mxu0 %v552
  %v1327 = vpop.f32.mrf.mxu0
  %v1328 = vadd.f32 0.0, %v1327
  %v1329 = vpop.f32.mrf.mxu0
  %v1330 = vadd.f32 0.0, %v1329
  %1331 = vdwg.mxu0
  %1332 = vmatpush.bf16.msra.mxu0 0
  %1333 = vmatpush.bf16.msra.mxu0 0
  %1334 = vmatpush.bf16.msra.mxu0 0
  %1335 = vmatpush.bf16.msra.mxu0 0
  %1336 = vmatpush.bf16.msra.mxu0 0
  %1337 = vmatpush.bf16.msra.mxu0 0
  %1338 = vmatpush.bf16.msra.mxu0 %v694
  %1339 = vmatpush.bf16.msra.mxu0 %v451
  %1340 = vmatmul.bf16.gmra.mxu0 %v552
  %v1341 = vpop.f32.mrf.mxu0
  %v1342 = vadd.f32 0.0, %v1341
  %v1343 = vpop.f32.mrf.mxu0
  %v1344 = vadd.f32 0.0, %v1343
  %1345 = vdwg.mxu0
  %1346 = vmatpush.bf16.msra.mxu0 0
  %1347 = vmatpush.bf16.msra.mxu0 0
  %1348 = vmatpush.bf16.msra.mxu0 0
  %1349 = vmatpush.bf16.msra.mxu0 0
  %1350 = vmatpush.bf16.msra.mxu0 0
  %1351 = vmatpush.bf16.msra.mxu0 0
  %1352 = vmatpush.bf16.msra.mxu0 %v697
  %1353 = vmatpush.bf16.msra.mxu0 %v452
  %1354 = vmatmul.bf16.gmra.mxu0 %v552
  %v1355 = vpop.f32.mrf.mxu0
  %v1356 = vadd.f32 0.0, %v1355
  %v1357 = vpop.f32.mrf.mxu0
  %v1358 = vadd.f32 0.0, %v1357
  %1359 = vdwg.mxu0
  %1360 = vmatpush.bf16.msra.mxu0 0
  %1361 = vmatpush.bf16.msra.mxu0 0
  %1362 = vmatpush.bf16.msra.mxu0 0
  %1363 = vmatpush.bf16.msra.mxu0 0
  %1364 = vmatpush.bf16.msra.mxu0 0
  %1365 = vmatpush.bf16.msra.mxu0 0
  %1366 = vmatpush.bf16.msra.mxu0 %v700
  %1367 = vmatpush.bf16.msra.mxu0 %v453
  %1368 = vmatmul.bf16.gmra.mxu0 %v552
  %v1369 = vpop.f32.mrf.mxu0
  %v1370 = vadd.f32 0.0, %v1369
  %v1371 = vpop.f32.mrf.mxu0
  %v1372 = vadd.f32 0.0, %v1371
  %1373 = vdwg.mxu0
  %s1374 = scalar_lea.vmem %s0, 768
  %v1375 = vld [vmem:[%s1374] sm:$0xff]
  %v1376 = vld [vmem:[%s1374 + $0x8] sm:$0xff]
  %v1377 = vld [vmem:[%s1374 + $0x10] sm:$0xff]
  %v1378 = vld [vmem:[%s1374 + $0x18] sm:$0xff]
  %v1379 = vld [vmem:[%s1374 + $0x20] sm:$0xff]
  %v1380 = vld [vmem:[%s1374 + $0x28] sm:$0xff]
  %v1381 = vld [vmem:[%s1374 + $0x30] sm:$0xff]
  %v1382 = vld [vmem:[%s1374 + $0x38] sm:$0xff]
  %v1383 = vld [vmem:[%s1374 + $0x40] sm:$0xff]
  %v1384 = vld [vmem:[%s1374 + $0x48] sm:$0xff]
  %v1385 = vld [vmem:[%s1374 + $0x50] sm:$0xff]
  %v1386 = vld [vmem:[%s1374 + $0x58] sm:$0xff]
  %v1387 = vld [vmem:[%s1374 + $0x60] sm:$0xff]
  %v1388 = vld [vmem:[%s1374 + $0x68] sm:$0xff]
  %v1389 = vld [vmem:[%s1374 + $0x70] sm:$0xff]
  %v1390 = vld [vmem:[%s1374 + $0x78] sm:$0xff]
  %v1391 = vld [vmem:[%s1374 + $0x80] sm:$0xff]
  %v1392 = vld [vmem:[%s1374 + $0x88] sm:$0xff]
  %v1393 = vld [vmem:[%s1374 + $0x90] sm:$0xff]
  %v1394 = vld [vmem:[%s1374 + $0x98] sm:$0xff]
  %v1395 = vld [vmem:[%s1374 + $0xa0] sm:$0xff]
  %v1396 = vld [vmem:[%s1374 + $0xa8] sm:$0xff]
  %v1397 = vld [vmem:[%s1374 + $0xb0] sm:$0xff]
  %v1398 = vld [vmem:[%s1374 + $0xb8] sm:$0xff]
  %v1399 = vld [vmem:[%s1374 + $0xc0] sm:$0xff]
  %v1400 = vld [vmem:[%s1374 + $0xc8] sm:$0xff]
  %v1401 = vld [vmem:[%s1374 + $0xd0] sm:$0xff]
  %v1402 = vld [vmem:[%s1374 + $0xd8] sm:$0xff]
  %v1403 = vld [vmem:[%s1374 + $0xe0] sm:$0xff]
  %v1404 = vld [vmem:[%s1374 + $0xe8] sm:$0xff]
  %v1405 = vld [vmem:[%s1374 + $0xf0] sm:$0xff]
  %v1406 = vld [vmem:[%s1374 + $0xf8] sm:$0xff]
  %v1407 = vld [vmem:[%s1374 + $0x100] sm:$0xff]
  %v1408 = vld [vmem:[%s1374 + $0x108] sm:$0xff]
  %v1409 = vld [vmem:[%s1374 + $0x110] sm:$0xff]
  %v1410 = vld [vmem:[%s1374 + $0x118] sm:$0xff]
  %v1411 = vld [vmem:[%s1374 + $0x120] sm:$0xff]
  %v1412 = vld [vmem:[%s1374 + $0x128] sm:$0xff]
  %v1413 = vld [vmem:[%s1374 + $0x130] sm:$0xff]
  %v1414 = vld [vmem:[%s1374 + $0x138] sm:$0xff]
  %v1415 = vld [vmem:[%s1374 + $0x140] sm:$0xff]
  %v1416 = vld [vmem:[%s1374 + $0x148] sm:$0xff]
  %v1417 = vld [vmem:[%s1374 + $0x150] sm:$0xff]
  %v1418 = vld [vmem:[%s1374 + $0x158] sm:$0xff]
  %v1419 = vld [vmem:[%s1374 + $0x160] sm:$0xff]
  %v1420 = vld [vmem:[%s1374 + $0x168] sm:$0xff]
  %v1421 = vld [vmem:[%s1374 + $0x170] sm:$0xff]
  %v1422 = vld [vmem:[%s1374 + $0x178] sm:$0xff]
  %v1423 = vld [vmem:[%s1374 + $0x180] sm:$0xff]
  %v1424 = vld [vmem:[%s1374 + $0x188] sm:$0xff]
  %v1425 = vld [vmem:[%s1374 + $0x190] sm:$0xff]
  %v1426 = vld [vmem:[%s1374 + $0x198] sm:$0xff]
  %v1427 = vld [vmem:[%s1374 + $0x1a0] sm:$0xff]
  %v1428 = vld [vmem:[%s1374 + $0x1a8] sm:$0xff]
  %v1429 = vld [vmem:[%s1374 + $0x1b0] sm:$0xff]
  %v1430 = vld [vmem:[%s1374 + $0x1b8] sm:$0xff]
  %v1431 = vld [vmem:[%s1374 + $0x1c0] sm:$0xff]
  %v1432 = vld [vmem:[%s1374 + $0x1c8] sm:$0xff]
  %v1433 = vld [vmem:[%s1374 + $0x1d0] sm:$0xff]
  %v1434 = vld [vmem:[%s1374 + $0x1d8] sm:$0xff]
  %v1435 = vld [vmem:[%s1374 + $0x1e0] sm:$0xff]
  %v1436 = vld [vmem:[%s1374 + $0x1e8] sm:$0xff]
  %v1437 = vld [vmem:[%s1374 + $0x1f0] sm:$0xff]
  %v1438 = vld [vmem:[%s1374 + $0x1f8] sm:$0xff]
  %v1439 = vld [vmem:[%s1374 + $0x200] sm:$0xff]
  %v1440 = vld [vmem:[%s1374 + $0x208] sm:$0xff]
  %v1441 = vld [vmem:[%s1374 + $0x210] sm:$0xff]
  %v1442 = vld [vmem:[%s1374 + $0x218] sm:$0xff]
  %v1443 = vld [vmem:[%s1374 + $0x220] sm:$0xff]
  %v1444 = vld [vmem:[%s1374 + $0x228] sm:$0xff]
  %v1445 = vld [vmem:[%s1374 + $0x230] sm:$0xff]
  %v1446 = vld [vmem:[%s1374 + $0x238] sm:$0xff]
  %v1447 = vld [vmem:[%s1374 + $0x240] sm:$0x11]
  %v1448 = vld [vmem:[%s1374 + $0x248] sm:$0x11]
  %v1449 = vld [vmem:[%s1374 + $0x250] sm:$0x11]
  %v1450 = vld [vmem:[%s1374 + $0x258] sm:$0x11]
  %v1451 = vld [vmem:[%s1374 + $0x260] sm:$0x11]
  %v1452 = vld [vmem:[%s1374 + $0x268] sm:$0x11]
  %v1453 = vld [vmem:[%s1374 + $0x270] sm:$0x11]
  %v1454 = vld [vmem:[%s1374 + $0x278] sm:$0x11]
  %v1455 = vld [vmem:[%s1374 + $0x280] sm:$0x11]
  %v1456 = vld [vmem:[%s1374 + $0x288] sm:$0x11]
  %v1457 = vld [vmem:[%s1374 + $0x290] sm:$0x11]
  %v1458 = vld [vmem:[%s1374 + $0x298] sm:$0x11]
  %v1459 = vld [vmem:[%s1374 + $0x2a0] sm:$0x11]
  %v1460 = vld [vmem:[%s1374 + $0x2a8] sm:$0x11]
  %v1461 = vld [vmem:[%s1374 + $0x2b0] sm:$0x11]
  %v1462 = vld [vmem:[%s1374 + $0x2b8] sm:$0x11]
  %v1463 = vld [vmem:[%s1374 + $0x2c0] sm:$0x11]
  %v1464 = vld [vmem:[%s1374 + $0x2c8] sm:$0x11]
  %v1465 = vld [vmem:[%s1374 + $0x2d0] sm:$0x11]
  %v1466 = vld [vmem:[%s1374 + $0x2d8] sm:$0x11]
  %v1467 = vld [vmem:[%s1374 + $0x2e0] sm:$0x11]
  %v1468 = vld [vmem:[%s1374 + $0x2e8] sm:$0x11]
  %v1469 = vld [vmem:[%s1374 + $0x2f0] sm:$0x11]
  %v1470 = vld [vmem:[%s1374 + $0x2f8] sm:$0x11]
  %v1567 = vunpack.c.l.b16 %v1375
  %v1568 = vunpack.c.h.b16 %v1375
  %v1569 = vunpack.c.l.b16 %v1376
  %v1570 = vunpack.c.h.b16 %v1376
  %v1571 = vunpack.c.l.b16 %v1377
  %v1572 = vunpack.c.h.b16 %v1377
  %v1573 = vunpack.c.l.b16 %v1378
  %v1574 = vunpack.c.h.b16 %v1378
  %v1575 = vunpack.c.l.b16 %v1379
  %v1576 = vunpack.c.h.b16 %v1379
  %v1577 = vunpack.c.l.b16 %v1380
  %v1578 = vunpack.c.h.b16 %v1380
  %v1579 = vunpack.c.l.b16 %v1381
  %v1580 = vunpack.c.h.b16 %v1381
  %v1581 = vunpack.c.l.b16 %v1382
  %v1582 = vunpack.c.h.b16 %v1382
  %v1583 = vunpack.c.l.b16 %v1383
  %v1584 = vunpack.c.h.b16 %v1383
  %v1585 = vunpack.c.l.b16 %v1384
  %v1586 = vunpack.c.h.b16 %v1384
  %v1587 = vunpack.c.l.b16 %v1385
  %v1588 = vunpack.c.h.b16 %v1385
  %v1589 = vunpack.c.l.b16 %v1386
  %v1590 = vunpack.c.h.b16 %v1386
  %v1591 = vunpack.c.l.b16 %v1387
  %v1592 = vunpack.c.h.b16 %v1387
  %v1593 = vunpack.c.l.b16 %v1388
  %v1594 = vunpack.c.h.b16 %v1388
  %v1595 = vunpack.c.l.b16 %v1389
  %v1596 = vunpack.c.h.b16 %v1389
  %v1597 = vunpack.c.l.b16 %v1390
  %v1598 = vunpack.c.h.b16 %v1390
  %v1599 = vunpack.c.l.b16 %v1391
  %v1600 = vunpack.c.h.b16 %v1391
  %v1601 = vunpack.c.l.b16 %v1392
  %v1602 = vunpack.c.h.b16 %v1392
  %v1603 = vunpack.c.l.b16 %v1393
  %v1604 = vunpack.c.h.b16 %v1393
  %v1605 = vunpack.c.l.b16 %v1394
  %v1606 = vunpack.c.h.b16 %v1394
  %v1607 = vunpack.c.l.b16 %v1395
  %v1608 = vunpack.c.h.b16 %v1395
  %v1609 = vunpack.c.l.b16 %v1396
  %v1610 = vunpack.c.h.b16 %v1396
  %v1611 = vunpack.c.l.b16 %v1397
  %v1612 = vunpack.c.h.b16 %v1397
  %v1613 = vunpack.c.l.b16 %v1398
  %v1614 = vunpack.c.h.b16 %v1398
  %v1615 = vunpack.c.l.b16 %v1399
  %v1616 = vunpack.c.h.b16 %v1399
  %v1617 = vunpack.c.l.b16 %v1400
  %v1618 = vunpack.c.h.b16 %v1400
  %v1619 = vunpack.c.l.b16 %v1401
  %v1620 = vunpack.c.h.b16 %v1401
  %v1621 = vunpack.c.l.b16 %v1402
  %v1622 = vunpack.c.h.b16 %v1402
  %v1623 = vunpack.c.l.b16 %v1403
  %v1624 = vunpack.c.h.b16 %v1403
  %v1625 = vunpack.c.l.b16 %v1404
  %v1626 = vunpack.c.h.b16 %v1404
  %v1627 = vunpack.c.l.b16 %v1405
  %v1628 = vunpack.c.h.b16 %v1405
  %v1629 = vunpack.c.l.b16 %v1406
  %v1630 = vunpack.c.h.b16 %v1406
  %v1631 = vunpack.c.l.b16 %v1407
  %v1632 = vunpack.c.h.b16 %v1407
  %v1633 = vunpack.c.l.b16 %v1408
  %v1634 = vunpack.c.h.b16 %v1408
  %v1635 = vunpack.c.l.b16 %v1409
  %v1636 = vunpack.c.h.b16 %v1409
  %v1637 = vunpack.c.l.b16 %v1410
  %v1638 = vunpack.c.h.b16 %v1410
  %v1639 = vunpack.c.l.b16 %v1411
  %v1640 = vunpack.c.h.b16 %v1411
  %v1641 = vunpack.c.l.b16 %v1412
  %v1642 = vunpack.c.h.b16 %v1412
  %v1643 = vunpack.c.l.b16 %v1413
  %v1644 = vunpack.c.h.b16 %v1413
  %v1645 = vunpack.c.l.b16 %v1414
  %v1646 = vunpack.c.h.b16 %v1414
  %v1647 = vunpack.c.l.b16 %v1415
  %v1648 = vunpack.c.h.b16 %v1415
  %v1649 = vunpack.c.l.b16 %v1416
  %v1650 = vunpack.c.h.b16 %v1416
  %v1651 = vunpack.c.l.b16 %v1417
  %v1652 = vunpack.c.h.b16 %v1417
  %v1653 = vunpack.c.l.b16 %v1418
  %v1654 = vunpack.c.h.b16 %v1418
  %v1655 = vunpack.c.l.b16 %v1419
  %v1656 = vunpack.c.h.b16 %v1419
  %v1657 = vunpack.c.l.b16 %v1420
  %v1658 = vunpack.c.h.b16 %v1420
  %v1659 = vunpack.c.l.b16 %v1421
  %v1660 = vunpack.c.h.b16 %v1421
  %v1661 = vunpack.c.l.b16 %v1422
  %v1662 = vunpack.c.h.b16 %v1422
  %v1663 = vunpack.c.l.b16 %v1423
  %v1664 = vunpack.c.h.b16 %v1423
  %v1665 = vunpack.c.l.b16 %v1424
  %v1666 = vunpack.c.h.b16 %v1424
  %v1667 = vunpack.c.l.b16 %v1425
  %v1668 = vunpack.c.h.b16 %v1425
  %v1669 = vunpack.c.l.b16 %v1426
  %v1670 = vunpack.c.h.b16 %v1426
  %v1671 = vunpack.c.l.b16 %v1427
  %v1672 = vunpack.c.h.b16 %v1427
  %v1673 = vunpack.c.l.b16 %v1428
  %v1674 = vunpack.c.h.b16 %v1428
  %v1675 = vunpack.c.l.b16 %v1429
  %v1676 = vunpack.c.h.b16 %v1429
  %v1677 = vunpack.c.l.b16 %v1430
  %v1678 = vunpack.c.h.b16 %v1430
  %v1679 = vunpack.c.l.b16 %v1431
  %v1680 = vunpack.c.h.b16 %v1431
  %v1681 = vunpack.c.l.b16 %v1432
  %v1682 = vunpack.c.h.b16 %v1432
  %v1683 = vunpack.c.l.b16 %v1433
  %v1684 = vunpack.c.h.b16 %v1433
  %v1685 = vunpack.c.l.b16 %v1434
  %v1686 = vunpack.c.h.b16 %v1434
  %v1687 = vunpack.c.l.b16 %v1435
  %v1688 = vunpack.c.h.b16 %v1435
  %v1689 = vunpack.c.l.b16 %v1436
  %v1690 = vunpack.c.h.b16 %v1436
  %v1691 = vunpack.c.l.b16 %v1437
  %v1692 = vunpack.c.h.b16 %v1437
  %v1693 = vunpack.c.l.b16 %v1438
  %v1694 = vunpack.c.h.b16 %v1438
  %v1695 = vunpack.c.l.b16 %v1439
  %v1696 = vunpack.c.h.b16 %v1439
  %v1697 = vunpack.c.l.b16 %v1440
  %v1698 = vunpack.c.h.b16 %v1440
  %v1699 = vunpack.c.l.b16 %v1441
  %v1700 = vunpack.c.h.b16 %v1441
  %v1701 = vunpack.c.l.b16 %v1442
  %v1702 = vunpack.c.h.b16 %v1442
  %v1703 = vunpack.c.l.b16 %v1443
  %v1704 = vunpack.c.h.b16 %v1443
  %v1705 = vunpack.c.l.b16 %v1444
  %v1706 = vunpack.c.h.b16 %v1444
  %v1707 = vunpack.c.l.b16 %v1445
  %v1708 = vunpack.c.h.b16 %v1445
  %v1709 = vunpack.c.l.b16 %v1446
  %v1710 = vunpack.c.h.b16 %v1446
  %v1711 = vunpack.c.l.b16 %v1447
  %v1712 = vunpack.c.h.b16 %v1447
  %v1713 = vunpack.c.l.b16 %v1448
  %v1714 = vunpack.c.h.b16 %v1448
  %v1715 = vunpack.c.l.b16 %v1449
  %v1716 = vunpack.c.h.b16 %v1449
  %v1717 = vunpack.c.l.b16 %v1450
  %v1718 = vunpack.c.h.b16 %v1450
  %v1719 = vunpack.c.l.b16 %v1451
  %v1720 = vunpack.c.h.b16 %v1451
  %v1721 = vunpack.c.l.b16 %v1452
  %v1722 = vunpack.c.h.b16 %v1452
  %v1723 = vunpack.c.l.b16 %v1453
  %v1724 = vunpack.c.h.b16 %v1453
  %v1725 = vunpack.c.l.b16 %v1454
  %v1726 = vunpack.c.h.b16 %v1454
  %v1727 = vunpack.c.l.b16 %v1455
  %v1728 = vunpack.c.h.b16 %v1455
  %v1729 = vunpack.c.l.b16 %v1456
  %v1730 = vunpack.c.h.b16 %v1456
  %v1731 = vunpack.c.l.b16 %v1457
  %v1732 = vunpack.c.h.b16 %v1457
  %v1733 = vunpack.c.l.b16 %v1458
  %v1734 = vunpack.c.h.b16 %v1458
  %v1735 = vunpack.c.l.b16 %v1459
  %v1736 = vunpack.c.h.b16 %v1459
  %v1737 = vunpack.c.l.b16 %v1460
  %v1738 = vunpack.c.h.b16 %v1460
  %v1739 = vunpack.c.l.b16 %v1461
  %v1740 = vunpack.c.h.b16 %v1461
  %v1741 = vunpack.c.l.b16 %v1462
  %v1742 = vunpack.c.h.b16 %v1462
  %v1743 = vunpack.c.l.b16 %v1463
  %v1744 = vunpack.c.h.b16 %v1463
  %v1745 = vunpack.c.l.b16 %v1464
  %v1746 = vunpack.c.h.b16 %v1464
  %v1747 = vunpack.c.l.b16 %v1465
  %v1748 = vunpack.c.h.b16 %v1465
  %v1749 = vunpack.c.l.b16 %v1466
  %v1750 = vunpack.c.h.b16 %v1466
  %v1751 = vunpack.c.l.b16 %v1467
  %v1752 = vunpack.c.h.b16 %v1467
  %v1753 = vunpack.c.l.b16 %v1468
  %v1754 = vunpack.c.h.b16 %v1468
  %v1755 = vunpack.c.l.b16 %v1469
  %v1756 = vunpack.c.h.b16 %v1469
  %v1757 = vunpack.c.l.b16 %v1470
  %v1758 = vunpack.c.h.b16 %v1470
  %v1759 = vpack.c.b16 %v1615, %v1567
  %v1760 = vpack.c.b16 %v1616, %v1568
  %v1761 = vpack.c.b16 %v1617, %v1569
  %v1762 = vpack.c.b16 %v1618, %v1570
  %v1763 = vpack.c.b16 %v1619, %v1571
  %v1764 = vpack.c.b16 %v1620, %v1572
  %v1765 = vpack.c.b16 %v1621, %v1573
  %v1766 = vpack.c.b16 %v1622, %v1574
  %v1767 = vpack.c.b16 %v1623, %v1575
  %v1768 = vpack.c.b16 %v1624, %v1576
  %v1769 = vpack.c.b16 %v1625, %v1577
  %v1770 = vpack.c.b16 %v1626, %v1578
  %v1771 = vpack.c.b16 %v1627, %v1579
  %v1772 = vpack.c.b16 %v1628, %v1580
  %v1773 = vpack.c.b16 %v1629, %v1581
  %v1774 = vpack.c.b16 %v1630, %v1582
  %v1775 = vpack.c.b16 %v1631, %v1583
  %v1776 = vpack.c.b16 %v1632, %v1584
  %v1777 = vpack.c.b16 %v1633, %v1585
  %v1778 = vpack.c.b16 %v1634, %v1586
  %v1779 = vpack.c.b16 %v1635, %v1587
  %v1780 = vpack.c.b16 %v1636, %v1588
  %v1781 = vpack.c.b16 %v1637, %v1589
  %v1782 = vpack.c.b16 %v1638, %v1590
  %v1783 = vpack.c.b16 %v1639, %v1591
  %v1784 = vpack.c.b16 %v1640, %v1592
  %v1785 = vpack.c.b16 %v1641, %v1593
  %v1786 = vpack.c.b16 %v1642, %v1594
  %v1787 = vpack.c.b16 %v1643, %v1595
  %v1788 = vpack.c.b16 %v1644, %v1596
  %v1789 = vpack.c.b16 %v1645, %v1597
  %v1790 = vpack.c.b16 %v1646, %v1598
  %v1791 = vpack.c.b16 %v1647, %v1599
  %v1792 = vpack.c.b16 %v1648, %v1600
  %v1793 = vpack.c.b16 %v1649, %v1601
  %v1794 = vpack.c.b16 %v1650, %v1602
  %v1795 = vpack.c.b16 %v1651, %v1603
  %v1796 = vpack.c.b16 %v1652, %v1604
  %v1797 = vpack.c.b16 %v1653, %v1605
  %v1798 = vpack.c.b16 %v1654, %v1606
  %v1799 = vpack.c.b16 %v1655, %v1607
  %v1800 = vpack.c.b16 %v1656, %v1608
  %v1801 = vpack.c.b16 %v1657, %v1609
  %v1802 = vpack.c.b16 %v1658, %v1610
  %v1803 = vpack.c.b16 %v1659, %v1611
  %v1804 = vpack.c.b16 %v1660, %v1612
  %v1805 = vpack.c.b16 %v1661, %v1613
  %v1806 = vpack.c.b16 %v1662, %v1614
  %v1807 = vpack.c.b16 %v1711, %v1663
  %v1808 = vpack.c.b16 %v1712, %v1664
  %v1809 = vpack.c.b16 %v1713, %v1665
  %v1810 = vpack.c.b16 %v1714, %v1666
  %v1811 = vpack.c.b16 %v1715, %v1667
  %v1812 = vpack.c.b16 %v1716, %v1668
  %v1813 = vpack.c.b16 %v1717, %v1669
  %v1814 = vpack.c.b16 %v1718, %v1670
  %v1815 = vpack.c.b16 %v1719, %v1671
  %v1816 = vpack.c.b16 %v1720, %v1672
  %v1817 = vpack.c.b16 %v1721, %v1673
  %v1818 = vpack.c.b16 %v1722, %v1674
  %v1819 = vpack.c.b16 %v1723, %v1675
  %v1820 = vpack.c.b16 %v1724, %v1676
  %v1821 = vpack.c.b16 %v1725, %v1677
  %v1822 = vpack.c.b16 %v1726, %v1678
  %v1823 = vpack.c.b16 %v1727, %v1679
  %v1824 = vpack.c.b16 %v1728, %v1680
  %v1825 = vpack.c.b16 %v1729, %v1681
  %v1826 = vpack.c.b16 %v1730, %v1682
  %v1827 = vpack.c.b16 %v1731, %v1683
  %v1828 = vpack.c.b16 %v1732, %v1684
  %v1829 = vpack.c.b16 %v1733, %v1685
  %v1830 = vpack.c.b16 %v1734, %v1686
  %v1831 = vpack.c.b16 %v1735, %v1687
  %v1832 = vpack.c.b16 %v1736, %v1688
  %v1833 = vpack.c.b16 %v1737, %v1689
  %v1834 = vpack.c.b16 %v1738, %v1690
  %v1835 = vpack.c.b16 %v1739, %v1691
  %v1836 = vpack.c.b16 %v1740, %v1692
  %v1837 = vpack.c.b16 %v1741, %v1693
  %v1838 = vpack.c.b16 %v1742, %v1694
  %v1839 = vpack.c.b16 %v1743, %v1695
  %v1840 = vpack.c.b16 %v1744, %v1696
  %v1841 = vpack.c.b16 %v1745, %v1697
  %v1842 = vpack.c.b16 %v1746, %v1698
  %v1843 = vpack.c.b16 %v1747, %v1699
  %v1844 = vpack.c.b16 %v1748, %v1700
  %v1845 = vpack.c.b16 %v1749, %v1701
  %v1846 = vpack.c.b16 %v1750, %v1702
  %v1847 = vpack.c.b16 %v1751, %v1703
  %v1848 = vpack.c.b16 %v1752, %v1704
  %v1849 = vpack.c.b16 %v1753, %v1705
  %v1850 = vpack.c.b16 %v1754, %v1706
  %v1851 = vpack.c.b16 %v1755, %v1707
  %v1852 = vpack.c.b16 %v1756, %v1708
  %v1853 = vpack.c.b16 %v1757, %v1709
  %v1854 = vpack.c.b16 %v1758, %v1710
  %v1904 = vand.u32 %v1807, %v557
  %v1907 = vand.u32 %v1808, %v557
  %v1910 = vand.u32 %v1809, %v557
  %v1913 = vand.u32 %v1810, %v557
  %v1916 = vand.u32 %v1811, %v557
  %v1919 = vand.u32 %v1812, %v557
  %v1922 = vand.u32 %v1813, %v557
  %v1925 = vand.u32 %v1814, %v557
  %v1928 = vand.u32 %v1815, %v557
  %v1931 = vand.u32 %v1816, %v557
  %v1934 = vand.u32 %v1817, %v557
  %v1937 = vand.u32 %v1818, %v557
  %v1940 = vand.u32 %v1819, %v557
  %v1943 = vand.u32 %v1820, %v557
  %v1946 = vand.u32 %v1821, %v557
  %v1949 = vand.u32 %v1822, %v557
  %v1952 = vand.u32 %v1823, %v557
  %v1955 = vand.u32 %v1824, %v557
  %v1958 = vand.u32 %v1825, %v557
  %v1961 = vand.u32 %v1826, %v557
  %v1964 = vand.u32 %v1827, %v557
  %v1967 = vand.u32 %v1828, %v557
  %v1970 = vand.u32 %v1829, %v557
  %v1973 = vand.u32 %v1830, %v557
  %v1976 = vand.u32 %v1831, %v557
  %v1979 = vand.u32 %v1832, %v557
  %v1982 = vand.u32 %v1833, %v557
  %v1985 = vand.u32 %v1834, %v557
  %v1988 = vand.u32 %v1835, %v557
  %v1991 = vand.u32 %v1836, %v557
  %v1994 = vand.u32 %v1837, %v557
  %v1997 = vand.u32 %v1838, %v557
  %v2000 = vand.u32 %v1839, %v557
  %v2003 = vand.u32 %v1840, %v557
  %v2006 = vand.u32 %v1841, %v557
  %v2009 = vand.u32 %v1842, %v557
  %v2012 = vand.u32 %v1843, %v557
  %v2015 = vand.u32 %v1844, %v557
  %v2018 = vand.u32 %v1845, %v557
  %v2021 = vand.u32 %v1846, %v557
  %v2024 = vand.u32 %v1847, %v557
  %v2027 = vand.u32 %v1848, %v557
  %v2030 = vand.u32 %v1849, %v557
  %v2033 = vand.u32 %v1850, %v557
  %v2036 = vand.u32 %v1851, %v557
  %v2039 = vand.u32 %v1852, %v557
  %v2042 = vand.u32 %v1853, %v557
  %v2045 = vand.u32 %v1854, %v557
  %2047 = vmatpush.bf16.msra.mxu0 0
  %2048 = vmatpush.bf16.msra.mxu0 0
  %2049 = vmatpush.bf16.msra.mxu0 0
  %2050 = vmatpush.bf16.msra.mxu0 0
  %2051 = vmatpush.bf16.msra.mxu0 0
  %2052 = vmatpush.bf16.msra.mxu0 0
  %2053 = vmatpush.bf16.msra.mxu0 %v1904
  %2054 = vmatpush.bf16.msra.mxu0 %v1759
  %2055 = vmatmul.bf16.gmra.mxu0 %v552
  %v2056 = vpop.f32.mrf.mxu0
  %v2057 = vadd.f32 0.0, %v2056
  %v2058 = vpop.f32.mrf.mxu0
  %v2059 = vadd.f32 0.0, %v2058
  %2060 = vdwg.mxu0
  %2061 = vmatpush.bf16.msra.mxu0 0
  %2062 = vmatpush.bf16.msra.mxu0 0
  %2063 = vmatpush.bf16.msra.mxu0 0
  %2064 = vmatpush.bf16.msra.mxu0 0
  %2065 = vmatpush.bf16.msra.mxu0 0
  %2066 = vmatpush.bf16.msra.mxu0 0
  %2067 = vmatpush.bf16.msra.mxu0 %v1907
  %2068 = vmatpush.bf16.msra.mxu0 %v1760
  %2069 = vmatmul.bf16.gmra.mxu0 %v552
  %v2070 = vpop.f32.mrf.mxu0
  %v2071 = vadd.f32 0.0, %v2070
  %v2072 = vpop.f32.mrf.mxu0
  %v2073 = vadd.f32 0.0, %v2072
  %2074 = vdwg.mxu0
  %2075 = vmatpush.bf16.msra.mxu0 0
  %2076 = vmatpush.bf16.msra.mxu0 0
  %2077 = vmatpush.bf16.msra.mxu0 0
  %2078 = vmatpush.bf16.msra.mxu0 0
  %2079 = vmatpush.bf16.msra.mxu0 0
  %2080 = vmatpush.bf16.msra.mxu0 0
  %2081 = vmatpush.bf16.msra.mxu0 %v1910
  %2082 = vmatpush.bf16.msra.mxu0 %v1761
  %2083 = vmatmul.bf16.gmra.mxu0 %v552
  %v2084 = vpop.f32.mrf.mxu0
  %v2085 = vadd.f32 0.0, %v2084
  %v2086 = vpop.f32.mrf.mxu0
  %v2087 = vadd.f32 0.0, %v2086
  %2088 = vdwg.mxu0
  %2089 = vmatpush.bf16.msra.mxu0 0
  %2090 = vmatpush.bf16.msra.mxu0 0
  %2091 = vmatpush.bf16.msra.mxu0 0
  %2092 = vmatpush.bf16.msra.mxu0 0
  %2093 = vmatpush.bf16.msra.mxu0 0
  %2094 = vmatpush.bf16.msra.mxu0 0
  %2095 = vmatpush.bf16.msra.mxu0 %v1913
  %2096 = vmatpush.bf16.msra.mxu0 %v1762
  %2097 = vmatmul.bf16.gmra.mxu0 %v552
  %v2098 = vpop.f32.mrf.mxu0
  %v2099 = vadd.f32 0.0, %v2098
  %v2100 = vpop.f32.mrf.mxu0
  %v2101 = vadd.f32 0.0, %v2100
  %2102 = vdwg.mxu0
  %2103 = vmatpush.bf16.msra.mxu0 0
  %2104 = vmatpush.bf16.msra.mxu0 0
  %2105 = vmatpush.bf16.msra.mxu0 0
  %2106 = vmatpush.bf16.msra.mxu0 0
  %2107 = vmatpush.bf16.msra.mxu0 0
  %2108 = vmatpush.bf16.msra.mxu0 0
  %2109 = vmatpush.bf16.msra.mxu0 %v1916
  %2110 = vmatpush.bf16.msra.mxu0 %v1763
  %2111 = vmatmul.bf16.gmra.mxu0 %v552
  %v2112 = vpop.f32.mrf.mxu0
  %v2113 = vadd.f32 0.0, %v2112
  %v2114 = vpop.f32.mrf.mxu0
  %v2115 = vadd.f32 0.0, %v2114
  %2116 = vdwg.mxu0
  %2117 = vmatpush.bf16.msra.mxu0 0
  %2118 = vmatpush.bf16.msra.mxu0 0
  %2119 = vmatpush.bf16.msra.mxu0 0
  %2120 = vmatpush.bf16.msra.mxu0 0
  %2121 = vmatpush.bf16.msra.mxu0 0
  %2122 = vmatpush.bf16.msra.mxu0 0
  %2123 = vmatpush.bf16.msra.mxu0 %v1919
  %2124 = vmatpush.bf16.msra.mxu0 %v1764
  %2125 = vmatmul.bf16.gmra.mxu0 %v552
  %v2126 = vpop.f32.mrf.mxu0
  %v2127 = vadd.f32 0.0, %v2126
  %v2128 = vpop.f32.mrf.mxu0
  %v2129 = vadd.f32 0.0, %v2128
  %2130 = vdwg.mxu0
  %2131 = vmatpush.bf16.msra.mxu0 0
  %2132 = vmatpush.bf16.msra.mxu0 0
  %2133 = vmatpush.bf16.msra.mxu0 0
  %2134 = vmatpush.bf16.msra.mxu0 0
  %2135 = vmatpush.bf16.msra.mxu0 0
  %2136 = vmatpush.bf16.msra.mxu0 0
  %2137 = vmatpush.bf16.msra.mxu0 %v1922
  %2138 = vmatpush.bf16.msra.mxu0 %v1765
  %2139 = vmatmul.bf16.gmra.mxu0 %v552
  %v2140 = vpop.f32.mrf.mxu0
  %v2141 = vadd.f32 0.0, %v2140
  %v2142 = vpop.f32.mrf.mxu0
  %v2143 = vadd.f32 0.0, %v2142
  %2144 = vdwg.mxu0
  %2145 = vmatpush.bf16.msra.mxu0 0
  %2146 = vmatpush.bf16.msra.mxu0 0
  %2147 = vmatpush.bf16.msra.mxu0 0
  %2148 = vmatpush.bf16.msra.mxu0 0
  %2149 = vmatpush.bf16.msra.mxu0 0
  %2150 = vmatpush.bf16.msra.mxu0 0
  %2151 = vmatpush.bf16.msra.mxu0 %v1925
  %2152 = vmatpush.bf16.msra.mxu0 %v1766
  %2153 = vmatmul.bf16.gmra.mxu0 %v552
  %v2154 = vpop.f32.mrf.mxu0
  %v2155 = vadd.f32 0.0, %v2154
  %v2156 = vpop.f32.mrf.mxu0
  %v2157 = vadd.f32 0.0, %v2156
  %2158 = vdwg.mxu0
  %2159 = vmatpush.bf16.msra.mxu0 0
  %2160 = vmatpush.bf16.msra.mxu0 0
  %2161 = vmatpush.bf16.msra.mxu0 0
  %2162 = vmatpush.bf16.msra.mxu0 0
  %2163 = vmatpush.bf16.msra.mxu0 0
  %2164 = vmatpush.bf16.msra.mxu0 0
  %2165 = vmatpush.bf16.msra.mxu0 %v1928
  %2166 = vmatpush.bf16.msra.mxu0 %v1767
  %2167 = vmatmul.bf16.gmra.mxu0 %v552
  %v2168 = vpop.f32.mrf.mxu0
  %v2169 = vadd.f32 0.0, %v2168
  %v2170 = vpop.f32.mrf.mxu0
  %v2171 = vadd.f32 0.0, %v2170
  %2172 = vdwg.mxu0
  %2173 = vmatpush.bf16.msra.mxu0 0
  %2174 = vmatpush.bf16.msra.mxu0 0
  %2175 = vmatpush.bf16.msra.mxu0 0
  %2176 = vmatpush.bf16.msra.mxu0 0
  %2177 = vmatpush.bf16.msra.mxu0 0
  %2178 = vmatpush.bf16.msra.mxu0 0
  %2179 = vmatpush.bf16.msra.mxu0 %v1931
  %2180 = vmatpush.bf16.msra.mxu0 %v1768
  %2181 = vmatmul.bf16.gmra.mxu0 %v552
  %v2182 = vpop.f32.mrf.mxu0
  %v2183 = vadd.f32 0.0, %v2182
  %v2184 = vpop.f32.mrf.mxu0
  %v2185 = vadd.f32 0.0, %v2184
  %2186 = vdwg.mxu0
  %2187 = vmatpush.bf16.msra.mxu0 0
  %2188 = vmatpush.bf16.msra.mxu0 0
  %2189 = vmatpush.bf16.msra.mxu0 0
  %2190 = vmatpush.bf16.msra.mxu0 0
  %2191 = vmatpush.bf16.msra.mxu0 0
  %2192 = vmatpush.bf16.msra.mxu0 0
  %2193 = vmatpush.bf16.msra.mxu0 %v1934
  %2194 = vmatpush.bf16.msra.mxu0 %v1769
  %2195 = vmatmul.bf16.gmra.mxu0 %v552
  %v2196 = vpop.f32.mrf.mxu0
  %v2197 = vadd.f32 0.0, %v2196
  %v2198 = vpop.f32.mrf.mxu0
  %v2199 = vadd.f32 0.0, %v2198
  %2200 = vdwg.mxu0
  %2201 = vmatpush.bf16.msra.mxu0 0
  %2202 = vmatpush.bf16.msra.mxu0 0
  %2203 = vmatpush.bf16.msra.mxu0 0
  %2204 = vmatpush.bf16.msra.mxu0 0
  %2205 = vmatpush.bf16.msra.mxu0 0
  %2206 = vmatpush.bf16.msra.mxu0 0
  %2207 = vmatpush.bf16.msra.mxu0 %v1937
  %2208 = vmatpush.bf16.msra.mxu0 %v1770
  %2209 = vmatmul.bf16.gmra.mxu0 %v552
  %v2210 = vpop.f32.mrf.mxu0
  %v2211 = vadd.f32 0.0, %v2210
  %v2212 = vpop.f32.mrf.mxu0
  %v2213 = vadd.f32 0.0, %v2212
  %2214 = vdwg.mxu0
  %2215 = vmatpush.bf16.msra.mxu0 0
  %2216 = vmatpush.bf16.msra.mxu0 0
  %2217 = vmatpush.bf16.msra.mxu0 0
  %2218 = vmatpush.bf16.msra.mxu0 0
  %2219 = vmatpush.bf16.msra.mxu0 0
  %2220 = vmatpush.bf16.msra.mxu0 0
  %2221 = vmatpush.bf16.msra.mxu0 %v1940
  %2222 = vmatpush.bf16.msra.mxu0 %v1771
  %2223 = vmatmul.bf16.gmra.mxu0 %v552
  %v2224 = vpop.f32.mrf.mxu0
  %v2225 = vadd.f32 0.0, %v2224
  %v2226 = vpop.f32.mrf.mxu0
  %v2227 = vadd.f32 0.0, %v2226
  %2228 = vdwg.mxu0
  %2229 = vmatpush.bf16.msra.mxu0 0
  %2230 = vmatpush.bf16.msra.mxu0 0
  %2231 = vmatpush.bf16.msra.mxu0 0
  %2232 = vmatpush.bf16.msra.mxu0 0
  %2233 = vmatpush.bf16.msra.mxu0 0
  %2234 = vmatpush.bf16.msra.mxu0 0
  %2235 = vmatpush.bf16.msra.mxu0 %v1943
  %2236 = vmatpush.bf16.msra.mxu0 %v1772
  %2237 = vmatmul.bf16.gmra.mxu0 %v552
  %v2238 = vpop.f32.mrf.mxu0
  %v2239 = vadd.f32 0.0, %v2238
  %v2240 = vpop.f32.mrf.mxu0
  %v2241 = vadd.f32 0.0, %v2240
  %2242 = vdwg.mxu0
  %2243 = vmatpush.bf16.msra.mxu0 0
  %2244 = vmatpush.bf16.msra.mxu0 0
  %2245 = vmatpush.bf16.msra.mxu0 0
  %2246 = vmatpush.bf16.msra.mxu0 0
  %2247 = vmatpush.bf16.msra.mxu0 0
  %2248 = vmatpush.bf16.msra.mxu0 0
  %2249 = vmatpush.bf16.msra.mxu0 %v1946
  %2250 = vmatpush.bf16.msra.mxu0 %v1773
  %2251 = vmatmul.bf16.gmra.mxu0 %v552
  %v2252 = vpop.f32.mrf.mxu0
  %v2253 = vadd.f32 0.0, %v2252
  %v2254 = vpop.f32.mrf.mxu0
  %v2255 = vadd.f32 0.0, %v2254
  %2256 = vdwg.mxu0
  %2257 = vmatpush.bf16.msra.mxu0 0
  %2258 = vmatpush.bf16.msra.mxu0 0
  %2259 = vmatpush.bf16.msra.mxu0 0
  %2260 = vmatpush.bf16.msra.mxu0 0
  %2261 = vmatpush.bf16.msra.mxu0 0
  %2262 = vmatpush.bf16.msra.mxu0 0
  %2263 = vmatpush.bf16.msra.mxu0 %v1949
  %2264 = vmatpush.bf16.msra.mxu0 %v1774
  %2265 = vmatmul.bf16.gmra.mxu0 %v552
  %v2266 = vpop.f32.mrf.mxu0
  %v2267 = vadd.f32 0.0, %v2266
  %v2268 = vpop.f32.mrf.mxu0
  %v2269 = vadd.f32 0.0, %v2268
  %2270 = vdwg.mxu0
  %2271 = vmatpush.bf16.msra.mxu0 0
  %2272 = vmatpush.bf16.msra.mxu0 0
  %2273 = vmatpush.bf16.msra.mxu0 0
  %2274 = vmatpush.bf16.msra.mxu0 0
  %2275 = vmatpush.bf16.msra.mxu0 0
  %2276 = vmatpush.bf16.msra.mxu0 0
  %2277 = vmatpush.bf16.msra.mxu0 %v1952
  %2278 = vmatpush.bf16.msra.mxu0 %v1775
  %2279 = vmatmul.bf16.gmra.mxu0 %v552
  %v2280 = vpop.f32.mrf.mxu0
  %v2281 = vadd.f32 0.0, %v2280
  %v2282 = vpop.f32.mrf.mxu0
  %v2283 = vadd.f32 0.0, %v2282
  %2284 = vdwg.mxu0
  %2285 = vmatpush.bf16.msra.mxu0 0
  %2286 = vmatpush.bf16.msra.mxu0 0
  %2287 = vmatpush.bf16.msra.mxu0 0
  %2288 = vmatpush.bf16.msra.mxu0 0
  %2289 = vmatpush.bf16.msra.mxu0 0
  %2290 = vmatpush.bf16.msra.mxu0 0
  %2291 = vmatpush.bf16.msra.mxu0 %v1955
  %2292 = vmatpush.bf16.msra.mxu0 %v1776
  %2293 = vmatmul.bf16.gmra.mxu0 %v552
  %v2294 = vpop.f32.mrf.mxu0
  %v2295 = vadd.f32 0.0, %v2294
  %v2296 = vpop.f32.mrf.mxu0
  %v2297 = vadd.f32 0.0, %v2296
  %2298 = vdwg.mxu0
  %2299 = vmatpush.bf16.msra.mxu0 0
  %2300 = vmatpush.bf16.msra.mxu0 0
  %2301 = vmatpush.bf16.msra.mxu0 0
  %2302 = vmatpush.bf16.msra.mxu0 0
  %2303 = vmatpush.bf16.msra.mxu0 0
  %2304 = vmatpush.bf16.msra.mxu0 0
  %2305 = vmatpush.bf16.msra.mxu0 %v1958
  %2306 = vmatpush.bf16.msra.mxu0 %v1777
  %2307 = vmatmul.bf16.gmra.mxu0 %v552
  %v2308 = vpop.f32.mrf.mxu0
  %v2309 = vadd.f32 0.0, %v2308
  %v2310 = vpop.f32.mrf.mxu0
  %v2311 = vadd.f32 0.0, %v2310
  %2312 = vdwg.mxu0
  %2313 = vmatpush.bf16.msra.mxu0 0
  %2314 = vmatpush.bf16.msra.mxu0 0
  %2315 = vmatpush.bf16.msra.mxu0 0
  %2316 = vmatpush.bf16.msra.mxu0 0
  %2317 = vmatpush.bf16.msra.mxu0 0
  %2318 = vmatpush.bf16.msra.mxu0 0
  %2319 = vmatpush.bf16.msra.mxu0 %v1961
  %2320 = vmatpush.bf16.msra.mxu0 %v1778
  %2321 = vmatmul.bf16.gmra.mxu0 %v552
  %v2322 = vpop.f32.mrf.mxu0
  %v2323 = vadd.f32 0.0, %v2322
  %v2324 = vpop.f32.mrf.mxu0
  %v2325 = vadd.f32 0.0, %v2324
  %2326 = vdwg.mxu0
  %2327 = vmatpush.bf16.msra.mxu0 0
  %2328 = vmatpush.bf16.msra.mxu0 0
  %2329 = vmatpush.bf16.msra.mxu0 0
  %2330 = vmatpush.bf16.msra.mxu0 0
  %2331 = vmatpush.bf16.msra.mxu0 0
  %2332 = vmatpush.bf16.msra.mxu0 0
  %2333 = vmatpush.bf16.msra.mxu0 %v1964
  %2334 = vmatpush.bf16.msra.mxu0 %v1779
  %2335 = vmatmul.bf16.gmra.mxu0 %v552
  %v2336 = vpop.f32.mrf.mxu0
  %v2337 = vadd.f32 0.0, %v2336
  %v2338 = vpop.f32.mrf.mxu0
  %v2339 = vadd.f32 0.0, %v2338
  %2340 = vdwg.mxu0
  %2341 = vmatpush.bf16.msra.mxu0 0
  %2342 = vmatpush.bf16.msra.mxu0 0
  %2343 = vmatpush.bf16.msra.mxu0 0
  %2344 = vmatpush.bf16.msra.mxu0 0
  %2345 = vmatpush.bf16.msra.mxu0 0
  %2346 = vmatpush.bf16.msra.mxu0 0
  %2347 = vmatpush.bf16.msra.mxu0 %v1967
  %2348 = vmatpush.bf16.msra.mxu0 %v1780
  %2349 = vmatmul.bf16.gmra.mxu0 %v552
  %v2350 = vpop.f32.mrf.mxu0
  %v2351 = vadd.f32 0.0, %v2350
  %v2352 = vpop.f32.mrf.mxu0
  %v2353 = vadd.f32 0.0, %v2352
  %2354 = vdwg.mxu0
  %2355 = vmatpush.bf16.msra.mxu0 0
  %2356 = vmatpush.bf16.msra.mxu0 0
  %2357 = vmatpush.bf16.msra.mxu0 0
  %2358 = vmatpush.bf16.msra.mxu0 0
  %2359 = vmatpush.bf16.msra.mxu0 0
  %2360 = vmatpush.bf16.msra.mxu0 0
  %2361 = vmatpush.bf16.msra.mxu0 %v1970
  %2362 = vmatpush.bf16.msra.mxu0 %v1781
  %2363 = vmatmul.bf16.gmra.mxu0 %v552
  %v2364 = vpop.f32.mrf.mxu0
  %v2365 = vadd.f32 0.0, %v2364
  %v2366 = vpop.f32.mrf.mxu0
  %v2367 = vadd.f32 0.0, %v2366
  %2368 = vdwg.mxu0
  %2369 = vmatpush.bf16.msra.mxu0 0
  %2370 = vmatpush.bf16.msra.mxu0 0
  %2371 = vmatpush.bf16.msra.mxu0 0
  %2372 = vmatpush.bf16.msra.mxu0 0
  %2373 = vmatpush.bf16.msra.mxu0 0
  %2374 = vmatpush.bf16.msra.mxu0 0
  %2375 = vmatpush.bf16.msra.mxu0 %v1973
  %2376 = vmatpush.bf16.msra.mxu0 %v1782
  %2377 = vmatmul.bf16.gmra.mxu0 %v552
  %v2378 = vpop.f32.mrf.mxu0
  %v2379 = vadd.f32 0.0, %v2378
  %v2380 = vpop.f32.mrf.mxu0
  %v2381 = vadd.f32 0.0, %v2380
  %2382 = vdwg.mxu0
  %2383 = vmatpush.bf16.msra.mxu0 0
  %2384 = vmatpush.bf16.msra.mxu0 0
  %2385 = vmatpush.bf16.msra.mxu0 0
  %2386 = vmatpush.bf16.msra.mxu0 0
  %2387 = vmatpush.bf16.msra.mxu0 0
  %2388 = vmatpush.bf16.msra.mxu0 0
  %2389 = vmatpush.bf16.msra.mxu0 %v1976
  %2390 = vmatpush.bf16.msra.mxu0 %v1783
  %2391 = vmatmul.bf16.gmra.mxu0 %v552
  %v2392 = vpop.f32.mrf.mxu0
  %v2393 = vadd.f32 0.0, %v2392
  %v2394 = vpop.f32.mrf.mxu0
  %v2395 = vadd.f32 0.0, %v2394
  %2396 = vdwg.mxu0
  %2397 = vmatpush.bf16.msra.mxu0 0
  %2398 = vmatpush.bf16.msra.mxu0 0
  %2399 = vmatpush.bf16.msra.mxu0 0
  %2400 = vmatpush.bf16.msra.mxu0 0
  %2401 = vmatpush.bf16.msra.mxu0 0
  %2402 = vmatpush.bf16.msra.mxu0 0
  %2403 = vmatpush.bf16.msra.mxu0 %v1979
  %2404 = vmatpush.bf16.msra.mxu0 %v1784
  %2405 = vmatmul.bf16.gmra.mxu0 %v552
  %v2406 = vpop.f32.mrf.mxu0
  %v2407 = vadd.f32 0.0, %v2406
  %v2408 = vpop.f32.mrf.mxu0
  %v2409 = vadd.f32 0.0, %v2408
  %2410 = vdwg.mxu0
  %2411 = vmatpush.bf16.msra.mxu0 0
  %2412 = vmatpush.bf16.msra.mxu0 0
  %2413 = vmatpush.bf16.msra.mxu0 0
  %2414 = vmatpush.bf16.msra.mxu0 0
  %2415 = vmatpush.bf16.msra.mxu0 0
  %2416 = vmatpush.bf16.msra.mxu0 0
  %2417 = vmatpush.bf16.msra.mxu0 %v1982
  %2418 = vmatpush.bf16.msra.mxu0 %v1785
  %2419 = vmatmul.bf16.gmra.mxu0 %v552
  %v2420 = vpop.f32.mrf.mxu0
  %v2421 = vadd.f32 0.0, %v2420
  %v2422 = vpop.f32.mrf.mxu0
  %v2423 = vadd.f32 0.0, %v2422
  %2424 = vdwg.mxu0
  %2425 = vmatpush.bf16.msra.mxu0 0
  %2426 = vmatpush.bf16.msra.mxu0 0
  %2427 = vmatpush.bf16.msra.mxu0 0
  %2428 = vmatpush.bf16.msra.mxu0 0
  %2429 = vmatpush.bf16.msra.mxu0 0
  %2430 = vmatpush.bf16.msra.mxu0 0
  %2431 = vmatpush.bf16.msra.mxu0 %v1985
  %2432 = vmatpush.bf16.msra.mxu0 %v1786
  %2433 = vmatmul.bf16.gmra.mxu0 %v552
  %v2434 = vpop.f32.mrf.mxu0
  %v2435 = vadd.f32 0.0, %v2434
  %v2436 = vpop.f32.mrf.mxu0
  %v2437 = vadd.f32 0.0, %v2436
  %2438 = vdwg.mxu0
  %2439 = vmatpush.bf16.msra.mxu0 0
  %2440 = vmatpush.bf16.msra.mxu0 0
  %2441 = vmatpush.bf16.msra.mxu0 0
  %2442 = vmatpush.bf16.msra.mxu0 0
  %2443 = vmatpush.bf16.msra.mxu0 0
  %2444 = vmatpush.bf16.msra.mxu0 0
  %2445 = vmatpush.bf16.msra.mxu0 %v1988
  %2446 = vmatpush.bf16.msra.mxu0 %v1787
  %2447 = vmatmul.bf16.gmra.mxu0 %v552
  %v2448 = vpop.f32.mrf.mxu0
  %v2449 = vadd.f32 0.0, %v2448
  %v2450 = vpop.f32.mrf.mxu0
  %v2451 = vadd.f32 0.0, %v2450
  %2452 = vdwg.mxu0
  %2453 = vmatpush.bf16.msra.mxu0 0
  %2454 = vmatpush.bf16.msra.mxu0 0
  %2455 = vmatpush.bf16.msra.mxu0 0
  %2456 = vmatpush.bf16.msra.mxu0 0
  %2457 = vmatpush.bf16.msra.mxu0 0
  %2458 = vmatpush.bf16.msra.mxu0 0
  %2459 = vmatpush.bf16.msra.mxu0 %v1991
  %2460 = vmatpush.bf16.msra.mxu0 %v1788
  %2461 = vmatmul.bf16.gmra.mxu0 %v552
  %v2462 = vpop.f32.mrf.mxu0
  %v2463 = vadd.f32 0.0, %v2462
  %v2464 = vpop.f32.mrf.mxu0
  %v2465 = vadd.f32 0.0, %v2464
  %2466 = vdwg.mxu0
  %2467 = vmatpush.bf16.msra.mxu0 0
  %2468 = vmatpush.bf16.msra.mxu0 0
  %2469 = vmatpush.bf16.msra.mxu0 0
  %2470 = vmatpush.bf16.msra.mxu0 0
  %2471 = vmatpush.bf16.msra.mxu0 0
  %2472 = vmatpush.bf16.msra.mxu0 0
  %2473 = vmatpush.bf16.msra.mxu0 %v1994
  %2474 = vmatpush.bf16.msra.mxu0 %v1789
  %2475 = vmatmul.bf16.gmra.mxu0 %v552
  %v2476 = vpop.f32.mrf.mxu0
  %v2477 = vadd.f32 0.0, %v2476
  %v2478 = vpop.f32.mrf.mxu0
  %v2479 = vadd.f32 0.0, %v2478
  %2480 = vdwg.mxu0
  %2481 = vmatpush.bf16.msra.mxu0 0
  %2482 = vmatpush.bf16.msra.mxu0 0
  %2483 = vmatpush.bf16.msra.mxu0 0
  %2484 = vmatpush.bf16.msra.mxu0 0
  %2485 = vmatpush.bf16.msra.mxu0 0
  %2486 = vmatpush.bf16.msra.mxu0 0
  %2487 = vmatpush.bf16.msra.mxu0 %v1997
  %2488 = vmatpush.bf16.msra.mxu0 %v1790
  %2489 = vmatmul.bf16.gmra.mxu0 %v552
  %v2490 = vpop.f32.mrf.mxu0
  %v2491 = vadd.f32 0.0, %v2490
  %v2492 = vpop.f32.mrf.mxu0
  %v2493 = vadd.f32 0.0, %v2492
  %2494 = vdwg.mxu0
  %2495 = vmatpush.bf16.msra.mxu0 0
  %2496 = vmatpush.bf16.msra.mxu0 0
  %2497 = vmatpush.bf16.msra.mxu0 0
  %2498 = vmatpush.bf16.msra.mxu0 0
  %2499 = vmatpush.bf16.msra.mxu0 0
  %2500 = vmatpush.bf16.msra.mxu0 0
  %2501 = vmatpush.bf16.msra.mxu0 %v2000
  %2502 = vmatpush.bf16.msra.mxu0 %v1791
  %2503 = vmatmul.bf16.gmra.mxu0 %v552
  %v2504 = vpop.f32.mrf.mxu0
  %v2505 = vadd.f32 0.0, %v2504
  %v2506 = vpop.f32.mrf.mxu0
  %v2507 = vadd.f32 0.0, %v2506
  %2508 = vdwg.mxu0
  %2509 = vmatpush.bf16.msra.mxu0 0
  %2510 = vmatpush.bf16.msra.mxu0 0
  %2511 = vmatpush.bf16.msra.mxu0 0
  %2512 = vmatpush.bf16.msra.mxu0 0
  %2513 = vmatpush.bf16.msra.mxu0 0
  %2514 = vmatpush.bf16.msra.mxu0 0
  %2515 = vmatpush.bf16.msra.mxu0 %v2003
  %2516 = vmatpush.bf16.msra.mxu0 %v1792
  %2517 = vmatmul.bf16.gmra.mxu0 %v552
  %v2518 = vpop.f32.mrf.mxu0
  %v2519 = vadd.f32 0.0, %v2518
  %v2520 = vpop.f32.mrf.mxu0
  %v2521 = vadd.f32 0.0, %v2520
  %2522 = vdwg.mxu0
  %2523 = vmatpush.bf16.msra.mxu0 0
  %2524 = vmatpush.bf16.msra.mxu0 0
  %2525 = vmatpush.bf16.msra.mxu0 0
  %2526 = vmatpush.bf16.msra.mxu0 0
  %2527 = vmatpush.bf16.msra.mxu0 0
  %2528 = vmatpush.bf16.msra.mxu0 0
  %2529 = vmatpush.bf16.msra.mxu0 %v2006
  %2530 = vmatpush.bf16.msra.mxu0 %v1793
  %2531 = vmatmul.bf16.gmra.mxu0 %v552
  %v2532 = vpop.f32.mrf.mxu0
  %v2533 = vadd.f32 0.0, %v2532
  %v2534 = vpop.f32.mrf.mxu0
  %v2535 = vadd.f32 0.0, %v2534
  %2536 = vdwg.mxu0
  %2537 = vmatpush.bf16.msra.mxu0 0
  %2538 = vmatpush.bf16.msra.mxu0 0
  %2539 = vmatpush.bf16.msra.mxu0 0
  %2540 = vmatpush.bf16.msra.mxu0 0
  %2541 = vmatpush.bf16.msra.mxu0 0
  %2542 = vmatpush.bf16.msra.mxu0 0
  %2543 = vmatpush.bf16.msra.mxu0 %v2009
  %2544 = vmatpush.bf16.msra.mxu0 %v1794
  %2545 = vmatmul.bf16.gmra.mxu0 %v552
  %v2546 = vpop.f32.mrf.mxu0
  %v2547 = vadd.f32 0.0, %v2546
  %v2548 = vpop.f32.mrf.mxu0
  %v2549 = vadd.f32 0.0, %v2548
  %2550 = vdwg.mxu0
  %2551 = vmatpush.bf16.msra.mxu0 0
  %2552 = vmatpush.bf16.msra.mxu0 0
  %2553 = vmatpush.bf16.msra.mxu0 0
  %2554 = vmatpush.bf16.msra.mxu0 0
  %2555 = vmatpush.bf16.msra.mxu0 0
  %2556 = vmatpush.bf16.msra.mxu0 0
  %2557 = vmatpush.bf16.msra.mxu0 %v2012
  %2558 = vmatpush.bf16.msra.mxu0 %v1795
  %2559 = vmatmul.bf16.gmra.mxu0 %v552
  %v2560 = vpop.f32.mrf.mxu0
  %v2561 = vadd.f32 0.0, %v2560
  %v2562 = vpop.f32.mrf.mxu0
  %v2563 = vadd.f32 0.0, %v2562
  %2564 = vdwg.mxu0
  %2565 = vmatpush.bf16.msra.mxu0 0
  %2566 = vmatpush.bf16.msra.mxu0 0
  %2567 = vmatpush.bf16.msra.mxu0 0
  %2568 = vmatpush.bf16.msra.mxu0 0
  %2569 = vmatpush.bf16.msra.mxu0 0
  %2570 = vmatpush.bf16.msra.mxu0 0
  %2571 = vmatpush.bf16.msra.mxu0 %v2015
  %2572 = vmatpush.bf16.msra.mxu0 %v1796
  %2573 = vmatmul.bf16.gmra.mxu0 %v552
  %v2574 = vpop.f32.mrf.mxu0
  %v2575 = vadd.f32 0.0, %v2574
  %v2576 = vpop.f32.mrf.mxu0
  %v2577 = vadd.f32 0.0, %v2576
  %2578 = vdwg.mxu0
  %2579 = vmatpush.bf16.msra.mxu0 0
  %2580 = vmatpush.bf16.msra.mxu0 0
  %2581 = vmatpush.bf16.msra.mxu0 0
  %2582 = vmatpush.bf16.msra.mxu0 0
  %2583 = vmatpush.bf16.msra.mxu0 0
  %2584 = vmatpush.bf16.msra.mxu0 0
  %2585 = vmatpush.bf16.msra.mxu0 %v2018
  %2586 = vmatpush.bf16.msra.mxu0 %v1797
  %2587 = vmatmul.bf16.gmra.mxu0 %v552
  %v2588 = vpop.f32.mrf.mxu0
  %v2589 = vadd.f32 0.0, %v2588
  %v2590 = vpop.f32.mrf.mxu0
  %v2591 = vadd.f32 0.0, %v2590
  %2592 = vdwg.mxu0
  %2593 = vmatpush.bf16.msra.mxu0 0
  %2594 = vmatpush.bf16.msra.mxu0 0
  %2595 = vmatpush.bf16.msra.mxu0 0
  %2596 = vmatpush.bf16.msra.mxu0 0
  %2597 = vmatpush.bf16.msra.mxu0 0
  %2598 = vmatpush.bf16.msra.mxu0 0
  %2599 = vmatpush.bf16.msra.mxu0 %v2021
  %2600 = vmatpush.bf16.msra.mxu0 %v1798
  %2601 = vmatmul.bf16.gmra.mxu0 %v552
  %v2602 = vpop.f32.mrf.mxu0
  %v2603 = vadd.f32 0.0, %v2602
  %v2604 = vpop.f32.mrf.mxu0
  %v2605 = vadd.f32 0.0, %v2604
  %2606 = vdwg.mxu0
  %2607 = vmatpush.bf16.msra.mxu0 0
  %2608 = vmatpush.bf16.msra.mxu0 0
  %2609 = vmatpush.bf16.msra.mxu0 0
  %2610 = vmatpush.bf16.msra.mxu0 0
  %2611 = vmatpush.bf16.msra.mxu0 0
  %2612 = vmatpush.bf16.msra.mxu0 0
  %2613 = vmatpush.bf16.msra.mxu0 %v2024
  %2614 = vmatpush.bf16.msra.mxu0 %v1799
  %2615 = vmatmul.bf16.gmra.mxu0 %v552
  %v2616 = vpop.f32.mrf.mxu0
  %v2617 = vadd.f32 0.0, %v2616
  %v2618 = vpop.f32.mrf.mxu0
  %v2619 = vadd.f32 0.0, %v2618
  %2620 = vdwg.mxu0
  %2621 = vmatpush.bf16.msra.mxu0 0
  %2622 = vmatpush.bf16.msra.mxu0 0
  %2623 = vmatpush.bf16.msra.mxu0 0
  %2624 = vmatpush.bf16.msra.mxu0 0
  %2625 = vmatpush.bf16.msra.mxu0 0
  %2626 = vmatpush.bf16.msra.mxu0 0
  %2627 = vmatpush.bf16.msra.mxu0 %v2027
  %2628 = vmatpush.bf16.msra.mxu0 %v1800
  %2629 = vmatmul.bf16.gmra.mxu0 %v552
  %v2630 = vpop.f32.mrf.mxu0
  %v2631 = vadd.f32 0.0, %v2630
  %v2632 = vpop.f32.mrf.mxu0
  %v2633 = vadd.f32 0.0, %v2632
  %2634 = vdwg.mxu0
  %2635 = vmatpush.bf16.msra.mxu0 0
  %2636 = vmatpush.bf16.msra.mxu0 0
  %2637 = vmatpush.bf16.msra.mxu0 0
  %2638 = vmatpush.bf16.msra.mxu0 0
  %2639 = vmatpush.bf16.msra.mxu0 0
  %2640 = vmatpush.bf16.msra.mxu0 0
  %2641 = vmatpush.bf16.msra.mxu0 %v2030
  %2642 = vmatpush.bf16.msra.mxu0 %v1801
  %2643 = vmatmul.bf16.gmra.mxu0 %v552
  %v2644 = vpop.f32.mrf.mxu0
  %v2645 = vadd.f32 0.0, %v2644
  %v2646 = vpop.f32.mrf.mxu0
  %v2647 = vadd.f32 0.0, %v2646
  %2648 = vdwg.mxu0
  %2649 = vmatpush.bf16.msra.mxu0 0
  %2650 = vmatpush.bf16.msra.mxu0 0
  %2651 = vmatpush.bf16.msra.mxu0 0
  %2652 = vmatpush.bf16.msra.mxu0 0
  %2653 = vmatpush.bf16.msra.mxu0 0
  %2654 = vmatpush.bf16.msra.mxu0 0
  %2655 = vmatpush.bf16.msra.mxu0 %v2033
  %2656 = vmatpush.bf16.msra.mxu0 %v1802
  %2657 = vmatmul.bf16.gmra.mxu0 %v552
  %v2658 = vpop.f32.mrf.mxu0
  %v2659 = vadd.f32 0.0, %v2658
  %v2660 = vpop.f32.mrf.mxu0
  %v2661 = vadd.f32 0.0, %v2660
  %2662 = vdwg.mxu0
  %2663 = vmatpush.bf16.msra.mxu0 0
  %2664 = vmatpush.bf16.msra.mxu0 0
  %2665 = vmatpush.bf16.msra.mxu0 0
  %2666 = vmatpush.bf16.msra.mxu0 0
  %2667 = vmatpush.bf16.msra.mxu0 0
  %2668 = vmatpush.bf16.msra.mxu0 0
  %2669 = vmatpush.bf16.msra.mxu0 %v2036
  %2670 = vmatpush.bf16.msra.mxu0 %v1803
  %2671 = vmatmul.bf16.gmra.mxu0 %v552
  %v2672 = vpop.f32.mrf.mxu0
  %v2673 = vadd.f32 0.0, %v2672
  %v2674 = vpop.f32.mrf.mxu0
  %v2675 = vadd.f32 0.0, %v2674
  %2676 = vdwg.mxu0
  %2677 = vmatpush.bf16.msra.mxu0 0
  %2678 = vmatpush.bf16.msra.mxu0 0
  %2679 = vmatpush.bf16.msra.mxu0 0
  %2680 = vmatpush.bf16.msra.mxu0 0
  %2681 = vmatpush.bf16.msra.mxu0 0
  %2682 = vmatpush.bf16.msra.mxu0 0
  %2683 = vmatpush.bf16.msra.mxu0 %v2039
  %2684 = vmatpush.bf16.msra.mxu0 %v1804
  %2685 = vmatmul.bf16.gmra.mxu0 %v552
  %v2686 = vpop.f32.mrf.mxu0
  %v2687 = vadd.f32 0.0, %v2686
  %v2688 = vpop.f32.mrf.mxu0
  %v2689 = vadd.f32 0.0, %v2688
  %2690 = vdwg.mxu0
  %2691 = vmatpush.bf16.msra.mxu0 0
  %2692 = vmatpush.bf16.msra.mxu0 0
  %2693 = vmatpush.bf16.msra.mxu0 0
  %2694 = vmatpush.bf16.msra.mxu0 0
  %2695 = vmatpush.bf16.msra.mxu0 0
  %2696 = vmatpush.bf16.msra.mxu0 0
  %2697 = vmatpush.bf16.msra.mxu0 %v2042
  %2698 = vmatpush.bf16.msra.mxu0 %v1805
  %2699 = vmatmul.bf16.gmra.mxu0 %v552
  %v2700 = vpop.f32.mrf.mxu0
  %v2701 = vadd.f32 0.0, %v2700
  %v2702 = vpop.f32.mrf.mxu0
  %v2703 = vadd.f32 0.0, %v2702
  %2704 = vdwg.mxu0
  %2705 = vmatpush.bf16.msra.mxu0 0
  %2706 = vmatpush.bf16.msra.mxu0 0
  %2707 = vmatpush.bf16.msra.mxu0 0
  %2708 = vmatpush.bf16.msra.mxu0 0
  %2709 = vmatpush.bf16.msra.mxu0 0
  %2710 = vmatpush.bf16.msra.mxu0 0
  %2711 = vmatpush.bf16.msra.mxu0 %v2045
  %2712 = vmatpush.bf16.msra.mxu0 %v1806
  %2713 = vmatmul.bf16.gmra.mxu0 %v552
  %v2714 = vpop.f32.mrf.mxu0
  %v2715 = vadd.f32 0.0, %v2714
  %v2716 = vpop.f32.mrf.mxu0
  %v2717 = vadd.f32 0.0, %v2716
  %2718 = vdwg.mxu0
  %v2719 = vmax.f32 %v712, %v2057
  %v2720 = vmax.f32 %v726, %v2071
  %v2721 = vmax.f32 %v740, %v2085
  %v2722 = vmax.f32 %v754, %v2099
  %v2723 = vmax.f32 %v768, %v2113
  %v2724 = vmax.f32 %v782, %v2127
  %v2725 = vmax.f32 %v796, %v2141
  %v2726 = vmax.f32 %v810, %v2155
  %v2727 = vmax.f32 %v824, %v2169
  %v2728 = vmax.f32 %v838, %v2183
  %v2729 = vmax.f32 %v852, %v2197
  %v2730 = vmax.f32 %v866, %v2211
  %v2731 = vmax.f32 %v880, %v2225
  %v2732 = vmax.f32 %v894, %v2239
  %v2733 = vmax.f32 %v908, %v2253
  %v2734 = vmax.f32 %v922, %v2267
  %v2735 = vmax.f32 %v936, %v2281
  %v2736 = vmax.f32 %v950, %v2295
  %v2737 = vmax.f32 %v964, %v2309
  %v2738 = vmax.f32 %v978, %v2323
  %v2739 = vmax.f32 %v992, %v2337
  %v2740 = vmax.f32 %v1006, %v2351
  %v2741 = vmax.f32 %v1020, %v2365
  %v2742 = vmax.f32 %v1034, %v2379
  %v2743 = vmax.f32 %v1048, %v2393
  %v2744 = vmax.f32 %v1062, %v2407
  %v2745 = vmax.f32 %v1076, %v2421
  %v2746 = vmax.f32 %v1090, %v2435
  %v2747 = vmax.f32 %v1104, %v2449
  %v2748 = vmax.f32 %v1118, %v2463
  %v2749 = vmax.f32 %v1132, %v2477
  %v2750 = vmax.f32 %v1146, %v2491
  %v2751 = vmax.f32 %v1160, %v2505
  %v2752 = vmax.f32 %v1174, %v2519
  %v2753 = vmax.f32 %v1188, %v2533
  %v2754 = vmax.f32 %v1202, %v2547
  %v2755 = vmax.f32 %v1216, %v2561
  %v2756 = vmax.f32 %v1230, %v2575
  %v2757 = vmax.f32 %v1244, %v2589
  %v2758 = vmax.f32 %v1258, %v2603
  %v2759 = vmax.f32 %v1272, %v2617
  %v2760 = vmax.f32 %v1286, %v2631
  %v2761 = vmax.f32 %v1300, %v2645
  %v2762 = vmax.f32 %v1314, %v2659
  %v2763 = vmax.f32 %v1328, %v2673
  %v2764 = vmax.f32 %v1342, %v2687
  %v2765 = vmax.f32 %v1356, %v2701
  %v2766 = vmax.f32 %v1370, %v2715
  %v2767 = vmax.f32 %v714, %v2059
  %v2768 = vmax.f32 %v728, %v2073
  %v2769 = vmax.f32 %v742, %v2087
  %v2770 = vmax.f32 %v756, %v2101
  %v2771 = vmax.f32 %v770, %v2115
  %v2772 = vmax.f32 %v784, %v2129
  %v2773 = vmax.f32 %v798, %v2143
  %v2774 = vmax.f32 %v812, %v2157
  %v2775 = vmax.f32 %v826, %v2171
  %v2776 = vmax.f32 %v840, %v2185
  %v2777 = vmax.f32 %v854, %v2199
  %v2778 = vmax.f32 %v868, %v2213
  %v2779 = vmax.f32 %v882, %v2227
  %v2780 = vmax.f32 %v896, %v2241
  %v2781 = vmax.f32 %v910, %v2255
  %v2782 = vmax.f32 %v924, %v2269
  %v2783 = vmax.f32 %v938, %v2283
  %v2784 = vmax.f32 %v952, %v2297
  %v2785 = vmax.f32 %v966, %v2311
  %v2786 = vmax.f32 %v980, %v2325
  %v2787 = vmax.f32 %v994, %v2339
  %v2788 = vmax.f32 %v1008, %v2353
  %v2789 = vmax.f32 %v1022, %v2367
  %v2790 = vmax.f32 %v1036, %v2381
  %v2791 = vmax.f32 %v1050, %v2395
  %v2792 = vmax.f32 %v1064, %v2409
  %v2793 = vmax.f32 %v1078, %v2423
  %v2794 = vmax.f32 %v1092, %v2437
  %v2795 = vmax.f32 %v1106, %v2451
  %v2796 = vmax.f32 %v1120, %v2465
  %v2797 = vmax.f32 %v1134, %v2479
  %v2798 = vmax.f32 %v1148, %v2493
  %v2799 = vmax.f32 %v1162, %v2507
  %v2800 = vmax.f32 %v1176, %v2521
  %v2801 = vmax.f32 %v1190, %v2535
  %v2802 = vmax.f32 %v1204, %v2549
  %v2803 = vmax.f32 %v1218, %v2563
  %v2804 = vmax.f32 %v1232, %v2577
  %v2805 = vmax.f32 %v1246, %v2591
  %v2806 = vmax.f32 %v1260, %v2605
  %v2807 = vmax.f32 %v1274, %v2619
  %v2808 = vmax.f32 %v1288, %v2633
  %v2809 = vmax.f32 %v1302, %v2647
  %v2810 = vmax.f32 %v1316, %v2661
  %v2811 = vmax.f32 %v1330, %v2675
  %v2812 = vmax.f32 %v1344, %v2689
  %v2813 = vmax.f32 %v1358, %v2703
  %v2814 = vmax.f32 %v1372, %v2717
  %s2815 = scalar_lea.vmem %s0, 1536
  %v2816 = vld [vmem:[%s2815] sm:$0xff]
  %v2817 = vld [vmem:[%s2815 + $0x8] sm:$0xff]
  %v2818 = vld [vmem:[%s2815 + $0x10] sm:$0xff]
  %v2819 = vld [vmem:[%s2815 + $0x18] sm:$0xff]
  %v2820 = vld [vmem:[%s2815 + $0x20] sm:$0xff]
  %v2821 = vld [vmem:[%s2815 + $0x28] sm:$0xff]
  %v2822 = vld [vmem:[%s2815 + $0x30] sm:$0xff]
  %v2823 = vld [vmem:[%s2815 + $0x38] sm:$0xff]
  %v2824 = vld [vmem:[%s2815 + $0x40] sm:$0xff]
  %v2825 = vld [vmem:[%s2815 + $0x48] sm:$0xff]
  %v2826 = vld [vmem:[%s2815 + $0x50] sm:$0xff]
  %v2827 = vld [vmem:[%s2815 + $0x58] sm:$0xff]
  %v2828 = vld [vmem:[%s2815 + $0x60] sm:$0xff]
  %v2829 = vld [vmem:[%s2815 + $0x68] sm:$0xff]
  %v2830 = vld [vmem:[%s2815 + $0x70] sm:$0xff]
  %v2831 = vld [vmem:[%s2815 + $0x78] sm:$0xff]
  %v2832 = vld [vmem:[%s2815 + $0x80] sm:$0xff]
  %v2833 = vld [vmem:[%s2815 + $0x88] sm:$0xff]
  %v2834 = vld [vmem:[%s2815 + $0x90] sm:$0xff]
  %v2835 = vld [vmem:[%s2815 + $0x98] sm:$0xff]
  %v2836 = vld [vmem:[%s2815 + $0xa0] sm:$0xff]
  %v2837 = vld [vmem:[%s2815 + $0xa8] sm:$0xff]
  %v2838 = vld [vmem:[%s2815 + $0xb0] sm:$0xff]
  %v2839 = vld [vmem:[%s2815 + $0xb8] sm:$0xff]
  %v2840 = vld [vmem:[%s2815 + $0xc0] sm:$0xff]
  %v2841 = vld [vmem:[%s2815 + $0xc8] sm:$0xff]
  %v2842 = vld [vmem:[%s2815 + $0xd0] sm:$0xff]
  %v2843 = vld [vmem:[%s2815 + $0xd8] sm:$0xff]
  %v2844 = vld [vmem:[%s2815 + $0xe0] sm:$0xff]
  %v2845 = vld [vmem:[%s2815 + $0xe8] sm:$0xff]
  %v2846 = vld [vmem:[%s2815 + $0xf0] sm:$0xff]
  %v2847 = vld [vmem:[%s2815 + $0xf8] sm:$0xff]
  %v2848 = vld [vmem:[%s2815 + $0x100] sm:$0xff]
  %v2849 = vld [vmem:[%s2815 + $0x108] sm:$0xff]
  %v2850 = vld [vmem:[%s2815 + $0x110] sm:$0xff]
  %v2851 = vld [vmem:[%s2815 + $0x118] sm:$0xff]
  %v2852 = vld [vmem:[%s2815 + $0x120] sm:$0xff]
  %v2853 = vld [vmem:[%s2815 + $0x128] sm:$0xff]
  %v2854 = vld [vmem:[%s2815 + $0x130] sm:$0xff]
  %v2855 = vld [vmem:[%s2815 + $0x138] sm:$0xff]
  %v2856 = vld [vmem:[%s2815 + $0x140] sm:$0xff]
  %v2857 = vld [vmem:[%s2815 + $0x148] sm:$0xff]
  %v2858 = vld [vmem:[%s2815 + $0x150] sm:$0xff]
  %v2859 = vld [vmem:[%s2815 + $0x158] sm:$0xff]
  %v2860 = vld [vmem:[%s2815 + $0x160] sm:$0xff]
  %v2861 = vld [vmem:[%s2815 + $0x168] sm:$0xff]
  %v2862 = vld [vmem:[%s2815 + $0x170] sm:$0xff]
  %v2863 = vld [vmem:[%s2815 + $0x178] sm:$0xff]
  %v2864 = vld [vmem:[%s2815 + $0x180] sm:$0xff]
  %v2865 = vld [vmem:[%s2815 + $0x188] sm:$0xff]
  %v2866 = vld [vmem:[%s2815 + $0x190] sm:$0xff]
  %v2867 = vld [vmem:[%s2815 + $0x198] sm:$0xff]
  %v2868 = vld [vmem:[%s2815 + $0x1a0] sm:$0xff]
  %v2869 = vld [vmem:[%s2815 + $0x1a8] sm:$0xff]
  %v2870 = vld [vmem:[%s2815 + $0x1b0] sm:$0xff]
  %v2871 = vld [vmem:[%s2815 + $0x1b8] sm:$0xff]
  %v2872 = vld [vmem:[%s2815 + $0x1c0] sm:$0xff]
  %v2873 = vld [vmem:[%s2815 + $0x1c8] sm:$0xff]
  %v2874 = vld [vmem:[%s2815 + $0x1d0] sm:$0xff]
  %v2875 = vld [vmem:[%s2815 + $0x1d8] sm:$0xff]
  %v2876 = vld [vmem:[%s2815 + $0x1e0] sm:$0xff]
  %v2877 = vld [vmem:[%s2815 + $0x1e8] sm:$0xff]
  %v2878 = vld [vmem:[%s2815 + $0x1f0] sm:$0xff]
  %v2879 = vld [vmem:[%s2815 + $0x1f8] sm:$0xff]
  %v2880 = vld [vmem:[%s2815 + $0x200] sm:$0xff]
  %v2881 = vld [vmem:[%s2815 + $0x208] sm:$0xff]
  %v2882 = vld [vmem:[%s2815 + $0x210] sm:$0xff]
  %v2883 = vld [vmem:[%s2815 + $0x218] sm:$0xff]
  %v2884 = vld [vmem:[%s2815 + $0x220] sm:$0xff]
  %v2885 = vld [vmem:[%s2815 + $0x228] sm:$0xff]
  %v2886 = vld [vmem:[%s2815 + $0x230] sm:$0xff]
  %v2887 = vld [vmem:[%s2815 + $0x238] sm:$0xff]
  %v2888 = vld [vmem:[%s2815 + $0x240] sm:$0x11]
  %v2889 = vld [vmem:[%s2815 + $0x248] sm:$0x11]
  %v2890 = vld [vmem:[%s2815 + $0x250] sm:$0x11]
  %v2891 = vld [vmem:[%s2815 + $0x258] sm:$0x11]
  %v2892 = vld [vmem:[%s2815 + $0x260] sm:$0x11]
  %v2893 = vld [vmem:[%s2815 + $0x268] sm:$0x11]
  %v2894 = vld [vmem:[%s2815 + $0x270] sm:$0x11]
  %v2895 = vld [vmem:[%s2815 + $0x278] sm:$0x11]
  %v2896 = vld [vmem:[%s2815 + $0x280] sm:$0x11]
  %v2897 = vld [vmem:[%s2815 + $0x288] sm:$0x11]
  %v2898 = vld [vmem:[%s2815 + $0x290] sm:$0x11]
  %v2899 = vld [vmem:[%s2815 + $0x298] sm:$0x11]
  %v2900 = vld [vmem:[%s2815 + $0x2a0] sm:$0x11]
  %v2901 = vld [vmem:[%s2815 + $0x2a8] sm:$0x11]
  %v2902 = vld [vmem:[%s2815 + $0x2b0] sm:$0x11]
  %v2903 = vld [vmem:[%s2815 + $0x2b8] sm:$0x11]
  %v2904 = vld [vmem:[%s2815 + $0x2c0] sm:$0x11]
  %v2905 = vld [vmem:[%s2815 + $0x2c8] sm:$0x11]
  %v2906 = vld [vmem:[%s2815 + $0x2d0] sm:$0x11]
  %v2907 = vld [vmem:[%s2815 + $0x2d8] sm:$0x11]
  %v2908 = vld [vmem:[%s2815 + $0x2e0] sm:$0x11]
  %v2909 = vld [vmem:[%s2815 + $0x2e8] sm:$0x11]
  %v2910 = vld [vmem:[%s2815 + $0x2f0] sm:$0x11]
  %v2911 = vld [vmem:[%s2815 + $0x2f8] sm:$0x11]
  %v3008 = vunpack.c.l.b16 %v2816
  %v3009 = vunpack.c.h.b16 %v2816
  %v3010 = vunpack.c.l.b16 %v2817
  %v3011 = vunpack.c.h.b16 %v2817
  %v3012 = vunpack.c.l.b16 %v2818
  %v3013 = vunpack.c.h.b16 %v2818
  %v3014 = vunpack.c.l.b16 %v2819
  %v3015 = vunpack.c.h.b16 %v2819
  %v3016 = vunpack.c.l.b16 %v2820
  %v3017 = vunpack.c.h.b16 %v2820
  %v3018 = vunpack.c.l.b16 %v2821
  %v3019 = vunpack.c.h.b16 %v2821
  %v3020 = vunpack.c.l.b16 %v2822
  %v3021 = vunpack.c.h.b16 %v2822
  %v3022 = vunpack.c.l.b16 %v2823
  %v3023 = vunpack.c.h.b16 %v2823
  %v3024 = vunpack.c.l.b16 %v2824
  %v3025 = vunpack.c.h.b16 %v2824
  %v3026 = vunpack.c.l.b16 %v2825
  %v3027 = vunpack.c.h.b16 %v2825
  %v3028 = vunpack.c.l.b16 %v2826
  %v3029 = vunpack.c.h.b16 %v2826
  %v3030 = vunpack.c.l.b16 %v2827
  %v3031 = vunpack.c.h.b16 %v2827
  %v3032 = vunpack.c.l.b16 %v2828
  %v3033 = vunpack.c.h.b16 %v2828
  %v3034 = vunpack.c.l.b16 %v2829
  %v3035 = vunpack.c.h.b16 %v2829
  %v3036 = vunpack.c.l.b16 %v2830
  %v3037 = vunpack.c.h.b16 %v2830
  %v3038 = vunpack.c.l.b16 %v2831
  %v3039 = vunpack.c.h.b16 %v2831
  %v3040 = vunpack.c.l.b16 %v2832
  %v3041 = vunpack.c.h.b16 %v2832
  %v3042 = vunpack.c.l.b16 %v2833
  %v3043 = vunpack.c.h.b16 %v2833
  %v3044 = vunpack.c.l.b16 %v2834
  %v3045 = vunpack.c.h.b16 %v2834
  %v3046 = vunpack.c.l.b16 %v2835
  %v3047 = vunpack.c.h.b16 %v2835
  %v3048 = vunpack.c.l.b16 %v2836
  %v3049 = vunpack.c.h.b16 %v2836
  %v3050 = vunpack.c.l.b16 %v2837
  %v3051 = vunpack.c.h.b16 %v2837
  %v3052 = vunpack.c.l.b16 %v2838
  %v3053 = vunpack.c.h.b16 %v2838
  %v3054 = vunpack.c.l.b16 %v2839
  %v3055 = vunpack.c.h.b16 %v2839
  %v3056 = vunpack.c.l.b16 %v2840
  %v3057 = vunpack.c.h.b16 %v2840
  %v3058 = vunpack.c.l.b16 %v2841
  %v3059 = vunpack.c.h.b16 %v2841
  %v3060 = vunpack.c.l.b16 %v2842
  %v3061 = vunpack.c.h.b16 %v2842
  %v3062 = vunpack.c.l.b16 %v2843
  %v3063 = vunpack.c.h.b16 %v2843
  %v3064 = vunpack.c.l.b16 %v2844
  %v3065 = vunpack.c.h.b16 %v2844
  %v3066 = vunpack.c.l.b16 %v2845
  %v3067 = vunpack.c.h.b16 %v2845
  %v3068 = vunpack.c.l.b16 %v2846
  %v3069 = vunpack.c.h.b16 %v2846
  %v3070 = vunpack.c.l.b16 %v2847
  %v3071 = vunpack.c.h.b16 %v2847
  %v3072 = vunpack.c.l.b16 %v2848
  %v3073 = vunpack.c.h.b16 %v2848
  %v3074 = vunpack.c.l.b16 %v2849
  %v3075 = vunpack.c.h.b16 %v2849
  %v3076 = vunpack.c.l.b16 %v2850
  %v3077 = vunpack.c.h.b16 %v2850
  %v3078 = vunpack.c.l.b16 %v2851
  %v3079 = vunpack.c.h.b16 %v2851
  %v3080 = vunpack.c.l.b16 %v2852
  %v3081 = vunpack.c.h.b16 %v2852
  %v3082 = vunpack.c.l.b16 %v2853
  %v3083 = vunpack.c.h.b16 %v2853
  %v3084 = vunpack.c.l.b16 %v2854
  %v3085 = vunpack.c.h.b16 %v2854
  %v3086 = vunpack.c.l.b16 %v2855
  %v3087 = vunpack.c.h.b16 %v2855
  %v3088 = vunpack.c.l.b16 %v2856
  %v3089 = vunpack.c.h.b16 %v2856
  %v3090 = vunpack.c.l.b16 %v2857
  %v3091 = vunpack.c.h.b16 %v2857
  %v3092 = vunpack.c.l.b16 %v2858
  %v3093 = vunpack.c.h.b16 %v2858
  %v3094 = vunpack.c.l.b16 %v2859
  %v3095 = vunpack.c.h.b16 %v2859
  %v3096 = vunpack.c.l.b16 %v2860
  %v3097 = vunpack.c.h.b16 %v2860
  %v3098 = vunpack.c.l.b16 %v2861
  %v3099 = vunpack.c.h.b16 %v2861
  %v3100 = vunpack.c.l.b16 %v2862
  %v3101 = vunpack.c.h.b16 %v2862
  %v3102 = vunpack.c.l.b16 %v2863
  %v3103 = vunpack.c.h.b16 %v2863
  %v3104 = vunpack.c.l.b16 %v2864
  %v3105 = vunpack.c.h.b16 %v2864
  %v3106 = vunpack.c.l.b16 %v2865
  %v3107 = vunpack.c.h.b16 %v2865
  %v3108 = vunpack.c.l.b16 %v2866
  %v3109 = vunpack.c.h.b16 %v2866
  %v3110 = vunpack.c.l.b16 %v2867
  %v3111 = vunpack.c.h.b16 %v2867
  %v3112 = vunpack.c.l.b16 %v2868
  %v3113 = vunpack.c.h.b16 %v2868
  %v3114 = vunpack.c.l.b16 %v2869
  %v3115 = vunpack.c.h.b16 %v2869
  %v3116 = vunpack.c.l.b16 %v2870
  %v3117 = vunpack.c.h.b16 %v2870
  %v3118 = vunpack.c.l.b16 %v2871
  %v3119 = vunpack.c.h.b16 %v2871
  %v3120 = vunpack.c.l.b16 %v2872
  %v3121 = vunpack.c.h.b16 %v2872
  %v3122 = vunpack.c.l.b16 %v2873
  %v3123 = vunpack.c.h.b16 %v2873
  %v3124 = vunpack.c.l.b16 %v2874
  %v3125 = vunpack.c.h.b16 %v2874
  %v3126 = vunpack.c.l.b16 %v2875
  %v3127 = vunpack.c.h.b16 %v2875
  %v3128 = vunpack.c.l.b16 %v2876
  %v3129 = vunpack.c.h.b16 %v2876
  %v3130 = vunpack.c.l.b16 %v2877
  %v3131 = vunpack.c.h.b16 %v2877
  %v3132 = vunpack.c.l.b16 %v2878
  %v3133 = vunpack.c.h.b16 %v2878
  %v3134 = vunpack.c.l.b16 %v2879
  %v3135 = vunpack.c.h.b16 %v2879
  %v3136 = vunpack.c.l.b16 %v2880
  %v3137 = vunpack.c.h.b16 %v2880
  %v3138 = vunpack.c.l.b16 %v2881
  %v3139 = vunpack.c.h.b16 %v2881
  %v3140 = vunpack.c.l.b16 %v2882
  %v3141 = vunpack.c.h.b16 %v2882
  %v3142 = vunpack.c.l.b16 %v2883
  %v3143 = vunpack.c.h.b16 %v2883
  %v3144 = vunpack.c.l.b16 %v2884
  %v3145 = vunpack.c.h.b16 %v2884
  %v3146 = vunpack.c.l.b16 %v2885
  %v3147 = vunpack.c.h.b16 %v2885
  %v3148 = vunpack.c.l.b16 %v2886
  %v3149 = vunpack.c.h.b16 %v2886
  %v3150 = vunpack.c.l.b16 %v2887
  %v3151 = vunpack.c.h.b16 %v2887
  %v3152 = vunpack.c.l.b16 %v2888
  %v3153 = vunpack.c.h.b16 %v2888
  %v3154 = vunpack.c.l.b16 %v2889
  %v3155 = vunpack.c.h.b16 %v2889
  %v3156 = vunpack.c.l.b16 %v2890
  %v3157 = vunpack.c.h.b16 %v2890
  %v3158 = vunpack.c.l.b16 %v2891
  %v3159 = vunpack.c.h.b16 %v2891
  %v3160 = vunpack.c.l.b16 %v2892
  %v3161 = vunpack.c.h.b16 %v2892
  %v3162 = vunpack.c.l.b16 %v2893
  %v3163 = vunpack.c.h.b16 %v2893
  %v3164 = vunpack.c.l.b16 %v2894
  %v3165 = vunpack.c.h.b16 %v2894
  %v3166 = vunpack.c.l.b16 %v2895
  %v3167 = vunpack.c.h.b16 %v2895
  %v3168 = vunpack.c.l.b16 %v2896
  %v3169 = vunpack.c.h.b16 %v2896
  %v3170 = vunpack.c.l.b16 %v2897
  %v3171 = vunpack.c.h.b16 %v2897
  %v3172 = vunpack.c.l.b16 %v2898
  %v3173 = vunpack.c.h.b16 %v2898
  %v3174 = vunpack.c.l.b16 %v2899
  %v3175 = vunpack.c.h.b16 %v2899
  %v3176 = vunpack.c.l.b16 %v2900
  %v3177 = vunpack.c.h.b16 %v2900
  %v3178 = vunpack.c.l.b16 %v2901
  %v3179 = vunpack.c.h.b16 %v2901
  %v3180 = vunpack.c.l.b16 %v2902
  %v3181 = vunpack.c.h.b16 %v2902
  %v3182 = vunpack.c.l.b16 %v2903
  %v3183 = vunpack.c.h.b16 %v2903
  %v3184 = vunpack.c.l.b16 %v2904
  %v3185 = vunpack.c.h.b16 %v2904
  %v3186 = vunpack.c.l.b16 %v2905
  %v3187 = vunpack.c.h.b16 %v2905
  %v3188 = vunpack.c.l.b16 %v2906
  %v3189 = vunpack.c.h.b16 %v2906
  %v3190 = vunpack.c.l.b16 %v2907
  %v3191 = vunpack.c.h.b16 %v2907
  %v3192 = vunpack.c.l.b16 %v2908
  %v3193 = vunpack.c.h.b16 %v2908
  %v3194 = vunpack.c.l.b16 %v2909
  %v3195 = vunpack.c.h.b16 %v2909
  %v3196 = vunpack.c.l.b16 %v2910
  %v3197 = vunpack.c.h.b16 %v2910
  %v3198 = vunpack.c.l.b16 %v2911
  %v3199 = vunpack.c.h.b16 %v2911
  %v3200 = vpack.c.b16 %v3056, %v3008
  %v3201 = vpack.c.b16 %v3057, %v3009
  %v3202 = vpack.c.b16 %v3058, %v3010
  %v3203 = vpack.c.b16 %v3059, %v3011
  %v3204 = vpack.c.b16 %v3060, %v3012
  %v3205 = vpack.c.b16 %v3061, %v3013
  %v3206 = vpack.c.b16 %v3062, %v3014
  %v3207 = vpack.c.b16 %v3063, %v3015
  %v3208 = vpack.c.b16 %v3064, %v3016
  %v3209 = vpack.c.b16 %v3065, %v3017
  %v3210 = vpack.c.b16 %v3066, %v3018
  %v3211 = vpack.c.b16 %v3067, %v3019
  %v3212 = vpack.c.b16 %v3068, %v3020
  %v3213 = vpack.c.b16 %v3069, %v3021
  %v3214 = vpack.c.b16 %v3070, %v3022
  %v3215 = vpack.c.b16 %v3071, %v3023
  %v3216 = vpack.c.b16 %v3072, %v3024
  %v3217 = vpack.c.b16 %v3073, %v3025
  %v3218 = vpack.c.b16 %v3074, %v3026
  %v3219 = vpack.c.b16 %v3075, %v3027
  %v3220 = vpack.c.b16 %v3076, %v3028
  %v3221 = vpack.c.b16 %v3077, %v3029
  %v3222 = vpack.c.b16 %v3078, %v3030
  %v3223 = vpack.c.b16 %v3079, %v3031
  %v3224 = vpack.c.b16 %v3080, %v3032
  %v3225 = vpack.c.b16 %v3081, %v3033
  %v3226 = vpack.c.b16 %v3082, %v3034
  %v3227 = vpack.c.b16 %v3083, %v3035
  %v3228 = vpack.c.b16 %v3084, %v3036
  %v3229 = vpack.c.b16 %v3085, %v3037
  %v3230 = vpack.c.b16 %v3086, %v3038
  %v3231 = vpack.c.b16 %v3087, %v3039
  %v3232 = vpack.c.b16 %v3088, %v3040
  %v3233 = vpack.c.b16 %v3089, %v3041
  %v3234 = vpack.c.b16 %v3090, %v3042
  %v3235 = vpack.c.b16 %v3091, %v3043
  %v3236 = vpack.c.b16 %v3092, %v3044
  %v3237 = vpack.c.b16 %v3093, %v3045
  %v3238 = vpack.c.b16 %v3094, %v3046
  %v3239 = vpack.c.b16 %v3095, %v3047
  %v3240 = vpack.c.b16 %v3096, %v3048
  %v3241 = vpack.c.b16 %v3097, %v3049
  %v3242 = vpack.c.b16 %v3098, %v3050
  %v3243 = vpack.c.b16 %v3099, %v3051
  %v3244 = vpack.c.b16 %v3100, %v3052
  %v3245 = vpack.c.b16 %v3101, %v3053
  %v3246 = vpack.c.b16 %v3102, %v3054
  %v3247 = vpack.c.b16 %v3103, %v3055
  %v3248 = vpack.c.b16 %v3152, %v3104
  %v3249 = vpack.c.b16 %v3153, %v3105
  %v3250 = vpack.c.b16 %v3154, %v3106
  %v3251 = vpack.c.b16 %v3155, %v3107
  %v3252 = vpack.c.b16 %v3156, %v3108
  %v3253 = vpack.c.b16 %v3157, %v3109
  %v3254 = vpack.c.b16 %v3158, %v3110
  %v3255 = vpack.c.b16 %v3159, %v3111
  %v3256 = vpack.c.b16 %v3160, %v3112
  %v3257 = vpack.c.b16 %v3161, %v3113
  %v3258 = vpack.c.b16 %v3162, %v3114
  %v3259 = vpack.c.b16 %v3163, %v3115
  %v3260 = vpack.c.b16 %v3164, %v3116
  %v3261 = vpack.c.b16 %v3165, %v3117
  %v3262 = vpack.c.b16 %v3166, %v3118
  %v3263 = vpack.c.b16 %v3167, %v3119
  %v3264 = vpack.c.b16 %v3168, %v3120
  %v3265 = vpack.c.b16 %v3169, %v3121
  %v3266 = vpack.c.b16 %v3170, %v3122
  %v3267 = vpack.c.b16 %v3171, %v3123
  %v3268 = vpack.c.b16 %v3172, %v3124
  %v3269 = vpack.c.b16 %v3173, %v3125
  %v3270 = vpack.c.b16 %v3174, %v3126
  %v3271 = vpack.c.b16 %v3175, %v3127
  %v3272 = vpack.c.b16 %v3176, %v3128
  %v3273 = vpack.c.b16 %v3177, %v3129
  %v3274 = vpack.c.b16 %v3178, %v3130
  %v3275 = vpack.c.b16 %v3179, %v3131
  %v3276 = vpack.c.b16 %v3180, %v3132
  %v3277 = vpack.c.b16 %v3181, %v3133
  %v3278 = vpack.c.b16 %v3182, %v3134
  %v3279 = vpack.c.b16 %v3183, %v3135
  %v3280 = vpack.c.b16 %v3184, %v3136
  %v3281 = vpack.c.b16 %v3185, %v3137
  %v3282 = vpack.c.b16 %v3186, %v3138
  %v3283 = vpack.c.b16 %v3187, %v3139
  %v3284 = vpack.c.b16 %v3188, %v3140
  %v3285 = vpack.c.b16 %v3189, %v3141
  %v3286 = vpack.c.b16 %v3190, %v3142
  %v3287 = vpack.c.b16 %v3191, %v3143
  %v3288 = vpack.c.b16 %v3192, %v3144
  %v3289 = vpack.c.b16 %v3193, %v3145
  %v3290 = vpack.c.b16 %v3194, %v3146
  %v3291 = vpack.c.b16 %v3195, %v3147
  %v3292 = vpack.c.b16 %v3196, %v3148
  %v3293 = vpack.c.b16 %v3197, %v3149
  %v3294 = vpack.c.b16 %v3198, %v3150
  %v3295 = vpack.c.b16 %v3199, %v3151
  %v3345 = vand.u32 %v3248, %v557
  %v3348 = vand.u32 %v3249, %v557
  %v3351 = vand.u32 %v3250, %v557
  %v3354 = vand.u32 %v3251, %v557
  %v3357 = vand.u32 %v3252, %v557
  %v3360 = vand.u32 %v3253, %v557
  %v3363 = vand.u32 %v3254, %v557
  %v3366 = vand.u32 %v3255, %v557
  %v3369 = vand.u32 %v3256, %v557
  %v3372 = vand.u32 %v3257, %v557
  %v3375 = vand.u32 %v3258, %v557
  %v3378 = vand.u32 %v3259, %v557
  %v3381 = vand.u32 %v3260, %v557
  %v3384 = vand.u32 %v3261, %v557
  %v3387 = vand.u32 %v3262, %v557
  %v3390 = vand.u32 %v3263, %v557
  %v3393 = vand.u32 %v3264, %v557
  %v3396 = vand.u32 %v3265, %v557
  %v3399 = vand.u32 %v3266, %v557
  %v3402 = vand.u32 %v3267, %v557
  %v3405 = vand.u32 %v3268, %v557
  %v3408 = vand.u32 %v3269, %v557
  %v3411 = vand.u32 %v3270, %v557
  %v3414 = vand.u32 %v3271, %v557
  %v3417 = vand.u32 %v3272, %v557
  %v3420 = vand.u32 %v3273, %v557
  %v3423 = vand.u32 %v3274, %v557
  %v3426 = vand.u32 %v3275, %v557
  %v3429 = vand.u32 %v3276, %v557
  %v3432 = vand.u32 %v3277, %v557
  %v3435 = vand.u32 %v3278, %v557
  %v3438 = vand.u32 %v3279, %v557
  %v3441 = vand.u32 %v3280, %v557
  %v3444 = vand.u32 %v3281, %v557
  %v3447 = vand.u32 %v3282, %v557
  %v3450 = vand.u32 %v3283, %v557
  %v3453 = vand.u32 %v3284, %v557
  %v3456 = vand.u32 %v3285, %v557
  %v3459 = vand.u32 %v3286, %v557
  %v3462 = vand.u32 %v3287, %v557
  %v3465 = vand.u32 %v3288, %v557
  %v3468 = vand.u32 %v3289, %v557
  %v3471 = vand.u32 %v3290, %v557
  %v3474 = vand.u32 %v3291, %v557
  %v3477 = vand.u32 %v3292, %v557
  %v3480 = vand.u32 %v3293, %v557
  %v3483 = vand.u32 %v3294, %v557
  %v3486 = vand.u32 %v3295, %v557
  %3488 = vmatpush.bf16.msra.mxu0 0
  %3489 = vmatpush.bf16.msra.mxu0 0
  %3490 = vmatpush.bf16.msra.mxu0 0
  %3491 = vmatpush.bf16.msra.mxu0 0
  %3492 = vmatpush.bf16.msra.mxu0 0
  %3493 = vmatpush.bf16.msra.mxu0 0
  %3494 = vmatpush.bf16.msra.mxu0 %v3345
  %3495 = vmatpush.bf16.msra.mxu0 %v3200
  %3496 = vmatmul.bf16.gmra.mxu0 %v552
  %v3497 = vpop.f32.mrf.mxu0
  %v3498 = vadd.f32 0.0, %v3497
  %v3499 = vpop.f32.mrf.mxu0
  %v3500 = vadd.f32 0.0, %v3499
  %3501 = vdwg.mxu0
  %3502 = vmatpush.bf16.msra.mxu0 0
  %3503 = vmatpush.bf16.msra.mxu0 0
  %3504 = vmatpush.bf16.msra.mxu0 0
  %3505 = vmatpush.bf16.msra.mxu0 0
  %3506 = vmatpush.bf16.msra.mxu0 0
  %3507 = vmatpush.bf16.msra.mxu0 0
  %3508 = vmatpush.bf16.msra.mxu0 %v3348
  %3509 = vmatpush.bf16.msra.mxu0 %v3201
  %3510 = vmatmul.bf16.gmra.mxu0 %v552
  %v3511 = vpop.f32.mrf.mxu0
  %v3512 = vadd.f32 0.0, %v3511
  %v3513 = vpop.f32.mrf.mxu0
  %v3514 = vadd.f32 0.0, %v3513
  %3515 = vdwg.mxu0
  %3516 = vmatpush.bf16.msra.mxu0 0
  %3517 = vmatpush.bf16.msra.mxu0 0
  %3518 = vmatpush.bf16.msra.mxu0 0
  %3519 = vmatpush.bf16.msra.mxu0 0
  %3520 = vmatpush.bf16.msra.mxu0 0
  %3521 = vmatpush.bf16.msra.mxu0 0
  %3522 = vmatpush.bf16.msra.mxu0 %v3351
  %3523 = vmatpush.bf16.msra.mxu0 %v3202
  %3524 = vmatmul.bf16.gmra.mxu0 %v552
  %v3525 = vpop.f32.mrf.mxu0
  %v3526 = vadd.f32 0.0, %v3525
  %v3527 = vpop.f32.mrf.mxu0
  %v3528 = vadd.f32 0.0, %v3527
  %3529 = vdwg.mxu0
  %3530 = vmatpush.bf16.msra.mxu0 0
  %3531 = vmatpush.bf16.msra.mxu0 0
  %3532 = vmatpush.bf16.msra.mxu0 0
  %3533 = vmatpush.bf16.msra.mxu0 0
  %3534 = vmatpush.bf16.msra.mxu0 0
  %3535 = vmatpush.bf16.msra.mxu0 0
  %3536 = vmatpush.bf16.msra.mxu0 %v3354
  %3537 = vmatpush.bf16.msra.mxu0 %v3203
  %3538 = vmatmul.bf16.gmra.mxu0 %v552
  %v3539 = vpop.f32.mrf.mxu0
  %v3540 = vadd.f32 0.0, %v3539
  %v3541 = vpop.f32.mrf.mxu0
  %v3542 = vadd.f32 0.0, %v3541
  %3543 = vdwg.mxu0
  %3544 = vmatpush.bf16.msra.mxu0 0
  %3545 = vmatpush.bf16.msra.mxu0 0
  %3546 = vmatpush.bf16.msra.mxu0 0
  %3547 = vmatpush.bf16.msra.mxu0 0
  %3548 = vmatpush.bf16.msra.mxu0 0
  %3549 = vmatpush.bf16.msra.mxu0 0
  %3550 = vmatpush.bf16.msra.mxu0 %v3357
  %3551 = vmatpush.bf16.msra.mxu0 %v3204
  %3552 = vmatmul.bf16.gmra.mxu0 %v552
  %v3553 = vpop.f32.mrf.mxu0
  %v3554 = vadd.f32 0.0, %v3553
  %v3555 = vpop.f32.mrf.mxu0
  %v3556 = vadd.f32 0.0, %v3555
  %3557 = vdwg.mxu0
  %3558 = vmatpush.bf16.msra.mxu0 0
  %3559 = vmatpush.bf16.msra.mxu0 0
  %3560 = vmatpush.bf16.msra.mxu0 0
  %3561 = vmatpush.bf16.msra.mxu0 0
  %3562 = vmatpush.bf16.msra.mxu0 0
  %3563 = vmatpush.bf16.msra.mxu0 0
  %3564 = vmatpush.bf16.msra.mxu0 %v3360
  %3565 = vmatpush.bf16.msra.mxu0 %v3205
  %3566 = vmatmul.bf16.gmra.mxu0 %v552
  %v3567 = vpop.f32.mrf.mxu0
  %v3568 = vadd.f32 0.0, %v3567
  %v3569 = vpop.f32.mrf.mxu0
  %v3570 = vadd.f32 0.0, %v3569
  %3571 = vdwg.mxu0
  %3572 = vmatpush.bf16.msra.mxu0 0
  %3573 = vmatpush.bf16.msra.mxu0 0
  %3574 = vmatpush.bf16.msra.mxu0 0
  %3575 = vmatpush.bf16.msra.mxu0 0
  %3576 = vmatpush.bf16.msra.mxu0 0
  %3577 = vmatpush.bf16.msra.mxu0 0
  %3578 = vmatpush.bf16.msra.mxu0 %v3363
  %3579 = vmatpush.bf16.msra.mxu0 %v3206
  %3580 = vmatmul.bf16.gmra.mxu0 %v552
  %v3581 = vpop.f32.mrf.mxu0
  %v3582 = vadd.f32 0.0, %v3581
  %v3583 = vpop.f32.mrf.mxu0
  %v3584 = vadd.f32 0.0, %v3583
  %3585 = vdwg.mxu0
  %3586 = vmatpush.bf16.msra.mxu0 0
  %3587 = vmatpush.bf16.msra.mxu0 0
  %3588 = vmatpush.bf16.msra.mxu0 0
  %3589 = vmatpush.bf16.msra.mxu0 0
  %3590 = vmatpush.bf16.msra.mxu0 0
  %3591 = vmatpush.bf16.msra.mxu0 0
  %3592 = vmatpush.bf16.msra.mxu0 %v3366
  %3593 = vmatpush.bf16.msra.mxu0 %v3207
  %3594 = vmatmul.bf16.gmra.mxu0 %v552
  %v3595 = vpop.f32.mrf.mxu0
  %v3596 = vadd.f32 0.0, %v3595
  %v3597 = vpop.f32.mrf.mxu0
  %v3598 = vadd.f32 0.0, %v3597
  %3599 = vdwg.mxu0
  %3600 = vmatpush.bf16.msra.mxu0 0
  %3601 = vmatpush.bf16.msra.mxu0 0
  %3602 = vmatpush.bf16.msra.mxu0 0
  %3603 = vmatpush.bf16.msra.mxu0 0
  %3604 = vmatpush.bf16.msra.mxu0 0
  %3605 = vmatpush.bf16.msra.mxu0 0
  %3606 = vmatpush.bf16.msra.mxu0 %v3369
  %3607 = vmatpush.bf16.msra.mxu0 %v3208
  %3608 = vmatmul.bf16.gmra.mxu0 %v552
  %v3609 = vpop.f32.mrf.mxu0
  %v3610 = vadd.f32 0.0, %v3609
  %v3611 = vpop.f32.mrf.mxu0
  %v3612 = vadd.f32 0.0, %v3611
  %3613 = vdwg.mxu0
  %3614 = vmatpush.bf16.msra.mxu0 0
  %3615 = vmatpush.bf16.msra.mxu0 0
  %3616 = vmatpush.bf16.msra.mxu0 0
  %3617 = vmatpush.bf16.msra.mxu0 0
  %3618 = vmatpush.bf16.msra.mxu0 0
  %3619 = vmatpush.bf16.msra.mxu0 0
  %3620 = vmatpush.bf16.msra.mxu0 %v3372
  %3621 = vmatpush.bf16.msra.mxu0 %v3209
  %3622 = vmatmul.bf16.gmra.mxu0 %v552
  %v3623 = vpop.f32.mrf.mxu0
  %v3624 = vadd.f32 0.0, %v3623
  %v3625 = vpop.f32.mrf.mxu0
  %v3626 = vadd.f32 0.0, %v3625
  %3627 = vdwg.mxu0
  %3628 = vmatpush.bf16.msra.mxu0 0
  %3629 = vmatpush.bf16.msra.mxu0 0
  %3630 = vmatpush.bf16.msra.mxu0 0
  %3631 = vmatpush.bf16.msra.mxu0 0
  %3632 = vmatpush.bf16.msra.mxu0 0
  %3633 = vmatpush.bf16.msra.mxu0 0
  %3634 = vmatpush.bf16.msra.mxu0 %v3375
  %3635 = vmatpush.bf16.msra.mxu0 %v3210
  %3636 = vmatmul.bf16.gmra.mxu0 %v552
  %v3637 = vpop.f32.mrf.mxu0
  %v3638 = vadd.f32 0.0, %v3637
  %v3639 = vpop.f32.mrf.mxu0
  %v3640 = vadd.f32 0.0, %v3639
  %3641 = vdwg.mxu0
  %3642 = vmatpush.bf16.msra.mxu0 0
  %3643 = vmatpush.bf16.msra.mxu0 0
  %3644 = vmatpush.bf16.msra.mxu0 0
  %3645 = vmatpush.bf16.msra.mxu0 0
  %3646 = vmatpush.bf16.msra.mxu0 0
  %3647 = vmatpush.bf16.msra.mxu0 0
  %3648 = vmatpush.bf16.msra.mxu0 %v3378
  %3649 = vmatpush.bf16.msra.mxu0 %v3211
  %3650 = vmatmul.bf16.gmra.mxu0 %v552
  %v3651 = vpop.f32.mrf.mxu0
  %v3652 = vadd.f32 0.0, %v3651
  %v3653 = vpop.f32.mrf.mxu0
  %v3654 = vadd.f32 0.0, %v3653
  %3655 = vdwg.mxu0
  %3656 = vmatpush.bf16.msra.mxu0 0
  %3657 = vmatpush.bf16.msra.mxu0 0
  %3658 = vmatpush.bf16.msra.mxu0 0
  %3659 = vmatpush.bf16.msra.mxu0 0
  %3660 = vmatpush.bf16.msra.mxu0 0
  %3661 = vmatpush.bf16.msra.mxu0 0
  %3662 = vmatpush.bf16.msra.mxu0 %v3381
  %3663 = vmatpush.bf16.msra.mxu0 %v3212
  %3664 = vmatmul.bf16.gmra.mxu0 %v552
  %v3665 = vpop.f32.mrf.mxu0
  %v3666 = vadd.f32 0.0, %v3665
  %v3667 = vpop.f32.mrf.mxu0
  %v3668 = vadd.f32 0.0, %v3667
  %3669 = vdwg.mxu0
  %3670 = vmatpush.bf16.msra.mxu0 0
  %3671 = vmatpush.bf16.msra.mxu0 0
  %3672 = vmatpush.bf16.msra.mxu0 0
  %3673 = vmatpush.bf16.msra.mxu0 0
  %3674 = vmatpush.bf16.msra.mxu0 0
  %3675 = vmatpush.bf16.msra.mxu0 0
  %3676 = vmatpush.bf16.msra.mxu0 %v3384
  %3677 = vmatpush.bf16.msra.mxu0 %v3213
  %3678 = vmatmul.bf16.gmra.mxu0 %v552
  %v3679 = vpop.f32.mrf.mxu0
  %v3680 = vadd.f32 0.0, %v3679
  %v3681 = vpop.f32.mrf.mxu0
  %v3682 = vadd.f32 0.0, %v3681
  %3683 = vdwg.mxu0
  %3684 = vmatpush.bf16.msra.mxu0 0
  %3685 = vmatpush.bf16.msra.mxu0 0
  %3686 = vmatpush.bf16.msra.mxu0 0
  %3687 = vmatpush.bf16.msra.mxu0 0
  %3688 = vmatpush.bf16.msra.mxu0 0
  %3689 = vmatpush.bf16.msra.mxu0 0
  %3690 = vmatpush.bf16.msra.mxu0 %v3387
  %3691 = vmatpush.bf16.msra.mxu0 %v3214
  %3692 = vmatmul.bf16.gmra.mxu0 %v552
  %v3693 = vpop.f32.mrf.mxu0
  %v3694 = vadd.f32 0.0, %v3693
  %v3695 = vpop.f32.mrf.mxu0
  %v3696 = vadd.f32 0.0, %v3695
  %3697 = vdwg.mxu0
  %3698 = vmatpush.bf16.msra.mxu0 0
  %3699 = vmatpush.bf16.msra.mxu0 0
  %3700 = vmatpush.bf16.msra.mxu0 0
  %3701 = vmatpush.bf16.msra.mxu0 0
  %3702 = vmatpush.bf16.msra.mxu0 0
  %3703 = vmatpush.bf16.msra.mxu0 0
  %3704 = vmatpush.bf16.msra.mxu0 %v3390
  %3705 = vmatpush.bf16.msra.mxu0 %v3215
  %3706 = vmatmul.bf16.gmra.mxu0 %v552
  %v3707 = vpop.f32.mrf.mxu0
  %v3708 = vadd.f32 0.0, %v3707
  %v3709 = vpop.f32.mrf.mxu0
  %v3710 = vadd.f32 0.0, %v3709
  %3711 = vdwg.mxu0
  %3712 = vmatpush.bf16.msra.mxu0 0
  %3713 = vmatpush.bf16.msra.mxu0 0
  %3714 = vmatpush.bf16.msra.mxu0 0
  %3715 = vmatpush.bf16.msra.mxu0 0
  %3716 = vmatpush.bf16.msra.mxu0 0
  %3717 = vmatpush.bf16.msra.mxu0 0
  %3718 = vmatpush.bf16.msra.mxu0 %v3393
  %3719 = vmatpush.bf16.msra.mxu0 %v3216
  %3720 = vmatmul.bf16.gmra.mxu0 %v552
  %v3721 = vpop.f32.mrf.mxu0
  %v3722 = vadd.f32 0.0, %v3721
  %v3723 = vpop.f32.mrf.mxu0
  %v3724 = vadd.f32 0.0, %v3723
  %3725 = vdwg.mxu0
  %3726 = vmatpush.bf16.msra.mxu0 0
  %3727 = vmatpush.bf16.msra.mxu0 0
  %3728 = vmatpush.bf16.msra.mxu0 0
  %3729 = vmatpush.bf16.msra.mxu0 0
  %3730 = vmatpush.bf16.msra.mxu0 0
  %3731 = vmatpush.bf16.msra.mxu0 0
  %3732 = vmatpush.bf16.msra.mxu0 %v3396
  %3733 = vmatpush.bf16.msra.mxu0 %v3217
  %3734 = vmatmul.bf16.gmra.mxu0 %v552
  %v3735 = vpop.f32.mrf.mxu0
  %v3736 = vadd.f32 0.0, %v3735
  %v3737 = vpop.f32.mrf.mxu0
  %v3738 = vadd.f32 0.0, %v3737
  %3739 = vdwg.mxu0
  %3740 = vmatpush.bf16.msra.mxu0 0
  %3741 = vmatpush.bf16.msra.mxu0 0
  %3742 = vmatpush.bf16.msra.mxu0 0
  %3743 = vmatpush.bf16.msra.mxu0 0
  %3744 = vmatpush.bf16.msra.mxu0 0
  %3745 = vmatpush.bf16.msra.mxu0 0
  %3746 = vmatpush.bf16.msra.mxu0 %v3399
  %3747 = vmatpush.bf16.msra.mxu0 %v3218
  %3748 = vmatmul.bf16.gmra.mxu0 %v552
  %v3749 = vpop.f32.mrf.mxu0
  %v3750 = vadd.f32 0.0, %v3749
  %v3751 = vpop.f32.mrf.mxu0
  %v3752 = vadd.f32 0.0, %v3751
  %3753 = vdwg.mxu0
  %3754 = vmatpush.bf16.msra.mxu0 0
  %3755 = vmatpush.bf16.msra.mxu0 0
  %3756 = vmatpush.bf16.msra.mxu0 0
  %3757 = vmatpush.bf16.msra.mxu0 0
  %3758 = vmatpush.bf16.msra.mxu0 0
  %3759 = vmatpush.bf16.msra.mxu0 0
  %3760 = vmatpush.bf16.msra.mxu0 %v3402
  %3761 = vmatpush.bf16.msra.mxu0 %v3219
  %3762 = vmatmul.bf16.gmra.mxu0 %v552
  %v3763 = vpop.f32.mrf.mxu0
  %v3764 = vadd.f32 0.0, %v3763
  %v3765 = vpop.f32.mrf.mxu0
  %v3766 = vadd.f32 0.0, %v3765
  %3767 = vdwg.mxu0
  %3768 = vmatpush.bf16.msra.mxu0 0
  %3769 = vmatpush.bf16.msra.mxu0 0
  %3770 = vmatpush.bf16.msra.mxu0 0
  %3771 = vmatpush.bf16.msra.mxu0 0
  %3772 = vmatpush.bf16.msra.mxu0 0
  %3773 = vmatpush.bf16.msra.mxu0 0
  %3774 = vmatpush.bf16.msra.mxu0 %v3405
  %3775 = vmatpush.bf16.msra.mxu0 %v3220
  %3776 = vmatmul.bf16.gmra.mxu0 %v552
  %v3777 = vpop.f32.mrf.mxu0
  %v3778 = vadd.f32 0.0, %v3777
  %v3779 = vpop.f32.mrf.mxu0
  %v3780 = vadd.f32 0.0, %v3779
  %3781 = vdwg.mxu0
  %3782 = vmatpush.bf16.msra.mxu0 0
  %3783 = vmatpush.bf16.msra.mxu0 0
  %3784 = vmatpush.bf16.msra.mxu0 0
  %3785 = vmatpush.bf16.msra.mxu0 0
  %3786 = vmatpush.bf16.msra.mxu0 0
  %3787 = vmatpush.bf16.msra.mxu0 0
  %3788 = vmatpush.bf16.msra.mxu0 %v3408
  %3789 = vmatpush.bf16.msra.mxu0 %v3221
  %3790 = vmatmul.bf16.gmra.mxu0 %v552
  %v3791 = vpop.f32.mrf.mxu0
  %v3792 = vadd.f32 0.0, %v3791
  %v3793 = vpop.f32.mrf.mxu0
  %v3794 = vadd.f32 0.0, %v3793
  %3795 = vdwg.mxu0
  %3796 = vmatpush.bf16.msra.mxu0 0
  %3797 = vmatpush.bf16.msra.mxu0 0
  %3798 = vmatpush.bf16.msra.mxu0 0
  %3799 = vmatpush.bf16.msra.mxu0 0
  %3800 = vmatpush.bf16.msra.mxu0 0
  %3801 = vmatpush.bf16.msra.mxu0 0
  %3802 = vmatpush.bf16.msra.mxu0 %v3411
  %3803 = vmatpush.bf16.msra.mxu0 %v3222
  %3804 = vmatmul.bf16.gmra.mxu0 %v552
  %v3805 = vpop.f32.mrf.mxu0
  %v3806 = vadd.f32 0.0, %v3805
  %v3807 = vpop.f32.mrf.mxu0
  %v3808 = vadd.f32 0.0, %v3807
  %3809 = vdwg.mxu0
  %3810 = vmatpush.bf16.msra.mxu0 0
  %3811 = vmatpush.bf16.msra.mxu0 0
  %3812 = vmatpush.bf16.msra.mxu0 0
  %3813 = vmatpush.bf16.msra.mxu0 0
  %3814 = vmatpush.bf16.msra.mxu0 0
  %3815 = vmatpush.bf16.msra.mxu0 0
  %3816 = vmatpush.bf16.msra.mxu0 %v3414
  %3817 = vmatpush.bf16.msra.mxu0 %v3223
  %3818 = vmatmul.bf16.gmra.mxu0 %v552
  %v3819 = vpop.f32.mrf.mxu0
  %v3820 = vadd.f32 0.0, %v3819
  %v3821 = vpop.f32.mrf.mxu0
  %v3822 = vadd.f32 0.0, %v3821
  %3823 = vdwg.mxu0
  %3824 = vmatpush.bf16.msra.mxu0 0
  %3825 = vmatpush.bf16.msra.mxu0 0
  %3826 = vmatpush.bf16.msra.mxu0 0
  %3827 = vmatpush.bf16.msra.mxu0 0
  %3828 = vmatpush.bf16.msra.mxu0 0
  %3829 = vmatpush.bf16.msra.mxu0 0
  %3830 = vmatpush.bf16.msra.mxu0 %v3417
  %3831 = vmatpush.bf16.msra.mxu0 %v3224
  %3832 = vmatmul.bf16.gmra.mxu0 %v552
  %v3833 = vpop.f32.mrf.mxu0
  %v3834 = vadd.f32 0.0, %v3833
  %v3835 = vpop.f32.mrf.mxu0
  %v3836 = vadd.f32 0.0, %v3835
  %3837 = vdwg.mxu0
  %3838 = vmatpush.bf16.msra.mxu0 0
  %3839 = vmatpush.bf16.msra.mxu0 0
  %3840 = vmatpush.bf16.msra.mxu0 0
  %3841 = vmatpush.bf16.msra.mxu0 0
  %3842 = vmatpush.bf16.msra.mxu0 0
  %3843 = vmatpush.bf16.msra.mxu0 0
  %3844 = vmatpush.bf16.msra.mxu0 %v3420
  %3845 = vmatpush.bf16.msra.mxu0 %v3225
  %3846 = vmatmul.bf16.gmra.mxu0 %v552
  %v3847 = vpop.f32.mrf.mxu0
  %v3848 = vadd.f32 0.0, %v3847
  %v3849 = vpop.f32.mrf.mxu0
  %v3850 = vadd.f32 0.0, %v3849
  %3851 = vdwg.mxu0
  %3852 = vmatpush.bf16.msra.mxu0 0
  %3853 = vmatpush.bf16.msra.mxu0 0
  %3854 = vmatpush.bf16.msra.mxu0 0
  %3855 = vmatpush.bf16.msra.mxu0 0
  %3856 = vmatpush.bf16.msra.mxu0 0
  %3857 = vmatpush.bf16.msra.mxu0 0
  %3858 = vmatpush.bf16.msra.mxu0 %v3423
  %3859 = vmatpush.bf16.msra.mxu0 %v3226
  %3860 = vmatmul.bf16.gmra.mxu0 %v552
  %v3861 = vpop.f32.mrf.mxu0
  %v3862 = vadd.f32 0.0, %v3861
  %v3863 = vpop.f32.mrf.mxu0
  %v3864 = vadd.f32 0.0, %v3863
  %3865 = vdwg.mxu0
  %3866 = vmatpush.bf16.msra.mxu0 0
  %3867 = vmatpush.bf16.msra.mxu0 0
  %3868 = vmatpush.bf16.msra.mxu0 0
  %3869 = vmatpush.bf16.msra.mxu0 0
  %3870 = vmatpush.bf16.msra.mxu0 0
  %3871 = vmatpush.bf16.msra.mxu0 0
  %3872 = vmatpush.bf16.msra.mxu0 %v3426
  %3873 = vmatpush.bf16.msra.mxu0 %v3227
  %3874 = vmatmul.bf16.gmra.mxu0 %v552
  %v3875 = vpop.f32.mrf.mxu0
  %v3876 = vadd.f32 0.0, %v3875
  %v3877 = vpop.f32.mrf.mxu0
  %v3878 = vadd.f32 0.0, %v3877
  %3879 = vdwg.mxu0
  %3880 = vmatpush.bf16.msra.mxu0 0
  %3881 = vmatpush.bf16.msra.mxu0 0
  %3882 = vmatpush.bf16.msra.mxu0 0
  %3883 = vmatpush.bf16.msra.mxu0 0
  %3884 = vmatpush.bf16.msra.mxu0 0
  %3885 = vmatpush.bf16.msra.mxu0 0
  %3886 = vmatpush.bf16.msra.mxu0 %v3429
  %3887 = vmatpush.bf16.msra.mxu0 %v3228
  %3888 = vmatmul.bf16.gmra.mxu0 %v552
  %v3889 = vpop.f32.mrf.mxu0
  %v3890 = vadd.f32 0.0, %v3889
  %v3891 = vpop.f32.mrf.mxu0
  %v3892 = vadd.f32 0.0, %v3891
  %3893 = vdwg.mxu0
  %3894 = vmatpush.bf16.msra.mxu0 0
  %3895 = vmatpush.bf16.msra.mxu0 0
  %3896 = vmatpush.bf16.msra.mxu0 0
  %3897 = vmatpush.bf16.msra.mxu0 0
  %3898 = vmatpush.bf16.msra.mxu0 0
  %3899 = vmatpush.bf16.msra.mxu0 0
  %3900 = vmatpush.bf16.msra.mxu0 %v3432
  %3901 = vmatpush.bf16.msra.mxu0 %v3229
  %3902 = vmatmul.bf16.gmra.mxu0 %v552
  %v3903 = vpop.f32.mrf.mxu0
  %v3904 = vadd.f32 0.0, %v3903
  %v3905 = vpop.f32.mrf.mxu0
  %v3906 = vadd.f32 0.0, %v3905
  %3907 = vdwg.mxu0
  %3908 = vmatpush.bf16.msra.mxu0 0
  %3909 = vmatpush.bf16.msra.mxu0 0
  %3910 = vmatpush.bf16.msra.mxu0 0
  %3911 = vmatpush.bf16.msra.mxu0 0
  %3912 = vmatpush.bf16.msra.mxu0 0
  %3913 = vmatpush.bf16.msra.mxu0 0
  %3914 = vmatpush.bf16.msra.mxu0 %v3435
  %3915 = vmatpush.bf16.msra.mxu0 %v3230
  %3916 = vmatmul.bf16.gmra.mxu0 %v552
  %v3917 = vpop.f32.mrf.mxu0
  %v3918 = vadd.f32 0.0, %v3917
  %v3919 = vpop.f32.mrf.mxu0
  %v3920 = vadd.f32 0.0, %v3919
  %3921 = vdwg.mxu0
  %3922 = vmatpush.bf16.msra.mxu0 0
  %3923 = vmatpush.bf16.msra.mxu0 0
  %3924 = vmatpush.bf16.msra.mxu0 0
  %3925 = vmatpush.bf16.msra.mxu0 0
  %3926 = vmatpush.bf16.msra.mxu0 0
  %3927 = vmatpush.bf16.msra.mxu0 0
  %3928 = vmatpush.bf16.msra.mxu0 %v3438
  %3929 = vmatpush.bf16.msra.mxu0 %v3231
  %3930 = vmatmul.bf16.gmra.mxu0 %v552
  %v3931 = vpop.f32.mrf.mxu0
  %v3932 = vadd.f32 0.0, %v3931
  %v3933 = vpop.f32.mrf.mxu0
  %v3934 = vadd.f32 0.0, %v3933
  %3935 = vdwg.mxu0
  %3936 = vmatpush.bf16.msra.mxu0 0
  %3937 = vmatpush.bf16.msra.mxu0 0
  %3938 = vmatpush.bf16.msra.mxu0 0
  %3939 = vmatpush.bf16.msra.mxu0 0
  %3940 = vmatpush.bf16.msra.mxu0 0
  %3941 = vmatpush.bf16.msra.mxu0 0
  %3942 = vmatpush.bf16.msra.mxu0 %v3441
  %3943 = vmatpush.bf16.msra.mxu0 %v3232
  %3944 = vmatmul.bf16.gmra.mxu0 %v552
  %v3945 = vpop.f32.mrf.mxu0
  %v3946 = vadd.f32 0.0, %v3945
  %v3947 = vpop.f32.mrf.mxu0
  %v3948 = vadd.f32 0.0, %v3947
  %3949 = vdwg.mxu0
  %3950 = vmatpush.bf16.msra.mxu0 0
  %3951 = vmatpush.bf16.msra.mxu0 0
  %3952 = vmatpush.bf16.msra.mxu0 0
  %3953 = vmatpush.bf16.msra.mxu0 0
  %3954 = vmatpush.bf16.msra.mxu0 0
  %3955 = vmatpush.bf16.msra.mxu0 0
  %3956 = vmatpush.bf16.msra.mxu0 %v3444
  %3957 = vmatpush.bf16.msra.mxu0 %v3233
  %3958 = vmatmul.bf16.gmra.mxu0 %v552
  %v3959 = vpop.f32.mrf.mxu0
  %v3960 = vadd.f32 0.0, %v3959
  %v3961 = vpop.f32.mrf.mxu0
  %v3962 = vadd.f32 0.0, %v3961
  %3963 = vdwg.mxu0
  %3964 = vmatpush.bf16.msra.mxu0 0
  %3965 = vmatpush.bf16.msra.mxu0 0
  %3966 = vmatpush.bf16.msra.mxu0 0
  %3967 = vmatpush.bf16.msra.mxu0 0
  %3968 = vmatpush.bf16.msra.mxu0 0
  %3969 = vmatpush.bf16.msra.mxu0 0
  %3970 = vmatpush.bf16.msra.mxu0 %v3447
  %3971 = vmatpush.bf16.msra.mxu0 %v3234
  %3972 = vmatmul.bf16.gmra.mxu0 %v552
  %v3973 = vpop.f32.mrf.mxu0
  %v3974 = vadd.f32 0.0, %v3973
  %v3975 = vpop.f32.mrf.mxu0
  %v3976 = vadd.f32 0.0, %v3975
  %3977 = vdwg.mxu0
  %3978 = vmatpush.bf16.msra.mxu0 0
  %3979 = vmatpush.bf16.msra.mxu0 0
  %3980 = vmatpush.bf16.msra.mxu0 0
  %3981 = vmatpush.bf16.msra.mxu0 0
  %3982 = vmatpush.bf16.msra.mxu0 0
  %3983 = vmatpush.bf16.msra.mxu0 0
  %3984 = vmatpush.bf16.msra.mxu0 %v3450
  %3985 = vmatpush.bf16.msra.mxu0 %v3235
  %3986 = vmatmul.bf16.gmra.mxu0 %v552
  %v3987 = vpop.f32.mrf.mxu0
  %v3988 = vadd.f32 0.0, %v3987
  %v3989 = vpop.f32.mrf.mxu0
  %v3990 = vadd.f32 0.0, %v3989
  %3991 = vdwg.mxu0
  %3992 = vmatpush.bf16.msra.mxu0 0
  %3993 = vmatpush.bf16.msra.mxu0 0
  %3994 = vmatpush.bf16.msra.mxu0 0
  %3995 = vmatpush.bf16.msra.mxu0 0
  %3996 = vmatpush.bf16.msra.mxu0 0
  %3997 = vmatpush.bf16.msra.mxu0 0
  %3998 = vmatpush.bf16.msra.mxu0 %v3453
  %3999 = vmatpush.bf16.msra.mxu0 %v3236
  %4000 = vmatmul.bf16.gmra.mxu0 %v552
  %v4001 = vpop.f32.mrf.mxu0
  %v4002 = vadd.f32 0.0, %v4001
  %v4003 = vpop.f32.mrf.mxu0
  %v4004 = vadd.f32 0.0, %v4003
  %4005 = vdwg.mxu0
  %4006 = vmatpush.bf16.msra.mxu0 0
  %4007 = vmatpush.bf16.msra.mxu0 0
  %4008 = vmatpush.bf16.msra.mxu0 0
  %4009 = vmatpush.bf16.msra.mxu0 0
  %4010 = vmatpush.bf16.msra.mxu0 0
  %4011 = vmatpush.bf16.msra.mxu0 0
  %4012 = vmatpush.bf16.msra.mxu0 %v3456
  %4013 = vmatpush.bf16.msra.mxu0 %v3237
  %4014 = vmatmul.bf16.gmra.mxu0 %v552
  %v4015 = vpop.f32.mrf.mxu0
  %v4016 = vadd.f32 0.0, %v4015
  %v4017 = vpop.f32.mrf.mxu0
  %v4018 = vadd.f32 0.0, %v4017
  %4019 = vdwg.mxu0
  %4020 = vmatpush.bf16.msra.mxu0 0
  %4021 = vmatpush.bf16.msra.mxu0 0
  %4022 = vmatpush.bf16.msra.mxu0 0
  %4023 = vmatpush.bf16.msra.mxu0 0
  %4024 = vmatpush.bf16.msra.mxu0 0
  %4025 = vmatpush.bf16.msra.mxu0 0
  %4026 = vmatpush.bf16.msra.mxu0 %v3459
  %4027 = vmatpush.bf16.msra.mxu0 %v3238
  %4028 = vmatmul.bf16.gmra.mxu0 %v552
  %v4029 = vpop.f32.mrf.mxu0
  %v4030 = vadd.f32 0.0, %v4029
  %v4031 = vpop.f32.mrf.mxu0
  %v4032 = vadd.f32 0.0, %v4031
  %4033 = vdwg.mxu0
  %4034 = vmatpush.bf16.msra.mxu0 0
  %4035 = vmatpush.bf16.msra.mxu0 0
  %4036 = vmatpush.bf16.msra.mxu0 0
  %4037 = vmatpush.bf16.msra.mxu0 0
  %4038 = vmatpush.bf16.msra.mxu0 0
  %4039 = vmatpush.bf16.msra.mxu0 0
  %4040 = vmatpush.bf16.msra.mxu0 %v3462
  %4041 = vmatpush.bf16.msra.mxu0 %v3239
  %4042 = vmatmul.bf16.gmra.mxu0 %v552
  %v4043 = vpop.f32.mrf.mxu0
  %v4044 = vadd.f32 0.0, %v4043
  %v4045 = vpop.f32.mrf.mxu0
  %v4046 = vadd.f32 0.0, %v4045
  %4047 = vdwg.mxu0
  %4048 = vmatpush.bf16.msra.mxu0 0
  %4049 = vmatpush.bf16.msra.mxu0 0
  %4050 = vmatpush.bf16.msra.mxu0 0
  %4051 = vmatpush.bf16.msra.mxu0 0
  %4052 = vmatpush.bf16.msra.mxu0 0
  %4053 = vmatpush.bf16.msra.mxu0 0
  %4054 = vmatpush.bf16.msra.mxu0 %v3465
  %4055 = vmatpush.bf16.msra.mxu0 %v3240
  %4056 = vmatmul.bf16.gmra.mxu0 %v552
  %v4057 = vpop.f32.mrf.mxu0
  %v4058 = vadd.f32 0.0, %v4057
  %v4059 = vpop.f32.mrf.mxu0
  %v4060 = vadd.f32 0.0, %v4059
  %4061 = vdwg.mxu0
  %4062 = vmatpush.bf16.msra.mxu0 0
  %4063 = vmatpush.bf16.msra.mxu0 0
  %4064 = vmatpush.bf16.msra.mxu0 0
  %4065 = vmatpush.bf16.msra.mxu0 0
  %4066 = vmatpush.bf16.msra.mxu0 0
  %4067 = vmatpush.bf16.msra.mxu0 0
  %4068 = vmatpush.bf16.msra.mxu0 %v3468
  %4069 = vmatpush.bf16.msra.mxu0 %v3241
  %4070 = vmatmul.bf16.gmra.mxu0 %v552
  %v4071 = vpop.f32.mrf.mxu0
  %v4072 = vadd.f32 0.0, %v4071
  %v4073 = vpop.f32.mrf.mxu0
  %v4074 = vadd.f32 0.0, %v4073
  %4075 = vdwg.mxu0
  %4076 = vmatpush.bf16.msra.mxu0 0
  %4077 = vmatpush.bf16.msra.mxu0 0
  %4078 = vmatpush.bf16.msra.mxu0 0
  %4079 = vmatpush.bf16.msra.mxu0 0
  %4080 = vmatpush.bf16.msra.mxu0 0
  %4081 = vmatpush.bf16.msra.mxu0 0
  %4082 = vmatpush.bf16.msra.mxu0 %v3471
  %4083 = vmatpush.bf16.msra.mxu0 %v3242
  %4084 = vmatmul.bf16.gmra.mxu0 %v552
  %v4085 = vpop.f32.mrf.mxu0
  %v4086 = vadd.f32 0.0, %v4085
  %v4087 = vpop.f32.mrf.mxu0
  %v4088 = vadd.f32 0.0, %v4087
  %4089 = vdwg.mxu0
  %4090 = vmatpush.bf16.msra.mxu0 0
  %4091 = vmatpush.bf16.msra.mxu0 0
  %4092 = vmatpush.bf16.msra.mxu0 0
  %4093 = vmatpush.bf16.msra.mxu0 0
  %4094 = vmatpush.bf16.msra.mxu0 0
  %4095 = vmatpush.bf16.msra.mxu0 0
  %4096 = vmatpush.bf16.msra.mxu0 %v3474
  %4097 = vmatpush.bf16.msra.mxu0 %v3243
  %4098 = vmatmul.bf16.gmra.mxu0 %v552
  %v4099 = vpop.f32.mrf.mxu0
  %v4100 = vadd.f32 0.0, %v4099
  %v4101 = vpop.f32.mrf.mxu0
  %v4102 = vadd.f32 0.0, %v4101
  %4103 = vdwg.mxu0
  %4104 = vmatpush.bf16.msra.mxu0 0
  %4105 = vmatpush.bf16.msra.mxu0 0
  %4106 = vmatpush.bf16.msra.mxu0 0
  %4107 = vmatpush.bf16.msra.mxu0 0
  %4108 = vmatpush.bf16.msra.mxu0 0
  %4109 = vmatpush.bf16.msra.mxu0 0
  %4110 = vmatpush.bf16.msra.mxu0 %v3477
  %4111 = vmatpush.bf16.msra.mxu0 %v3244
  %4112 = vmatmul.bf16.gmra.mxu0 %v552
  %v4113 = vpop.f32.mrf.mxu0
  %v4114 = vadd.f32 0.0, %v4113
  %v4115 = vpop.f32.mrf.mxu0
  %v4116 = vadd.f32 0.0, %v4115
  %4117 = vdwg.mxu0
  %4118 = vmatpush.bf16.msra.mxu0 0
  %4119 = vmatpush.bf16.msra.mxu0 0
  %4120 = vmatpush.bf16.msra.mxu0 0
  %4121 = vmatpush.bf16.msra.mxu0 0
  %4122 = vmatpush.bf16.msra.mxu0 0
  %4123 = vmatpush.bf16.msra.mxu0 0
  %4124 = vmatpush.bf16.msra.mxu0 %v3480
  %4125 = vmatpush.bf16.msra.mxu0 %v3245
  %4126 = vmatmul.bf16.gmra.mxu0 %v552
  %v4127 = vpop.f32.mrf.mxu0
  %v4128 = vadd.f32 0.0, %v4127
  %v4129 = vpop.f32.mrf.mxu0
  %v4130 = vadd.f32 0.0, %v4129
  %4131 = vdwg.mxu0
  %4132 = vmatpush.bf16.msra.mxu0 0
  %4133 = vmatpush.bf16.msra.mxu0 0
  %4134 = vmatpush.bf16.msra.mxu0 0
  %4135 = vmatpush.bf16.msra.mxu0 0
  %4136 = vmatpush.bf16.msra.mxu0 0
  %4137 = vmatpush.bf16.msra.mxu0 0
  %4138 = vmatpush.bf16.msra.mxu0 %v3483
  %4139 = vmatpush.bf16.msra.mxu0 %v3246
  %4140 = vmatmul.bf16.gmra.mxu0 %v552
  %v4141 = vpop.f32.mrf.mxu0
  %v4142 = vadd.f32 0.0, %v4141
  %v4143 = vpop.f32.mrf.mxu0
  %v4144 = vadd.f32 0.0, %v4143
  %4145 = vdwg.mxu0
  %4146 = vmatpush.bf16.msra.mxu0 0
  %4147 = vmatpush.bf16.msra.mxu0 0
  %4148 = vmatpush.bf16.msra.mxu0 0
  %4149 = vmatpush.bf16.msra.mxu0 0
  %4150 = vmatpush.bf16.msra.mxu0 0
  %4151 = vmatpush.bf16.msra.mxu0 0
  %4152 = vmatpush.bf16.msra.mxu0 %v3486
  %4153 = vmatpush.bf16.msra.mxu0 %v3247
  %4154 = vmatmul.bf16.gmra.mxu0 %v552
  %v4155 = vpop.f32.mrf.mxu0
  %v4156 = vadd.f32 0.0, %v4155
  %v4157 = vpop.f32.mrf.mxu0
  %v4158 = vadd.f32 0.0, %v4157
  %4159 = vdwg.mxu0
  %v4160 = vmax.f32 %v2719, %v3498
  %v4161 = vmax.f32 %v2720, %v3512
  %v4162 = vmax.f32 %v2721, %v3526
  %v4163 = vmax.f32 %v2722, %v3540
  %v4164 = vmax.f32 %v2723, %v3554
  %v4165 = vmax.f32 %v2724, %v3568
  %v4166 = vmax.f32 %v2725, %v3582
  %v4167 = vmax.f32 %v2726, %v3596
  %v4168 = vmax.f32 %v2727, %v3610
  %v4169 = vmax.f32 %v2728, %v3624
  %v4170 = vmax.f32 %v2729, %v3638
  %v4171 = vmax.f32 %v2730, %v3652
  %v4172 = vmax.f32 %v2731, %v3666
  %v4173 = vmax.f32 %v2732, %v3680
  %v4174 = vmax.f32 %v2733, %v3694
  %v4175 = vmax.f32 %v2734, %v3708
  %v4176 = vmax.f32 %v2735, %v3722
  %v4177 = vmax.f32 %v2736, %v3736
  %v4178 = vmax.f32 %v2737, %v3750
  %v4179 = vmax.f32 %v2738, %v3764
  %v4180 = vmax.f32 %v2739, %v3778
  %v4181 = vmax.f32 %v2740, %v3792
  %v4182 = vmax.f32 %v2741, %v3806
  %v4183 = vmax.f32 %v2742, %v3820
  %v4184 = vmax.f32 %v2743, %v3834
  %v4185 = vmax.f32 %v2744, %v3848
  %v4186 = vmax.f32 %v2745, %v3862
  %v4187 = vmax.f32 %v2746, %v3876
  %v4188 = vmax.f32 %v2747, %v3890
  %v4189 = vmax.f32 %v2748, %v3904
  %v4190 = vmax.f32 %v2749, %v3918
  %v4191 = vmax.f32 %v2750, %v3932
  %v4192 = vmax.f32 %v2751, %v3946
  %v4193 = vmax.f32 %v2752, %v3960
  %v4194 = vmax.f32 %v2753, %v3974
  %v4195 = vmax.f32 %v2754, %v3988
  %v4196 = vmax.f32 %v2755, %v4002
  %v4197 = vmax.f32 %v2756, %v4016
  %v4198 = vmax.f32 %v2757, %v4030
  %v4199 = vmax.f32 %v2758, %v4044
  %v4200 = vmax.f32 %v2759, %v4058
  %v4201 = vmax.f32 %v2760, %v4072
  %v4202 = vmax.f32 %v2761, %v4086
  %v4203 = vmax.f32 %v2762, %v4100
  %v4204 = vmax.f32 %v2763, %v4114
  %v4205 = vmax.f32 %v2764, %v4128
  %v4206 = vmax.f32 %v2765, %v4142
  %v4207 = vmax.f32 %v2766, %v4156
  %v4208 = vmax.f32 %v2767, %v3500
  %v4209 = vmax.f32 %v2768, %v3514
  %v4210 = vmax.f32 %v2769, %v3528
  %v4211 = vmax.f32 %v2770, %v3542
  %v4212 = vmax.f32 %v2771, %v3556
  %v4213 = vmax.f32 %v2772, %v3570
  %v4214 = vmax.f32 %v2773, %v3584
  %v4215 = vmax.f32 %v2774, %v3598
  %v4216 = vmax.f32 %v2775, %v3612
  %v4217 = vmax.f32 %v2776, %v3626
  %v4218 = vmax.f32 %v2777, %v3640
  %v4219 = vmax.f32 %v2778, %v3654
  %v4220 = vmax.f32 %v2779, %v3668
  %v4221 = vmax.f32 %v2780, %v3682
  %v4222 = vmax.f32 %v2781, %v3696
  %v4223 = vmax.f32 %v2782, %v3710
  %v4224 = vmax.f32 %v2783, %v3724
  %v4225 = vmax.f32 %v2784, %v3738
  %v4226 = vmax.f32 %v2785, %v3752
  %v4227 = vmax.f32 %v2786, %v3766
  %v4228 = vmax.f32 %v2787, %v3780
  %v4229 = vmax.f32 %v2788, %v3794
  %v4230 = vmax.f32 %v2789, %v3808
  %v4231 = vmax.f32 %v2790, %v3822
  %v4232 = vmax.f32 %v2791, %v3836
  %v4233 = vmax.f32 %v2792, %v3850
  %v4234 = vmax.f32 %v2793, %v3864
  %v4235 = vmax.f32 %v2794, %v3878
  %v4236 = vmax.f32 %v2795, %v3892
  %v4237 = vmax.f32 %v2796, %v3906
  %v4238 = vmax.f32 %v2797, %v3920
  %v4239 = vmax.f32 %v2798, %v3934
  %v4240 = vmax.f32 %v2799, %v3948
  %v4241 = vmax.f32 %v2800, %v3962
  %v4242 = vmax.f32 %v2801, %v3976
  %v4243 = vmax.f32 %v2802, %v3990
  %v4244 = vmax.f32 %v2803, %v4004
  %v4245 = vmax.f32 %v2804, %v4018
  %v4246 = vmax.f32 %v2805, %v4032
  %v4247 = vmax.f32 %v2806, %v4046
  %v4248 = vmax.f32 %v2807, %v4060
  %v4249 = vmax.f32 %v2808, %v4074
  %v4250 = vmax.f32 %v2809, %v4088
  %v4251 = vmax.f32 %v2810, %v4102
  %v4252 = vmax.f32 %v2811, %v4116
  %v4253 = vmax.f32 %v2812, %v4130
  %v4254 = vmax.f32 %v2813, %v4144
  %v4255 = vmax.f32 %v2814, %v4158
  %s4256 = scalar_lea.vmem %s0, 2304
  %v4257 = vld [vmem:[%s4256] sm:$0xff]
  %v4258 = vld [vmem:[%s4256 + $0x8] sm:$0xff]
  %v4259 = vld [vmem:[%s4256 + $0x10] sm:$0xff]
  %v4260 = vld [vmem:[%s4256 + $0x18] sm:$0xff]
  %v4261 = vld [vmem:[%s4256 + $0x20] sm:$0xff]
  %v4262 = vld [vmem:[%s4256 + $0x28] sm:$0xff]
  %v4263 = vld [vmem:[%s4256 + $0x30] sm:$0xff]
  %v4264 = vld [vmem:[%s4256 + $0x38] sm:$0xff]
  %v4265 = vld [vmem:[%s4256 + $0x40] sm:$0xff]
  %v4266 = vld [vmem:[%s4256 + $0x48] sm:$0xff]
  %v4267 = vld [vmem:[%s4256 + $0x50] sm:$0xff]
  %v4268 = vld [vmem:[%s4256 + $0x58] sm:$0xff]
  %v4269 = vld [vmem:[%s4256 + $0x60] sm:$0xff]
  %v4270 = vld [vmem:[%s4256 + $0x68] sm:$0xff]
  %v4271 = vld [vmem:[%s4256 + $0x70] sm:$0xff]
  %v4272 = vld [vmem:[%s4256 + $0x78] sm:$0xff]
  %v4273 = vld [vmem:[%s4256 + $0x80] sm:$0xff]
  %v4274 = vld [vmem:[%s4256 + $0x88] sm:$0xff]
  %v4275 = vld [vmem:[%s4256 + $0x90] sm:$0xff]
  %v4276 = vld [vmem:[%s4256 + $0x98] sm:$0xff]
  %v4277 = vld [vmem:[%s4256 + $0xa0] sm:$0xff]
  %v4278 = vld [vmem:[%s4256 + $0xa8] sm:$0xff]
  %v4279 = vld [vmem:[%s4256 + $0xb0] sm:$0xff]
  %v4280 = vld [vmem:[%s4256 + $0xb8] sm:$0xff]
  %v4281 = vld [vmem:[%s4256 + $0xc0] sm:$0xff]
  %v4282 = vld [vmem:[%s4256 + $0xc8] sm:$0xff]
  %v4283 = vld [vmem:[%s4256 + $0xd0] sm:$0xff]
  %v4284 = vld [vmem:[%s4256 + $0xd8] sm:$0xff]
  %v4285 = vld [vmem:[%s4256 + $0xe0] sm:$0xff]
  %v4286 = vld [vmem:[%s4256 + $0xe8] sm:$0xff]
  %v4287 = vld [vmem:[%s4256 + $0xf0] sm:$0xff]
  %v4288 = vld [vmem:[%s4256 + $0xf8] sm:$0xff]
  %v4289 = vld [vmem:[%s4256 + $0x100] sm:$0xff]
  %v4290 = vld [vmem:[%s4256 + $0x108] sm:$0xff]
  %v4291 = vld [vmem:[%s4256 + $0x110] sm:$0xff]
  %v4292 = vld [vmem:[%s4256 + $0x118] sm:$0xff]
  %v4293 = vld [vmem:[%s4256 + $0x120] sm:$0xff]
  %v4294 = vld [vmem:[%s4256 + $0x128] sm:$0xff]
  %v4295 = vld [vmem:[%s4256 + $0x130] sm:$0xff]
  %v4296 = vld [vmem:[%s4256 + $0x138] sm:$0xff]
  %v4297 = vld [vmem:[%s4256 + $0x140] sm:$0xff]
  %v4298 = vld [vmem:[%s4256 + $0x148] sm:$0xff]
  %v4299 = vld [vmem:[%s4256 + $0x150] sm:$0xff]
  %v4300 = vld [vmem:[%s4256 + $0x158] sm:$0xff]
  %v4301 = vld [vmem:[%s4256 + $0x160] sm:$0xff]
  %v4302 = vld [vmem:[%s4256 + $0x168] sm:$0xff]
  %v4303 = vld [vmem:[%s4256 + $0x170] sm:$0xff]
  %v4304 = vld [vmem:[%s4256 + $0x178] sm:$0xff]
  %v4305 = vld [vmem:[%s4256 + $0x180] sm:$0xff]
  %v4306 = vld [vmem:[%s4256 + $0x188] sm:$0xff]
  %v4307 = vld [vmem:[%s4256 + $0x190] sm:$0xff]
  %v4308 = vld [vmem:[%s4256 + $0x198] sm:$0xff]
  %v4309 = vld [vmem:[%s4256 + $0x1a0] sm:$0xff]
  %v4310 = vld [vmem:[%s4256 + $0x1a8] sm:$0xff]
  %v4311 = vld [vmem:[%s4256 + $0x1b0] sm:$0xff]
  %v4312 = vld [vmem:[%s4256 + $0x1b8] sm:$0xff]
  %v4313 = vld [vmem:[%s4256 + $0x1c0] sm:$0xff]
  %v4314 = vld [vmem:[%s4256 + $0x1c8] sm:$0xff]
  %v4315 = vld [vmem:[%s4256 + $0x1d0] sm:$0xff]
  %v4316 = vld [vmem:[%s4256 + $0x1d8] sm:$0xff]
  %v4317 = vld [vmem:[%s4256 + $0x1e0] sm:$0xff]
  %v4318 = vld [vmem:[%s4256 + $0x1e8] sm:$0xff]
  %v4319 = vld [vmem:[%s4256 + $0x1f0] sm:$0xff]
  %v4320 = vld [vmem:[%s4256 + $0x1f8] sm:$0xff]
  %v4321 = vld [vmem:[%s4256 + $0x200] sm:$0xff]
  %v4322 = vld [vmem:[%s4256 + $0x208] sm:$0xff]
  %v4323 = vld [vmem:[%s4256 + $0x210] sm:$0xff]
  %v4324 = vld [vmem:[%s4256 + $0x218] sm:$0xff]
  %v4325 = vld [vmem:[%s4256 + $0x220] sm:$0xff]
  %v4326 = vld [vmem:[%s4256 + $0x228] sm:$0xff]
  %v4327 = vld [vmem:[%s4256 + $0x230] sm:$0xff]
  %v4328 = vld [vmem:[%s4256 + $0x238] sm:$0xff]
  %v4329 = vld [vmem:[%s4256 + $0x240] sm:$0x11]
  %v4330 = vld [vmem:[%s4256 + $0x248] sm:$0x11]
  %v4331 = vld [vmem:[%s4256 + $0x250] sm:$0x11]
  %v4332 = vld [vmem:[%s4256 + $0x258] sm:$0x11]
  %v4333 = vld [vmem:[%s4256 + $0x260] sm:$0x11]
  %v4334 = vld [vmem:[%s4256 + $0x268] sm:$0x11]
  %v4335 = vld [vmem:[%s4256 + $0x270] sm:$0x11]
  %v4336 = vld [vmem:[%s4256 + $0x278] sm:$0x11]
  %v4337 = vld [vmem:[%s4256 + $0x280] sm:$0x11]
  %v4338 = vld [vmem:[%s4256 + $0x288] sm:$0x11]
  %v4339 = vld [vmem:[%s4256 + $0x290] sm:$0x11]
  %v4340 = vld [vmem:[%s4256 + $0x298] sm:$0x11]
  %v4341 = vld [vmem:[%s4256 + $0x2a0] sm:$0x11]
  %v4342 = vld [vmem:[%s4256 + $0x2a8] sm:$0x11]
  %v4343 = vld [vmem:[%s4256 + $0x2b0] sm:$0x11]
  %v4344 = vld [vmem:[%s4256 + $0x2b8] sm:$0x11]
  %v4345 = vld [vmem:[%s4256 + $0x2c0] sm:$0x11]
  %v4346 = vld [vmem:[%s4256 + $0x2c8] sm:$0x11]
  %v4347 = vld [vmem:[%s4256 + $0x2d0] sm:$0x11]
  %v4348 = vld [vmem:[%s4256 + $0x2d8] sm:$0x11]
  %v4349 = vld [vmem:[%s4256 + $0x2e0] sm:$0x11]
  %v4350 = vld [vmem:[%s4256 + $0x2e8] sm:$0x11]
  %v4351 = vld [vmem:[%s4256 + $0x2f0] sm:$0x11]
  %v4352 = vld [vmem:[%s4256 + $0x2f8] sm:$0x11]
  %v4449 = vunpack.c.l.b16 %v4257
  %v4450 = vunpack.c.h.b16 %v4257
  %v4451 = vunpack.c.l.b16 %v4258
  %v4452 = vunpack.c.h.b16 %v4258
  %v4453 = vunpack.c.l.b16 %v4259
  %v4454 = vunpack.c.h.b16 %v4259
  %v4455 = vunpack.c.l.b16 %v4260
  %v4456 = vunpack.c.h.b16 %v4260
  %v4457 = vunpack.c.l.b16 %v4261
  %v4458 = vunpack.c.h.b16 %v4261
  %v4459 = vunpack.c.l.b16 %v4262
  %v4460 = vunpack.c.h.b16 %v4262
  %v4461 = vunpack.c.l.b16 %v4263
  %v4462 = vunpack.c.h.b16 %v4263
  %v4463 = vunpack.c.l.b16 %v4264
  %v4464 = vunpack.c.h.b16 %v4264
  %v4465 = vunpack.c.l.b16 %v4265
  %v4466 = vunpack.c.h.b16 %v4265
  %v4467 = vunpack.c.l.b16 %v4266
  %v4468 = vunpack.c.h.b16 %v4266
  %v4469 = vunpack.c.l.b16 %v4267
  %v4470 = vunpack.c.h.b16 %v4267
  %v4471 = vunpack.c.l.b16 %v4268
  %v4472 = vunpack.c.h.b16 %v4268
  %v4473 = vunpack.c.l.b16 %v4269
  %v4474 = vunpack.c.h.b16 %v4269
  %v4475 = vunpack.c.l.b16 %v4270
  %v4476 = vunpack.c.h.b16 %v4270
  %v4477 = vunpack.c.l.b16 %v4271
  %v4478 = vunpack.c.h.b16 %v4271
  %v4479 = vunpack.c.l.b16 %v4272
  %v4480 = vunpack.c.h.b16 %v4272
  %v4481 = vunpack.c.l.b16 %v4273
  %v4482 = vunpack.c.h.b16 %v4273
  %v4483 = vunpack.c.l.b16 %v4274
  %v4484 = vunpack.c.h.b16 %v4274
  %v4485 = vunpack.c.l.b16 %v4275
  %v4486 = vunpack.c.h.b16 %v4275
  %v4487 = vunpack.c.l.b16 %v4276
  %v4488 = vunpack.c.h.b16 %v4276
  %v4489 = vunpack.c.l.b16 %v4277
  %v4490 = vunpack.c.h.b16 %v4277
  %v4491 = vunpack.c.l.b16 %v4278
  %v4492 = vunpack.c.h.b16 %v4278
  %v4493 = vunpack.c.l.b16 %v4279
  %v4494 = vunpack.c.h.b16 %v4279
  %v4495 = vunpack.c.l.b16 %v4280
  %v4496 = vunpack.c.h.b16 %v4280
  %v4497 = vunpack.c.l.b16 %v4281
  %v4498 = vunpack.c.h.b16 %v4281
  %v4499 = vunpack.c.l.b16 %v4282
  %v4500 = vunpack.c.h.b16 %v4282
  %v4501 = vunpack.c.l.b16 %v4283
  %v4502 = vunpack.c.h.b16 %v4283
  %v4503 = vunpack.c.l.b16 %v4284
  %v4504 = vunpack.c.h.b16 %v4284
  %v4505 = vunpack.c.l.b16 %v4285
  %v4506 = vunpack.c.h.b16 %v4285
  %v4507 = vunpack.c.l.b16 %v4286
  %v4508 = vunpack.c.h.b16 %v4286
  %v4509 = vunpack.c.l.b16 %v4287
  %v4510 = vunpack.c.h.b16 %v4287
  %v4511 = vunpack.c.l.b16 %v4288
  %v4512 = vunpack.c.h.b16 %v4288
  %v4513 = vunpack.c.l.b16 %v4289
  %v4514 = vunpack.c.h.b16 %v4289
  %v4515 = vunpack.c.l.b16 %v4290
  %v4516 = vunpack.c.h.b16 %v4290
  %v4517 = vunpack.c.l.b16 %v4291
  %v4518 = vunpack.c.h.b16 %v4291
  %v4519 = vunpack.c.l.b16 %v4292
  %v4520 = vunpack.c.h.b16 %v4292
  %v4521 = vunpack.c.l.b16 %v4293
  %v4522 = vunpack.c.h.b16 %v4293
  %v4523 = vunpack.c.l.b16 %v4294
  %v4524 = vunpack.c.h.b16 %v4294
  %v4525 = vunpack.c.l.b16 %v4295
  %v4526 = vunpack.c.h.b16 %v4295
  %v4527 = vunpack.c.l.b16 %v4296
  %v4528 = vunpack.c.h.b16 %v4296
  %v4529 = vunpack.c.l.b16 %v4297
  %v4530 = vunpack.c.h.b16 %v4297
  %v4531 = vunpack.c.l.b16 %v4298
  %v4532 = vunpack.c.h.b16 %v4298
  %v4533 = vunpack.c.l.b16 %v4299
  %v4534 = vunpack.c.h.b16 %v4299
  %v4535 = vunpack.c.l.b16 %v4300
  %v4536 = vunpack.c.h.b16 %v4300
  %v4537 = vunpack.c.l.b16 %v4301
  %v4538 = vunpack.c.h.b16 %v4301
  %v4539 = vunpack.c.l.b16 %v4302
  %v4540 = vunpack.c.h.b16 %v4302
  %v4541 = vunpack.c.l.b16 %v4303
  %v4542 = vunpack.c.h.b16 %v4303
  %v4543 = vunpack.c.l.b16 %v4304
  %v4544 = vunpack.c.h.b16 %v4304
  %v4545 = vunpack.c.l.b16 %v4305
  %v4546 = vunpack.c.h.b16 %v4305
  %v4547 = vunpack.c.l.b16 %v4306
  %v4548 = vunpack.c.h.b16 %v4306
  %v4549 = vunpack.c.l.b16 %v4307
  %v4550 = vunpack.c.h.b16 %v4307
  %v4551 = vunpack.c.l.b16 %v4308
  %v4552 = vunpack.c.h.b16 %v4308
  %v4553 = vunpack.c.l.b16 %v4309
  %v4554 = vunpack.c.h.b16 %v4309
  %v4555 = vunpack.c.l.b16 %v4310
  %v4556 = vunpack.c.h.b16 %v4310
  %v4557 = vunpack.c.l.b16 %v4311
  %v4558 = vunpack.c.h.b16 %v4311
  %v4559 = vunpack.c.l.b16 %v4312
  %v4560 = vunpack.c.h.b16 %v4312
  %v4561 = vunpack.c.l.b16 %v4313
  %v4562 = vunpack.c.h.b16 %v4313
  %v4563 = vunpack.c.l.b16 %v4314
  %v4564 = vunpack.c.h.b16 %v4314
  %v4565 = vunpack.c.l.b16 %v4315
  %v4566 = vunpack.c.h.b16 %v4315
  %v4567 = vunpack.c.l.b16 %v4316
  %v4568 = vunpack.c.h.b16 %v4316
  %v4569 = vunpack.c.l.b16 %v4317
  %v4570 = vunpack.c.h.b16 %v4317
  %v4571 = vunpack.c.l.b16 %v4318
  %v4572 = vunpack.c.h.b16 %v4318
  %v4573 = vunpack.c.l.b16 %v4319
  %v4574 = vunpack.c.h.b16 %v4319
  %v4575 = vunpack.c.l.b16 %v4320
  %v4576 = vunpack.c.h.b16 %v4320
  %v4577 = vunpack.c.l.b16 %v4321
  %v4578 = vunpack.c.h.b16 %v4321
  %v4579 = vunpack.c.l.b16 %v4322
  %v4580 = vunpack.c.h.b16 %v4322
  %v4581 = vunpack.c.l.b16 %v4323
  %v4582 = vunpack.c.h.b16 %v4323
  %v4583 = vunpack.c.l.b16 %v4324
  %v4584 = vunpack.c.h.b16 %v4324
  %v4585 = vunpack.c.l.b16 %v4325
  %v4586 = vunpack.c.h.b16 %v4325
  %v4587 = vunpack.c.l.b16 %v4326
  %v4588 = vunpack.c.h.b16 %v4326
  %v4589 = vunpack.c.l.b16 %v4327
  %v4590 = vunpack.c.h.b16 %v4327
  %v4591 = vunpack.c.l.b16 %v4328
  %v4592 = vunpack.c.h.b16 %v4328
  %v4593 = vunpack.c.l.b16 %v4329
  %v4594 = vunpack.c.h.b16 %v4329
  %v4595 = vunpack.c.l.b16 %v4330
  %v4596 = vunpack.c.h.b16 %v4330
  %v4597 = vunpack.c.l.b16 %v4331
  %v4598 = vunpack.c.h.b16 %v4331
  %v4599 = vunpack.c.l.b16 %v4332
  %v4600 = vunpack.c.h.b16 %v4332
  %v4601 = vunpack.c.l.b16 %v4333
  %v4602 = vunpack.c.h.b16 %v4333
  %v4603 = vunpack.c.l.b16 %v4334
  %v4604 = vunpack.c.h.b16 %v4334
  %v4605 = vunpack.c.l.b16 %v4335
  %v4606 = vunpack.c.h.b16 %v4335
  %v4607 = vunpack.c.l.b16 %v4336
  %v4608 = vunpack.c.h.b16 %v4336
  %v4609 = vunpack.c.l.b16 %v4337
  %v4610 = vunpack.c.h.b16 %v4337
  %v4611 = vunpack.c.l.b16 %v4338
  %v4612 = vunpack.c.h.b16 %v4338
  %v4613 = vunpack.c.l.b16 %v4339
  %v4614 = vunpack.c.h.b16 %v4339
  %v4615 = vunpack.c.l.b16 %v4340
  %v4616 = vunpack.c.h.b16 %v4340
  %v4617 = vunpack.c.l.b16 %v4341
  %v4618 = vunpack.c.h.b16 %v4341
  %v4619 = vunpack.c.l.b16 %v4342
  %v4620 = vunpack.c.h.b16 %v4342
  %v4621 = vunpack.c.l.b16 %v4343
  %v4622 = vunpack.c.h.b16 %v4343
  %v4623 = vunpack.c.l.b16 %v4344
  %v4624 = vunpack.c.h.b16 %v4344
  %v4625 = vunpack.c.l.b16 %v4345
  %v4626 = vunpack.c.h.b16 %v4345
  %v4627 = vunpack.c.l.b16 %v4346
  %v4628 = vunpack.c.h.b16 %v4346
  %v4629 = vunpack.c.l.b16 %v4347
  %v4630 = vunpack.c.h.b16 %v4347
  %v4631 = vunpack.c.l.b16 %v4348
  %v4632 = vunpack.c.h.b16 %v4348
  %v4633 = vunpack.c.l.b16 %v4349
  %v4634 = vunpack.c.h.b16 %v4349
  %v4635 = vunpack.c.l.b16 %v4350
  %v4636 = vunpack.c.h.b16 %v4350
  %v4637 = vunpack.c.l.b16 %v4351
  %v4638 = vunpack.c.h.b16 %v4351
  %v4639 = vunpack.c.l.b16 %v4352
  %v4640 = vunpack.c.h.b16 %v4352
  %v4641 = vpack.c.b16 %v4497, %v4449
  %v4642 = vpack.c.b16 %v4498, %v4450
  %v4643 = vpack.c.b16 %v4499, %v4451
  %v4644 = vpack.c.b16 %v4500, %v4452
  %v4645 = vpack.c.b16 %v4501, %v4453
  %v4646 = vpack.c.b16 %v4502, %v4454
  %v4647 = vpack.c.b16 %v4503, %v4455
  %v4648 = vpack.c.b16 %v4504, %v4456
  %v4649 = vpack.c.b16 %v4505, %v4457
  %v4650 = vpack.c.b16 %v4506, %v4458
  %v4651 = vpack.c.b16 %v4507, %v4459
  %v4652 = vpack.c.b16 %v4508, %v4460
  %v4653 = vpack.c.b16 %v4509, %v4461
  %v4654 = vpack.c.b16 %v4510, %v4462
  %v4655 = vpack.c.b16 %v4511, %v4463
  %v4656 = vpack.c.b16 %v4512, %v4464
  %v4657 = vpack.c.b16 %v4513, %v4465
  %v4658 = vpack.c.b16 %v4514, %v4466
  %v4659 = vpack.c.b16 %v4515, %v4467
  %v4660 = vpack.c.b16 %v4516, %v4468
  %v4661 = vpack.c.b16 %v4517, %v4469
  %v4662 = vpack.c.b16 %v4518, %v4470
  %v4663 = vpack.c.b16 %v4519, %v4471
  %v4664 = vpack.c.b16 %v4520, %v4472
  %v4665 = vpack.c.b16 %v4521, %v4473
  %v4666 = vpack.c.b16 %v4522, %v4474
  %v4667 = vpack.c.b16 %v4523, %v4475
  %v4668 = vpack.c.b16 %v4524, %v4476
  %v4669 = vpack.c.b16 %v4525, %v4477
  %v4670 = vpack.c.b16 %v4526, %v4478
  %v4671 = vpack.c.b16 %v4527, %v4479
  %v4672 = vpack.c.b16 %v4528, %v4480
  %v4673 = vpack.c.b16 %v4529, %v4481
  %v4674 = vpack.c.b16 %v4530, %v4482
  %v4675 = vpack.c.b16 %v4531, %v4483
  %v4676 = vpack.c.b16 %v4532, %v4484
  %v4677 = vpack.c.b16 %v4533, %v4485
  %v4678 = vpack.c.b16 %v4534, %v4486
  %v4679 = vpack.c.b16 %v4535, %v4487
  %v4680 = vpack.c.b16 %v4536, %v4488
  %v4681 = vpack.c.b16 %v4537, %v4489
  %v4682 = vpack.c.b16 %v4538, %v4490
  %v4683 = vpack.c.b16 %v4539, %v4491
  %v4684 = vpack.c.b16 %v4540, %v4492
  %v4685 = vpack.c.b16 %v4541, %v4493
  %v4686 = vpack.c.b16 %v4542, %v4494
  %v4687 = vpack.c.b16 %v4543, %v4495
  %v4688 = vpack.c.b16 %v4544, %v4496
  %v4689 = vpack.c.b16 %v4593, %v4545
  %v4690 = vpack.c.b16 %v4594, %v4546
  %v4691 = vpack.c.b16 %v4595, %v4547
  %v4692 = vpack.c.b16 %v4596, %v4548
  %v4693 = vpack.c.b16 %v4597, %v4549
  %v4694 = vpack.c.b16 %v4598, %v4550
  %v4695 = vpack.c.b16 %v4599, %v4551
  %v4696 = vpack.c.b16 %v4600, %v4552
  %v4697 = vpack.c.b16 %v4601, %v4553
  %v4698 = vpack.c.b16 %v4602, %v4554
  %v4699 = vpack.c.b16 %v4603, %v4555
  %v4700 = vpack.c.b16 %v4604, %v4556
  %v4701 = vpack.c.b16 %v4605, %v4557
  %v4702 = vpack.c.b16 %v4606, %v4558
  %v4703 = vpack.c.b16 %v4607, %v4559
  %v4704 = vpack.c.b16 %v4608, %v4560
  %v4705 = vpack.c.b16 %v4609, %v4561
  %v4706 = vpack.c.b16 %v4610, %v4562
  %v4707 = vpack.c.b16 %v4611, %v4563
  %v4708 = vpack.c.b16 %v4612, %v4564
  %v4709 = vpack.c.b16 %v4613, %v4565
  %v4710 = vpack.c.b16 %v4614, %v4566
  %v4711 = vpack.c.b16 %v4615, %v4567
  %v4712 = vpack.c.b16 %v4616, %v4568
  %v4713 = vpack.c.b16 %v4617, %v4569
  %v4714 = vpack.c.b16 %v4618, %v4570
  %v4715 = vpack.c.b16 %v4619, %v4571
  %v4716 = vpack.c.b16 %v4620, %v4572
  %v4717 = vpack.c.b16 %v4621, %v4573
  %v4718 = vpack.c.b16 %v4622, %v4574
  %v4719 = vpack.c.b16 %v4623, %v4575
  %v4720 = vpack.c.b16 %v4624, %v4576
  %v4721 = vpack.c.b16 %v4625, %v4577
  %v4722 = vpack.c.b16 %v4626, %v4578
  %v4723 = vpack.c.b16 %v4627, %v4579
  %v4724 = vpack.c.b16 %v4628, %v4580
  %v4725 = vpack.c.b16 %v4629, %v4581
  %v4726 = vpack.c.b16 %v4630, %v4582
  %v4727 = vpack.c.b16 %v4631, %v4583
  %v4728 = vpack.c.b16 %v4632, %v4584
  %v4729 = vpack.c.b16 %v4633, %v4585
  %v4730 = vpack.c.b16 %v4634, %v4586
  %v4731 = vpack.c.b16 %v4635, %v4587
  %v4732 = vpack.c.b16 %v4636, %v4588
  %v4733 = vpack.c.b16 %v4637, %v4589
  %v4734 = vpack.c.b16 %v4638, %v4590
  %v4735 = vpack.c.b16 %v4639, %v4591
  %v4736 = vpack.c.b16 %v4640, %v4592
  %v4786 = vand.u32 %v4689, %v557
  %v4789 = vand.u32 %v4690, %v557
  %v4792 = vand.u32 %v4691, %v557
  %v4795 = vand.u32 %v4692, %v557
  %v4798 = vand.u32 %v4693, %v557
  %v4801 = vand.u32 %v4694, %v557
  %v4804 = vand.u32 %v4695, %v557
  %v4807 = vand.u32 %v4696, %v557
  %v4810 = vand.u32 %v4697, %v557
  %v4813 = vand.u32 %v4698, %v557
  %v4816 = vand.u32 %v4699, %v557
  %v4819 = vand.u32 %v4700, %v557
  %v4822 = vand.u32 %v4701, %v557
  %v4825 = vand.u32 %v4702, %v557
  %v4828 = vand.u32 %v4703, %v557
  %v4831 = vand.u32 %v4704, %v557
  %v4834 = vand.u32 %v4705, %v557
  %v4837 = vand.u32 %v4706, %v557
  %v4840 = vand.u32 %v4707, %v557
  %v4843 = vand.u32 %v4708, %v557
  %v4846 = vand.u32 %v4709, %v557
  %v4849 = vand.u32 %v4710, %v557
  %v4852 = vand.u32 %v4711, %v557
  %v4855 = vand.u32 %v4712, %v557
  %v4858 = vand.u32 %v4713, %v557
  %v4861 = vand.u32 %v4714, %v557
  %v4864 = vand.u32 %v4715, %v557
  %v4867 = vand.u32 %v4716, %v557
  %v4870 = vand.u32 %v4717, %v557
  %v4873 = vand.u32 %v4718, %v557
  %v4876 = vand.u32 %v4719, %v557
  %v4879 = vand.u32 %v4720, %v557
  %v4882 = vand.u32 %v4721, %v557
  %v4885 = vand.u32 %v4722, %v557
  %v4888 = vand.u32 %v4723, %v557
  %v4891 = vand.u32 %v4724, %v557
  %v4894 = vand.u32 %v4725, %v557
  %v4897 = vand.u32 %v4726, %v557
  %v4900 = vand.u32 %v4727, %v557
  %v4903 = vand.u32 %v4728, %v557
  %v4906 = vand.u32 %v4729, %v557
  %v4909 = vand.u32 %v4730, %v557
  %v4912 = vand.u32 %v4731, %v557
  %v4915 = vand.u32 %v4732, %v557
  %v4918 = vand.u32 %v4733, %v557
  %v4921 = vand.u32 %v4734, %v557
  %v4924 = vand.u32 %v4735, %v557
  %v4927 = vand.u32 %v4736, %v557
  %4929 = vmatpush.bf16.msra.mxu0 0
  %4930 = vmatpush.bf16.msra.mxu0 0
  %4931 = vmatpush.bf16.msra.mxu0 0
  %4932 = vmatpush.bf16.msra.mxu0 0
  %4933 = vmatpush.bf16.msra.mxu0 0
  %4934 = vmatpush.bf16.msra.mxu0 0
  %4935 = vmatpush.bf16.msra.mxu0 %v4786
  %4936 = vmatpush.bf16.msra.mxu0 %v4641
  %4937 = vmatmul.bf16.gmra.mxu0 %v552
  %v4938 = vpop.f32.mrf.mxu0
  %v4939 = vadd.f32 0.0, %v4938
  %v4940 = vpop.f32.mrf.mxu0
  %v4941 = vadd.f32 0.0, %v4940
  %4942 = vdwg.mxu0
  %4943 = vmatpush.bf16.msra.mxu0 0
  %4944 = vmatpush.bf16.msra.mxu0 0
  %4945 = vmatpush.bf16.msra.mxu0 0
  %4946 = vmatpush.bf16.msra.mxu0 0
  %4947 = vmatpush.bf16.msra.mxu0 0
  %4948 = vmatpush.bf16.msra.mxu0 0
  %4949 = vmatpush.bf16.msra.mxu0 %v4789
  %4950 = vmatpush.bf16.msra.mxu0 %v4642
  %4951 = vmatmul.bf16.gmra.mxu0 %v552
  %v4952 = vpop.f32.mrf.mxu0
  %v4953 = vadd.f32 0.0, %v4952
  %v4954 = vpop.f32.mrf.mxu0
  %v4955 = vadd.f32 0.0, %v4954
  %4956 = vdwg.mxu0
  %4957 = vmatpush.bf16.msra.mxu0 0
  %4958 = vmatpush.bf16.msra.mxu0 0
  %4959 = vmatpush.bf16.msra.mxu0 0
  %4960 = vmatpush.bf16.msra.mxu0 0
  %4961 = vmatpush.bf16.msra.mxu0 0
  %4962 = vmatpush.bf16.msra.mxu0 0
  %4963 = vmatpush.bf16.msra.mxu0 %v4792
  %4964 = vmatpush.bf16.msra.mxu0 %v4643
  %4965 = vmatmul.bf16.gmra.mxu0 %v552
  %v4966 = vpop.f32.mrf.mxu0
  %v4967 = vadd.f32 0.0, %v4966
  %v4968 = vpop.f32.mrf.mxu0
  %v4969 = vadd.f32 0.0, %v4968
  %4970 = vdwg.mxu0
  %4971 = vmatpush.bf16.msra.mxu0 0
  %4972 = vmatpush.bf16.msra.mxu0 0
  %4973 = vmatpush.bf16.msra.mxu0 0
  %4974 = vmatpush.bf16.msra.mxu0 0
  %4975 = vmatpush.bf16.msra.mxu0 0
  %4976 = vmatpush.bf16.msra.mxu0 0
  %4977 = vmatpush.bf16.msra.mxu0 %v4795
  %4978 = vmatpush.bf16.msra.mxu0 %v4644
  %4979 = vmatmul.bf16.gmra.mxu0 %v552
  %v4980 = vpop.f32.mrf.mxu0
  %v4981 = vadd.f32 0.0, %v4980
  %v4982 = vpop.f32.mrf.mxu0
  %v4983 = vadd.f32 0.0, %v4982
  %4984 = vdwg.mxu0
  %4985 = vmatpush.bf16.msra.mxu0 0
  %4986 = vmatpush.bf16.msra.mxu0 0
  %4987 = vmatpush.bf16.msra.mxu0 0
  %4988 = vmatpush.bf16.msra.mxu0 0
  %4989 = vmatpush.bf16.msra.mxu0 0
  %4990 = vmatpush.bf16.msra.mxu0 0
  %4991 = vmatpush.bf16.msra.mxu0 %v4798
  %4992 = vmatpush.bf16.msra.mxu0 %v4645
  %4993 = vmatmul.bf16.gmra.mxu0 %v552
  %v4994 = vpop.f32.mrf.mxu0
  %v4995 = vadd.f32 0.0, %v4994
  %v4996 = vpop.f32.mrf.mxu0
  %v4997 = vadd.f32 0.0, %v4996
  %4998 = vdwg.mxu0
  %4999 = vmatpush.bf16.msra.mxu0 0
  %5000 = vmatpush.bf16.msra.mxu0 0
  %5001 = vmatpush.bf16.msra.mxu0 0
  %5002 = vmatpush.bf16.msra.mxu0 0
  %5003 = vmatpush.bf16.msra.mxu0 0
  %5004 = vmatpush.bf16.msra.mxu0 0
  %5005 = vmatpush.bf16.msra.mxu0 %v4801
  %5006 = vmatpush.bf16.msra.mxu0 %v4646
  %5007 = vmatmul.bf16.gmra.mxu0 %v552
  %v5008 = vpop.f32.mrf.mxu0
  %v5009 = vadd.f32 0.0, %v5008
  %v5010 = vpop.f32.mrf.mxu0
  %v5011 = vadd.f32 0.0, %v5010
  %5012 = vdwg.mxu0
  %5013 = vmatpush.bf16.msra.mxu0 0
  %5014 = vmatpush.bf16.msra.mxu0 0
  %5015 = vmatpush.bf16.msra.mxu0 0
  %5016 = vmatpush.bf16.msra.mxu0 0
  %5017 = vmatpush.bf16.msra.mxu0 0
  %5018 = vmatpush.bf16.msra.mxu0 0
  %5019 = vmatpush.bf16.msra.mxu0 %v4804
  %5020 = vmatpush.bf16.msra.mxu0 %v4647
  %5021 = vmatmul.bf16.gmra.mxu0 %v552
  %v5022 = vpop.f32.mrf.mxu0
  %v5023 = vadd.f32 0.0, %v5022
  %v5024 = vpop.f32.mrf.mxu0
  %v5025 = vadd.f32 0.0, %v5024
  %5026 = vdwg.mxu0
  %5027 = vmatpush.bf16.msra.mxu0 0
  %5028 = vmatpush.bf16.msra.mxu0 0
  %5029 = vmatpush.bf16.msra.mxu0 0
  %5030 = vmatpush.bf16.msra.mxu0 0
  %5031 = vmatpush.bf16.msra.mxu0 0
  %5032 = vmatpush.bf16.msra.mxu0 0
  %5033 = vmatpush.bf16.msra.mxu0 %v4807
  %5034 = vmatpush.bf16.msra.mxu0 %v4648
  %5035 = vmatmul.bf16.gmra.mxu0 %v552
  %v5036 = vpop.f32.mrf.mxu0
  %v5037 = vadd.f32 0.0, %v5036
  %v5038 = vpop.f32.mrf.mxu0
  %v5039 = vadd.f32 0.0, %v5038
  %5040 = vdwg.mxu0
  %5041 = vmatpush.bf16.msra.mxu0 0
  %5042 = vmatpush.bf16.msra.mxu0 0
  %5043 = vmatpush.bf16.msra.mxu0 0
  %5044 = vmatpush.bf16.msra.mxu0 0
  %5045 = vmatpush.bf16.msra.mxu0 0
  %5046 = vmatpush.bf16.msra.mxu0 0
  %5047 = vmatpush.bf16.msra.mxu0 %v4810
  %5048 = vmatpush.bf16.msra.mxu0 %v4649
  %5049 = vmatmul.bf16.gmra.mxu0 %v552
  %v5050 = vpop.f32.mrf.mxu0
  %v5051 = vadd.f32 0.0, %v5050
  %v5052 = vpop.f32.mrf.mxu0
  %v5053 = vadd.f32 0.0, %v5052
  %5054 = vdwg.mxu0
  %5055 = vmatpush.bf16.msra.mxu0 0
  %5056 = vmatpush.bf16.msra.mxu0 0
  %5057 = vmatpush.bf16.msra.mxu0 0
  %5058 = vmatpush.bf16.msra.mxu0 0
  %5059 = vmatpush.bf16.msra.mxu0 0
  %5060 = vmatpush.bf16.msra.mxu0 0
  %5061 = vmatpush.bf16.msra.mxu0 %v4813
  %5062 = vmatpush.bf16.msra.mxu0 %v4650
  %5063 = vmatmul.bf16.gmra.mxu0 %v552
  %v5064 = vpop.f32.mrf.mxu0
  %v5065 = vadd.f32 0.0, %v5064
  %v5066 = vpop.f32.mrf.mxu0
  %v5067 = vadd.f32 0.0, %v5066
  %5068 = vdwg.mxu0
  %5069 = vmatpush.bf16.msra.mxu0 0
  %5070 = vmatpush.bf16.msra.mxu0 0
  %5071 = vmatpush.bf16.msra.mxu0 0
  %5072 = vmatpush.bf16.msra.mxu0 0
  %5073 = vmatpush.bf16.msra.mxu0 0
  %5074 = vmatpush.bf16.msra.mxu0 0
  %5075 = vmatpush.bf16.msra.mxu0 %v4816
  %5076 = vmatpush.bf16.msra.mxu0 %v4651
  %5077 = vmatmul.bf16.gmra.mxu0 %v552
  %v5078 = vpop.f32.mrf.mxu0
  %v5079 = vadd.f32 0.0, %v5078
  %v5080 = vpop.f32.mrf.mxu0
  %v5081 = vadd.f32 0.0, %v5080
  %5082 = vdwg.mxu0
  %5083 = vmatpush.bf16.msra.mxu0 0
  %5084 = vmatpush.bf16.msra.mxu0 0
  %5085 = vmatpush.bf16.msra.mxu0 0
  %5086 = vmatpush.bf16.msra.mxu0 0
  %5087 = vmatpush.bf16.msra.mxu0 0
  %5088 = vmatpush.bf16.msra.mxu0 0
  %5089 = vmatpush.bf16.msra.mxu0 %v4819
  %5090 = vmatpush.bf16.msra.mxu0 %v4652
  %5091 = vmatmul.bf16.gmra.mxu0 %v552
  %v5092 = vpop.f32.mrf.mxu0
  %v5093 = vadd.f32 0.0, %v5092
  %v5094 = vpop.f32.mrf.mxu0
  %v5095 = vadd.f32 0.0, %v5094
  %5096 = vdwg.mxu0
  %5097 = vmatpush.bf16.msra.mxu0 0
  %5098 = vmatpush.bf16.msra.mxu0 0
  %5099 = vmatpush.bf16.msra.mxu0 0
  %5100 = vmatpush.bf16.msra.mxu0 0
  %5101 = vmatpush.bf16.msra.mxu0 0
  %5102 = vmatpush.bf16.msra.mxu0 0
  %5103 = vmatpush.bf16.msra.mxu0 %v4822
  %5104 = vmatpush.bf16.msra.mxu0 %v4653
  %5105 = vmatmul.bf16.gmra.mxu0 %v552
  %v5106 = vpop.f32.mrf.mxu0
  %v5107 = vadd.f32 0.0, %v5106
  %v5108 = vpop.f32.mrf.mxu0
  %v5109 = vadd.f32 0.0, %v5108
  %5110 = vdwg.mxu0
  %5111 = vmatpush.bf16.msra.mxu0 0
  %5112 = vmatpush.bf16.msra.mxu0 0
  %5113 = vmatpush.bf16.msra.mxu0 0
  %5114 = vmatpush.bf16.msra.mxu0 0
  %5115 = vmatpush.bf16.msra.mxu0 0
  %5116 = vmatpush.bf16.msra.mxu0 0
  %5117 = vmatpush.bf16.msra.mxu0 %v4825
  %5118 = vmatpush.bf16.msra.mxu0 %v4654
  %5119 = vmatmul.bf16.gmra.mxu0 %v552
  %v5120 = vpop.f32.mrf.mxu0
  %v5121 = vadd.f32 0.0, %v5120
  %v5122 = vpop.f32.mrf.mxu0
  %v5123 = vadd.f32 0.0, %v5122
  %5124 = vdwg.mxu0
  %5125 = vmatpush.bf16.msra.mxu0 0
  %5126 = vmatpush.bf16.msra.mxu0 0
  %5127 = vmatpush.bf16.msra.mxu0 0
  %5128 = vmatpush.bf16.msra.mxu0 0
  %5129 = vmatpush.bf16.msra.mxu0 0
  %5130 = vmatpush.bf16.msra.mxu0 0
  %5131 = vmatpush.bf16.msra.mxu0 %v4828
  %5132 = vmatpush.bf16.msra.mxu0 %v4655
  %5133 = vmatmul.bf16.gmra.mxu0 %v552
  %v5134 = vpop.f32.mrf.mxu0
  %v5135 = vadd.f32 0.0, %v5134
  %v5136 = vpop.f32.mrf.mxu0
  %v5137 = vadd.f32 0.0, %v5136
  %5138 = vdwg.mxu0
  %5139 = vmatpush.bf16.msra.mxu0 0
  %5140 = vmatpush.bf16.msra.mxu0 0
  %5141 = vmatpush.bf16.msra.mxu0 0
  %5142 = vmatpush.bf16.msra.mxu0 0
  %5143 = vmatpush.bf16.msra.mxu0 0
  %5144 = vmatpush.bf16.msra.mxu0 0
  %5145 = vmatpush.bf16.msra.mxu0 %v4831
  %5146 = vmatpush.bf16.msra.mxu0 %v4656
  %5147 = vmatmul.bf16.gmra.mxu0 %v552
  %v5148 = vpop.f32.mrf.mxu0
  %v5149 = vadd.f32 0.0, %v5148
  %v5150 = vpop.f32.mrf.mxu0
  %v5151 = vadd.f32 0.0, %v5150
  %5152 = vdwg.mxu0
  %5153 = vmatpush.bf16.msra.mxu0 0
  %5154 = vmatpush.bf16.msra.mxu0 0
  %5155 = vmatpush.bf16.msra.mxu0 0
  %5156 = vmatpush.bf16.msra.mxu0 0
  %5157 = vmatpush.bf16.msra.mxu0 0
  %5158 = vmatpush.bf16.msra.mxu0 0
  %5159 = vmatpush.bf16.msra.mxu0 %v4834
  %5160 = vmatpush.bf16.msra.mxu0 %v4657
  %5161 = vmatmul.bf16.gmra.mxu0 %v552
  %v5162 = vpop.f32.mrf.mxu0
  %v5163 = vadd.f32 0.0, %v5162
  %v5164 = vpop.f32.mrf.mxu0
  %v5165 = vadd.f32 0.0, %v5164
  %5166 = vdwg.mxu0
  %5167 = vmatpush.bf16.msra.mxu0 0
  %5168 = vmatpush.bf16.msra.mxu0 0
  %5169 = vmatpush.bf16.msra.mxu0 0
  %5170 = vmatpush.bf16.msra.mxu0 0
  %5171 = vmatpush.bf16.msra.mxu0 0
  %5172 = vmatpush.bf16.msra.mxu0 0
  %5173 = vmatpush.bf16.msra.mxu0 %v4837
  %5174 = vmatpush.bf16.msra.mxu0 %v4658
  %5175 = vmatmul.bf16.gmra.mxu0 %v552
  %v5176 = vpop.f32.mrf.mxu0
  %v5177 = vadd.f32 0.0, %v5176
  %v5178 = vpop.f32.mrf.mxu0
  %v5179 = vadd.f32 0.0, %v5178
  %5180 = vdwg.mxu0
  %5181 = vmatpush.bf16.msra.mxu0 0
  %5182 = vmatpush.bf16.msra.mxu0 0
  %5183 = vmatpush.bf16.msra.mxu0 0
  %5184 = vmatpush.bf16.msra.mxu0 0
  %5185 = vmatpush.bf16.msra.mxu0 0
  %5186 = vmatpush.bf16.msra.mxu0 0
  %5187 = vmatpush.bf16.msra.mxu0 %v4840
  %5188 = vmatpush.bf16.msra.mxu0 %v4659
  %5189 = vmatmul.bf16.gmra.mxu0 %v552
  %v5190 = vpop.f32.mrf.mxu0
  %v5191 = vadd.f32 0.0, %v5190
  %v5192 = vpop.f32.mrf.mxu0
  %v5193 = vadd.f32 0.0, %v5192
  %5194 = vdwg.mxu0
  %5195 = vmatpush.bf16.msra.mxu0 0
  %5196 = vmatpush.bf16.msra.mxu0 0
  %5197 = vmatpush.bf16.msra.mxu0 0
  %5198 = vmatpush.bf16.msra.mxu0 0
  %5199 = vmatpush.bf16.msra.mxu0 0
  %5200 = vmatpush.bf16.msra.mxu0 0
  %5201 = vmatpush.bf16.msra.mxu0 %v4843
  %5202 = vmatpush.bf16.msra.mxu0 %v4660
  %5203 = vmatmul.bf16.gmra.mxu0 %v552
  %v5204 = vpop.f32.mrf.mxu0
  %v5205 = vadd.f32 0.0, %v5204
  %v5206 = vpop.f32.mrf.mxu0
  %v5207 = vadd.f32 0.0, %v5206
  %5208 = vdwg.mxu0
  %5209 = vmatpush.bf16.msra.mxu0 0
  %5210 = vmatpush.bf16.msra.mxu0 0
  %5211 = vmatpush.bf16.msra.mxu0 0
  %5212 = vmatpush.bf16.msra.mxu0 0
  %5213 = vmatpush.bf16.msra.mxu0 0
  %5214 = vmatpush.bf16.msra.mxu0 0
  %5215 = vmatpush.bf16.msra.mxu0 %v4846
  %5216 = vmatpush.bf16.msra.mxu0 %v4661
  %5217 = vmatmul.bf16.gmra.mxu0 %v552
  %v5218 = vpop.f32.mrf.mxu0
  %v5219 = vadd.f32 0.0, %v5218
  %v5220 = vpop.f32.mrf.mxu0
  %v5221 = vadd.f32 0.0, %v5220
  %5222 = vdwg.mxu0
  %5223 = vmatpush.bf16.msra.mxu0 0
  %5224 = vmatpush.bf16.msra.mxu0 0
  %5225 = vmatpush.bf16.msra.mxu0 0
  %5226 = vmatpush.bf16.msra.mxu0 0
  %5227 = vmatpush.bf16.msra.mxu0 0
  %5228 = vmatpush.bf16.msra.mxu0 0
  %5229 = vmatpush.bf16.msra.mxu0 %v4849
  %5230 = vmatpush.bf16.msra.mxu0 %v4662
  %5231 = vmatmul.bf16.gmra.mxu0 %v552
  %v5232 = vpop.f32.mrf.mxu0
  %v5233 = vadd.f32 0.0, %v5232
  %v5234 = vpop.f32.mrf.mxu0
  %v5235 = vadd.f32 0.0, %v5234
  %5236 = vdwg.mxu0
  %5237 = vmatpush.bf16.msra.mxu0 0
  %5238 = vmatpush.bf16.msra.mxu0 0
  %5239 = vmatpush.bf16.msra.mxu0 0
  %5240 = vmatpush.bf16.msra.mxu0 0
  %5241 = vmatpush.bf16.msra.mxu0 0
  %5242 = vmatpush.bf16.msra.mxu0 0
  %5243 = vmatpush.bf16.msra.mxu0 %v4852
  %5244 = vmatpush.bf16.msra.mxu0 %v4663
  %5245 = vmatmul.bf16.gmra.mxu0 %v552
  %v5246 = vpop.f32.mrf.mxu0
  %v5247 = vadd.f32 0.0, %v5246
  %v5248 = vpop.f32.mrf.mxu0
  %v5249 = vadd.f32 0.0, %v5248
  %5250 = vdwg.mxu0
  %5251 = vmatpush.bf16.msra.mxu0 0
  %5252 = vmatpush.bf16.msra.mxu0 0
  %5253 = vmatpush.bf16.msra.mxu0 0
  %5254 = vmatpush.bf16.msra.mxu0 0
  %5255 = vmatpush.bf16.msra.mxu0 0
  %5256 = vmatpush.bf16.msra.mxu0 0
  %5257 = vmatpush.bf16.msra.mxu0 %v4855
  %5258 = vmatpush.bf16.msra.mxu0 %v4664
  %5259 = vmatmul.bf16.gmra.mxu0 %v552
  %v5260 = vpop.f32.mrf.mxu0
  %v5261 = vadd.f32 0.0, %v5260
  %v5262 = vpop.f32.mrf.mxu0
  %v5263 = vadd.f32 0.0, %v5262
  %5264 = vdwg.mxu0
  %5265 = vmatpush.bf16.msra.mxu0 0
  %5266 = vmatpush.bf16.msra.mxu0 0
  %5267 = vmatpush.bf16.msra.mxu0 0
  %5268 = vmatpush.bf16.msra.mxu0 0
  %5269 = vmatpush.bf16.msra.mxu0 0
  %5270 = vmatpush.bf16.msra.mxu0 0
  %5271 = vmatpush.bf16.msra.mxu0 %v4858
  %5272 = vmatpush.bf16.msra.mxu0 %v4665
  %5273 = vmatmul.bf16.gmra.mxu0 %v552
  %v5274 = vpop.f32.mrf.mxu0
  %v5275 = vadd.f32 0.0, %v5274
  %v5276 = vpop.f32.mrf.mxu0
  %v5277 = vadd.f32 0.0, %v5276
  %5278 = vdwg.mxu0
  %5279 = vmatpush.bf16.msra.mxu0 0
  %5280 = vmatpush.bf16.msra.mxu0 0
  %5281 = vmatpush.bf16.msra.mxu0 0
  %5282 = vmatpush.bf16.msra.mxu0 0
  %5283 = vmatpush.bf16.msra.mxu0 0
  %5284 = vmatpush.bf16.msra.mxu0 0
  %5285 = vmatpush.bf16.msra.mxu0 %v4861
  %5286 = vmatpush.bf16.msra.mxu0 %v4666
  %5287 = vmatmul.bf16.gmra.mxu0 %v552
  %v5288 = vpop.f32.mrf.mxu0
  %v5289 = vadd.f32 0.0, %v5288
  %v5290 = vpop.f32.mrf.mxu0
  %v5291 = vadd.f32 0.0, %v5290
  %5292 = vdwg.mxu0
  %5293 = vmatpush.bf16.msra.mxu0 0
  %5294 = vmatpush.bf16.msra.mxu0 0
  %5295 = vmatpush.bf16.msra.mxu0 0
  %5296 = vmatpush.bf16.msra.mxu0 0
  %5297 = vmatpush.bf16.msra.mxu0 0
  %5298 = vmatpush.bf16.msra.mxu0 0
  %5299 = vmatpush.bf16.msra.mxu0 %v4864
  %5300 = vmatpush.bf16.msra.mxu0 %v4667
  %5301 = vmatmul.bf16.gmra.mxu0 %v552
  %v5302 = vpop.f32.mrf.mxu0
  %v5303 = vadd.f32 0.0, %v5302
  %v5304 = vpop.f32.mrf.mxu0
  %v5305 = vadd.f32 0.0, %v5304
  %5306 = vdwg.mxu0
  %5307 = vmatpush.bf16.msra.mxu0 0
  %5308 = vmatpush.bf16.msra.mxu0 0
  %5309 = vmatpush.bf16.msra.mxu0 0
  %5310 = vmatpush.bf16.msra.mxu0 0
  %5311 = vmatpush.bf16.msra.mxu0 0
  %5312 = vmatpush.bf16.msra.mxu0 0
  %5313 = vmatpush.bf16.msra.mxu0 %v4867
  %5314 = vmatpush.bf16.msra.mxu0 %v4668
  %5315 = vmatmul.bf16.gmra.mxu0 %v552
  %v5316 = vpop.f32.mrf.mxu0
  %v5317 = vadd.f32 0.0, %v5316
  %v5318 = vpop.f32.mrf.mxu0
  %v5319 = vadd.f32 0.0, %v5318
  %5320 = vdwg.mxu0
  %5321 = vmatpush.bf16.msra.mxu0 0
  %5322 = vmatpush.bf16.msra.mxu0 0
  %5323 = vmatpush.bf16.msra.mxu0 0
  %5324 = vmatpush.bf16.msra.mxu0 0
  %5325 = vmatpush.bf16.msra.mxu0 0
  %5326 = vmatpush.bf16.msra.mxu0 0
  %5327 = vmatpush.bf16.msra.mxu0 %v4870
  %5328 = vmatpush.bf16.msra.mxu0 %v4669
  %5329 = vmatmul.bf16.gmra.mxu0 %v552
  %v5330 = vpop.f32.mrf.mxu0
  %v5331 = vadd.f32 0.0, %v5330
  %v5332 = vpop.f32.mrf.mxu0
  %v5333 = vadd.f32 0.0, %v5332
  %5334 = vdwg.mxu0
  %5335 = vmatpush.bf16.msra.mxu0 0
  %5336 = vmatpush.bf16.msra.mxu0 0
  %5337 = vmatpush.bf16.msra.mxu0 0
  %5338 = vmatpush.bf16.msra.mxu0 0
  %5339 = vmatpush.bf16.msra.mxu0 0
  %5340 = vmatpush.bf16.msra.mxu0 0
  %5341 = vmatpush.bf16.msra.mxu0 %v4873
  %5342 = vmatpush.bf16.msra.mxu0 %v4670
  %5343 = vmatmul.bf16.gmra.mxu0 %v552
  %v5344 = vpop.f32.mrf.mxu0
  %v5345 = vadd.f32 0.0, %v5344
  %v5346 = vpop.f32.mrf.mxu0
  %v5347 = vadd.f32 0.0, %v5346
  %5348 = vdwg.mxu0
  %5349 = vmatpush.bf16.msra.mxu0 0
  %5350 = vmatpush.bf16.msra.mxu0 0
  %5351 = vmatpush.bf16.msra.mxu0 0
  %5352 = vmatpush.bf16.msra.mxu0 0
  %5353 = vmatpush.bf16.msra.mxu0 0
  %5354 = vmatpush.bf16.msra.mxu0 0
  %5355 = vmatpush.bf16.msra.mxu0 %v4876
  %5356 = vmatpush.bf16.msra.mxu0 %v4671
  %5357 = vmatmul.bf16.gmra.mxu0 %v552
  %v5358 = vpop.f32.mrf.mxu0
  %v5359 = vadd.f32 0.0, %v5358
  %v5360 = vpop.f32.mrf.mxu0
  %v5361 = vadd.f32 0.0, %v5360
  %5362 = vdwg.mxu0
  %5363 = vmatpush.bf16.msra.mxu0 0
  %5364 = vmatpush.bf16.msra.mxu0 0
  %5365 = vmatpush.bf16.msra.mxu0 0
  %5366 = vmatpush.bf16.msra.mxu0 0
  %5367 = vmatpush.bf16.msra.mxu0 0
  %5368 = vmatpush.bf16.msra.mxu0 0
  %5369 = vmatpush.bf16.msra.mxu0 %v4879
  %5370 = vmatpush.bf16.msra.mxu0 %v4672
  %5371 = vmatmul.bf16.gmra.mxu0 %v552
  %v5372 = vpop.f32.mrf.mxu0
  %v5373 = vadd.f32 0.0, %v5372
  %v5374 = vpop.f32.mrf.mxu0
  %v5375 = vadd.f32 0.0, %v5374
  %5376 = vdwg.mxu0
  %5377 = vmatpush.bf16.msra.mxu0 0
  %5378 = vmatpush.bf16.msra.mxu0 0
  %5379 = vmatpush.bf16.msra.mxu0 0
  %5380 = vmatpush.bf16.msra.mxu0 0
  %5381 = vmatpush.bf16.msra.mxu0 0
  %5382 = vmatpush.bf16.msra.mxu0 0
  %5383 = vmatpush.bf16.msra.mxu0 %v4882
  %5384 = vmatpush.bf16.msra.mxu0 %v4673
  %5385 = vmatmul.bf16.gmra.mxu0 %v552
  %v5386 = vpop.f32.mrf.mxu0
  %v5387 = vadd.f32 0.0, %v5386
  %v5388 = vpop.f32.mrf.mxu0
  %v5389 = vadd.f32 0.0, %v5388
  %5390 = vdwg.mxu0
  %5391 = vmatpush.bf16.msra.mxu0 0
  %5392 = vmatpush.bf16.msra.mxu0 0
  %5393 = vmatpush.bf16.msra.mxu0 0
  %5394 = vmatpush.bf16.msra.mxu0 0
  %5395 = vmatpush.bf16.msra.mxu0 0
  %5396 = vmatpush.bf16.msra.mxu0 0
  %5397 = vmatpush.bf16.msra.mxu0 %v4885
  %5398 = vmatpush.bf16.msra.mxu0 %v4674
  %5399 = vmatmul.bf16.gmra.mxu0 %v552
  %v5400 = vpop.f32.mrf.mxu0
  %v5401 = vadd.f32 0.0, %v5400
  %v5402 = vpop.f32.mrf.mxu0
  %v5403 = vadd.f32 0.0, %v5402
  %5404 = vdwg.mxu0
  %5405 = vmatpush.bf16.msra.mxu0 0
  %5406 = vmatpush.bf16.msra.mxu0 0
  %5407 = vmatpush.bf16.msra.mxu0 0
  %5408 = vmatpush.bf16.msra.mxu0 0
  %5409 = vmatpush.bf16.msra.mxu0 0
  %5410 = vmatpush.bf16.msra.mxu0 0
  %5411 = vmatpush.bf16.msra.mxu0 %v4888
  %5412 = vmatpush.bf16.msra.mxu0 %v4675
  %5413 = vmatmul.bf16.gmra.mxu0 %v552
  %v5414 = vpop.f32.mrf.mxu0
  %v5415 = vadd.f32 0.0, %v5414
  %v5416 = vpop.f32.mrf.mxu0
  %v5417 = vadd.f32 0.0, %v5416
  %5418 = vdwg.mxu0
  %5419 = vmatpush.bf16.msra.mxu0 0
  %5420 = vmatpush.bf16.msra.mxu0 0
  %5421 = vmatpush.bf16.msra.mxu0 0
  %5422 = vmatpush.bf16.msra.mxu0 0
  %5423 = vmatpush.bf16.msra.mxu0 0
  %5424 = vmatpush.bf16.msra.mxu0 0
  %5425 = vmatpush.bf16.msra.mxu0 %v4891
  %5426 = vmatpush.bf16.msra.mxu0 %v4676
  %5427 = vmatmul.bf16.gmra.mxu0 %v552
  %v5428 = vpop.f32.mrf.mxu0
  %v5429 = vadd.f32 0.0, %v5428
  %v5430 = vpop.f32.mrf.mxu0
  %v5431 = vadd.f32 0.0, %v5430
  %5432 = vdwg.mxu0
  %5433 = vmatpush.bf16.msra.mxu0 0
  %5434 = vmatpush.bf16.msra.mxu0 0
  %5435 = vmatpush.bf16.msra.mxu0 0
  %5436 = vmatpush.bf16.msra.mxu0 0
  %5437 = vmatpush.bf16.msra.mxu0 0
  %5438 = vmatpush.bf16.msra.mxu0 0
  %5439 = vmatpush.bf16.msra.mxu0 %v4894
  %5440 = vmatpush.bf16.msra.mxu0 %v4677
  %5441 = vmatmul.bf16.gmra.mxu0 %v552
  %v5442 = vpop.f32.mrf.mxu0
  %v5443 = vadd.f32 0.0, %v5442
  %v5444 = vpop.f32.mrf.mxu0
  %v5445 = vadd.f32 0.0, %v5444
  %5446 = vdwg.mxu0
  %5447 = vmatpush.bf16.msra.mxu0 0
  %5448 = vmatpush.bf16.msra.mxu0 0
  %5449 = vmatpush.bf16.msra.mxu0 0
  %5450 = vmatpush.bf16.msra.mxu0 0
  %5451 = vmatpush.bf16.msra.mxu0 0
  %5452 = vmatpush.bf16.msra.mxu0 0
  %5453 = vmatpush.bf16.msra.mxu0 %v4897
  %5454 = vmatpush.bf16.msra.mxu0 %v4678
  %5455 = vmatmul.bf16.gmra.mxu0 %v552
  %v5456 = vpop.f32.mrf.mxu0
  %v5457 = vadd.f32 0.0, %v5456
  %v5458 = vpop.f32.mrf.mxu0
  %v5459 = vadd.f32 0.0, %v5458
  %5460 = vdwg.mxu0
  %5461 = vmatpush.bf16.msra.mxu0 0
  %5462 = vmatpush.bf16.msra.mxu0 0
  %5463 = vmatpush.bf16.msra.mxu0 0
  %5464 = vmatpush.bf16.msra.mxu0 0
  %5465 = vmatpush.bf16.msra.mxu0 0
  %5466 = vmatpush.bf16.msra.mxu0 0
  %5467 = vmatpush.bf16.msra.mxu0 %v4900
  %5468 = vmatpush.bf16.msra.mxu0 %v4679
  %5469 = vmatmul.bf16.gmra.mxu0 %v552
  %v5470 = vpop.f32.mrf.mxu0
  %v5471 = vadd.f32 0.0, %v5470
  %v5472 = vpop.f32.mrf.mxu0
  %v5473 = vadd.f32 0.0, %v5472
  %5474 = vdwg.mxu0
  %5475 = vmatpush.bf16.msra.mxu0 0
  %5476 = vmatpush.bf16.msra.mxu0 0
  %5477 = vmatpush.bf16.msra.mxu0 0
  %5478 = vmatpush.bf16.msra.mxu0 0
  %5479 = vmatpush.bf16.msra.mxu0 0
  %5480 = vmatpush.bf16.msra.mxu0 0
  %5481 = vmatpush.bf16.msra.mxu0 %v4903
  %5482 = vmatpush.bf16.msra.mxu0 %v4680
  %5483 = vmatmul.bf16.gmra.mxu0 %v552
  %v5484 = vpop.f32.mrf.mxu0
  %v5485 = vadd.f32 0.0, %v5484
  %v5486 = vpop.f32.mrf.mxu0
  %v5487 = vadd.f32 0.0, %v5486
  %5488 = vdwg.mxu0
  %5489 = vmatpush.bf16.msra.mxu0 0
  %5490 = vmatpush.bf16.msra.mxu0 0
  %5491 = vmatpush.bf16.msra.mxu0 0
  %5492 = vmatpush.bf16.msra.mxu0 0
  %5493 = vmatpush.bf16.msra.mxu0 0
  %5494 = vmatpush.bf16.msra.mxu0 0
  %5495 = vmatpush.bf16.msra.mxu0 %v4906
  %5496 = vmatpush.bf16.msra.mxu0 %v4681
  %5497 = vmatmul.bf16.gmra.mxu0 %v552
  %v5498 = vpop.f32.mrf.mxu0
  %v5499 = vadd.f32 0.0, %v5498
  %v5500 = vpop.f32.mrf.mxu0
  %v5501 = vadd.f32 0.0, %v5500
  %5502 = vdwg.mxu0
  %5503 = vmatpush.bf16.msra.mxu0 0
  %5504 = vmatpush.bf16.msra.mxu0 0
  %5505 = vmatpush.bf16.msra.mxu0 0
  %5506 = vmatpush.bf16.msra.mxu0 0
  %5507 = vmatpush.bf16.msra.mxu0 0
  %5508 = vmatpush.bf16.msra.mxu0 0
  %5509 = vmatpush.bf16.msra.mxu0 %v4909
  %5510 = vmatpush.bf16.msra.mxu0 %v4682
  %5511 = vmatmul.bf16.gmra.mxu0 %v552
  %v5512 = vpop.f32.mrf.mxu0
  %v5513 = vadd.f32 0.0, %v5512
  %v5514 = vpop.f32.mrf.mxu0
  %v5515 = vadd.f32 0.0, %v5514
  %5516 = vdwg.mxu0
  %5517 = vmatpush.bf16.msra.mxu0 0
  %5518 = vmatpush.bf16.msra.mxu0 0
  %5519 = vmatpush.bf16.msra.mxu0 0
  %5520 = vmatpush.bf16.msra.mxu0 0
  %5521 = vmatpush.bf16.msra.mxu0 0
  %5522 = vmatpush.bf16.msra.mxu0 0
  %5523 = vmatpush.bf16.msra.mxu0 %v4912
  %5524 = vmatpush.bf16.msra.mxu0 %v4683
  %5525 = vmatmul.bf16.gmra.mxu0 %v552
  %v5526 = vpop.f32.mrf.mxu0
  %v5527 = vadd.f32 0.0, %v5526
  %v5528 = vpop.f32.mrf.mxu0
  %v5529 = vadd.f32 0.0, %v5528
  %5530 = vdwg.mxu0
  %5531 = vmatpush.bf16.msra.mxu0 0
  %5532 = vmatpush.bf16.msra.mxu0 0
  %5533 = vmatpush.bf16.msra.mxu0 0
  %5534 = vmatpush.bf16.msra.mxu0 0
  %5535 = vmatpush.bf16.msra.mxu0 0
  %5536 = vmatpush.bf16.msra.mxu0 0
  %5537 = vmatpush.bf16.msra.mxu0 %v4915
  %5538 = vmatpush.bf16.msra.mxu0 %v4684
  %5539 = vmatmul.bf16.gmra.mxu0 %v552
  %v5540 = vpop.f32.mrf.mxu0
  %v5541 = vadd.f32 0.0, %v5540
  %v5542 = vpop.f32.mrf.mxu0
  %v5543 = vadd.f32 0.0, %v5542
  %5544 = vdwg.mxu0
  %5545 = vmatpush.bf16.msra.mxu0 0
  %5546 = vmatpush.bf16.msra.mxu0 0
  %5547 = vmatpush.bf16.msra.mxu0 0
  %5548 = vmatpush.bf16.msra.mxu0 0
  %5549 = vmatpush.bf16.msra.mxu0 0
  %5550 = vmatpush.bf16.msra.mxu0 0
  %5551 = vmatpush.bf16.msra.mxu0 %v4918
  %5552 = vmatpush.bf16.msra.mxu0 %v4685
  %5553 = vmatmul.bf16.gmra.mxu0 %v552
  %v5554 = vpop.f32.mrf.mxu0
  %v5555 = vadd.f32 0.0, %v5554
  %v5556 = vpop.f32.mrf.mxu0
  %v5557 = vadd.f32 0.0, %v5556
  %5558 = vdwg.mxu0
  %5559 = vmatpush.bf16.msra.mxu0 0
  %5560 = vmatpush.bf16.msra.mxu0 0
  %5561 = vmatpush.bf16.msra.mxu0 0
  %5562 = vmatpush.bf16.msra.mxu0 0
  %5563 = vmatpush.bf16.msra.mxu0 0
  %5564 = vmatpush.bf16.msra.mxu0 0
  %5565 = vmatpush.bf16.msra.mxu0 %v4921
  %5566 = vmatpush.bf16.msra.mxu0 %v4686
  %5567 = vmatmul.bf16.gmra.mxu0 %v552
  %v5568 = vpop.f32.mrf.mxu0
  %v5569 = vadd.f32 0.0, %v5568
  %v5570 = vpop.f32.mrf.mxu0
  %v5571 = vadd.f32 0.0, %v5570
  %5572 = vdwg.mxu0
  %5573 = vmatpush.bf16.msra.mxu0 0
  %5574 = vmatpush.bf16.msra.mxu0 0
  %5575 = vmatpush.bf16.msra.mxu0 0
  %5576 = vmatpush.bf16.msra.mxu0 0
  %5577 = vmatpush.bf16.msra.mxu0 0
  %5578 = vmatpush.bf16.msra.mxu0 0
  %5579 = vmatpush.bf16.msra.mxu0 %v4924
  %5580 = vmatpush.bf16.msra.mxu0 %v4687
  %5581 = vmatmul.bf16.gmra.mxu0 %v552
  %v5582 = vpop.f32.mrf.mxu0
  %v5583 = vadd.f32 0.0, %v5582
  %v5584 = vpop.f32.mrf.mxu0
  %v5585 = vadd.f32 0.0, %v5584
  %5586 = vdwg.mxu0
  %5587 = vmatpush.bf16.msra.mxu0 0
  %5588 = vmatpush.bf16.msra.mxu0 0
  %5589 = vmatpush.bf16.msra.mxu0 0
  %5590 = vmatpush.bf16.msra.mxu0 0
  %5591 = vmatpush.bf16.msra.mxu0 0
  %5592 = vmatpush.bf16.msra.mxu0 0
  %5593 = vmatpush.bf16.msra.mxu0 %v4927
  %5594 = vmatpush.bf16.msra.mxu0 %v4688
  %5595 = vmatmul.bf16.gmra.mxu0 %v552
  %v5596 = vpop.f32.mrf.mxu0
  %v5597 = vadd.f32 0.0, %v5596
  %v5598 = vpop.f32.mrf.mxu0
  %v5599 = vadd.f32 0.0, %v5598
  %5600 = vdwg.mxu0
  %v5601 = vmax.f32 %v4160, %v4939
  %v5602 = vmax.f32 %v4161, %v4953
  %v5603 = vmax.f32 %v4162, %v4967
  %v5604 = vmax.f32 %v4163, %v4981
  %v5605 = vmax.f32 %v4164, %v4995
  %v5606 = vmax.f32 %v4165, %v5009
  %v5607 = vmax.f32 %v4166, %v5023
  %v5608 = vmax.f32 %v4167, %v5037
  %v5609 = vmax.f32 %v4168, %v5051
  %v5610 = vmax.f32 %v4169, %v5065
  %v5611 = vmax.f32 %v4170, %v5079
  %v5612 = vmax.f32 %v4171, %v5093
  %v5613 = vmax.f32 %v4172, %v5107
  %v5614 = vmax.f32 %v4173, %v5121
  %v5615 = vmax.f32 %v4174, %v5135
  %v5616 = vmax.f32 %v4175, %v5149
  %v5617 = vmax.f32 %v4176, %v5163
  %v5618 = vmax.f32 %v4177, %v5177
  %v5619 = vmax.f32 %v4178, %v5191
  %v5620 = vmax.f32 %v4179, %v5205
  %v5621 = vmax.f32 %v4180, %v5219
  %v5622 = vmax.f32 %v4181, %v5233
  %v5623 = vmax.f32 %v4182, %v5247
  %v5624 = vmax.f32 %v4183, %v5261
  %v5625 = vmax.f32 %v4184, %v5275
  %v5626 = vmax.f32 %v4185, %v5289
  %v5627 = vmax.f32 %v4186, %v5303
  %v5628 = vmax.f32 %v4187, %v5317
  %v5629 = vmax.f32 %v4188, %v5331
  %v5630 = vmax.f32 %v4189, %v5345
  %v5631 = vmax.f32 %v4190, %v5359
  %v5632 = vmax.f32 %v4191, %v5373
  %v5633 = vmax.f32 %v4192, %v5387
  %v5634 = vmax.f32 %v4193, %v5401
  %v5635 = vmax.f32 %v4194, %v5415
  %v5636 = vmax.f32 %v4195, %v5429
  %v5637 = vmax.f32 %v4196, %v5443
  %v5638 = vmax.f32 %v4197, %v5457
  %v5639 = vmax.f32 %v4198, %v5471
  %v5640 = vmax.f32 %v4199, %v5485
  %v5641 = vmax.f32 %v4200, %v5499
  %v5642 = vmax.f32 %v4201, %v5513
  %v5643 = vmax.f32 %v4202, %v5527
  %v5644 = vmax.f32 %v4203, %v5541
  %v5645 = vmax.f32 %v4204, %v5555
  %v5646 = vmax.f32 %v4205, %v5569
  %v5647 = vmax.f32 %v4206, %v5583
  %v5648 = vmax.f32 %v4207, %v5597
  %v5649 = vmax.f32 %v4208, %v4941
  %v5650 = vmax.f32 %v4209, %v4955
  %v5651 = vmax.f32 %v4210, %v4969
  %v5652 = vmax.f32 %v4211, %v4983
  %v5653 = vmax.f32 %v4212, %v4997
  %v5654 = vmax.f32 %v4213, %v5011
  %v5655 = vmax.f32 %v4214, %v5025
  %v5656 = vmax.f32 %v4215, %v5039
  %v5657 = vmax.f32 %v4216, %v5053
  %v5658 = vmax.f32 %v4217, %v5067
  %v5659 = vmax.f32 %v4218, %v5081
  %v5660 = vmax.f32 %v4219, %v5095
  %v5661 = vmax.f32 %v4220, %v5109
  %v5662 = vmax.f32 %v4221, %v5123
  %v5663 = vmax.f32 %v4222, %v5137
  %v5664 = vmax.f32 %v4223, %v5151
  %v5665 = vmax.f32 %v4224, %v5165
  %v5666 = vmax.f32 %v4225, %v5179
  %v5667 = vmax.f32 %v4226, %v5193
  %v5668 = vmax.f32 %v4227, %v5207
  %v5669 = vmax.f32 %v4228, %v5221
  %v5670 = vmax.f32 %v4229, %v5235
  %v5671 = vmax.f32 %v4230, %v5249
  %v5672 = vmax.f32 %v4231, %v5263
  %v5673 = vmax.f32 %v4232, %v5277
  %v5674 = vmax.f32 %v4233, %v5291
  %v5675 = vmax.f32 %v4234, %v5305
  %v5676 = vmax.f32 %v4235, %v5319
  %v5677 = vmax.f32 %v4236, %v5333
  %v5678 = vmax.f32 %v4237, %v5347
  %v5679 = vmax.f32 %v4238, %v5361
  %v5680 = vmax.f32 %v4239, %v5375
  %v5681 = vmax.f32 %v4240, %v5389
  %v5682 = vmax.f32 %v4241, %v5403
  %v5683 = vmax.f32 %v4242, %v5417
  %v5684 = vmax.f32 %v4243, %v5431
  %v5685 = vmax.f32 %v4244, %v5445
  %v5686 = vmax.f32 %v4245, %v5459
  %v5687 = vmax.f32 %v4246, %v5473
  %v5688 = vmax.f32 %v4247, %v5487
  %v5689 = vmax.f32 %v4248, %v5501
  %v5690 = vmax.f32 %v4249, %v5515
  %v5691 = vmax.f32 %v4250, %v5529
  %v5692 = vmax.f32 %v4251, %v5543
  %v5693 = vmax.f32 %v4252, %v5557
  %v5694 = vmax.f32 %v4253, %v5571
  %v5695 = vmax.f32 %v4254, %v5585
  %v5696 = vmax.f32 %v4255, %v5599
  %v5697 = vld [vmem:[%s2] sm:$0xff]
  %v5698 = vld [vmem:[%s2 + $0x8] sm:$0x3]
  %5700 = vset.pattern.permute.xlu0 0
  %5701 = vperm.xlu0 %5700, %v5697
  %v5702 = vpop.permute.xlu0 %5701
  %5705 = vset.pattern.permute.xlu0 0
  %5706 = vperm.xlu0 %5705, %v5698
  %v5707 = vpop.permute.xlu0 %5706
  %v5709 = vadd.f32 %v5601, %v5702
  %v5710 = vadd.f32 %v5602, %v5702
  %v5711 = vadd.f32 %v5603, %v5702
  %v5712 = vadd.f32 %v5604, %v5702
  %v5713 = vadd.f32 %v5605, %v5702
  %v5714 = vadd.f32 %v5606, %v5702
  %v5715 = vadd.f32 %v5607, %v5702
  %v5716 = vadd.f32 %v5608, %v5702
  %v5717 = vadd.f32 %v5609, %v5702
  %v5718 = vadd.f32 %v5610, %v5702
  %v5719 = vadd.f32 %v5611, %v5702
  %v5720 = vadd.f32 %v5612, %v5702
  %v5721 = vadd.f32 %v5613, %v5702
  %v5722 = vadd.f32 %v5614, %v5702
  %v5723 = vadd.f32 %v5615, %v5702
  %v5724 = vadd.f32 %v5616, %v5702
  %v5725 = vadd.f32 %v5617, %v5702
  %v5726 = vadd.f32 %v5618, %v5702
  %v5727 = vadd.f32 %v5619, %v5702
  %v5728 = vadd.f32 %v5620, %v5702
  %v5729 = vadd.f32 %v5621, %v5702
  %v5730 = vadd.f32 %v5622, %v5702
  %v5731 = vadd.f32 %v5623, %v5702
  %v5732 = vadd.f32 %v5624, %v5702
  %v5733 = vadd.f32 %v5625, %v5702
  %v5734 = vadd.f32 %v5626, %v5702
  %v5735 = vadd.f32 %v5627, %v5702
  %v5736 = vadd.f32 %v5628, %v5702
  %v5737 = vadd.f32 %v5629, %v5702
  %v5738 = vadd.f32 %v5630, %v5702
  %v5739 = vadd.f32 %v5631, %v5702
  %v5740 = vadd.f32 %v5632, %v5702
  %v5741 = vadd.f32 %v5633, %v5702
  %v5742 = vadd.f32 %v5634, %v5702
  %v5743 = vadd.f32 %v5635, %v5702
  %v5744 = vadd.f32 %v5636, %v5702
  %v5745 = vadd.f32 %v5637, %v5702
  %v5746 = vadd.f32 %v5638, %v5702
  %v5747 = vadd.f32 %v5639, %v5702
  %v5748 = vadd.f32 %v5640, %v5702
  %v5749 = vadd.f32 %v5641, %v5702
  %v5750 = vadd.f32 %v5642, %v5702
  %v5751 = vadd.f32 %v5643, %v5702
  %v5752 = vadd.f32 %v5644, %v5702
  %v5753 = vadd.f32 %v5645, %v5702
  %v5754 = vadd.f32 %v5646, %v5702
  %v5755 = vadd.f32 %v5647, %v5702
  %v5756 = vadd.f32 %v5648, %v5702
  %v5757 = vadd.f32 %v5649, %v5707
  %v5758 = vadd.f32 %v5650, %v5707
  %v5759 = vadd.f32 %v5651, %v5707
  %v5760 = vadd.f32 %v5652, %v5707
  %v5761 = vadd.f32 %v5653, %v5707
  %v5762 = vadd.f32 %v5654, %v5707
  %v5763 = vadd.f32 %v5655, %v5707
  %v5764 = vadd.f32 %v5656, %v5707
  %v5765 = vadd.f32 %v5657, %v5707
  %v5766 = vadd.f32 %v5658, %v5707
  %v5767 = vadd.f32 %v5659, %v5707
  %v5768 = vadd.f32 %v5660, %v5707
  %v5769 = vadd.f32 %v5661, %v5707
  %v5770 = vadd.f32 %v5662, %v5707
  %v5771 = vadd.f32 %v5663, %v5707
  %v5772 = vadd.f32 %v5664, %v5707
  %v5773 = vadd.f32 %v5665, %v5707
  %v5774 = vadd.f32 %v5666, %v5707
  %v5775 = vadd.f32 %v5667, %v5707
  %v5776 = vadd.f32 %v5668, %v5707
  %v5777 = vadd.f32 %v5669, %v5707
  %v5778 = vadd.f32 %v5670, %v5707
  %v5779 = vadd.f32 %v5671, %v5707
  %v5780 = vadd.f32 %v5672, %v5707
  %v5781 = vadd.f32 %v5673, %v5707
  %v5782 = vadd.f32 %v5674, %v5707
  %v5783 = vadd.f32 %v5675, %v5707
  %v5784 = vadd.f32 %v5676, %v5707
  %v5785 = vadd.f32 %v5677, %v5707
  %v5786 = vadd.f32 %v5678, %v5707
  %v5787 = vadd.f32 %v5679, %v5707
  %v5788 = vadd.f32 %v5680, %v5707
  %v5789 = vadd.f32 %v5681, %v5707
  %v5790 = vadd.f32 %v5682, %v5707
  %v5791 = vadd.f32 %v5683, %v5707
  %v5792 = vadd.f32 %v5684, %v5707
  %v5793 = vadd.f32 %v5685, %v5707
  %v5794 = vadd.f32 %v5686, %v5707
  %v5795 = vadd.f32 %v5687, %v5707
  %v5796 = vadd.f32 %v5688, %v5707
  %v5797 = vadd.f32 %v5689, %v5707
  %v5798 = vadd.f32 %v5690, %v5707
  %v5799 = vadd.f32 %v5691, %v5707
  %v5800 = vadd.f32 %v5692, %v5707
  %v5801 = vadd.f32 %v5693, %v5707
  %v5802 = vadd.f32 %v5694, %v5707
  %v5803 = vadd.f32 %v5695, %v5707
  %v5804 = vadd.f32 %v5696, %v5707
  %v5805 = vmax.f32 %v5709, 0.0
  %v5806 = vmax.f32 %v5710, 0.0
  %v5807 = vmax.f32 %v5711, 0.0
  %v5808 = vmax.f32 %v5712, 0.0
  %v5809 = vmax.f32 %v5713, 0.0
  %v5810 = vmax.f32 %v5714, 0.0
  %v5811 = vmax.f32 %v5715, 0.0
  %v5812 = vmax.f32 %v5716, 0.0
  %v5813 = vmax.f32 %v5717, 0.0
  %v5814 = vmax.f32 %v5718, 0.0
  %v5815 = vmax.f32 %v5719, 0.0
  %v5816 = vmax.f32 %v5720, 0.0
  %v5817 = vmax.f32 %v5721, 0.0
  %v5818 = vmax.f32 %v5722, 0.0
  %v5819 = vmax.f32 %v5723, 0.0
  %v5820 = vmax.f32 %v5724, 0.0
  %v5821 = vmax.f32 %v5725, 0.0
  %v5822 = vmax.f32 %v5726, 0.0
  %v5823 = vmax.f32 %v5727, 0.0
  %v5824 = vmax.f32 %v5728, 0.0
  %v5825 = vmax.f32 %v5729, 0.0
  %v5826 = vmax.f32 %v5730, 0.0
  %v5827 = vmax.f32 %v5731, 0.0
  %v5828 = vmax.f32 %v5732, 0.0
  %v5829 = vmax.f32 %v5733, 0.0
  %v5830 = vmax.f32 %v5734, 0.0
  %v5831 = vmax.f32 %v5735, 0.0
  %v5832 = vmax.f32 %v5736, 0.0
  %v5833 = vmax.f32 %v5737, 0.0
  %v5834 = vmax.f32 %v5738, 0.0
  %v5835 = vmax.f32 %v5739, 0.0
  %v5836 = vmax.f32 %v5740, 0.0
  %v5837 = vmax.f32 %v5741, 0.0
  %v5838 = vmax.f32 %v5742, 0.0
  %v5839 = vmax.f32 %v5743, 0.0
  %v5840 = vmax.f32 %v5744, 0.0
  %v5841 = vmax.f32 %v5745, 0.0
  %v5842 = vmax.f32 %v5746, 0.0
  %v5843 = vmax.f32 %v5747, 0.0
  %v5844 = vmax.f32 %v5748, 0.0
  %v5845 = vmax.f32 %v5749, 0.0
  %v5846 = vmax.f32 %v5750, 0.0
  %v5847 = vmax.f32 %v5751, 0.0
  %v5848 = vmax.f32 %v5752, 0.0
  %v5849 = vmax.f32 %v5753, 0.0
  %v5850 = vmax.f32 %v5754, 0.0
  %v5851 = vmax.f32 %v5755, 0.0
  %v5852 = vmax.f32 %v5756, 0.0
  %v5853 = vmax.f32 %v5757, 0.0
  %v5854 = vmax.f32 %v5758, 0.0
  %v5855 = vmax.f32 %v5759, 0.0
  %v5856 = vmax.f32 %v5760, 0.0
  %v5857 = vmax.f32 %v5761, 0.0
  %v5858 = vmax.f32 %v5762, 0.0
  %v5859 = vmax.f32 %v5763, 0.0
  %v5860 = vmax.f32 %v5764, 0.0
  %v5861 = vmax.f32 %v5765, 0.0
  %v5862 = vmax.f32 %v5766, 0.0
  %v5863 = vmax.f32 %v5767, 0.0
  %v5864 = vmax.f32 %v5768, 0.0
  %v5865 = vmax.f32 %v5769, 0.0
  %v5866 = vmax.f32 %v5770, 0.0
  %v5867 = vmax.f32 %v5771, 0.0
  %v5868 = vmax.f32 %v5772, 0.0
  %v5869 = vmax.f32 %v5773, 0.0
  %v5870 = vmax.f32 %v5774, 0.0
  %v5871 = vmax.f32 %v5775, 0.0
  %v5872 = vmax.f32 %v5776, 0.0
  %v5873 = vmax.f32 %v5777, 0.0
  %v5874 = vmax.f32 %v5778, 0.0
  %v5875 = vmax.f32 %v5779, 0.0
  %v5876 = vmax.f32 %v5780, 0.0
  %v5877 = vmax.f32 %v5781, 0.0
  %v5878 = vmax.f32 %v5782, 0.0
  %v5879 = vmax.f32 %v5783, 0.0
  %v5880 = vmax.f32 %v5784, 0.0
  %v5881 = vmax.f32 %v5785, 0.0
  %v5882 = vmax.f32 %v5786, 0.0
  %v5883 = vmax.f32 %v5787, 0.0
  %v5884 = vmax.f32 %v5788, 0.0
  %v5885 = vmax.f32 %v5789, 0.0
  %v5886 = vmax.f32 %v5790, 0.0
  %v5887 = vmax.f32 %v5791, 0.0
  %v5888 = vmax.f32 %v5792, 0.0
  %v5889 = vmax.f32 %v5793, 0.0
  %v5890 = vmax.f32 %v5794, 0.0
  %v5891 = vmax.f32 %v5795, 0.0
  %v5892 = vmax.f32 %v5796, 0.0
  %v5893 = vmax.f32 %v5797, 0.0
  %v5894 = vmax.f32 %v5798, 0.0
  %v5895 = vmax.f32 %v5799, 0.0
  %v5896 = vmax.f32 %v5800, 0.0
  %v5897 = vmax.f32 %v5801, 0.0
  %v5898 = vmax.f32 %v5802, 0.0
  %v5899 = vmax.f32 %v5803, 0.0
  %v5900 = vmax.f32 %v5804, 0.0
  %v5901 = vpack.c.bf16 %v5806, %v5805
  %v5902 = vpack.c.bf16 %v5808, %v5807
  %v5903 = vpack.c.bf16 %v5810, %v5809
  %v5904 = vpack.c.bf16 %v5812, %v5811
  %v5905 = vpack.c.bf16 %v5814, %v5813
  %v5906 = vpack.c.bf16 %v5816, %v5815
  %v5907 = vpack.c.bf16 %v5818, %v5817
  %v5908 = vpack.c.bf16 %v5820, %v5819
  %v5909 = vpack.c.bf16 %v5822, %v5821
  %v5910 = vpack.c.bf16 %v5824, %v5823
  %v5911 = vpack.c.bf16 %v5826, %v5825
  %v5912 = vpack.c.bf16 %v5828, %v5827
  %v5913 = vpack.c.bf16 %v5830, %v5829
  %v5914 = vpack.c.bf16 %v5832, %v5831
  %v5915 = vpack.c.bf16 %v5834, %v5833
  %v5916 = vpack.c.bf16 %v5836, %v5835
  %v5917 = vpack.c.bf16 %v5838, %v5837
  %v5918 = vpack.c.bf16 %v5840, %v5839
  %v5919 = vpack.c.bf16 %v5842, %v5841
  %v5920 = vpack.c.bf16 %v5844, %v5843
  %v5921 = vpack.c.bf16 %v5846, %v5845
  %v5922 = vpack.c.bf16 %v5848, %v5847
  %v5923 = vpack.c.bf16 %v5850, %v5849
  %v5924 = vpack.c.bf16 %v5852, %v5851
  %v5925 = vpack.c.bf16 %v5854, %v5853
  %v5926 = vpack.c.bf16 %v5856, %v5855
  %v5927 = vpack.c.bf16 %v5858, %v5857
  %v5928 = vpack.c.bf16 %v5860, %v5859
  %v5929 = vpack.c.bf16 %v5862, %v5861
  %v5930 = vpack.c.bf16 %v5864, %v5863
  %v5931 = vpack.c.bf16 %v5866, %v5865
  %v5932 = vpack.c.bf16 %v5868, %v5867
  %v5933 = vpack.c.bf16 %v5870, %v5869
  %v5934 = vpack.c.bf16 %v5872, %v5871
  %v5935 = vpack.c.bf16 %v5874, %v5873
  %v5936 = vpack.c.bf16 %v5876, %v5875
  %v5937 = vpack.c.bf16 %v5878, %v5877
  %v5938 = vpack.c.bf16 %v5880, %v5879
  %v5939 = vpack.c.bf16 %v5882, %v5881
  %v5940 = vpack.c.bf16 %v5884, %v5883
  %v5941 = vpack.c.bf16 %v5886, %v5885
  %v5942 = vpack.c.bf16 %v5888, %v5887
  %v5943 = vpack.c.bf16 %v5890, %v5889
  %v5944 = vpack.c.bf16 %v5892, %v5891
  %v5945 = vpack.c.bf16 %v5894, %v5893
  %v5946 = vpack.c.bf16 %v5896, %v5895
  %v5947 = vpack.c.bf16 %v5898, %v5897
  %v5948 = vpack.c.bf16 %v5900, %v5899
  %5949 = vst [vmem:[%s3] sm:$0xff] %v5901
  %5950 = vst [vmem:[%s3 + $0x8] sm:$0xff] %v5902
  %5951 = vst [vmem:[%s3 + $0x10] sm:$0xff] %v5903
  %5952 = vst [vmem:[%s3 + $0x18] sm:$0xff] %v5904
  %5953 = vst [vmem:[%s3 + $0x20] sm:$0xff] %v5905
  %5954 = vst [vmem:[%s3 + $0x28] sm:$0xff] %v5906
  %5955 = vst [vmem:[%s3 + $0x30] sm:$0xff] %v5907
  %5956 = vst [vmem:[%s3 + $0x38] sm:$0xff] %v5908
  %5957 = vst [vmem:[%s3 + $0x40] sm:$0xff] %v5909
  %5958 = vst [vmem:[%s3 + $0x48] sm:$0xff] %v5910
  %5959 = vst [vmem:[%s3 + $0x50] sm:$0xff] %v5911
  %5960 = vst [vmem:[%s3 + $0x58] sm:$0xff] %v5912
  %5961 = vst [vmem:[%s3 + $0x60] sm:$0xff] %v5913
  %5962 = vst [vmem:[%s3 + $0x68] sm:$0xff] %v5914
  %5963 = vst [vmem:[%s3 + $0x70] sm:$0xff] %v5915
  %5964 = vst [vmem:[%s3 + $0x78] sm:$0xff] %v5916
  %5965 = vst [vmem:[%s3 + $0x80] sm:$0xff] %v5917
  %5966 = vst [vmem:[%s3 + $0x88] sm:$0xff] %v5918
  %5967 = vst [vmem:[%s3 + $0x90] sm:$0xff] %v5919
  %5968 = vst [vmem:[%s3 + $0x98] sm:$0xff] %v5920
  %5969 = vst [vmem:[%s3 + $0xa0] sm:$0xff] %v5921
  %5970 = vst [vmem:[%s3 + $0xa8] sm:$0xff] %v5922
  %5971 = vst [vmem:[%s3 + $0xb0] sm:$0xff] %v5923
  %vm5972 = vcmask 277508
  %vm5973 = vmor %vm5972, %vm554
  %5974 = vst.msk [vmem:[%s3 + $0xb8] sm:$0xff] %vm5973, %v5924
  %5975 = vst [vmem:[%s3 + $0xc0] sm:$0x11] %v5925
  %5976 = vst [vmem:[%s3 + $0xc8] sm:$0x11] %v5926
  %5977 = vst [vmem:[%s3 + $0xd0] sm:$0x11] %v5927
  %5978 = vst [vmem:[%s3 + $0xd8] sm:$0x11] %v5928
  %5979 = vst [vmem:[%s3 + $0xe0] sm:$0x11] %v5929
  %5980 = vst [vmem:[%s3 + $0xe8] sm:$0x11] %v5930
  %5981 = vst [vmem:[%s3 + $0xf0] sm:$0x11] %v5931
  %5982 = vst [vmem:[%s3 + $0xf8] sm:$0x11] %v5932
  %5983 = vst [vmem:[%s3 + $0x100] sm:$0x11] %v5933
  %5984 = vst [vmem:[%s3 + $0x108] sm:$0x11] %v5934
  %5985 = vst [vmem:[%s3 + $0x110] sm:$0x11] %v5935
  %5986 = vst [vmem:[%s3 + $0x118] sm:$0x11] %v5936
  %5987 = vst [vmem:[%s3 + $0x120] sm:$0x11] %v5937
  %5988 = vst [vmem:[%s3 + $0x128] sm:$0x11] %v5938
  %5989 = vst [vmem:[%s3 + $0x130] sm:$0x11] %v5939
  %5990 = vst [vmem:[%s3 + $0x138] sm:$0x11] %v5940
  %5991 = vst [vmem:[%s3 + $0x140] sm:$0x11] %v5941
  %5992 = vst [vmem:[%s3 + $0x148] sm:$0x11] %v5942
  %5993 = vst [vmem:[%s3 + $0x150] sm:$0x11] %v5943
  %5994 = vst [vmem:[%s3 + $0x158] sm:$0x11] %v5944
  %5995 = vst [vmem:[%s3 + $0x160] sm:$0x11] %v5945
  %5996 = vst [vmem:[%s3 + $0x168] sm:$0x11] %v5946
  %5997 = vst [vmem:[%s3 + $0x170] sm:$0x11] %v5947
  %vm5998 = vcmask 1040384
  %vm5999 = vcmask 274436
  %vm6000 = vmor %vm5999, %vm5998
  %6001 = vst.msk [vmem:[%s3 + $0x178] sm:$0x11] %vm6000, %v5948
  // Predicated region
  $region14: #{net1_forward.4} parent=0 // pred_check
    _
  $region15: #{net1_forward.4} parent=0 // pred_check_branch
    %6003 = sbr.rel (0) target = $region17
  $region16: #{net1_forward.4} parent=0 // pred_region
    _
  $region17: #{net1_forward.4} parent=0 // pred_fallthru
    _
  // Predicated region
  $region18: #{net1_forward.4} parent=0 // pred_check
    _
  $region19: #{net1_forward.4} parent=0 // pred_check_branch
    %6005 = sbr.rel (0) target = $region21
  $region20: #{net1_forward.4} parent=0 // pred_region
    _
  $region21: #{net1_forward.4} parent=0 // pred_fallthru
    _

// kernel: net1_forward.5
$region0: #{net1_forward.5}
  #allocation0 [shape = 'u32[]', space=smem, size = 0x4, offset = 0x4, fixed_abs, tag = 'smem constant byte address 0x4 - core index']
  #allocation1 [shape = 'u32[72,128]{1,0:T(1,128)}', space=vmem, size = 0x9000, scoped, tag = 'internal scratch']
  %s0 = inlined_call_operand.vmem [shape: bf16[20,90], index: 0, kind: input, shape index: {}]
  %s1 = inlined_call_operand.vmem [shape: bf16[90,1458], index: 1, kind: input, shape index: {}]
  %s2 = inlined_call_operand.vmem [shape: f32[20,1], index: 2, kind: input, shape index: {}]
  %s3 = inlined_call_operand.vmem [shape: bf16[20,1458], index: 3, kind: output, shape index: {}]
  %s4 = sld [smem:[#allocation0]]
  $region22: #{net1_forward.5} parent=0
    _
  %s6 = ssub.s32 1, %s4
  %s7 = scalar_select 0, %s6, %s4
  // Predicated region
  $region2: #{net1_forward.5} parent=0 // pred_check
    _
  $region3: #{net1_forward.5} parent=0 // pred_check_branch
    %9 = sbr.rel (0) target = $region5
  $region4: #{net1_forward.5} parent=0 // pred_region
    _
  $region5: #{net1_forward.5} parent=0 // pred_fallthru
    _
  // Predicated region
  $region6: #{net1_forward.5} parent=0 // pred_check
    _
  $region7: #{net1_forward.5} parent=0 // pred_check_branch
    %11 = sbr.rel (0) target = $region9
  $region8: #{net1_forward.5} parent=0 // pred_region
    _
  $region9: #{net1_forward.5} parent=0 // pred_fallthru
    _
  // Predicated region
  $region10: #{net1_forward.5} parent=0 // pred_check
    _
  $region11: #{net1_forward.5} parent=0 // pred_check_branch
    %13 = sbr.rel (0) target = $region13
  $region12: #{net1_forward.5} parent=0 // pred_region
    _
  $region13: #{net1_forward.5} parent=0 // pred_fallthru
    _
  %v15 = vld [vmem:[%s0] sm:$0xf]
  %v16 = vld [vmem:[%s0 + $0x4] sm:$0xf]
  %v17 = vld [vmem:[%s0 + $0x8] sm:$0x3]
  %v18 = vld [vmem:[%s1] sm:$0xff]
  %v19 = vld [vmem:[%s1 + $0x8] sm:$0xff]
  %v20 = vld [vmem:[%s1 + $0x10] sm:$0xff]
  %v21 = vld [vmem:[%s1 + $0x18] sm:$0xff]
  %v22 = vld [vmem:[%s1 + $0x20] sm:$0xff]
  %v23 = vld [vmem:[%s1 + $0x28] sm:$0xff]
  %v24 = vld [vmem:[%s1 + $0x30] sm:$0xff]
  %v25 = vld [vmem:[%s1 + $0x38] sm:$0xff]
  %v26 = vld [vmem:[%s1 + $0x40] sm:$0xff]
  %v27 = vld [vmem:[%s1 + $0x48] sm:$0xff]
  %v28 = vld [vmem:[%s1 + $0x50] sm:$0xff]
  %v29 = vld [vmem:[%s1 + $0x58] sm:$0xff]
  %v30 = vld [vmem:[%s1 + $0x60] sm:$0xff]
  %v31 = vld [vmem:[%s1 + $0x68] sm:$0xff]
  %v32 = vld [vmem:[%s1 + $0x70] sm:$0xff]
  %v33 = vld [vmem:[%s1 + $0x78] sm:$0xff]
  %v34 = vld [vmem:[%s1 + $0x80] sm:$0xff]
  %v35 = vld [vmem:[%s1 + $0x88] sm:$0xff]
  %v36 = vld [vmem:[%s1 + $0x90] sm:$0xff]
  %v37 = vld [vmem:[%s1 + $0x98] sm:$0xff]
  %v38 = vld [vmem:[%s1 + $0xa0] sm:$0xff]
  %v39 = vld [vmem:[%s1 + $0xa8] sm:$0xff]
  %v40 = vld [vmem:[%s1 + $0xb0] sm:$0xff]
  %v41 = vld [vmem:[%s1 + $0xb8] sm:$0xff]
  %v42 = vld [vmem:[%s1 + $0xc0] sm:$0xff]
  %v43 = vld [vmem:[%s1 + $0xc8] sm:$0xff]
  %v44 = vld [vmem:[%s1 + $0xd0] sm:$0xff]
  %v45 = vld [vmem:[%s1 + $0xd8] sm:$0xff]
  %v46 = vld [vmem:[%s1 + $0xe0] sm:$0xff]
  %v47 = vld [vmem:[%s1 + $0xe8] sm:$0xff]
  %v48 = vld [vmem:[%s1 + $0xf0] sm:$0xff]
  %v49 = vld [vmem:[%s1 + $0xf8] sm:$0xff]
  %v50 = vld [vmem:[%s1 + $0x100] sm:$0xff]
  %v51 = vld [vmem:[%s1 + $0x108] sm:$0xff]
  %v52 = vld [vmem:[%s1 + $0x110] sm:$0xff]
  %v53 = vld [vmem:[%s1 + $0x118] sm:$0xff]
  %v54 = vld [vmem:[%s1 + $0x120] sm:$0xff]
  %v55 = vld [vmem:[%s1 + $0x128] sm:$0xff]
  %v56 = vld [vmem:[%s1 + $0x130] sm:$0xff]
  %v57 = vld [vmem:[%s1 + $0x138] sm:$0xff]
  %v58 = vld [vmem:[%s1 + $0x140] sm:$0xff]
  %v59 = vld [vmem:[%s1 + $0x148] sm:$0xff]
  %v60 = vld [vmem:[%s1 + $0x150] sm:$0xff]
  %v61 = vld [vmem:[%s1 + $0x158] sm:$0xff]
  %v62 = vld [vmem:[%s1 + $0x160] sm:$0xff]
  %v63 = vld [vmem:[%s1 + $0x168] sm:$0xff]
  %v64 = vld [vmem:[%s1 + $0x170] sm:$0xff]
  %v65 = vld [vmem:[%s1 + $0x178] sm:$0xff]
  %v66 = vld [vmem:[%s1 + $0x180] sm:$0xff]
  %v67 = vld [vmem:[%s1 + $0x188] sm:$0xff]
  %v68 = vld [vmem:[%s1 + $0x190] sm:$0xff]
  %v69 = vld [vmem:[%s1 + $0x198] sm:$0xff]
  %v70 = vld [vmem:[%s1 + $0x1a0] sm:$0xff]
  %v71 = vld [vmem:[%s1 + $0x1a8] sm:$0xff]
  %v72 = vld [vmem:[%s1 + $0x1b0] sm:$0xff]
  %v73 = vld [vmem:[%s1 + $0x1b8] sm:$0xff]
  %v74 = vld [vmem:[%s1 + $0x1c0] sm:$0xff]
  %v75 = vld [vmem:[%s1 + $0x1c8] sm:$0xff]
  %v76 = vld [vmem:[%s1 + $0x1d0] sm:$0xff]
  %v77 = vld [vmem:[%s1 + $0x1d8] sm:$0xff]
  %v78 = vld [vmem:[%s1 + $0x1e0] sm:$0xff]
  %v79 = vld [vmem:[%s1 + $0x1e8] sm:$0xff]
  %v80 = vld [vmem:[%s1 + $0x1f0] sm:$0xff]
  %v81 = vld [vmem:[%s1 + $0x1f8] sm:$0xff]
  %v82 = vld [vmem:[%s1 + $0x200] sm:$0xff]
  %v83 = vld [vmem:[%s1 + $0x208] sm:$0xff]
  %v84 = vld [vmem:[%s1 + $0x210] sm:$0x11]
  %v85 = vld [vmem:[%s1 + $0x218] sm:$0x11]
  %v86 = vld [vmem:[%s1 + $0x220] sm:$0x11]
  %v87 = vld [vmem:[%s1 + $0x228] sm:$0x11]
  %v88 = vld [vmem:[%s1 + $0x230] sm:$0x11]
  %v89 = vld [vmem:[%s1 + $0x238] sm:$0x11]
  %v90 = vld [vmem:[%s2] sm:$0xff]
  %v91 = vld [vmem:[%s2 + $0x8] sm:$0xff]
  %v92 = vld [vmem:[%s2 + $0x10] sm:$0xf]
  %94 = vset.pattern.permute.xlu0 0
  %95 = vperm.xlu0 %94, %v90
  %v96 = vpop.permute.xlu0 %95
  %99 = vset.pattern.permute.xlu0 0
  %100 = vperm.xlu0 %99, %v91
  %v101 = vpop.permute.xlu0 %100
  %104 = vset.pattern.permute.xlu0 0
  %105 = vperm.xlu0 %104, %v92
  %v106 = vpop.permute.xlu0 %105
  %v111 = vunpack.c.l.b16 %v15
  %v112 = vunpack.c.l.b16 %v16
  %v113 = vunpack.c.l.b16 %v17
  %v114 = vpack.c.b16 %v112, %v111
  %v115 = vpack.c.b16 %v113, %v113
  %v188 = vunpack.c.l.b16 %v18
  %v189 = vunpack.c.h.b16 %v18
  %v190 = vunpack.c.l.b16 %v19
  %v191 = vunpack.c.h.b16 %v19
  %v192 = vunpack.c.l.b16 %v20
  %v193 = vunpack.c.h.b16 %v20
  %v194 = vunpack.c.l.b16 %v21
  %v195 = vunpack.c.h.b16 %v21
  %v196 = vunpack.c.l.b16 %v22
  %v197 = vunpack.c.h.b16 %v22
  %v198 = vunpack.c.l.b16 %v23
  %v199 = vunpack.c.h.b16 %v23
  %v200 = vunpack.c.l.b16 %v24
  %v201 = vunpack.c.h.b16 %v24
  %v202 = vunpack.c.l.b16 %v25
  %v203 = vunpack.c.h.b16 %v25
  %v204 = vunpack.c.l.b16 %v26
  %v205 = vunpack.c.h.b16 %v26
  %v206 = vunpack.c.l.b16 %v27
  %v207 = vunpack.c.h.b16 %v27
  %v208 = vunpack.c.l.b16 %v28
  %v209 = vunpack.c.h.b16 %v28
  %v210 = vunpack.c.l.b16 %v29
  %v211 = vunpack.c.h.b16 %v29
  %v212 = vunpack.c.l.b16 %v30
  %v213 = vunpack.c.h.b16 %v30
  %v214 = vunpack.c.l.b16 %v31
  %v215 = vunpack.c.h.b16 %v31
  %v216 = vunpack.c.l.b16 %v32
  %v217 = vunpack.c.h.b16 %v32
  %v218 = vunpack.c.l.b16 %v33
  %v219 = vunpack.c.h.b16 %v33
  %v220 = vunpack.c.l.b16 %v34
  %v221 = vunpack.c.h.b16 %v34
  %v222 = vunpack.c.l.b16 %v35
  %v223 = vunpack.c.h.b16 %v35
  %v224 = vunpack.c.l.b16 %v36
  %v225 = vunpack.c.h.b16 %v36
  %v226 = vunpack.c.l.b16 %v37
  %v227 = vunpack.c.h.b16 %v37
  %v228 = vunpack.c.l.b16 %v38
  %v229 = vunpack.c.h.b16 %v38
  %v230 = vunpack.c.l.b16 %v39
  %v231 = vunpack.c.h.b16 %v39
  %v232 = vunpack.c.l.b16 %v40
  %v233 = vunpack.c.h.b16 %v40
  %v234 = vunpack.c.l.b16 %v41
  %v235 = vunpack.c.h.b16 %v41
  %v236 = vunpack.c.l.b16 %v42
  %v237 = vunpack.c.h.b16 %v42
  %v238 = vunpack.c.l.b16 %v43
  %v239 = vunpack.c.h.b16 %v43
  %v240 = vunpack.c.l.b16 %v44
  %v241 = vunpack.c.h.b16 %v44
  %v242 = vunpack.c.l.b16 %v45
  %v243 = vunpack.c.h.b16 %v45
  %v244 = vunpack.c.l.b16 %v46
  %v245 = vunpack.c.h.b16 %v46
  %v246 = vunpack.c.l.b16 %v47
  %v247 = vunpack.c.h.b16 %v47
  %v248 = vunpack.c.l.b16 %v48
  %v249 = vunpack.c.h.b16 %v48
  %v250 = vunpack.c.l.b16 %v49
  %v251 = vunpack.c.h.b16 %v49
  %v252 = vunpack.c.l.b16 %v50
  %v253 = vunpack.c.h.b16 %v50
  %v254 = vunpack.c.l.b16 %v51
  %v255 = vunpack.c.h.b16 %v51
  %v256 = vunpack.c.l.b16 %v52
  %v257 = vunpack.c.h.b16 %v52
  %v258 = vunpack.c.l.b16 %v53
  %v259 = vunpack.c.h.b16 %v53
  %v260 = vunpack.c.l.b16 %v54
  %v261 = vunpack.c.h.b16 %v54
  %v262 = vunpack.c.l.b16 %v55
  %v263 = vunpack.c.h.b16 %v55
  %v264 = vunpack.c.l.b16 %v56
  %v265 = vunpack.c.h.b16 %v56
  %v266 = vunpack.c.l.b16 %v57
  %v267 = vunpack.c.h.b16 %v57
  %v268 = vunpack.c.l.b16 %v58
  %v269 = vunpack.c.h.b16 %v58
  %v270 = vunpack.c.l.b16 %v59
  %v271 = vunpack.c.h.b16 %v59
  %v272 = vunpack.c.l.b16 %v60
  %v273 = vunpack.c.h.b16 %v60
  %v274 = vunpack.c.l.b16 %v61
  %v275 = vunpack.c.h.b16 %v61
  %v276 = vunpack.c.l.b16 %v62
  %v277 = vunpack.c.h.b16 %v62
  %v278 = vunpack.c.l.b16 %v63
  %v279 = vunpack.c.h.b16 %v63
  %v280 = vunpack.c.l.b16 %v64
  %v281 = vunpack.c.h.b16 %v64
  %v282 = vunpack.c.l.b16 %v65
  %v283 = vunpack.c.h.b16 %v65
  %v284 = vunpack.c.l.b16 %v66
  %v285 = vunpack.c.h.b16 %v66
  %v286 = vunpack.c.l.b16 %v67
  %v287 = vunpack.c.h.b16 %v67
  %v288 = vunpack.c.l.b16 %v68
  %v289 = vunpack.c.h.b16 %v68
  %v290 = vunpack.c.l.b16 %v69
  %v291 = vunpack.c.h.b16 %v69
  %v292 = vunpack.c.l.b16 %v70
  %v293 = vunpack.c.h.b16 %v70
  %v294 = vunpack.c.l.b16 %v71
  %v295 = vunpack.c.h.b16 %v71
  %v296 = vunpack.c.l.b16 %v72
  %v297 = vunpack.c.h.b16 %v72
  %v298 = vunpack.c.l.b16 %v73
  %v299 = vunpack.c.h.b16 %v73
  %v300 = vunpack.c.l.b16 %v74
  %v301 = vunpack.c.h.b16 %v74
  %v302 = vunpack.c.l.b16 %v75
  %v303 = vunpack.c.h.b16 %v75
  %v304 = vunpack.c.l.b16 %v76
  %v305 = vunpack.c.h.b16 %v76
  %v306 = vunpack.c.l.b16 %v77
  %v307 = vunpack.c.h.b16 %v77
  %v308 = vunpack.c.l.b16 %v78
  %v309 = vunpack.c.h.b16 %v78
  %v310 = vunpack.c.l.b16 %v79
  %v311 = vunpack.c.h.b16 %v79
  %v312 = vunpack.c.l.b16 %v80
  %v313 = vunpack.c.h.b16 %v80
  %v314 = vunpack.c.l.b16 %v81
  %v315 = vunpack.c.h.b16 %v81
  %v316 = vunpack.c.l.b16 %v82
  %v317 = vunpack.c.h.b16 %v82
  %v318 = vunpack.c.l.b16 %v83
  %v319 = vunpack.c.h.b16 %v83
  %v320 = vunpack.c.l.b16 %v84
  %v321 = vunpack.c.h.b16 %v84
  %v322 = vunpack.c.l.b16 %v85
  %v323 = vunpack.c.h.b16 %v85
  %v324 = vunpack.c.l.b16 %v86
  %v325 = vunpack.c.h.b16 %v86
  %v326 = vunpack.c.l.b16 %v87
  %v327 = vunpack.c.h.b16 %v87
  %v328 = vunpack.c.l.b16 %v88
  %v329 = vunpack.c.h.b16 %v88
  %v330 = vunpack.c.l.b16 %v89
  %v331 = vunpack.c.h.b16 %v89
  %v332 = vpack.c.b16 %v200, %v188
  %v333 = vpack.c.b16 %v201, %v189
  %v334 = vpack.c.b16 %v202, %v190
  %v335 = vpack.c.b16 %v203, %v191
  %v336 = vpack.c.b16 %v204, %v192
  %v337 = vpack.c.b16 %v205, %v193
  %v338 = vpack.c.b16 %v206, %v194
  %v339 = vpack.c.b16 %v207, %v195
  %v340 = vpack.c.b16 %v208, %v196
  %v341 = vpack.c.b16 %v209, %v197
  %v342 = vpack.c.b16 %v210, %v198
  %v343 = vpack.c.b16 %v211, %v199
  %v344 = vpack.c.b16 %v224, %v212
  %v345 = vpack.c.b16 %v225, %v213
  %v346 = vpack.c.b16 %v226, %v214
  %v347 = vpack.c.b16 %v227, %v215
  %v348 = vpack.c.b16 %v228, %v216
  %v349 = vpack.c.b16 %v229, %v217
  %v350 = vpack.c.b16 %v230, %v218
  %v351 = vpack.c.b16 %v231, %v219
  %v352 = vpack.c.b16 %v232, %v220
  %v353 = vpack.c.b16 %v233, %v221
  %v354 = vpack.c.b16 %v234, %v222
  %v355 = vpack.c.b16 %v235, %v223
  %v356 = vpack.c.b16 %v248, %v236
  %v357 = vpack.c.b16 %v249, %v237
  %v358 = vpack.c.b16 %v250, %v238
  %v359 = vpack.c.b16 %v251, %v239
  %v360 = vpack.c.b16 %v252, %v240
  %v361 = vpack.c.b16 %v253, %v241
  %v362 = vpack.c.b16 %v254, %v242
  %v363 = vpack.c.b16 %v255, %v243
  %v364 = vpack.c.b16 %v256, %v244
  %v365 = vpack.c.b16 %v257, %v245
  %v366 = vpack.c.b16 %v258, %v246
  %v367 = vpack.c.b16 %v259, %v247
  %v368 = vpack.c.b16 %v272, %v260
  %v369 = vpack.c.b16 %v273, %v261
  %v370 = vpack.c.b16 %v274, %v262
  %v371 = vpack.c.b16 %v275, %v263
  %v372 = vpack.c.b16 %v276, %v264
  %v373 = vpack.c.b16 %v277, %v265
  %v374 = vpack.c.b16 %v278, %v266
  %v375 = vpack.c.b16 %v279, %v267
  %v376 = vpack.c.b16 %v280, %v268
  %v377 = vpack.c.b16 %v281, %v269
  %v378 = vpack.c.b16 %v282, %v270
  %v379 = vpack.c.b16 %v283, %v271
  %v380 = vpack.c.b16 %v296, %v284
  %v381 = vpack.c.b16 %v297, %v285
  %v382 = vpack.c.b16 %v298, %v286
  %v383 = vpack.c.b16 %v299, %v287
  %v384 = vpack.c.b16 %v300, %v288
  %v385 = vpack.c.b16 %v301, %v289
  %v386 = vpack.c.b16 %v302, %v290
  %v387 = vpack.c.b16 %v303, %v291
  %v388 = vpack.c.b16 %v304, %v292
  %v389 = vpack.c.b16 %v305, %v293
  %v390 = vpack.c.b16 %v306, %v294
  %v391 = vpack.c.b16 %v307, %v295
  %v392 = vpack.c.b16 %v320, %v308
  %v393 = vpack.c.b16 %v321, %v309
  %v394 = vpack.c.b16 %v322, %v310
  %v395 = vpack.c.b16 %v323, %v311
  %v396 = vpack.c.b16 %v324, %v312
  %v397 = vpack.c.b16 %v325, %v313
  %v398 = vpack.c.b16 %v326, %v314
  %v399 = vpack.c.b16 %v327, %v315
  %v400 = vpack.c.b16 %v328, %v316
  %v401 = vpack.c.b16 %v329, %v317
  %v402 = vpack.c.b16 %v330, %v318
  %v403 = vpack.c.b16 %v331, %v319
  %vm464 = vcmask 736256
  %v466 = vsel %vm464, %v114, 0
  %v469 = vsel %vm464, %v115, 0
  %vm471 = vcmask 1044480
  %v473 = vsel %vm471, %v392, 0
  %v476 = vsel %vm471, %v393, 0
  %v479 = vsel %vm471, %v394, 0
  %v482 = vsel %vm471, %v395, 0
  %v485 = vsel %vm471, %v396, 0
  %v488 = vsel %vm471, %v397, 0
  %v491 = vsel %vm471, %v398, 0
  %v494 = vsel %vm471, %v399, 0
  %v497 = vsel %vm471, %v400, 0
  %v500 = vsel %vm471, %v401, 0
  %v503 = vsel %vm471, %v402, 0
  %v506 = vsel %vm471, %v403, 0
  %508 = vmatpush.bf16.msra.mxu0 0
  %509 = vmatpush.bf16.msra.mxu0 0
  %510 = vmatpush.bf16.msra.mxu0 %v473
  %511 = vmatpush.bf16.msra.mxu0 %v380
  %512 = vmatpush.bf16.msra.mxu0 %v368
  %513 = vmatpush.bf16.msra.mxu0 %v356
  %514 = vmatpush.bf16.msra.mxu0 %v344
  %515 = vmatpush.bf16.msra.mxu0 %v332
  %516 = vmatmul.bf16.gmra.mxu0 %v466
  %v517 = vpop.f32.mrf.mxu0
  %v518 = vadd.f32 %v96, %v517
  %v519 = vpop.f32.mrf.mxu0
  %v520 = vadd.f32 %v101, %v519
  %521 = vmatmul.bf16.gmra.mxu0 %v469
  %v522 = vpop.f32.mrf.mxu0
  %v523 = vadd.f32 %v106, %v522
  %v524 = vpop.f32.mrf.mxu0
  %525 = vdwg.mxu0
  %526 = vmatpush.bf16.msra.mxu0 0
  %527 = vmatpush.bf16.msra.mxu0 0
  %528 = vmatpush.bf16.msra.mxu0 %v476
  %529 = vmatpush.bf16.msra.mxu0 %v381
  %530 = vmatpush.bf16.msra.mxu0 %v369
  %531 = vmatpush.bf16.msra.mxu0 %v357
  %532 = vmatpush.bf16.msra.mxu0 %v345
  %533 = vmatpush.bf16.msra.mxu0 %v333
  %534 = vmatmul.bf16.gmra.mxu0 %v466
  %v535 = vpop.f32.mrf.mxu0
  %v536 = vadd.f32 %v96, %v535
  %v537 = vpop.f32.mrf.mxu0
  %v538 = vadd.f32 %v101, %v537
  %539 = vmatmul.bf16.gmra.mxu0 %v469
  %v540 = vpop.f32.mrf.mxu0
  %v541 = vadd.f32 %v106, %v540
  %v542 = vpop.f32.mrf.mxu0
  %543 = vdwg.mxu0
  %544 = vmatpush.bf16.msra.mxu0 0
  %545 = vmatpush.bf16.msra.mxu0 0
  %546 = vmatpush.bf16.msra.mxu0 %v479
  %547 = vmatpush.bf16.msra.mxu0 %v382
  %548 = vmatpush.bf16.msra.mxu0 %v370
  %549 = vmatpush.bf16.msra.mxu0 %v358
  %550 = vmatpush.bf16.msra.mxu0 %v346
  %551 = vmatpush.bf16.msra.mxu0 %v334
  %552 = vmatmul.bf16.gmra.mxu0 %v466
  %v553 = vpop.f32.mrf.mxu0
  %v554 = vadd.f32 %v96, %v553
  %v555 = vpop.f32.mrf.mxu0
  %v556 = vadd.f32 %v101, %v555
  %557 = vmatmul.bf16.gmra.mxu0 %v469
  %v558 = vpop.f32.mrf.mxu0
  %v559 = vadd.f32 %v106, %v558
  %v560 = vpop.f32.mrf.mxu0
  %561 = vdwg.mxu0
  %562 = vmatpush.bf16.msra.mxu0 0
  %563 = vmatpush.bf16.msra.mxu0 0
  %564 = vmatpush.bf16.msra.mxu0 %v482
  %565 = vmatpush.bf16.msra.mxu0 %v383
  %566 = vmatpush.bf16.msra.mxu0 %v371
  %567 = vmatpush.bf16.msra.mxu0 %v359
  %568 = vmatpush.bf16.msra.mxu0 %v347
  %569 = vmatpush.bf16.msra.mxu0 %v335
  %570 = vmatmul.bf16.gmra.mxu0 %v466
  %v571 = vpop.f32.mrf.mxu0
  %v572 = vadd.f32 %v96, %v571
  %v573 = vpop.f32.mrf.mxu0
  %v574 = vadd.f32 %v101, %v573
  %575 = vmatmul.bf16.gmra.mxu0 %v469
  %v576 = vpop.f32.mrf.mxu0
  %v577 = vadd.f32 %v106, %v576
  %v578 = vpop.f32.mrf.mxu0
  %579 = vdwg.mxu0
  %580 = vmatpush.bf16.msra.mxu0 0
  %581 = vmatpush.bf16.msra.mxu0 0
  %582 = vmatpush.bf16.msra.mxu0 %v485
  %583 = vmatpush.bf16.msra.mxu0 %v384
  %584 = vmatpush.bf16.msra.mxu0 %v372
  %585 = vmatpush.bf16.msra.mxu0 %v360
  %586 = vmatpush.bf16.msra.mxu0 %v348
  %587 = vmatpush.bf16.msra.mxu0 %v336
  %588 = vmatmul.bf16.gmra.mxu0 %v466
  %v589 = vpop.f32.mrf.mxu0
  %v590 = vadd.f32 %v96, %v589
  %v591 = vpop.f32.mrf.mxu0
  %v592 = vadd.f32 %v101, %v591
  %593 = vmatmul.bf16.gmra.mxu0 %v469
  %v594 = vpop.f32.mrf.mxu0
  %v595 = vadd.f32 %v106, %v594
  %v596 = vpop.f32.mrf.mxu0
  %597 = vdwg.mxu0
  %598 = vmatpush.bf16.msra.mxu0 0
  %599 = vmatpush.bf16.msra.mxu0 0
  %600 = vmatpush.bf16.msra.mxu0 %v488
  %601 = vmatpush.bf16.msra.mxu0 %v385
  %602 = vmatpush.bf16.msra.mxu0 %v373
  %603 = vmatpush.bf16.msra.mxu0 %v361
  %604 = vmatpush.bf16.msra.mxu0 %v349
  %605 = vmatpush.bf16.msra.mxu0 %v337
  %606 = vmatmul.bf16.gmra.mxu0 %v466
  %v607 = vpop.f32.mrf.mxu0
  %v608 = vadd.f32 %v96, %v607
  %v609 = vpop.f32.mrf.mxu0
  %v610 = vadd.f32 %v101, %v609
  %611 = vmatmul.bf16.gmra.mxu0 %v469
  %v612 = vpop.f32.mrf.mxu0
  %v613 = vadd.f32 %v106, %v612
  %v614 = vpop.f32.mrf.mxu0
  %615 = vdwg.mxu0
  %616 = vmatpush.bf16.msra.mxu0 0
  %617 = vmatpush.bf16.msra.mxu0 0
  %618 = vmatpush.bf16.msra.mxu0 %v491
  %619 = vmatpush.bf16.msra.mxu0 %v386
  %620 = vmatpush.bf16.msra.mxu0 %v374
  %621 = vmatpush.bf16.msra.mxu0 %v362
  %622 = vmatpush.bf16.msra.mxu0 %v350
  %623 = vmatpush.bf16.msra.mxu0 %v338
  %624 = vmatmul.bf16.gmra.mxu0 %v466
  %v625 = vpop.f32.mrf.mxu0
  %v626 = vadd.f32 %v96, %v625
  %v627 = vpop.f32.mrf.mxu0
  %v628 = vadd.f32 %v101, %v627
  %629 = vmatmul.bf16.gmra.mxu0 %v469
  %v630 = vpop.f32.mrf.mxu0
  %v631 = vadd.f32 %v106, %v630
  %v632 = vpop.f32.mrf.mxu0
  %633 = vdwg.mxu0
  %634 = vmatpush.bf16.msra.mxu0 0
  %635 = vmatpush.bf16.msra.mxu0 0
  %636 = vmatpush.bf16.msra.mxu0 %v494
  %637 = vmatpush.bf16.msra.mxu0 %v387
  %638 = vmatpush.bf16.msra.mxu0 %v375
  %639 = vmatpush.bf16.msra.mxu0 %v363
  %640 = vmatpush.bf16.msra.mxu0 %v351
  %641 = vmatpush.bf16.msra.mxu0 %v339
  %642 = vmatmul.bf16.gmra.mxu0 %v466
  %v643 = vpop.f32.mrf.mxu0
  %v644 = vadd.f32 %v96, %v643
  %v645 = vpop.f32.mrf.mxu0
  %v646 = vadd.f32 %v101, %v645
  %647 = vmatmul.bf16.gmra.mxu0 %v469
  %v648 = vpop.f32.mrf.mxu0
  %v649 = vadd.f32 %v106, %v648
  %v650 = vpop.f32.mrf.mxu0
  %651 = vdwg.mxu0
  %652 = vmatpush.bf16.msra.mxu0 0
  %653 = vmatpush.bf16.msra.mxu0 0
  %654 = vmatpush.bf16.msra.mxu0 %v497
  %655 = vmatpush.bf16.msra.mxu0 %v388
  %656 = vmatpush.bf16.msra.mxu0 %v376
  %657 = vmatpush.bf16.msra.mxu0 %v364
  %658 = vmatpush.bf16.msra.mxu0 %v352
  %659 = vmatpush.bf16.msra.mxu0 %v340
  %660 = vmatmul.bf16.gmra.mxu0 %v466
  %v661 = vpop.f32.mrf.mxu0
  %v662 = vadd.f32 %v96, %v661
  %v663 = vpop.f32.mrf.mxu0
  %v664 = vadd.f32 %v101, %v663
  %665 = vmatmul.bf16.gmra.mxu0 %v469
  %v666 = vpop.f32.mrf.mxu0
  %v667 = vadd.f32 %v106, %v666
  %v668 = vpop.f32.mrf.mxu0
  %669 = vdwg.mxu0
  %670 = vmatpush.bf16.msra.mxu0 0
  %671 = vmatpush.bf16.msra.mxu0 0
  %672 = vmatpush.bf16.msra.mxu0 %v500
  %673 = vmatpush.bf16.msra.mxu0 %v389
  %674 = vmatpush.bf16.msra.mxu0 %v377
  %675 = vmatpush.bf16.msra.mxu0 %v365
  %676 = vmatpush.bf16.msra.mxu0 %v353
  %677 = vmatpush.bf16.msra.mxu0 %v341
  %678 = vmatmul.bf16.gmra.mxu0 %v466
  %v679 = vpop.f32.mrf.mxu0
  %v680 = vadd.f32 %v96, %v679
  %v681 = vpop.f32.mrf.mxu0
  %v682 = vadd.f32 %v101, %v681
  %683 = vmatmul.bf16.gmra.mxu0 %v469
  %v684 = vpop.f32.mrf.mxu0
  %v685 = vadd.f32 %v106, %v684
  %v686 = vpop.f32.mrf.mxu0
  %687 = vdwg.mxu0
  %688 = vmatpush.bf16.msra.mxu0 0
  %689 = vmatpush.bf16.msra.mxu0 0
  %690 = vmatpush.bf16.msra.mxu0 %v503
  %691 = vmatpush.bf16.msra.mxu0 %v390
  %692 = vmatpush.bf16.msra.mxu0 %v378
  %693 = vmatpush.bf16.msra.mxu0 %v366
  %694 = vmatpush.bf16.msra.mxu0 %v354
  %695 = vmatpush.bf16.msra.mxu0 %v342
  %696 = vmatmul.bf16.gmra.mxu0 %v466
  %v697 = vpop.f32.mrf.mxu0
  %v698 = vadd.f32 %v96, %v697
  %v699 = vpop.f32.mrf.mxu0
  %v700 = vadd.f32 %v101, %v699
  %701 = vmatmul.bf16.gmra.mxu0 %v469
  %v702 = vpop.f32.mrf.mxu0
  %v703 = vadd.f32 %v106, %v702
  %v704 = vpop.f32.mrf.mxu0
  %705 = vdwg.mxu0
  %706 = vmatpush.bf16.msra.mxu0 0
  %707 = vmatpush.bf16.msra.mxu0 0
  %708 = vmatpush.bf16.msra.mxu0 %v506
  %709 = vmatpush.bf16.msra.mxu0 %v391
  %710 = vmatpush.bf16.msra.mxu0 %v379
  %711 = vmatpush.bf16.msra.mxu0 %v367
  %712 = vmatpush.bf16.msra.mxu0 %v355
  %713 = vmatpush.bf16.msra.mxu0 %v343
  %714 = vmatmul.bf16.gmra.mxu0 %v466
  %v715 = vpop.f32.mrf.mxu0
  %v716 = vadd.f32 %v96, %v715
  %v717 = vpop.f32.mrf.mxu0
  %v718 = vadd.f32 %v101, %v717
  %719 = vmatmul.bf16.gmra.mxu0 %v469
  %v720 = vpop.f32.mrf.mxu0
  %v721 = vadd.f32 %v106, %v720
  %v722 = vpop.f32.mrf.mxu0
  %723 = vdwg.mxu0
  %v724 = vpack.c.bf16 %v536, %v518
  %v725 = vpack.c.bf16 %v572, %v554
  %v726 = vpack.c.bf16 %v608, %v590
  %v727 = vpack.c.bf16 %v644, %v626
  %v728 = vpack.c.bf16 %v680, %v662
  %v729 = vpack.c.bf16 %v716, %v698
  %v730 = vpack.c.bf16 %v538, %v520
  %v731 = vpack.c.bf16 %v574, %v556
  %v732 = vpack.c.bf16 %v610, %v592
  %v733 = vpack.c.bf16 %v646, %v628
  %v734 = vpack.c.bf16 %v682, %v664
  %v735 = vpack.c.bf16 %v718, %v700
  %v736 = vpack.c.bf16 %v541, %v523
  %v737 = vpack.c.bf16 %v577, %v559
  %v738 = vpack.c.bf16 %v613, %v595
  %v739 = vpack.c.bf16 %v649, %v631
  %v740 = vpack.c.bf16 %v685, %v667
  %v741 = vpack.c.bf16 %v721, %v703
  %742 = vst [vmem:[%s3] sm:$0xff] %v724
  %743 = vst [vmem:[%s3 + $0x8] sm:$0xff] %v725
  %744 = vst [vmem:[%s3 + $0x10] sm:$0xff] %v726
  %745 = vst [vmem:[%s3 + $0x18] sm:$0xff] %v727
  %746 = vst [vmem:[%s3 + $0x20] sm:$0xff] %v728
  %vm747 = vcmask 1043456
  %vm748 = vcmask 408580
  %vm749 = vmor %vm748, %vm747
  %750 = vst.msk [vmem:[%s3 + $0x28] sm:$0xff] %vm749, %v729
  %751 = vst [vmem:[%s3 + $0x30] sm:$0xff] %v730
  %752 = vst [vmem:[%s3 + $0x38] sm:$0xff] %v731
  %753 = vst [vmem:[%s3 + $0x40] sm:$0xff] %v732
  %754 = vst [vmem:[%s3 + $0x48] sm:$0xff] %v733
  %755 = vst [vmem:[%s3 + $0x50] sm:$0xff] %v734
  %756 = vst.msk [vmem:[%s3 + $0x58] sm:$0xff] %vm749, %v735
  %757 = vst [vmem:[%s3 + $0x60] sm:$0x33] %v736
  %758 = vst [vmem:[%s3 + $0x68] sm:$0x33] %v737
  %759 = vst [vmem:[%s3 + $0x70] sm:$0x33] %v738
  %760 = vst [vmem:[%s3 + $0x78] sm:$0x33] %v739
  %761 = vst [vmem:[%s3 + $0x80] sm:$0x33] %v740
  %vm762 = vcmask 1041408
  %vm763 = vcmask 406532
  %vm764 = vmor %vm763, %vm762
  %765 = vst.msk [vmem:[%s3 + $0x88] sm:$0x33] %vm764, %v741
  // Predicated region
  $region14: #{net1_forward.5} parent=0 // pred_check
    _
  $region15: #{net1_forward.5} parent=0 // pred_check_branch
    %767 = sbr.rel (0) target = $region17
  $region16: #{net1_forward.5} parent=0 // pred_region
    _
  $region17: #{net1_forward.5} parent=0 // pred_fallthru
    _
  // Predicated region
  $region18: #{net1_forward.5} parent=0 // pred_check
    _
  $region19: #{net1_forward.5} parent=0 // pred_check_branch
    %769 = sbr.rel (0) target = $region21
  $region20: #{net1_forward.5} parent=0 // pred_region
    _
  $region21: #{net1_forward.5} parent=0 // pred_fallthru
    _

// kernel: net1_forward.6
$region0: #{net1_forward.6}
  #allocation0 [shape = 'u32[]', space=smem, size = 0x4, offset = 0x4, fixed_abs, tag = 'smem constant byte address 0x4 - core index']
  #allocation1 [shape = 'u32[72,128]{1,0:T(1,128)}', space=vmem, size = 0x9000, scoped, tag = 'internal scratch']
  %s0 = inlined_call_operand.vmem [shape: bf16[20,180], index: 0, kind: input, shape index: {}]
  %s1 = inlined_call_operand.vmem [shape: bf16[180,338], index: 1, kind: input, shape index: {}]
  %s2 = inlined_call_operand.vmem [shape: f32[20,1], index: 2, kind: input, shape index: {}]
  %s3 = inlined_call_operand.vmem [shape: bf16[20,338], index: 3, kind: output, shape index: {}]
  %s4 = sld [smem:[#allocation0]]
  $region22: #{net1_forward.6} parent=0
    _
  %s6 = ssub.s32 1, %s4
  %s7 = scalar_select 0, %s6, %s4
  // Predicated region
  $region2: #{net1_forward.6} parent=0 // pred_check
    _
  $region3: #{net1_forward.6} parent=0 // pred_check_branch
    %9 = sbr.rel (0) target = $region5
  $region4: #{net1_forward.6} parent=0 // pred_region
    _
  $region5: #{net1_forward.6} parent=0 // pred_fallthru
    _
  // Predicated region
  $region6: #{net1_forward.6} parent=0 // pred_check
    _
  $region7: #{net1_forward.6} parent=0 // pred_check_branch
    %11 = sbr.rel (0) target = $region9
  $region8: #{net1_forward.6} parent=0 // pred_region
    _
  $region9: #{net1_forward.6} parent=0 // pred_fallthru
    _
  // Predicated region
  $region10: #{net1_forward.6} parent=0 // pred_check
    _
  $region11: #{net1_forward.6} parent=0 // pred_check_branch
    %13 = sbr.rel (0) target = $region13
  $region12: #{net1_forward.6} parent=0 // pred_region
    _
  $region13: #{net1_forward.6} parent=0 // pred_fallthru
    _
  %v15 = vld [vmem:[%s0] sm:$0xff]
  %v16 = vld [vmem:[%s0 + $0x8] sm:$0xff]
  %v17 = vld [vmem:[%s0 + $0x10] sm:$0x33]
  %v18 = vld [vmem:[%s1] sm:$0xff]
  %v19 = vld [vmem:[%s1 + $0x8] sm:$0xf]
  %v20 = vld [vmem:[%s1 + $0xc] sm:$0xff]
  %v21 = vld [vmem:[%s1 + $0x14] sm:$0xf]
  %v22 = vld [vmem:[%s1 + $0x18] sm:$0xff]
  %v23 = vld [vmem:[%s1 + $0x20] sm:$0xf]
  %v24 = vld [vmem:[%s1 + $0x24] sm:$0xff]
  %v25 = vld [vmem:[%s1 + $0x2c] sm:$0xf]
  %v26 = vld [vmem:[%s1 + $0x30] sm:$0xff]
  %v27 = vld [vmem:[%s1 + $0x38] sm:$0xf]
  %v28 = vld [vmem:[%s1 + $0x3c] sm:$0xff]
  %v29 = vld [vmem:[%s1 + $0x44] sm:$0xf]
  %v30 = vld [vmem:[%s1 + $0x48] sm:$0xff]
  %v31 = vld [vmem:[%s1 + $0x50] sm:$0xf]
  %v32 = vld [vmem:[%s1 + $0x54] sm:$0xff]
  %v33 = vld [vmem:[%s1 + $0x5c] sm:$0xf]
  %v34 = vld [vmem:[%s1 + $0x60] sm:$0xff]
  %v35 = vld [vmem:[%s1 + $0x68] sm:$0xf]
  %v36 = vld [vmem:[%s1 + $0x6c] sm:$0xff]
  %v37 = vld [vmem:[%s1 + $0x74] sm:$0xf]
  %v38 = vld [vmem:[%s1 + $0x78] sm:$0xff]
  %v39 = vld [vmem:[%s1 + $0x80] sm:$0xf]
  %v40 = vld [vmem:[%s1 + $0x84] sm:$0xff]
  %v41 = vld [vmem:[%s1 + $0x8c] sm:$0xf]
  %v42 = vld [vmem:[%s1 + $0x90] sm:$0xff]
  %v43 = vld [vmem:[%s1 + $0x98] sm:$0xf]
  %v44 = vld [vmem:[%s1 + $0x9c] sm:$0xff]
  %v45 = vld [vmem:[%s1 + $0xa4] sm:$0xf]
  %v46 = vld [vmem:[%s1 + $0xa8] sm:$0xff]
  %v47 = vld [vmem:[%s1 + $0xb0] sm:$0xf]
  %v48 = vld [vmem:[%s1 + $0xb4] sm:$0xff]
  %v49 = vld [vmem:[%s1 + $0xbc] sm:$0xf]
  %v50 = vld [vmem:[%s1 + $0xc0] sm:$0xff]
  %v51 = vld [vmem:[%s1 + $0xc8] sm:$0xf]
  %v52 = vld [vmem:[%s1 + $0xcc] sm:$0xff]
  %v53 = vld [vmem:[%s1 + $0xd4] sm:$0xf]
  %v54 = vld [vmem:[%s1 + $0xd8] sm:$0xff]
  %v55 = vld [vmem:[%s1 + $0xe0] sm:$0xf]
  %v56 = vld [vmem:[%s1 + $0xe4] sm:$0xff]
  %v57 = vld [vmem:[%s1 + $0xec] sm:$0xf]
  %v58 = vld [vmem:[%s1 + $0xf0] sm:$0xff]
  %v59 = vld [vmem:[%s1 + $0xf8] sm:$0xf]
  %v60 = vld [vmem:[%s1 + $0xfc] sm:$0xff]
  %v61 = vld [vmem:[%s1 + $0x104] sm:$0xf]
  %v62 = vld [vmem:[%s1 + $0x108] sm:$0x33]
  %v63 = vld [vmem:[%s1 + $0x110] sm:$0x3]
  %v64 = vld [vmem:[%s2] sm:$0xff]
  %v65 = vld [vmem:[%s2 + $0x8] sm:$0xff]
  %v66 = vld [vmem:[%s2 + $0x10] sm:$0xf]
  %68 = vset.pattern.permute.xlu0 0
  %69 = vperm.xlu0 %68, %v64
  %v70 = vpop.permute.xlu0 %69
  %73 = vset.pattern.permute.xlu0 0
  %74 = vperm.xlu0 %73, %v65
  %v75 = vpop.permute.xlu0 %74
  %78 = vset.pattern.permute.xlu0 0
  %79 = vperm.xlu0 %78, %v66
  %v80 = vpop.permute.xlu0 %79
  %v85 = vunpack.c.l.b16 %v15
  %v86 = vunpack.c.h.b16 %v15
  %v87 = vunpack.c.l.b16 %v16
  %v88 = vunpack.c.h.b16 %v16
  %v89 = vunpack.c.l.b16 %v17
  %v90 = vunpack.c.h.b16 %v17
  %v91 = vpack.c.b16 %v87, %v85
  %v92 = vpack.c.b16 %v88, %v86
  %v93 = vpack.c.b16 %v89, %v89
  %v94 = vpack.c.b16 %v90, %v90
  %v143 = vunpack.c.l.b16 %v18
  %v144 = vunpack.c.h.b16 %v18
  %v145 = vunpack.c.l.b16 %v19
  %v146 = vunpack.c.l.b16 %v20
  %v147 = vunpack.c.h.b16 %v20
  %v148 = vunpack.c.l.b16 %v21
  %v149 = vunpack.c.l.b16 %v22
  %v150 = vunpack.c.h.b16 %v22
  %v151 = vunpack.c.l.b16 %v23
  %v152 = vunpack.c.l.b16 %v24
  %v153 = vunpack.c.h.b16 %v24
  %v154 = vunpack.c.l.b16 %v25
  %v155 = vunpack.c.l.b16 %v26
  %v156 = vunpack.c.h.b16 %v26
  %v157 = vunpack.c.l.b16 %v27
  %v158 = vunpack.c.l.b16 %v28
  %v159 = vunpack.c.h.b16 %v28
  %v160 = vunpack.c.l.b16 %v29
  %v161 = vunpack.c.l.b16 %v30
  %v162 = vunpack.c.h.b16 %v30
  %v163 = vunpack.c.l.b16 %v31
  %v164 = vunpack.c.l.b16 %v32
  %v165 = vunpack.c.h.b16 %v32
  %v166 = vunpack.c.l.b16 %v33
  %v167 = vunpack.c.l.b16 %v34
  %v168 = vunpack.c.h.b16 %v34
  %v169 = vunpack.c.l.b16 %v35
  %v170 = vunpack.c.l.b16 %v36
  %v171 = vunpack.c.h.b16 %v36
  %v172 = vunpack.c.l.b16 %v37
  %v173 = vunpack.c.l.b16 %v38
  %v174 = vunpack.c.h.b16 %v38
  %v175 = vunpack.c.l.b16 %v39
  %v176 = vunpack.c.l.b16 %v40
  %v177 = vunpack.c.h.b16 %v40
  %v178 = vunpack.c.l.b16 %v41
  %v179 = vunpack.c.l.b16 %v42
  %v180 = vunpack.c.h.b16 %v42
  %v181 = vunpack.c.l.b16 %v43
  %v182 = vunpack.c.l.b16 %v44
  %v183 = vunpack.c.h.b16 %v44
  %v184 = vunpack.c.l.b16 %v45
  %v185 = vunpack.c.l.b16 %v46
  %v186 = vunpack.c.h.b16 %v46
  %v187 = vunpack.c.l.b16 %v47
  %v188 = vunpack.c.l.b16 %v48
  %v189 = vunpack.c.h.b16 %v48
  %v190 = vunpack.c.l.b16 %v49
  %v191 = vunpack.c.l.b16 %v50
  %v192 = vunpack.c.h.b16 %v50
  %v193 = vunpack.c.l.b16 %v51
  %v194 = vunpack.c.l.b16 %v52
  %v195 = vunpack.c.h.b16 %v52
  %v196 = vunpack.c.l.b16 %v53
  %v197 = vunpack.c.l.b16 %v54
  %v198 = vunpack.c.h.b16 %v54
  %v199 = vunpack.c.l.b16 %v55
  %v200 = vunpack.c.l.b16 %v56
  %v201 = vunpack.c.h.b16 %v56
  %v202 = vunpack.c.l.b16 %v57
  %v203 = vunpack.c.l.b16 %v58
  %v204 = vunpack.c.h.b16 %v58
  %v205 = vunpack.c.l.b16 %v59
  %v206 = vunpack.c.l.b16 %v60
  %v207 = vunpack.c.h.b16 %v60
  %v208 = vunpack.c.l.b16 %v61
  %v209 = vunpack.c.l.b16 %v62
  %v210 = vunpack.c.h.b16 %v62
  %v211 = vunpack.c.l.b16 %v63
  %v212 = vpack.c.b16 %v146, %v143
  %v213 = vpack.c.b16 %v147, %v144
  %v214 = vpack.c.b16 %v148, %v145
  %v215 = vpack.c.b16 %v152, %v149
  %v216 = vpack.c.b16 %v153, %v150
  %v217 = vpack.c.b16 %v154, %v151
  %v218 = vpack.c.b16 %v158, %v155
  %v219 = vpack.c.b16 %v159, %v156
  %v220 = vpack.c.b16 %v160, %v157
  %v221 = vpack.c.b16 %v164, %v161
  %v222 = vpack.c.b16 %v165, %v162
  %v223 = vpack.c.b16 %v166, %v163
  %v224 = vpack.c.b16 %v170, %v167
  %v225 = vpack.c.b16 %v171, %v168
  %v226 = vpack.c.b16 %v172, %v169
  %v227 = vpack.c.b16 %v176, %v173
  %v228 = vpack.c.b16 %v177, %v174
  %v229 = vpack.c.b16 %v178, %v175
  %v230 = vpack.c.b16 %v182, %v179
  %v231 = vpack.c.b16 %v183, %v180
  %v232 = vpack.c.b16 %v184, %v181
  %v233 = vpack.c.b16 %v188, %v185
  %v234 = vpack.c.b16 %v189, %v186
  %v235 = vpack.c.b16 %v190, %v187
  %v236 = vpack.c.b16 %v194, %v191
  %v237 = vpack.c.b16 %v195, %v192
  %v238 = vpack.c.b16 %v196, %v193
  %v239 = vpack.c.b16 %v200, %v197
  %v240 = vpack.c.b16 %v201, %v198
  %v241 = vpack.c.b16 %v202, %v199
  %v242 = vpack.c.b16 %v206, %v203
  %v243 = vpack.c.b16 %v207, %v204
  %v244 = vpack.c.b16 %v208, %v205
  %v245 = vpack.c.b16 %v209, %v209
  %v246 = vpack.c.b16 %v210, %v210
  %v247 = vpack.c.b16 %v211, %v211
  %vm281 = vcmask 424960
  %v283 = vsel %vm281, %v92, 0
  %v286 = vsel %vm281, %v94, 0
  %vm288 = vcmask 1041408
  %v290 = vsel %vm288, %v245, 0
  %v293 = vsel %vm288, %v246, 0
  %v296 = vsel %vm288, %v247, 0
  %298 = vmatpush.bf16.msra.mxu0 %v233
  %299 = vmatpush.bf16.msra.mxu0 %v230
  %300 = vmatpush.bf16.msra.mxu0 %v227
  %301 = vmatpush.bf16.msra.mxu0 %v224
  %302 = vmatpush.bf16.msra.mxu0 %v221
  %303 = vmatpush.bf16.msra.mxu0 %v218
  %304 = vmatpush.bf16.msra.mxu0 %v215
  %305 = vmatpush.bf16.msra.mxu0 %v212
  %306 = vmatmul.bf16.gmra.mxu0 %v91
  %v307 = vpop.f32.mrf.mxu0
  %v308 = vadd.f32 %v70, %v307
  %v309 = vpop.f32.mrf.mxu0
  %v310 = vadd.f32 %v75, %v309
  %311 = vmatmul.bf16.gmra.mxu0 %v93
  %v312 = vpop.f32.mrf.mxu0
  %v313 = vadd.f32 %v80, %v312
  %v314 = vpop.f32.mrf.mxu0
  %315 = vdwg.mxu0
  %316 = vmatpush.bf16.msra.mxu0 0
  %317 = vmatpush.bf16.msra.mxu0 0
  %318 = vmatpush.bf16.msra.mxu0 0
  %319 = vmatpush.bf16.msra.mxu0 0
  %320 = vmatpush.bf16.msra.mxu0 %v290
  %321 = vmatpush.bf16.msra.mxu0 %v242
  %322 = vmatpush.bf16.msra.mxu0 %v239
  %323 = vmatpush.bf16.msra.mxu0 %v236
  %324 = vmatmul.bf16.gmra.mxu0 %v283
  %v325 = vpop.f32.mrf.mxu0
  %v326 = vadd.f32 %v308, %v325
  %v327 = vpop.f32.mrf.mxu0
  %v328 = vadd.f32 %v310, %v327
  %329 = vmatmul.bf16.gmra.mxu0 %v286
  %v330 = vpop.f32.mrf.mxu0
  %v331 = vadd.f32 %v313, %v330
  %v332 = vpop.f32.mrf.mxu0
  %333 = vdwg.mxu0
  %334 = vmatpush.bf16.msra.mxu0 %v234
  %335 = vmatpush.bf16.msra.mxu0 %v231
  %336 = vmatpush.bf16.msra.mxu0 %v228
  %337 = vmatpush.bf16.msra.mxu0 %v225
  %338 = vmatpush.bf16.msra.mxu0 %v222
  %339 = vmatpush.bf16.msra.mxu0 %v219
  %340 = vmatpush.bf16.msra.mxu0 %v216
  %341 = vmatpush.bf16.msra.mxu0 %v213
  %342 = vmatmul.bf16.gmra.mxu0 %v91
  %v343 = vpop.f32.mrf.mxu0
  %v344 = vadd.f32 %v70, %v343
  %v345 = vpop.f32.mrf.mxu0
  %v346 = vadd.f32 %v75, %v345
  %347 = vmatmul.bf16.gmra.mxu0 %v93
  %v348 = vpop.f32.mrf.mxu0
  %v349 = vadd.f32 %v80, %v348
  %v350 = vpop.f32.mrf.mxu0
  %351 = vdwg.mxu0
  %352 = vmatpush.bf16.msra.mxu0 0
  %353 = vmatpush.bf16.msra.mxu0 0
  %354 = vmatpush.bf16.msra.mxu0 0
  %355 = vmatpush.bf16.msra.mxu0 0
  %356 = vmatpush.bf16.msra.mxu0 %v293
  %357 = vmatpush.bf16.msra.mxu0 %v243
  %358 = vmatpush.bf16.msra.mxu0 %v240
  %359 = vmatpush.bf16.msra.mxu0 %v237
  %360 = vmatmul.bf16.gmra.mxu0 %v283
  %v361 = vpop.f32.mrf.mxu0
  %v362 = vadd.f32 %v344, %v361
  %v363 = vpop.f32.mrf.mxu0
  %v364 = vadd.f32 %v346, %v363
  %365 = vmatmul.bf16.gmra.mxu0 %v286
  %v366 = vpop.f32.mrf.mxu0
  %v367 = vadd.f32 %v349, %v366
  %v368 = vpop.f32.mrf.mxu0
  %369 = vdwg.mxu0
  %370 = vmatpush.bf16.msra.mxu0 %v235
  %371 = vmatpush.bf16.msra.mxu0 %v232
  %372 = vmatpush.bf16.msra.mxu0 %v229
  %373 = vmatpush.bf16.msra.mxu0 %v226
  %374 = vmatpush.bf16.msra.mxu0 %v223
  %375 = vmatpush.bf16.msra.mxu0 %v220
  %376 = vmatpush.bf16.msra.mxu0 %v217
  %377 = vmatpush.bf16.msra.mxu0 %v214
  %378 = vmatmul.bf16.gmra.mxu0 %v91
  %v379 = vpop.f32.mrf.mxu0
  %v380 = vadd.f32 %v70, %v379
  %v381 = vpop.f32.mrf.mxu0
  %v382 = vadd.f32 %v75, %v381
  %383 = vmatmul.bf16.gmra.mxu0 %v93
  %v384 = vpop.f32.mrf.mxu0
  %v385 = vadd.f32 %v80, %v384
  %v386 = vpop.f32.mrf.mxu0
  %387 = vdwg.mxu0
  %388 = vmatpush.bf16.msra.mxu0 0
  %389 = vmatpush.bf16.msra.mxu0 0
  %390 = vmatpush.bf16.msra.mxu0 0
  %391 = vmatpush.bf16.msra.mxu0 0
  %392 = vmatpush.bf16.msra.mxu0 %v296
  %393 = vmatpush.bf16.msra.mxu0 %v244
  %394 = vmatpush.bf16.msra.mxu0 %v241
  %395 = vmatpush.bf16.msra.mxu0 %v238
  %396 = vmatmul.bf16.gmra.mxu0 %v283
  %v397 = vpop.f32.mrf.mxu0
  %v398 = vadd.f32 %v380, %v397
  %v399 = vpop.f32.mrf.mxu0
  %v400 = vadd.f32 %v382, %v399
  %401 = vmatmul.bf16.gmra.mxu0 %v286
  %v402 = vpop.f32.mrf.mxu0
  %v403 = vadd.f32 %v385, %v402
  %v404 = vpop.f32.mrf.mxu0
  %405 = vdwg.mxu0
  %v406 = vpack.c.bf16 %v362, %v326
  %v407 = vpack.c.bf16 %v398, %v398
  %v408 = vpack.c.bf16 %v364, %v328
  %v409 = vpack.c.bf16 %v400, %v400
  %v410 = vpack.c.bf16 %v367, %v331
  %v411 = vpack.c.bf16 %v403, %v403
  %412 = vst [vmem:[%s3] sm:$0xff] %v406
  %vm413 = vcmask 666624
  %414 = vst.msk [vmem:[%s3 + $0x8] sm:$0xf] %vm413, %v407
  %415 = vst [vmem:[%s3 + $0xc] sm:$0xff] %v408
  %416 = vst.msk [vmem:[%s3 + $0x14] sm:$0xf] %vm413, %v409
  %417 = vst [vmem:[%s3 + $0x18] sm:$0x33] %v410
  %vm418 = vcmask 664576
  %419 = vst.msk [vmem:[%s3 + $0x20] sm:$0x3] %vm418, %v411
  // Predicated region
  $region14: #{net1_forward.6} parent=0 // pred_check
    _
  $region15: #{net1_forward.6} parent=0 // pred_check_branch
    %421 = sbr.rel (0) target = $region17
  $region16: #{net1_forward.6} parent=0 // pred_region
    _
  $region17: #{net1_forward.6} parent=0 // pred_fallthru
    _
  // Predicated region
  $region18: #{net1_forward.6} parent=0 // pred_check
    _
  $region19: #{net1_forward.6} parent=0 // pred_check_branch
    %423 = sbr.rel (0) target = $region21
  $region20: #{net1_forward.6} parent=0 // pred_region
    _
  $region21: #{net1_forward.6} parent=0 // pred_fallthru
    _

// kernel: net1_forward.7
$region0: #{net1_forward.7}
  #allocation0 [shape = 'u32[]', space=smem, size = 0x4, offset = 0x4, fixed_abs, tag = 'smem constant byte address 0x4 - core index']
  #allocation1 [shape = 'u32[72,128]{1,0:T(1,128)}', space=vmem, size = 0x9000, scoped, tag = 'internal scratch']
  %s0 = inlined_call_operand.vmem [shape: bf16[720,2], index: 0, kind: input, shape index: {}]
  %s1 = inlined_call_operand.vmem [shape: bf16[720,2], index: 1, kind: input, shape index: {}]
  %s2 = inlined_call_operand.vmem [shape: bf16[720,2], index: 2, kind: input, shape index: {}]
  %s3 = inlined_call_operand.vmem [shape: bf16[720,2], index: 3, kind: input, shape index: {}]
  %s4 = inlined_call_operand.vmem [shape: bf16[50,720], index: 4, kind: input, shape index: {}]
  %s5 = inlined_call_operand.vmem [shape: f32[50,1], index: 5, kind: input, shape index: {}]
  %s6 = inlined_call_operand.vmem [shape: bf16[4,50], index: 6, kind: input, shape index: {}]
  %s7 = inlined_call_operand.vmem [shape: f32[4,1], index: 7, kind: input, shape index: {}]
  %s8 = inlined_call_operand.vmem [shape: f32[4,2], index: 8, kind: output, shape index: {}]
  %s9 = sld [smem:[#allocation0]]
  $region42: #{net1_forward.7} parent=0
    _
  %s11 = ssub.s32 1, %s9
  %s12 = scalar_select 0, %s11, %s9
  // Predicated region
  $region2: #{net1_forward.7} parent=0 // pred_check
    _
  $region3: #{net1_forward.7} parent=0 // pred_check_branch
    %14 = sbr.rel (0) target = $region5
  $region4: #{net1_forward.7} parent=0 // pred_region
    _
  $region5: #{net1_forward.7} parent=0 // pred_fallthru
    _
  // Predicated region
  $region6: #{net1_forward.7} parent=0 // pred_check
    _
  $region7: #{net1_forward.7} parent=0 // pred_check_branch
    %16 = sbr.rel (0) target = $region9
  $region8: #{net1_forward.7} parent=0 // pred_region
    _
  $region9: #{net1_forward.7} parent=0 // pred_fallthru
    _
  // Predicated region
  $region10: #{net1_forward.7} parent=0 // pred_check
    _
  $region11: #{net1_forward.7} parent=0 // pred_check_branch
    %18 = sbr.rel (0) target = $region13
  $region12: #{net1_forward.7} parent=0 // pred_region
    _
  $region13: #{net1_forward.7} parent=0 // pred_fallthru
    _
  // Predicated region
  $region14: #{net1_forward.7} parent=0 // pred_check
    _
  $region15: #{net1_forward.7} parent=0 // pred_check_branch
    %20 = sbr.rel (0) target = $region17
  $region16: #{net1_forward.7} parent=0 // pred_region
    _
  $region17: #{net1_forward.7} parent=0 // pred_fallthru
    _
  // Predicated region
  $region18: #{net1_forward.7} parent=0 // pred_check
    _
  $region19: #{net1_forward.7} parent=0 // pred_check_branch
    %22 = sbr.rel (0) target = $region21
  $region20: #{net1_forward.7} parent=0 // pred_region
    _
  $region21: #{net1_forward.7} parent=0 // pred_fallthru
    _
  // Predicated region
  $region22: #{net1_forward.7} parent=0 // pred_check
    _
  $region23: #{net1_forward.7} parent=0 // pred_check_branch
    %24 = sbr.rel (0) target = $region25
  $region24: #{net1_forward.7} parent=0 // pred_region
    _
  $region25: #{net1_forward.7} parent=0 // pred_fallthru
    _
  // Predicated region
  $region26: #{net1_forward.7} parent=0 // pred_check
    _
  $region27: #{net1_forward.7} parent=0 // pred_check_branch
    %26 = sbr.rel (0) target = $region29
  $region28: #{net1_forward.7} parent=0 // pred_region
    _
  $region29: #{net1_forward.7} parent=0 // pred_fallthru
    _
  // Predicated region
  $region30: #{net1_forward.7} parent=0 // pred_check
    _
  $region31: #{net1_forward.7} parent=0 // pred_check_branch
    %28 = sbr.rel (0) target = $region33
  $region32: #{net1_forward.7} parent=0 // pred_region
    _
  $region33: #{net1_forward.7} parent=0 // pred_fallthru
    _
  %v30 = vld [vmem:[%s0] sm:$0xf]
  %v31 = vld [vmem:[%s0 + $0x4] sm:$0xf]
  %v32 = vld [vmem:[%s0 + $0x8] sm:$0xf]
  %v33 = vld [vmem:[%s0 + $0xc] sm:$0xf]
  %v34 = vld [vmem:[%s0 + $0x10] sm:$0xf]
  %v35 = vld [vmem:[%s0 + $0x14] sm:$0xf]
  %v36 = vld [vmem:[%s0 + $0x18] sm:$0xf]
  %v37 = vld [vmem:[%s0 + $0x1c] sm:$0xf]
  %v38 = vld [vmem:[%s0 + $0x20] sm:$0xf]
  %v39 = vld [vmem:[%s0 + $0x24] sm:$0xf]
  %v40 = vld [vmem:[%s0 + $0x28] sm:$0xf]
  %v41 = vld [vmem:[%s0 + $0x2c] sm:$0xf]
  %v42 = vld [vmem:[%s0 + $0x30] sm:$0xf]
  %v43 = vld [vmem:[%s0 + $0x34] sm:$0xf]
  %v44 = vld [vmem:[%s0 + $0x38] sm:$0xf]
  %v45 = vld [vmem:[%s0 + $0x3c] sm:$0xf]
  %v46 = vld [vmem:[%s0 + $0x40] sm:$0xf]
  %v47 = vld [vmem:[%s0 + $0x44] sm:$0xf]
  %v48 = vld [vmem:[%s0 + $0x48] sm:$0xf]
  %v49 = vld [vmem:[%s0 + $0x4c] sm:$0xf]
  %v50 = vld [vmem:[%s0 + $0x50] sm:$0xf]
  %v51 = vld [vmem:[%s0 + $0x54] sm:$0xf]
  %v52 = vld [vmem:[%s0 + $0x58] sm:$0xf]
  %v53 = vld [vmem:[%s0 + $0x5c] sm:$0xf]
  %v54 = vld [vmem:[%s0 + $0x60] sm:$0xf]
  %v55 = vld [vmem:[%s0 + $0x64] sm:$0xf]
  %v56 = vld [vmem:[%s0 + $0x68] sm:$0xf]
  %v57 = vld [vmem:[%s0 + $0x6c] sm:$0xf]
  %v58 = vld [vmem:[%s0 + $0x70] sm:$0xf]
  %v59 = vld [vmem:[%s0 + $0x74] sm:$0xf]
  %v60 = vld [vmem:[%s0 + $0x78] sm:$0xf]
  %v61 = vld [vmem:[%s0 + $0x7c] sm:$0xf]
  %v62 = vld [vmem:[%s0 + $0x80] sm:$0xf]
  %v63 = vld [vmem:[%s0 + $0x84] sm:$0xf]
  %v64 = vld [vmem:[%s0 + $0x88] sm:$0xf]
  %v65 = vld [vmem:[%s0 + $0x8c] sm:$0xf]
  %v66 = vld [vmem:[%s0 + $0x90] sm:$0xf]
  %v67 = vld [vmem:[%s0 + $0x94] sm:$0xf]
  %v68 = vld [vmem:[%s0 + $0x98] sm:$0xf]
  %v69 = vld [vmem:[%s0 + $0x9c] sm:$0xf]
  %v70 = vld [vmem:[%s0 + $0xa0] sm:$0xf]
  %v71 = vld [vmem:[%s0 + $0xa4] sm:$0xf]
  %v72 = vld [vmem:[%s0 + $0xa8] sm:$0xf]
  %v73 = vld [vmem:[%s0 + $0xac] sm:$0xf]
  %v74 = vld [vmem:[%s0 + $0xb0] sm:$0xf]
  %v75 = vld [vmem:[%s0 + $0xb4] sm:$0xf]
  %v76 = vld [vmem:[%s0 + $0xb8] sm:$0xf]
  %v77 = vld [vmem:[%s0 + $0xbc] sm:$0xf]
  %v78 = vld [vmem:[%s0 + $0xc0] sm:$0xf]
  %v79 = vld [vmem:[%s0 + $0xc4] sm:$0xf]
  %v80 = vld [vmem:[%s0 + $0xc8] sm:$0xf]
  %v81 = vld [vmem:[%s0 + $0xcc] sm:$0xf]
  %v82 = vld [vmem:[%s0 + $0xd0] sm:$0xf]
  %v83 = vld [vmem:[%s0 + $0xd4] sm:$0xf]
  %v84 = vld [vmem:[%s0 + $0xd8] sm:$0xf]
  %v85 = vld [vmem:[%s0 + $0xdc] sm:$0xf]
  %v86 = vld [vmem:[%s0 + $0xe0] sm:$0xf]
  %v87 = vld [vmem:[%s0 + $0xe4] sm:$0xf]
  %v88 = vld [vmem:[%s0 + $0xe8] sm:$0xf]
  %v89 = vld [vmem:[%s0 + $0xec] sm:$0xf]
  %v90 = vld [vmem:[%s0 + $0xf0] sm:$0xf]
  %v91 = vld [vmem:[%s0 + $0xf4] sm:$0xf]
  %v92 = vld [vmem:[%s0 + $0xf8] sm:$0xf]
  %v93 = vld [vmem:[%s0 + $0xfc] sm:$0xf]
  %v94 = vld [vmem:[%s0 + $0x100] sm:$0xf]
  %v95 = vld [vmem:[%s0 + $0x104] sm:$0xf]
  %v96 = vld [vmem:[%s0 + $0x108] sm:$0xf]
  %v97 = vld [vmem:[%s0 + $0x10c] sm:$0xf]
  %v98 = vld [vmem:[%s0 + $0x110] sm:$0xf]
  %v99 = vld [vmem:[%s0 + $0x114] sm:$0xf]
  %v100 = vld [vmem:[%s0 + $0x118] sm:$0xf]
  %v101 = vld [vmem:[%s0 + $0x11c] sm:$0xf]
  %v102 = vld [vmem:[%s0 + $0x120] sm:$0xf]
  %v103 = vld [vmem:[%s0 + $0x124] sm:$0xf]
  %v104 = vld [vmem:[%s0 + $0x128] sm:$0xf]
  %v105 = vld [vmem:[%s0 + $0x12c] sm:$0xf]
  %v106 = vld [vmem:[%s0 + $0x130] sm:$0xf]
  %v107 = vld [vmem:[%s0 + $0x134] sm:$0xf]
  %v108 = vld [vmem:[%s0 + $0x138] sm:$0xf]
  %v109 = vld [vmem:[%s0 + $0x13c] sm:$0xf]
  %v110 = vld [vmem:[%s0 + $0x140] sm:$0xf]
  %v111 = vld [vmem:[%s0 + $0x144] sm:$0xf]
  %v112 = vld [vmem:[%s0 + $0x148] sm:$0xf]
  %v113 = vld [vmem:[%s0 + $0x14c] sm:$0xf]
  %v114 = vld [vmem:[%s0 + $0x150] sm:$0xf]
  %v115 = vld [vmem:[%s0 + $0x154] sm:$0xf]
  %v116 = vld [vmem:[%s0 + $0x158] sm:$0xf]
  %v117 = vld [vmem:[%s0 + $0x15c] sm:$0xf]
  %v118 = vld [vmem:[%s0 + $0x160] sm:$0xf]
  %v119 = vld [vmem:[%s0 + $0x164] sm:$0xf]
  %v120 = vld [vmem:[%s1] sm:$0xf]
  %v121 = vld [vmem:[%s1 + $0x4] sm:$0xf]
  %v122 = vld [vmem:[%s1 + $0x8] sm:$0xf]
  %v123 = vld [vmem:[%s1 + $0xc] sm:$0xf]
  %v124 = vld [vmem:[%s1 + $0x10] sm:$0xf]
  %v125 = vld [vmem:[%s1 + $0x14] sm:$0xf]
  %v126 = vld [vmem:[%s1 + $0x18] sm:$0xf]
  %v127 = vld [vmem:[%s1 + $0x1c] sm:$0xf]
  %v128 = vld [vmem:[%s1 + $0x20] sm:$0xf]
  %v129 = vld [vmem:[%s1 + $0x24] sm:$0xf]
  %v130 = vld [vmem:[%s1 + $0x28] sm:$0xf]
  %v131 = vld [vmem:[%s1 + $0x2c] sm:$0xf]
  %v132 = vld [vmem:[%s1 + $0x30] sm:$0xf]
  %v133 = vld [vmem:[%s1 + $0x34] sm:$0xf]
  %v134 = vld [vmem:[%s1 + $0x38] sm:$0xf]
  %v135 = vld [vmem:[%s1 + $0x3c] sm:$0xf]
  %v136 = vld [vmem:[%s1 + $0x40] sm:$0xf]
  %v137 = vld [vmem:[%s1 + $0x44] sm:$0xf]
  %v138 = vld [vmem:[%s1 + $0x48] sm:$0xf]
  %v139 = vld [vmem:[%s1 + $0x4c] sm:$0xf]
  %v140 = vld [vmem:[%s1 + $0x50] sm:$0xf]
  %v141 = vld [vmem:[%s1 + $0x54] sm:$0xf]
  %v142 = vld [vmem:[%s1 + $0x58] sm:$0xf]
  %v143 = vld [vmem:[%s1 + $0x5c] sm:$0xf]
  %v144 = vld [vmem:[%s1 + $0x60] sm:$0xf]
  %v145 = vld [vmem:[%s1 + $0x64] sm:$0xf]
  %v146 = vld [vmem:[%s1 + $0x68] sm:$0xf]
  %v147 = vld [vmem:[%s1 + $0x6c] sm:$0xf]
  %v148 = vld [vmem:[%s1 + $0x70] sm:$0xf]
  %v149 = vld [vmem:[%s1 + $0x74] sm:$0xf]
  %v150 = vld [vmem:[%s1 + $0x78] sm:$0xf]
  %v151 = vld [vmem:[%s1 + $0x7c] sm:$0xf]
  %v152 = vld [vmem:[%s1 + $0x80] sm:$0xf]
  %v153 = vld [vmem:[%s1 + $0x84] sm:$0xf]
  %v154 = vld [vmem:[%s1 + $0x88] sm:$0xf]
  %v155 = vld [vmem:[%s1 + $0x8c] sm:$0xf]
  %v156 = vld [vmem:[%s1 + $0x90] sm:$0xf]
  %v157 = vld [vmem:[%s1 + $0x94] sm:$0xf]
  %v158 = vld [vmem:[%s1 + $0x98] sm:$0xf]
  %v159 = vld [vmem:[%s1 + $0x9c] sm:$0xf]
  %v160 = vld [vmem:[%s1 + $0xa0] sm:$0xf]
  %v161 = vld [vmem:[%s1 + $0xa4] sm:$0xf]
  %v162 = vld [vmem:[%s1 + $0xa8] sm:$0xf]
  %v163 = vld [vmem:[%s1 + $0xac] sm:$0xf]
  %v164 = vld [vmem:[%s1 + $0xb0] sm:$0xf]
  %v165 = vld [vmem:[%s1 + $0xb4] sm:$0xf]
  %v166 = vld [vmem:[%s1 + $0xb8] sm:$0xf]
  %v167 = vld [vmem:[%s1 + $0xbc] sm:$0xf]
  %v168 = vld [vmem:[%s1 + $0xc0] sm:$0xf]
  %v169 = vld [vmem:[%s1 + $0xc4] sm:$0xf]
  %v170 = vld [vmem:[%s1 + $0xc8] sm:$0xf]
  %v171 = vld [vmem:[%s1 + $0xcc] sm:$0xf]
  %v172 = vld [vmem:[%s1 + $0xd0] sm:$0xf]
  %v173 = vld [vmem:[%s1 + $0xd4] sm:$0xf]
  %v174 = vld [vmem:[%s1 + $0xd8] sm:$0xf]
  %v175 = vld [vmem:[%s1 + $0xdc] sm:$0xf]
  %v176 = vld [vmem:[%s1 + $0xe0] sm:$0xf]
  %v177 = vld [vmem:[%s1 + $0xe4] sm:$0xf]
  %v178 = vld [vmem:[%s1 + $0xe8] sm:$0xf]
  %v179 = vld [vmem:[%s1 + $0xec] sm:$0xf]
  %v180 = vld [vmem:[%s1 + $0xf0] sm:$0xf]
  %v181 = vld [vmem:[%s1 + $0xf4] sm:$0xf]
  %v182 = vld [vmem:[%s1 + $0xf8] sm:$0xf]
  %v183 = vld [vmem:[%s1 + $0xfc] sm:$0xf]
  %v184 = vld [vmem:[%s1 + $0x100] sm:$0xf]
  %v185 = vld [vmem:[%s1 + $0x104] sm:$0xf]
  %v186 = vld [vmem:[%s1 + $0x108] sm:$0xf]
  %v187 = vld [vmem:[%s1 + $0x10c] sm:$0xf]
  %v188 = vld [vmem:[%s1 + $0x110] sm:$0xf]
  %v189 = vld [vmem:[%s1 + $0x114] sm:$0xf]
  %v190 = vld [vmem:[%s1 + $0x118] sm:$0xf]
  %v191 = vld [vmem:[%s1 + $0x11c] sm:$0xf]
  %v192 = vld [vmem:[%s1 + $0x120] sm:$0xf]
  %v193 = vld [vmem:[%s1 + $0x124] sm:$0xf]
  %v194 = vld [vmem:[%s1 + $0x128] sm:$0xf]
  %v195 = vld [vmem:[%s1 + $0x12c] sm:$0xf]
  %v196 = vld [vmem:[%s1 + $0x130] sm:$0xf]
  %v197 = vld [vmem:[%s1 + $0x134] sm:$0xf]
  %v198 = vld [vmem:[%s1 + $0x138] sm:$0xf]
  %v199 = vld [vmem:[%s1 + $0x13c] sm:$0xf]
  %v200 = vld [vmem:[%s1 + $0x140] sm:$0xf]
  %v201 = vld [vmem:[%s1 + $0x144] sm:$0xf]
  %v202 = vld [vmem:[%s1 + $0x148] sm:$0xf]
  %v203 = vld [vmem:[%s1 + $0x14c] sm:$0xf]
  %v204 = vld [vmem:[%s1 + $0x150] sm:$0xf]
  %v205 = vld [vmem:[%s1 + $0x154] sm:$0xf]
  %v206 = vld [vmem:[%s1 + $0x158] sm:$0xf]
  %v207 = vld [vmem:[%s1 + $0x15c] sm:$0xf]
  %v208 = vld [vmem:[%s1 + $0x160] sm:$0xf]
  %v209 = vld [vmem:[%s1 + $0x164] sm:$0xf]
  %v210 = vunpack.c.l.bf16 %v30
  %v211 = vunpack.c.l.bf16 %v31
  %v212 = vunpack.c.l.bf16 %v32
  %v213 = vunpack.c.l.bf16 %v33
  %v214 = vunpack.c.l.bf16 %v34
  %v215 = vunpack.c.l.bf16 %v35
  %v216 = vunpack.c.l.bf16 %v36
  %v217 = vunpack.c.l.bf16 %v37
  %v218 = vunpack.c.l.bf16 %v38
  %v219 = vunpack.c.l.bf16 %v39
  %v220 = vunpack.c.l.bf16 %v40
  %v221 = vunpack.c.l.bf16 %v41
  %v222 = vunpack.c.l.bf16 %v42
  %v223 = vunpack.c.l.bf16 %v43
  %v224 = vunpack.c.l.bf16 %v44
  %v225 = vunpack.c.l.bf16 %v45
  %v226 = vunpack.c.l.bf16 %v46
  %v227 = vunpack.c.l.bf16 %v47
  %v228 = vunpack.c.l.bf16 %v48
  %v229 = vunpack.c.l.bf16 %v49
  %v230 = vunpack.c.l.bf16 %v50
  %v231 = vunpack.c.l.bf16 %v51
  %v232 = vunpack.c.l.bf16 %v52
  %v233 = vunpack.c.l.bf16 %v53
  %v234 = vunpack.c.l.bf16 %v54
  %v235 = vunpack.c.l.bf16 %v55
  %v236 = vunpack.c.l.bf16 %v56
  %v237 = vunpack.c.l.bf16 %v57
  %v238 = vunpack.c.l.bf16 %v58
  %v239 = vunpack.c.l.bf16 %v59
  %v240 = vunpack.c.l.bf16 %v60
  %v241 = vunpack.c.l.bf16 %v61
  %v242 = vunpack.c.l.bf16 %v62
  %v243 = vunpack.c.l.bf16 %v63
  %v244 = vunpack.c.l.bf16 %v64
  %v245 = vunpack.c.l.bf16 %v65
  %v246 = vunpack.c.l.bf16 %v66
  %v247 = vunpack.c.l.bf16 %v67
  %v248 = vunpack.c.l.bf16 %v68
  %v249 = vunpack.c.l.bf16 %v69
  %v250 = vunpack.c.l.bf16 %v70
  %v251 = vunpack.c.l.bf16 %v71
  %v252 = vunpack.c.l.bf16 %v72
  %v253 = vunpack.c.l.bf16 %v73
  %v254 = vunpack.c.l.bf16 %v74
  %v255 = vunpack.c.l.bf16 %v75
  %v256 = vunpack.c.l.bf16 %v76
  %v257 = vunpack.c.l.bf16 %v77
  %v258 = vunpack.c.l.bf16 %v78
  %v259 = vunpack.c.l.bf16 %v79
  %v260 = vunpack.c.l.bf16 %v80
  %v261 = vunpack.c.l.bf16 %v81
  %v262 = vunpack.c.l.bf16 %v82
  %v263 = vunpack.c.l.bf16 %v83
  %v264 = vunpack.c.l.bf16 %v84
  %v265 = vunpack.c.l.bf16 %v85
  %v266 = vunpack.c.l.bf16 %v86
  %v267 = vunpack.c.l.bf16 %v87
  %v268 = vunpack.c.l.bf16 %v88
  %v269 = vunpack.c.l.bf16 %v89
  %v270 = vunpack.c.l.bf16 %v90
  %v271 = vunpack.c.l.bf16 %v91
  %v272 = vunpack.c.l.bf16 %v92
  %v273 = vunpack.c.l.bf16 %v93
  %v274 = vunpack.c.l.bf16 %v94
  %v275 = vunpack.c.l.bf16 %v95
  %v276 = vunpack.c.l.bf16 %v96
  %v277 = vunpack.c.l.bf16 %v97
  %v278 = vunpack.c.l.bf16 %v98
  %v279 = vunpack.c.l.bf16 %v99
  %v280 = vunpack.c.l.bf16 %v100
  %v281 = vunpack.c.l.bf16 %v101
  %v282 = vunpack.c.l.bf16 %v102
  %v283 = vunpack.c.l.bf16 %v103
  %v284 = vunpack.c.l.bf16 %v104
  %v285 = vunpack.c.l.bf16 %v105
  %v286 = vunpack.c.l.bf16 %v106
  %v287 = vunpack.c.l.bf16 %v107
  %v288 = vunpack.c.l.bf16 %v108
  %v289 = vunpack.c.l.bf16 %v109
  %v290 = vunpack.c.l.bf16 %v110
  %v291 = vunpack.c.l.bf16 %v111
  %v292 = vunpack.c.l.bf16 %v112
  %v293 = vunpack.c.l.bf16 %v113
  %v294 = vunpack.c.l.bf16 %v114
  %v295 = vunpack.c.l.bf16 %v115
  %v296 = vunpack.c.l.bf16 %v116
  %v297 = vunpack.c.l.bf16 %v117
  %v298 = vunpack.c.l.bf16 %v118
  %v299 = vunpack.c.l.bf16 %v119
  %v300 = vunpack.c.l.bf16 %v120
  %v301 = vunpack.c.l.bf16 %v121
  %v302 = vunpack.c.l.bf16 %v122
  %v303 = vunpack.c.l.bf16 %v123
  %v304 = vunpack.c.l.bf16 %v124
  %v305 = vunpack.c.l.bf16 %v125
  %v306 = vunpack.c.l.bf16 %v126
  %v307 = vunpack.c.l.bf16 %v127
  %v308 = vunpack.c.l.bf16 %v128
  %v309 = vunpack.c.l.bf16 %v129
  %v310 = vunpack.c.l.bf16 %v130
  %v311 = vunpack.c.l.bf16 %v131
  %v312 = vunpack.c.l.bf16 %v132
  %v313 = vunpack.c.l.bf16 %v133
  %v314 = vunpack.c.l.bf16 %v134
  %v315 = vunpack.c.l.bf16 %v135
  %v316 = vunpack.c.l.bf16 %v136
  %v317 = vunpack.c.l.bf16 %v137
  %v318 = vunpack.c.l.bf16 %v138
  %v319 = vunpack.c.l.bf16 %v139
  %v320 = vunpack.c.l.bf16 %v140
  %v321 = vunpack.c.l.bf16 %v141
  %v322 = vunpack.c.l.bf16 %v142
  %v323 = vunpack.c.l.bf16 %v143
  %v324 = vunpack.c.l.bf16 %v144
  %v325 = vunpack.c.l.bf16 %v145
  %v326 = vunpack.c.l.bf16 %v146
  %v327 = vunpack.c.l.bf16 %v147
  %v328 = vunpack.c.l.bf16 %v148
  %v329 = vunpack.c.l.bf16 %v149
  %v330 = vunpack.c.l.bf16 %v150
  %v331 = vunpack.c.l.bf16 %v151
  %v332 = vunpack.c.l.bf16 %v152
  %v333 = vunpack.c.l.bf16 %v153
  %v334 = vunpack.c.l.bf16 %v154
  %v335 = vunpack.c.l.bf16 %v155
  %v336 = vunpack.c.l.bf16 %v156
  %v337 = vunpack.c.l.bf16 %v157
  %v338 = vunpack.c.l.bf16 %v158
  %v339 = vunpack.c.l.bf16 %v159
  %v340 = vunpack.c.l.bf16 %v160
  %v341 = vunpack.c.l.bf16 %v161
  %v342 = vunpack.c.l.bf16 %v162
  %v343 = vunpack.c.l.bf16 %v163
  %v344 = vunpack.c.l.bf16 %v164
  %v345 = vunpack.c.l.bf16 %v165
  %v346 = vunpack.c.l.bf16 %v166
  %v347 = vunpack.c.l.bf16 %v167
  %v348 = vunpack.c.l.bf16 %v168
  %v349 = vunpack.c.l.bf16 %v169
  %v350 = vunpack.c.l.bf16 %v170
  %v351 = vunpack.c.l.bf16 %v171
  %v352 = vunpack.c.l.bf16 %v172
  %v353 = vunpack.c.l.bf16 %v173
  %v354 = vunpack.c.l.bf16 %v174
  %v355 = vunpack.c.l.bf16 %v175
  %v356 = vunpack.c.l.bf16 %v176
  %v357 = vunpack.c.l.bf16 %v177
  %v358 = vunpack.c.l.bf16 %v178
  %v359 = vunpack.c.l.bf16 %v179
  %v360 = vunpack.c.l.bf16 %v180
  %v361 = vunpack.c.l.bf16 %v181
  %v362 = vunpack.c.l.bf16 %v182
  %v363 = vunpack.c.l.bf16 %v183
  %v364 = vunpack.c.l.bf16 %v184
  %v365 = vunpack.c.l.bf16 %v185
  %v366 = vunpack.c.l.bf16 %v186
  %v367 = vunpack.c.l.bf16 %v187
  %v368 = vunpack.c.l.bf16 %v188
  %v369 = vunpack.c.l.bf16 %v189
  %v370 = vunpack.c.l.bf16 %v190
  %v371 = vunpack.c.l.bf16 %v191
  %v372 = vunpack.c.l.bf16 %v192
  %v373 = vunpack.c.l.bf16 %v193
  %v374 = vunpack.c.l.bf16 %v194
  %v375 = vunpack.c.l.bf16 %v195
  %v376 = vunpack.c.l.bf16 %v196
  %v377 = vunpack.c.l.bf16 %v197
  %v378 = vunpack.c.l.bf16 %v198
  %v379 = vunpack.c.l.bf16 %v199
  %v380 = vunpack.c.l.bf16 %v200
  %v381 = vunpack.c.l.bf16 %v201
  %v382 = vunpack.c.l.bf16 %v202
  %v383 = vunpack.c.l.bf16 %v203
  %v384 = vunpack.c.l.bf16 %v204
  %v385 = vunpack.c.l.bf16 %v205
  %v386 = vunpack.c.l.bf16 %v206
  %v387 = vunpack.c.l.bf16 %v207
  %v388 = vunpack.c.l.bf16 %v208
  %v389 = vunpack.c.l.bf16 %v209
  %v390 = vmax.f32 %v210, %v300
  %v391 = vmax.f32 %v211, %v301
  %v392 = vmax.f32 %v212, %v302
  %v393 = vmax.f32 %v213, %v303
  %v394 = vmax.f32 %v214, %v304
  %v395 = vmax.f32 %v215, %v305
  %v396 = vmax.f32 %v216, %v306
  %v397 = vmax.f32 %v217, %v307
  %v398 = vmax.f32 %v218, %v308
  %v399 = vmax.f32 %v219, %v309
  %v400 = vmax.f32 %v220, %v310
  %v401 = vmax.f32 %v221, %v311
  %v402 = vmax.f32 %v222, %v312
  %v403 = vmax.f32 %v223, %v313
  %v404 = vmax.f32 %v224, %v314
  %v405 = vmax.f32 %v225, %v315
  %v406 = vmax.f32 %v226, %v316
  %v407 = vmax.f32 %v227, %v317
  %v408 = vmax.f32 %v228, %v318
  %v409 = vmax.f32 %v229, %v319
  %v410 = vmax.f32 %v230, %v320
  %v411 = vmax.f32 %v231, %v321
  %v412 = vmax.f32 %v232, %v322
  %v413 = vmax.f32 %v233, %v323
  %v414 = vmax.f32 %v234, %v324
  %v415 = vmax.f32 %v235, %v325
  %v416 = vmax.f32 %v236, %v326
  %v417 = vmax.f32 %v237, %v327
  %v418 = vmax.f32 %v238, %v328
  %v419 = vmax.f32 %v239, %v329
  %v420 = vmax.f32 %v240, %v330
  %v421 = vmax.f32 %v241, %v331
  %v422 = vmax.f32 %v242, %v332
  %v423 = vmax.f32 %v243, %v333
  %v424 = vmax.f32 %v244, %v334
  %v425 = vmax.f32 %v245, %v335
  %v426 = vmax.f32 %v246, %v336
  %v427 = vmax.f32 %v247, %v337
  %v428 = vmax.f32 %v248, %v338
  %v429 = vmax.f32 %v249, %v339
  %v430 = vmax.f32 %v250, %v340
  %v431 = vmax.f32 %v251, %v341
  %v432 = vmax.f32 %v252, %v342
  %v433 = vmax.f32 %v253, %v343
  %v434 = vmax.f32 %v254, %v344
  %v435 = vmax.f32 %v255, %v345
  %v436 = vmax.f32 %v256, %v346
  %v437 = vmax.f32 %v257, %v347
  %v438 = vmax.f32 %v258, %v348
  %v439 = vmax.f32 %v259, %v349
  %v440 = vmax.f32 %v260, %v350
  %v441 = vmax.f32 %v261, %v351
  %v442 = vmax.f32 %v262, %v352
  %v443 = vmax.f32 %v263, %v353
  %v444 = vmax.f32 %v264, %v354
  %v445 = vmax.f32 %v265, %v355
  %v446 = vmax.f32 %v266, %v356
  %v447 = vmax.f32 %v267, %v357
  %v448 = vmax.f32 %v268, %v358
  %v449 = vmax.f32 %v269, %v359
  %v450 = vmax.f32 %v270, %v360
  %v451 = vmax.f32 %v271, %v361
  %v452 = vmax.f32 %v272, %v362
  %v453 = vmax.f32 %v273, %v363
  %v454 = vmax.f32 %v274, %v364
  %v455 = vmax.f32 %v275, %v365
  %v456 = vmax.f32 %v276, %v366
  %v457 = vmax.f32 %v277, %v367
  %v458 = vmax.f32 %v278, %v368
  %v459 = vmax.f32 %v279, %v369
  %v460 = vmax.f32 %v280, %v370
  %v461 = vmax.f32 %v281, %v371
  %v462 = vmax.f32 %v282, %v372
  %v463 = vmax.f32 %v283, %v373
  %v464 = vmax.f32 %v284, %v374
  %v465 = vmax.f32 %v285, %v375
  %v466 = vmax.f32 %v286, %v376
  %v467 = vmax.f32 %v287, %v377
  %v468 = vmax.f32 %v288, %v378
  %v469 = vmax.f32 %v289, %v379
  %v470 = vmax.f32 %v290, %v380
  %v471 = vmax.f32 %v291, %v381
  %v472 = vmax.f32 %v292, %v382
  %v473 = vmax.f32 %v293, %v383
  %v474 = vmax.f32 %v294, %v384
  %v475 = vmax.f32 %v295, %v385
  %v476 = vmax.f32 %v296, %v386
  %v477 = vmax.f32 %v297, %v387
  %v478 = vmax.f32 %v298, %v388
  %v479 = vmax.f32 %v299, %v389
  %v480 = vpack.c.bf16 %v390, %v390
  %v481 = vpack.c.bf16 %v391, %v391
  %v482 = vpack.c.bf16 %v392, %v392
  %v483 = vpack.c.bf16 %v393, %v393
  %v484 = vpack.c.bf16 %v394, %v394
  %v485 = vpack.c.bf16 %v395, %v395
  %v486 = vpack.c.bf16 %v396, %v396
  %v487 = vpack.c.bf16 %v397, %v397
  %v488 = vpack.c.bf16 %v398, %v398
  %v489 = vpack.c.bf16 %v399, %v399
  %v490 = vpack.c.bf16 %v400, %v400
  %v491 = vpack.c.bf16 %v401, %v401
  %v492 = vpack.c.bf16 %v402, %v402
  %v493 = vpack.c.bf16 %v403, %v403
  %v494 = vpack.c.bf16 %v404, %v404
  %v495 = vpack.c.bf16 %v405, %v405
  %v496 = vpack.c.bf16 %v406, %v406
  %v497 = vpack.c.bf16 %v407, %v407
  %v498 = vpack.c.bf16 %v408, %v408
  %v499 = vpack.c.bf16 %v409, %v409
  %v500 = vpack.c.bf16 %v410, %v410
  %v501 = vpack.c.bf16 %v411, %v411
  %v502 = vpack.c.bf16 %v412, %v412
  %v503 = vpack.c.bf16 %v413, %v413
  %v504 = vpack.c.bf16 %v414, %v414
  %v505 = vpack.c.bf16 %v415, %v415
  %v506 = vpack.c.bf16 %v416, %v416
  %v507 = vpack.c.bf16 %v417, %v417
  %v508 = vpack.c.bf16 %v418, %v418
  %v509 = vpack.c.bf16 %v419, %v419
  %v510 = vpack.c.bf16 %v420, %v420
  %v511 = vpack.c.bf16 %v421, %v421
  %v512 = vpack.c.bf16 %v422, %v422
  %v513 = vpack.c.bf16 %v423, %v423
  %v514 = vpack.c.bf16 %v424, %v424
  %v515 = vpack.c.bf16 %v425, %v425
  %v516 = vpack.c.bf16 %v426, %v426
  %v517 = vpack.c.bf16 %v427, %v427
  %v518 = vpack.c.bf16 %v428, %v428
  %v519 = vpack.c.bf16 %v429, %v429
  %v520 = vpack.c.bf16 %v430, %v430
  %v521 = vpack.c.bf16 %v431, %v431
  %v522 = vpack.c.bf16 %v432, %v432
  %v523 = vpack.c.bf16 %v433, %v433
  %v524 = vpack.c.bf16 %v434, %v434
  %v525 = vpack.c.bf16 %v435, %v435
  %v526 = vpack.c.bf16 %v436, %v436
  %v527 = vpack.c.bf16 %v437, %v437
  %v528 = vpack.c.bf16 %v438, %v438
  %v529 = vpack.c.bf16 %v439, %v439
  %v530 = vpack.c.bf16 %v440, %v440
  %v531 = vpack.c.bf16 %v441, %v441
  %v532 = vpack.c.bf16 %v442, %v442
  %v533 = vpack.c.bf16 %v443, %v443
  %v534 = vpack.c.bf16 %v444, %v444
  %v535 = vpack.c.bf16 %v445, %v445
  %v536 = vpack.c.bf16 %v446, %v446
  %v537 = vpack.c.bf16 %v447, %v447
  %v538 = vpack.c.bf16 %v448, %v448
  %v539 = vpack.c.bf16 %v449, %v449
  %v540 = vpack.c.bf16 %v450, %v450
  %v541 = vpack.c.bf16 %v451, %v451
  %v542 = vpack.c.bf16 %v452, %v452
  %v543 = vpack.c.bf16 %v453, %v453
  %v544 = vpack.c.bf16 %v454, %v454
  %v545 = vpack.c.bf16 %v455, %v455
  %v546 = vpack.c.bf16 %v456, %v456
  %v547 = vpack.c.bf16 %v457, %v457
  %v548 = vpack.c.bf16 %v458, %v458
  %v549 = vpack.c.bf16 %v459, %v459
  %v550 = vpack.c.bf16 %v460, %v460
  %v551 = vpack.c.bf16 %v461, %v461
  %v552 = vpack.c.bf16 %v462, %v462
  %v553 = vpack.c.bf16 %v463, %v463
  %v554 = vpack.c.bf16 %v464, %v464
  %v555 = vpack.c.bf16 %v465, %v465
  %v556 = vpack.c.bf16 %v466, %v466
  %v557 = vpack.c.bf16 %v467, %v467
  %v558 = vpack.c.bf16 %v468, %v468
  %v559 = vpack.c.bf16 %v469, %v469
  %v560 = vpack.c.bf16 %v470, %v470
  %v561 = vpack.c.bf16 %v471, %v471
  %v562 = vpack.c.bf16 %v472, %v472
  %v563 = vpack.c.bf16 %v473, %v473
  %v564 = vpack.c.bf16 %v474, %v474
  %v565 = vpack.c.bf16 %v475, %v475
  %v566 = vpack.c.bf16 %v476, %v476
  %v567 = vpack.c.bf16 %v477, %v477
  %v568 = vpack.c.bf16 %v478, %v478
  %v569 = vpack.c.bf16 %v479, %v479
  %v570 = vld [vmem:[%s2] sm:$0xf]
  %v571 = vld [vmem:[%s2 + $0x4] sm:$0xf]
  %v572 = vld [vmem:[%s2 + $0x8] sm:$0xf]
  %v573 = vld [vmem:[%s2 + $0xc] sm:$0xf]
  %v574 = vld [vmem:[%s2 + $0x10] sm:$0xf]
  %v575 = vld [vmem:[%s2 + $0x14] sm:$0xf]
  %v576 = vld [vmem:[%s2 + $0x18] sm:$0xf]
  %v577 = vld [vmem:[%s2 + $0x1c] sm:$0xf]
  %v578 = vld [vmem:[%s2 + $0x20] sm:$0xf]
  %v579 = vld [vmem:[%s2 + $0x24] sm:$0xf]
  %v580 = vld [vmem:[%s2 + $0x28] sm:$0xf]
  %v581 = vld [vmem:[%s2 + $0x2c] sm:$0xf]
  %v582 = vld [vmem:[%s2 + $0x30] sm:$0xf]
  %v583 = vld [vmem:[%s2 + $0x34] sm:$0xf]
  %v584 = vld [vmem:[%s2 + $0x38] sm:$0xf]
  %v585 = vld [vmem:[%s2 + $0x3c] sm:$0xf]
  %v586 = vld [vmem:[%s2 + $0x40] sm:$0xf]
  %v587 = vld [vmem:[%s2 + $0x44] sm:$0xf]
  %v588 = vld [vmem:[%s2 + $0x48] sm:$0xf]
  %v589 = vld [vmem:[%s2 + $0x4c] sm:$0xf]
  %v590 = vld [vmem:[%s2 + $0x50] sm:$0xf]
  %v591 = vld [vmem:[%s2 + $0x54] sm:$0xf]
  %v592 = vld [vmem:[%s2 + $0x58] sm:$0xf]
  %v593 = vld [vmem:[%s2 + $0x5c] sm:$0xf]
  %v594 = vld [vmem:[%s2 + $0x60] sm:$0xf]
  %v595 = vld [vmem:[%s2 + $0x64] sm:$0xf]
  %v596 = vld [vmem:[%s2 + $0x68] sm:$0xf]
  %v597 = vld [vmem:[%s2 + $0x6c] sm:$0xf]
  %v598 = vld [vmem:[%s2 + $0x70] sm:$0xf]
  %v599 = vld [vmem:[%s2 + $0x74] sm:$0xf]
  %v600 = vld [vmem:[%s2 + $0x78] sm:$0xf]
  %v601 = vld [vmem:[%s2 + $0x7c] sm:$0xf]
  %v602 = vld [vmem:[%s2 + $0x80] sm:$0xf]
  %v603 = vld [vmem:[%s2 + $0x84] sm:$0xf]
  %v604 = vld [vmem:[%s2 + $0x88] sm:$0xf]
  %v605 = vld [vmem:[%s2 + $0x8c] sm:$0xf]
  %v606 = vld [vmem:[%s2 + $0x90] sm:$0xf]
  %v607 = vld [vmem:[%s2 + $0x94] sm:$0xf]
  %v608 = vld [vmem:[%s2 + $0x98] sm:$0xf]
  %v609 = vld [vmem:[%s2 + $0x9c] sm:$0xf]
  %v610 = vld [vmem:[%s2 + $0xa0] sm:$0xf]
  %v611 = vld [vmem:[%s2 + $0xa4] sm:$0xf]
  %v612 = vld [vmem:[%s2 + $0xa8] sm:$0xf]
  %v613 = vld [vmem:[%s2 + $0xac] sm:$0xf]
  %v614 = vld [vmem:[%s2 + $0xb0] sm:$0xf]
  %v615 = vld [vmem:[%s2 + $0xb4] sm:$0xf]
  %v616 = vld [vmem:[%s2 + $0xb8] sm:$0xf]
  %v617 = vld [vmem:[%s2 + $0xbc] sm:$0xf]
  %v618 = vld [vmem:[%s2 + $0xc0] sm:$0xf]
  %v619 = vld [vmem:[%s2 + $0xc4] sm:$0xf]
  %v620 = vld [vmem:[%s2 + $0xc8] sm:$0xf]
  %v621 = vld [vmem:[%s2 + $0xcc] sm:$0xf]
  %v622 = vld [vmem:[%s2 + $0xd0] sm:$0xf]
  %v623 = vld [vmem:[%s2 + $0xd4] sm:$0xf]
  %v624 = vld [vmem:[%s2 + $0xd8] sm:$0xf]
  %v625 = vld [vmem:[%s2 + $0xdc] sm:$0xf]
  %v626 = vld [vmem:[%s2 + $0xe0] sm:$0xf]
  %v627 = vld [vmem:[%s2 + $0xe4] sm:$0xf]
  %v628 = vld [vmem:[%s2 + $0xe8] sm:$0xf]
  %v629 = vld [vmem:[%s2 + $0xec] sm:$0xf]
  %v630 = vld [vmem:[%s2 + $0xf0] sm:$0xf]
  %v631 = vld [vmem:[%s2 + $0xf4] sm:$0xf]
  %v632 = vld [vmem:[%s2 + $0xf8] sm:$0xf]
  %v633 = vld [vmem:[%s2 + $0xfc] sm:$0xf]
  %v634 = vld [vmem:[%s2 + $0x100] sm:$0xf]
  %v635 = vld [vmem:[%s2 + $0x104] sm:$0xf]
  %v636 = vld [vmem:[%s2 + $0x108] sm:$0xf]
  %v637 = vld [vmem:[%s2 + $0x10c] sm:$0xf]
  %v638 = vld [vmem:[%s2 + $0x110] sm:$0xf]
  %v639 = vld [vmem:[%s2 + $0x114] sm:$0xf]
  %v640 = vld [vmem:[%s2 + $0x118] sm:$0xf]
  %v641 = vld [vmem:[%s2 + $0x11c] sm:$0xf]
  %v642 = vld [vmem:[%s2 + $0x120] sm:$0xf]
  %v643 = vld [vmem:[%s2 + $0x124] sm:$0xf]
  %v644 = vld [vmem:[%s2 + $0x128] sm:$0xf]
  %v645 = vld [vmem:[%s2 + $0x12c] sm:$0xf]
  %v646 = vld [vmem:[%s2 + $0x130] sm:$0xf]
  %v647 = vld [vmem:[%s2 + $0x134] sm:$0xf]
  %v648 = vld [vmem:[%s2 + $0x138] sm:$0xf]
  %v649 = vld [vmem:[%s2 + $0x13c] sm:$0xf]
  %v650 = vld [vmem:[%s2 + $0x140] sm:$0xf]
  %v651 = vld [vmem:[%s2 + $0x144] sm:$0xf]
  %v652 = vld [vmem:[%s2 + $0x148] sm:$0xf]
  %v653 = vld [vmem:[%s2 + $0x14c] sm:$0xf]
  %v654 = vld [vmem:[%s2 + $0x150] sm:$0xf]
  %v655 = vld [vmem:[%s2 + $0x154] sm:$0xf]
  %v656 = vld [vmem:[%s2 + $0x158] sm:$0xf]
  %v657 = vld [vmem:[%s2 + $0x15c] sm:$0xf]
  %v658 = vld [vmem:[%s2 + $0x160] sm:$0xf]
  %v659 = vld [vmem:[%s2 + $0x164] sm:$0xf]
  %v660 = vld [vmem:[%s3] sm:$0xf]
  %v661 = vld [vmem:[%s3 + $0x4] sm:$0xf]
  %v662 = vld [vmem:[%s3 + $0x8] sm:$0xf]
  %v663 = vld [vmem:[%s3 + $0xc] sm:$0xf]
  %v664 = vld [vmem:[%s3 + $0x10] sm:$0xf]
  %v665 = vld [vmem:[%s3 + $0x14] sm:$0xf]
  %v666 = vld [vmem:[%s3 + $0x18] sm:$0xf]
  %v667 = vld [vmem:[%s3 + $0x1c] sm:$0xf]
  %v668 = vld [vmem:[%s3 + $0x20] sm:$0xf]
  %v669 = vld [vmem:[%s3 + $0x24] sm:$0xf]
  %v670 = vld [vmem:[%s3 + $0x28] sm:$0xf]
  %v671 = vld [vmem:[%s3 + $0x2c] sm:$0xf]
  %v672 = vld [vmem:[%s3 + $0x30] sm:$0xf]
  %v673 = vld [vmem:[%s3 + $0x34] sm:$0xf]
  %v674 = vld [vmem:[%s3 + $0x38] sm:$0xf]
  %v675 = vld [vmem:[%s3 + $0x3c] sm:$0xf]
  %v676 = vld [vmem:[%s3 + $0x40] sm:$0xf]
  %v677 = vld [vmem:[%s3 + $0x44] sm:$0xf]
  %v678 = vld [vmem:[%s3 + $0x48] sm:$0xf]
  %v679 = vld [vmem:[%s3 + $0x4c] sm:$0xf]
  %v680 = vld [vmem:[%s3 + $0x50] sm:$0xf]
  %v681 = vld [vmem:[%s3 + $0x54] sm:$0xf]
  %v682 = vld [vmem:[%s3 + $0x58] sm:$0xf]
  %v683 = vld [vmem:[%s3 + $0x5c] sm:$0xf]
  %v684 = vld [vmem:[%s3 + $0x60] sm:$0xf]
  %v685 = vld [vmem:[%s3 + $0x64] sm:$0xf]
  %v686 = vld [vmem:[%s3 + $0x68] sm:$0xf]
  %v687 = vld [vmem:[%s3 + $0x6c] sm:$0xf]
  %v688 = vld [vmem:[%s3 + $0x70] sm:$0xf]
  %v689 = vld [vmem:[%s3 + $0x74] sm:$0xf]
  %v690 = vld [vmem:[%s3 + $0x78] sm:$0xf]
  %v691 = vld [vmem:[%s3 + $0x7c] sm:$0xf]
  %v692 = vld [vmem:[%s3 + $0x80] sm:$0xf]
  %v693 = vld [vmem:[%s3 + $0x84] sm:$0xf]
  %v694 = vld [vmem:[%s3 + $0x88] sm:$0xf]
  %v695 = vld [vmem:[%s3 + $0x8c] sm:$0xf]
  %v696 = vld [vmem:[%s3 + $0x90] sm:$0xf]
  %v697 = vld [vmem:[%s3 + $0x94] sm:$0xf]
  %v698 = vld [vmem:[%s3 + $0x98] sm:$0xf]
  %v699 = vld [vmem:[%s3 + $0x9c] sm:$0xf]
  %v700 = vld [vmem:[%s3 + $0xa0] sm:$0xf]
  %v701 = vld [vmem:[%s3 + $0xa4] sm:$0xf]
  %v702 = vld [vmem:[%s3 + $0xa8] sm:$0xf]
  %v703 = vld [vmem:[%s3 + $0xac] sm:$0xf]
  %v704 = vld [vmem:[%s3 + $0xb0] sm:$0xf]
  %v705 = vld [vmem:[%s3 + $0xb4] sm:$0xf]
  %v706 = vld [vmem:[%s3 + $0xb8] sm:$0xf]
  %v707 = vld [vmem:[%s3 + $0xbc] sm:$0xf]
  %v708 = vld [vmem:[%s3 + $0xc0] sm:$0xf]
  %v709 = vld [vmem:[%s3 + $0xc4] sm:$0xf]
  %v710 = vld [vmem:[%s3 + $0xc8] sm:$0xf]
  %v711 = vld [vmem:[%s3 + $0xcc] sm:$0xf]
  %v712 = vld [vmem:[%s3 + $0xd0] sm:$0xf]
  %v713 = vld [vmem:[%s3 + $0xd4] sm:$0xf]
  %v714 = vld [vmem:[%s3 + $0xd8] sm:$0xf]
  %v715 = vld [vmem:[%s3 + $0xdc] sm:$0xf]
  %v716 = vld [vmem:[%s3 + $0xe0] sm:$0xf]
  %v717 = vld [vmem:[%s3 + $0xe4] sm:$0xf]
  %v718 = vld [vmem:[%s3 + $0xe8] sm:$0xf]
  %v719 = vld [vmem:[%s3 + $0xec] sm:$0xf]
  %v720 = vld [vmem:[%s3 + $0xf0] sm:$0xf]
  %v721 = vld [vmem:[%s3 + $0xf4] sm:$0xf]
  %v722 = vld [vmem:[%s3 + $0xf8] sm:$0xf]
  %v723 = vld [vmem:[%s3 + $0xfc] sm:$0xf]
  %v724 = vld [vmem:[%s3 + $0x100] sm:$0xf]
  %v725 = vld [vmem:[%s3 + $0x104] sm:$0xf]
  %v726 = vld [vmem:[%s3 + $0x108] sm:$0xf]
  %v727 = vld [vmem:[%s3 + $0x10c] sm:$0xf]
  %v728 = vld [vmem:[%s3 + $0x110] sm:$0xf]
  %v729 = vld [vmem:[%s3 + $0x114] sm:$0xf]
  %v730 = vld [vmem:[%s3 + $0x118] sm:$0xf]
  %v731 = vld [vmem:[%s3 + $0x11c] sm:$0xf]
  %v732 = vld [vmem:[%s3 + $0x120] sm:$0xf]
  %v733 = vld [vmem:[%s3 + $0x124] sm:$0xf]
  %v734 = vld [vmem:[%s3 + $0x128] sm:$0xf]
  %v735 = vld [vmem:[%s3 + $0x12c] sm:$0xf]
  %v736 = vld [vmem:[%s3 + $0x130] sm:$0xf]
  %v737 = vld [vmem:[%s3 + $0x134] sm:$0xf]
  %v738 = vld [vmem:[%s3 + $0x138] sm:$0xf]
  %v739 = vld [vmem:[%s3 + $0x13c] sm:$0xf]
  %v740 = vld [vmem:[%s3 + $0x140] sm:$0xf]
  %v741 = vld [vmem:[%s3 + $0x144] sm:$0xf]
  %v742 = vld [vmem:[%s3 + $0x148] sm:$0xf]
  %v743 = vld [vmem:[%s3 + $0x14c] sm:$0xf]
  %v744 = vld [vmem:[%s3 + $0x150] sm:$0xf]
  %v745 = vld [vmem:[%s3 + $0x154] sm:$0xf]
  %v746 = vld [vmem:[%s3 + $0x158] sm:$0xf]
  %v747 = vld [vmem:[%s3 + $0x15c] sm:$0xf]
  %v748 = vld [vmem:[%s3 + $0x160] sm:$0xf]
  %v749 = vld [vmem:[%s3 + $0x164] sm:$0xf]
  %v750 = vunpack.c.l.bf16 %v570
  %v751 = vunpack.c.l.bf16 %v571
  %v752 = vunpack.c.l.bf16 %v572
  %v753 = vunpack.c.l.bf16 %v573
  %v754 = vunpack.c.l.bf16 %v574
  %v755 = vunpack.c.l.bf16 %v575
  %v756 = vunpack.c.l.bf16 %v576
  %v757 = vunpack.c.l.bf16 %v577
  %v758 = vunpack.c.l.bf16 %v578
  %v759 = vunpack.c.l.bf16 %v579
  %v760 = vunpack.c.l.bf16 %v580
  %v761 = vunpack.c.l.bf16 %v581
  %v762 = vunpack.c.l.bf16 %v582
  %v763 = vunpack.c.l.bf16 %v583
  %v764 = vunpack.c.l.bf16 %v584
  %v765 = vunpack.c.l.bf16 %v585
  %v766 = vunpack.c.l.bf16 %v586
  %v767 = vunpack.c.l.bf16 %v587
  %v768 = vunpack.c.l.bf16 %v588
  %v769 = vunpack.c.l.bf16 %v589
  %v770 = vunpack.c.l.bf16 %v590
  %v771 = vunpack.c.l.bf16 %v591
  %v772 = vunpack.c.l.bf16 %v592
  %v773 = vunpack.c.l.bf16 %v593
  %v774 = vunpack.c.l.bf16 %v594
  %v775 = vunpack.c.l.bf16 %v595
  %v776 = vunpack.c.l.bf16 %v596
  %v777 = vunpack.c.l.bf16 %v597
  %v778 = vunpack.c.l.bf16 %v598
  %v779 = vunpack.c.l.bf16 %v599
  %v780 = vunpack.c.l.bf16 %v600
  %v781 = vunpack.c.l.bf16 %v601
  %v782 = vunpack.c.l.bf16 %v602
  %v783 = vunpack.c.l.bf16 %v603
  %v784 = vunpack.c.l.bf16 %v604
  %v785 = vunpack.c.l.bf16 %v605
  %v786 = vunpack.c.l.bf16 %v606
  %v787 = vunpack.c.l.bf16 %v607
  %v788 = vunpack.c.l.bf16 %v608
  %v789 = vunpack.c.l.bf16 %v609
  %v790 = vunpack.c.l.bf16 %v610
  %v791 = vunpack.c.l.bf16 %v611
  %v792 = vunpack.c.l.bf16 %v612
  %v793 = vunpack.c.l.bf16 %v613
  %v794 = vunpack.c.l.bf16 %v614
  %v795 = vunpack.c.l.bf16 %v615
  %v796 = vunpack.c.l.bf16 %v616
  %v797 = vunpack.c.l.bf16 %v617
  %v798 = vunpack.c.l.bf16 %v618
  %v799 = vunpack.c.l.bf16 %v619
  %v800 = vunpack.c.l.bf16 %v620
  %v801 = vunpack.c.l.bf16 %v621
  %v802 = vunpack.c.l.bf16 %v622
  %v803 = vunpack.c.l.bf16 %v623
  %v804 = vunpack.c.l.bf16 %v624
  %v805 = vunpack.c.l.bf16 %v625
  %v806 = vunpack.c.l.bf16 %v626
  %v807 = vunpack.c.l.bf16 %v627
  %v808 = vunpack.c.l.bf16 %v628
  %v809 = vunpack.c.l.bf16 %v629
  %v810 = vunpack.c.l.bf16 %v630
  %v811 = vunpack.c.l.bf16 %v631
  %v812 = vunpack.c.l.bf16 %v632
  %v813 = vunpack.c.l.bf16 %v633
  %v814 = vunpack.c.l.bf16 %v634
  %v815 = vunpack.c.l.bf16 %v635
  %v816 = vunpack.c.l.bf16 %v636
  %v817 = vunpack.c.l.bf16 %v637
  %v818 = vunpack.c.l.bf16 %v638
  %v819 = vunpack.c.l.bf16 %v639
  %v820 = vunpack.c.l.bf16 %v640
  %v821 = vunpack.c.l.bf16 %v641
  %v822 = vunpack.c.l.bf16 %v642
  %v823 = vunpack.c.l.bf16 %v643
  %v824 = vunpack.c.l.bf16 %v644
  %v825 = vunpack.c.l.bf16 %v645
  %v826 = vunpack.c.l.bf16 %v646
  %v827 = vunpack.c.l.bf16 %v647
  %v828 = vunpack.c.l.bf16 %v648
  %v829 = vunpack.c.l.bf16 %v649
  %v830 = vunpack.c.l.bf16 %v650
  %v831 = vunpack.c.l.bf16 %v651
  %v832 = vunpack.c.l.bf16 %v652
  %v833 = vunpack.c.l.bf16 %v653
  %v834 = vunpack.c.l.bf16 %v654
  %v835 = vunpack.c.l.bf16 %v655
  %v836 = vunpack.c.l.bf16 %v656
  %v837 = vunpack.c.l.bf16 %v657
  %v838 = vunpack.c.l.bf16 %v658
  %v839 = vunpack.c.l.bf16 %v659
  %v840 = vunpack.c.l.bf16 %v660
  %v841 = vunpack.c.l.bf16 %v661
  %v842 = vunpack.c.l.bf16 %v662
  %v843 = vunpack.c.l.bf16 %v663
  %v844 = vunpack.c.l.bf16 %v664
  %v845 = vunpack.c.l.bf16 %v665
  %v846 = vunpack.c.l.bf16 %v666
  %v847 = vunpack.c.l.bf16 %v667
  %v848 = vunpack.c.l.bf16 %v668
  %v849 = vunpack.c.l.bf16 %v669
  %v850 = vunpack.c.l.bf16 %v670
  %v851 = vunpack.c.l.bf16 %v671
  %v852 = vunpack.c.l.bf16 %v672
  %v853 = vunpack.c.l.bf16 %v673
  %v854 = vunpack.c.l.bf16 %v674
  %v855 = vunpack.c.l.bf16 %v675
  %v856 = vunpack.c.l.bf16 %v676
  %v857 = vunpack.c.l.bf16 %v677
  %v858 = vunpack.c.l.bf16 %v678
  %v859 = vunpack.c.l.bf16 %v679
  %v860 = vunpack.c.l.bf16 %v680
  %v861 = vunpack.c.l.bf16 %v681
  %v862 = vunpack.c.l.bf16 %v682
  %v863 = vunpack.c.l.bf16 %v683
  %v864 = vunpack.c.l.bf16 %v684
  %v865 = vunpack.c.l.bf16 %v685
  %v866 = vunpack.c.l.bf16 %v686
  %v867 = vunpack.c.l.bf16 %v687
  %v868 = vunpack.c.l.bf16 %v688
  %v869 = vunpack.c.l.bf16 %v689
  %v870 = vunpack.c.l.bf16 %v690
  %v871 = vunpack.c.l.bf16 %v691
  %v872 = vunpack.c.l.bf16 %v692
  %v873 = vunpack.c.l.bf16 %v693
  %v874 = vunpack.c.l.bf16 %v694
  %v875 = vunpack.c.l.bf16 %v695
  %v876 = vunpack.c.l.bf16 %v696
  %v877 = vunpack.c.l.bf16 %v697
  %v878 = vunpack.c.l.bf16 %v698
  %v879 = vunpack.c.l.bf16 %v699
  %v880 = vunpack.c.l.bf16 %v700
  %v881 = vunpack.c.l.bf16 %v701
  %v882 = vunpack.c.l.bf16 %v702
  %v883 = vunpack.c.l.bf16 %v703
  %v884 = vunpack.c.l.bf16 %v704
  %v885 = vunpack.c.l.bf16 %v705
  %v886 = vunpack.c.l.bf16 %v706
  %v887 = vunpack.c.l.bf16 %v707
  %v888 = vunpack.c.l.bf16 %v708
  %v889 = vunpack.c.l.bf16 %v709
  %v890 = vunpack.c.l.bf16 %v710
  %v891 = vunpack.c.l.bf16 %v711
  %v892 = vunpack.c.l.bf16 %v712
  %v893 = vunpack.c.l.bf16 %v713
  %v894 = vunpack.c.l.bf16 %v714
  %v895 = vunpack.c.l.bf16 %v715
  %v896 = vunpack.c.l.bf16 %v716
  %v897 = vunpack.c.l.bf16 %v717
  %v898 = vunpack.c.l.bf16 %v718
  %v899 = vunpack.c.l.bf16 %v719
  %v900 = vunpack.c.l.bf16 %v720
  %v901 = vunpack.c.l.bf16 %v721
  %v902 = vunpack.c.l.bf16 %v722
  %v903 = vunpack.c.l.bf16 %v723
  %v904 = vunpack.c.l.bf16 %v724
  %v905 = vunpack.c.l.bf16 %v725
  %v906 = vunpack.c.l.bf16 %v726
  %v907 = vunpack.c.l.bf16 %v727
  %v908 = vunpack.c.l.bf16 %v728
  %v909 = vunpack.c.l.bf16 %v729
  %v910 = vunpack.c.l.bf16 %v730
  %v911 = vunpack.c.l.bf16 %v731
  %v912 = vunpack.c.l.bf16 %v732
  %v913 = vunpack.c.l.bf16 %v733
  %v914 = vunpack.c.l.bf16 %v734
  %v915 = vunpack.c.l.bf16 %v735
  %v916 = vunpack.c.l.bf16 %v736
  %v917 = vunpack.c.l.bf16 %v737
  %v918 = vunpack.c.l.bf16 %v738
  %v919 = vunpack.c.l.bf16 %v739
  %v920 = vunpack.c.l.bf16 %v740
  %v921 = vunpack.c.l.bf16 %v741
  %v922 = vunpack.c.l.bf16 %v742
  %v923 = vunpack.c.l.bf16 %v743
  %v924 = vunpack.c.l.bf16 %v744
  %v925 = vunpack.c.l.bf16 %v745
  %v926 = vunpack.c.l.bf16 %v746
  %v927 = vunpack.c.l.bf16 %v747
  %v928 = vunpack.c.l.bf16 %v748
  %v929 = vunpack.c.l.bf16 %v749
  %v930 = vmax.f32 %v750, %v840
  %v931 = vmax.f32 %v751, %v841
  %v932 = vmax.f32 %v752, %v842
  %v933 = vmax.f32 %v753, %v843
  %v934 = vmax.f32 %v754, %v844
  %v935 = vmax.f32 %v755, %v845
  %v936 = vmax.f32 %v756, %v846
  %v937 = vmax.f32 %v757, %v847
  %v938 = vmax.f32 %v758, %v848
  %v939 = vmax.f32 %v759, %v849
  %v940 = vmax.f32 %v760, %v850
  %v941 = vmax.f32 %v761, %v851
  %v942 = vmax.f32 %v762, %v852
  %v943 = vmax.f32 %v763, %v853
  %v944 = vmax.f32 %v764, %v854
  %v945 = vmax.f32 %v765, %v855
  %v946 = vmax.f32 %v766, %v856
  %v947 = vmax.f32 %v767, %v857
  %v948 = vmax.f32 %v768, %v858
  %v949 = vmax.f32 %v769, %v859
  %v950 = vmax.f32 %v770, %v860
  %v951 = vmax.f32 %v771, %v861
  %v952 = vmax.f32 %v772, %v862
  %v953 = vmax.f32 %v773, %v863
  %v954 = vmax.f32 %v774, %v864
  %v955 = vmax.f32 %v775, %v865
  %v956 = vmax.f32 %v776, %v866
  %v957 = vmax.f32 %v777, %v867
  %v958 = vmax.f32 %v778, %v868
  %v959 = vmax.f32 %v779, %v869
  %v960 = vmax.f32 %v780, %v870
  %v961 = vmax.f32 %v781, %v871
  %v962 = vmax.f32 %v782, %v872
  %v963 = vmax.f32 %v783, %v873
  %v964 = vmax.f32 %v784, %v874
  %v965 = vmax.f32 %v785, %v875
  %v966 = vmax.f32 %v786, %v876
  %v967 = vmax.f32 %v787, %v877
  %v968 = vmax.f32 %v788, %v878
  %v969 = vmax.f32 %v789, %v879
  %v970 = vmax.f32 %v790, %v880
  %v971 = vmax.f32 %v791, %v881
  %v972 = vmax.f32 %v792, %v882
  %v973 = vmax.f32 %v793, %v883
  %v974 = vmax.f32 %v794, %v884
  %v975 = vmax.f32 %v795, %v885
  %v976 = vmax.f32 %v796, %v886
  %v977 = vmax.f32 %v797, %v887
  %v978 = vmax.f32 %v798, %v888
  %v979 = vmax.f32 %v799, %v889
  %v980 = vmax.f32 %v800, %v890
  %v981 = vmax.f32 %v801, %v891
  %v982 = vmax.f32 %v802, %v892
  %v983 = vmax.f32 %v803, %v893
  %v984 = vmax.f32 %v804, %v894
  %v985 = vmax.f32 %v805, %v895
  %v986 = vmax.f32 %v806, %v896
  %v987 = vmax.f32 %v807, %v897
  %v988 = vmax.f32 %v808, %v898
  %v989 = vmax.f32 %v809, %v899
  %v990 = vmax.f32 %v810, %v900
  %v991 = vmax.f32 %v811, %v901
  %v992 = vmax.f32 %v812, %v902
  %v993 = vmax.f32 %v813, %v903
  %v994 = vmax.f32 %v814, %v904
  %v995 = vmax.f32 %v815, %v905
  %v996 = vmax.f32 %v816, %v906
  %v997 = vmax.f32 %v817, %v907
  %v998 = vmax.f32 %v818, %v908
  %v999 = vmax.f32 %v819, %v909
  %v1000 = vmax.f32 %v820, %v910
  %v1001 = vmax.f32 %v821, %v911
  %v1002 = vmax.f32 %v822, %v912
  %v1003 = vmax.f32 %v823, %v913
  %v1004 = vmax.f32 %v824, %v914
  %v1005 = vmax.f32 %v825, %v915
  %v1006 = vmax.f32 %v826, %v916
  %v1007 = vmax.f32 %v827, %v917
  %v1008 = vmax.f32 %v828, %v918
  %v1009 = vmax.f32 %v829, %v919
  %v1010 = vmax.f32 %v830, %v920
  %v1011 = vmax.f32 %v831, %v921
  %v1012 = vmax.f32 %v832, %v922
  %v1013 = vmax.f32 %v833, %v923
  %v1014 = vmax.f32 %v834, %v924
  %v1015 = vmax.f32 %v835, %v925
  %v1016 = vmax.f32 %v836, %v926
  %v1017 = vmax.f32 %v837, %v927
  %v1018 = vmax.f32 %v838, %v928
  %v1019 = vmax.f32 %v839, %v929
  %v1020 = vpack.c.bf16 %v930, %v930
  %v1021 = vpack.c.bf16 %v931, %v931
  %v1022 = vpack.c.bf16 %v932, %v932
  %v1023 = vpack.c.bf16 %v933, %v933
  %v1024 = vpack.c.bf16 %v934, %v934
  %v1025 = vpack.c.bf16 %v935, %v935
  %v1026 = vpack.c.bf16 %v936, %v936
  %v1027 = vpack.c.bf16 %v937, %v937
  %v1028 = vpack.c.bf16 %v938, %v938
  %v1029 = vpack.c.bf16 %v939, %v939
  %v1030 = vpack.c.bf16 %v940, %v940
  %v1031 = vpack.c.bf16 %v941, %v941
  %v1032 = vpack.c.bf16 %v942, %v942
  %v1033 = vpack.c.bf16 %v943, %v943
  %v1034 = vpack.c.bf16 %v944, %v944
  %v1035 = vpack.c.bf16 %v945, %v945
  %v1036 = vpack.c.bf16 %v946, %v946
  %v1037 = vpack.c.bf16 %v947, %v947
  %v1038 = vpack.c.bf16 %v948, %v948
  %v1039 = vpack.c.bf16 %v949, %v949
  %v1040 = vpack.c.bf16 %v950, %v950
  %v1041 = vpack.c.bf16 %v951, %v951
  %v1042 = vpack.c.bf16 %v952, %v952
  %v1043 = vpack.c.bf16 %v953, %v953
  %v1044 = vpack.c.bf16 %v954, %v954
  %v1045 = vpack.c.bf16 %v955, %v955
  %v1046 = vpack.c.bf16 %v956, %v956
  %v1047 = vpack.c.bf16 %v957, %v957
  %v1048 = vpack.c.bf16 %v958, %v958
  %v1049 = vpack.c.bf16 %v959, %v959
  %v1050 = vpack.c.bf16 %v960, %v960
  %v1051 = vpack.c.bf16 %v961, %v961
  %v1052 = vpack.c.bf16 %v962, %v962
  %v1053 = vpack.c.bf16 %v963, %v963
  %v1054 = vpack.c.bf16 %v964, %v964
  %v1055 = vpack.c.bf16 %v965, %v965
  %v1056 = vpack.c.bf16 %v966, %v966
  %v1057 = vpack.c.bf16 %v967, %v967
  %v1058 = vpack.c.bf16 %v968, %v968
  %v1059 = vpack.c.bf16 %v969, %v969
  %v1060 = vpack.c.bf16 %v970, %v970
  %v1061 = vpack.c.bf16 %v971, %v971
  %v1062 = vpack.c.bf16 %v972, %v972
  %v1063 = vpack.c.bf16 %v973, %v973
  %v1064 = vpack.c.bf16 %v974, %v974
  %v1065 = vpack.c.bf16 %v975, %v975
  %v1066 = vpack.c.bf16 %v976, %v976
  %v1067 = vpack.c.bf16 %v977, %v977
  %v1068 = vpack.c.bf16 %v978, %v978
  %v1069 = vpack.c.bf16 %v979, %v979
  %v1070 = vpack.c.bf16 %v980, %v980
  %v1071 = vpack.c.bf16 %v981, %v981
  %v1072 = vpack.c.bf16 %v982, %v982
  %v1073 = vpack.c.bf16 %v983, %v983
  %v1074 = vpack.c.bf16 %v984, %v984
  %v1075 = vpack.c.bf16 %v985, %v985
  %v1076 = vpack.c.bf16 %v986, %v986
  %v1077 = vpack.c.bf16 %v987, %v987
  %v1078 = vpack.c.bf16 %v988, %v988
  %v1079 = vpack.c.bf16 %v989, %v989
  %v1080 = vpack.c.bf16 %v990, %v990
  %v1081 = vpack.c.bf16 %v991, %v991
  %v1082 = vpack.c.bf16 %v992, %v992
  %v1083 = vpack.c.bf16 %v993, %v993
  %v1084 = vpack.c.bf16 %v994, %v994
  %v1085 = vpack.c.bf16 %v995, %v995
  %v1086 = vpack.c.bf16 %v996, %v996
  %v1087 = vpack.c.bf16 %v997, %v997
  %v1088 = vpack.c.bf16 %v998, %v998
  %v1089 = vpack.c.bf16 %v999, %v999
  %v1090 = vpack.c.bf16 %v1000, %v1000
  %v1091 = vpack.c.bf16 %v1001, %v1001
  %v1092 = vpack.c.bf16 %v1002, %v1002
  %v1093 = vpack.c.bf16 %v1003, %v1003
  %v1094 = vpack.c.bf16 %v1004, %v1004
  %v1095 = vpack.c.bf16 %v1005, %v1005
  %v1096 = vpack.c.bf16 %v1006, %v1006
  %v1097 = vpack.c.bf16 %v1007, %v1007
  %v1098 = vpack.c.bf16 %v1008, %v1008
  %v1099 = vpack.c.bf16 %v1009, %v1009
  %v1100 = vpack.c.bf16 %v1010, %v1010
  %v1101 = vpack.c.bf16 %v1011, %v1011
  %v1102 = vpack.c.bf16 %v1012, %v1012
  %v1103 = vpack.c.bf16 %v1013, %v1013
  %v1104 = vpack.c.bf16 %v1014, %v1014
  %v1105 = vpack.c.bf16 %v1015, %v1015
  %v1106 = vpack.c.bf16 %v1016, %v1016
  %v1107 = vpack.c.bf16 %v1017, %v1017
  %v1108 = vpack.c.bf16 %v1018, %v1018
  %v1109 = vpack.c.bf16 %v1019, %v1019
  %v1110 = vunpack.c.l.bf16 %v480
  %v1111 = vunpack.c.l.bf16 %v481
  %v1112 = vunpack.c.l.bf16 %v482
  %v1113 = vunpack.c.l.bf16 %v483
  %v1114 = vunpack.c.l.bf16 %v484
  %v1115 = vunpack.c.l.bf16 %v485
  %v1116 = vunpack.c.l.bf16 %v486
  %v1117 = vunpack.c.l.bf16 %v487
  %v1118 = vunpack.c.l.bf16 %v488
  %v1119 = vunpack.c.l.bf16 %v489
  %v1120 = vunpack.c.l.bf16 %v490
  %v1121 = vunpack.c.l.bf16 %v491
  %v1122 = vunpack.c.l.bf16 %v492
  %v1123 = vunpack.c.l.bf16 %v493
  %v1124 = vunpack.c.l.bf16 %v494
  %v1125 = vunpack.c.l.bf16 %v495
  %v1126 = vunpack.c.l.bf16 %v496
  %v1127 = vunpack.c.l.bf16 %v497
  %v1128 = vunpack.c.l.bf16 %v498
  %v1129 = vunpack.c.l.bf16 %v499
  %v1130 = vunpack.c.l.bf16 %v500
  %v1131 = vunpack.c.l.bf16 %v501
  %v1132 = vunpack.c.l.bf16 %v502
  %v1133 = vunpack.c.l.bf16 %v503
  %v1134 = vunpack.c.l.bf16 %v504
  %v1135 = vunpack.c.l.bf16 %v505
  %v1136 = vunpack.c.l.bf16 %v506
  %v1137 = vunpack.c.l.bf16 %v507
  %v1138 = vunpack.c.l.bf16 %v508
  %v1139 = vunpack.c.l.bf16 %v509
  %v1140 = vunpack.c.l.bf16 %v510
  %v1141 = vunpack.c.l.bf16 %v511
  %v1142 = vunpack.c.l.bf16 %v512
  %v1143 = vunpack.c.l.bf16 %v513
  %v1144 = vunpack.c.l.bf16 %v514
  %v1145 = vunpack.c.l.bf16 %v515
  %v1146 = vunpack.c.l.bf16 %v516
  %v1147 = vunpack.c.l.bf16 %v517
  %v1148 = vunpack.c.l.bf16 %v518
  %v1149 = vunpack.c.l.bf16 %v519
  %v1150 = vunpack.c.l.bf16 %v520
  %v1151 = vunpack.c.l.bf16 %v521
  %v1152 = vunpack.c.l.bf16 %v522
  %v1153 = vunpack.c.l.bf16 %v523
  %v1154 = vunpack.c.l.bf16 %v524
  %v1155 = vunpack.c.l.bf16 %v525
  %v1156 = vunpack.c.l.bf16 %v526
  %v1157 = vunpack.c.l.bf16 %v527
  %v1158 = vunpack.c.l.bf16 %v528
  %v1159 = vunpack.c.l.bf16 %v529
  %v1160 = vunpack.c.l.bf16 %v530
  %v1161 = vunpack.c.l.bf16 %v531
  %v1162 = vunpack.c.l.bf16 %v532
  %v1163 = vunpack.c.l.bf16 %v533
  %v1164 = vunpack.c.l.bf16 %v534
  %v1165 = vunpack.c.l.bf16 %v535
  %v1166 = vunpack.c.l.bf16 %v536
  %v1167 = vunpack.c.l.bf16 %v537
  %v1168 = vunpack.c.l.bf16 %v538
  %v1169 = vunpack.c.l.bf16 %v539
  %v1170 = vunpack.c.l.bf16 %v540
  %v1171 = vunpack.c.l.bf16 %v541
  %v1172 = vunpack.c.l.bf16 %v542
  %v1173 = vunpack.c.l.bf16 %v543
  %v1174 = vunpack.c.l.bf16 %v544
  %v1175 = vunpack.c.l.bf16 %v545
  %v1176 = vunpack.c.l.bf16 %v546
  %v1177 = vunpack.c.l.bf16 %v547
  %v1178 = vunpack.c.l.bf16 %v548
  %v1179 = vunpack.c.l.bf16 %v549
  %v1180 = vunpack.c.l.bf16 %v550
  %v1181 = vunpack.c.l.bf16 %v551
  %v1182 = vunpack.c.l.bf16 %v552
  %v1183 = vunpack.c.l.bf16 %v553
  %v1184 = vunpack.c.l.bf16 %v554
  %v1185 = vunpack.c.l.bf16 %v555
  %v1186 = vunpack.c.l.bf16 %v556
  %v1187 = vunpack.c.l.bf16 %v557
  %v1188 = vunpack.c.l.bf16 %v558
  %v1189 = vunpack.c.l.bf16 %v559
  %v1190 = vunpack.c.l.bf16 %v560
  %v1191 = vunpack.c.l.bf16 %v561
  %v1192 = vunpack.c.l.bf16 %v562
  %v1193 = vunpack.c.l.bf16 %v563
  %v1194 = vunpack.c.l.bf16 %v564
  %v1195 = vunpack.c.l.bf16 %v565
  %v1196 = vunpack.c.l.bf16 %v566
  %v1197 = vunpack.c.l.bf16 %v567
  %v1198 = vunpack.c.l.bf16 %v568
  %v1199 = vunpack.c.l.bf16 %v569
  %v1200 = vunpack.c.l.bf16 %v1020
  %v1201 = vunpack.c.l.bf16 %v1021
  %v1202 = vunpack.c.l.bf16 %v1022
  %v1203 = vunpack.c.l.bf16 %v1023
  %v1204 = vunpack.c.l.bf16 %v1024
  %v1205 = vunpack.c.l.bf16 %v1025
  %v1206 = vunpack.c.l.bf16 %v1026
  %v1207 = vunpack.c.l.bf16 %v1027
  %v1208 = vunpack.c.l.bf16 %v1028
  %v1209 = vunpack.c.l.bf16 %v1029
  %v1210 = vunpack.c.l.bf16 %v1030
  %v1211 = vunpack.c.l.bf16 %v1031
  %v1212 = vunpack.c.l.bf16 %v1032
  %v1213 = vunpack.c.l.bf16 %v1033
  %v1214 = vunpack.c.l.bf16 %v1034
  %v1215 = vunpack.c.l.bf16 %v1035
  %v1216 = vunpack.c.l.bf16 %v1036
  %v1217 = vunpack.c.l.bf16 %v1037
  %v1218 = vunpack.c.l.bf16 %v1038
  %v1219 = vunpack.c.l.bf16 %v1039
  %v1220 = vunpack.c.l.bf16 %v1040
  %v1221 = vunpack.c.l.bf16 %v1041
  %v1222 = vunpack.c.l.bf16 %v1042
  %v1223 = vunpack.c.l.bf16 %v1043
  %v1224 = vunpack.c.l.bf16 %v1044
  %v1225 = vunpack.c.l.bf16 %v1045
  %v1226 = vunpack.c.l.bf16 %v1046
  %v1227 = vunpack.c.l.bf16 %v1047
  %v1228 = vunpack.c.l.bf16 %v1048
  %v1229 = vunpack.c.l.bf16 %v1049
  %v1230 = vunpack.c.l.bf16 %v1050
  %v1231 = vunpack.c.l.bf16 %v1051
  %v1232 = vunpack.c.l.bf16 %v1052
  %v1233 = vunpack.c.l.bf16 %v1053
  %v1234 = vunpack.c.l.bf16 %v1054
  %v1235 = vunpack.c.l.bf16 %v1055
  %v1236 = vunpack.c.l.bf16 %v1056
  %v1237 = vunpack.c.l.bf16 %v1057
  %v1238 = vunpack.c.l.bf16 %v1058
  %v1239 = vunpack.c.l.bf16 %v1059
  %v1240 = vunpack.c.l.bf16 %v1060
  %v1241 = vunpack.c.l.bf16 %v1061
  %v1242 = vunpack.c.l.bf16 %v1062
  %v1243 = vunpack.c.l.bf16 %v1063
  %v1244 = vunpack.c.l.bf16 %v1064
  %v1245 = vunpack.c.l.bf16 %v1065
  %v1246 = vunpack.c.l.bf16 %v1066
  %v1247 = vunpack.c.l.bf16 %v1067
  %v1248 = vunpack.c.l.bf16 %v1068
  %v1249 = vunpack.c.l.bf16 %v1069
  %v1250 = vunpack.c.l.bf16 %v1070
  %v1251 = vunpack.c.l.bf16 %v1071
  %v1252 = vunpack.c.l.bf16 %v1072
  %v1253 = vunpack.c.l.bf16 %v1073
  %v1254 = vunpack.c.l.bf16 %v1074
  %v1255 = vunpack.c.l.bf16 %v1075
  %v1256 = vunpack.c.l.bf16 %v1076
  %v1257 = vunpack.c.l.bf16 %v1077
  %v1258 = vunpack.c.l.bf16 %v1078
  %v1259 = vunpack.c.l.bf16 %v1079
  %v1260 = vunpack.c.l.bf16 %v1080
  %v1261 = vunpack.c.l.bf16 %v1081
  %v1262 = vunpack.c.l.bf16 %v1082
  %v1263 = vunpack.c.l.bf16 %v1083
  %v1264 = vunpack.c.l.bf16 %v1084
  %v1265 = vunpack.c.l.bf16 %v1085
  %v1266 = vunpack.c.l.bf16 %v1086
  %v1267 = vunpack.c.l.bf16 %v1087
  %v1268 = vunpack.c.l.bf16 %v1088
  %v1269 = vunpack.c.l.bf16 %v1089
  %v1270 = vunpack.c.l.bf16 %v1090
  %v1271 = vunpack.c.l.bf16 %v1091
  %v1272 = vunpack.c.l.bf16 %v1092
  %v1273 = vunpack.c.l.bf16 %v1093
  %v1274 = vunpack.c.l.bf16 %v1094
  %v1275 = vunpack.c.l.bf16 %v1095
  %v1276 = vunpack.c.l.bf16 %v1096
  %v1277 = vunpack.c.l.bf16 %v1097
  %v1278 = vunpack.c.l.bf16 %v1098
  %v1279 = vunpack.c.l.bf16 %v1099
  %v1280 = vunpack.c.l.bf16 %v1100
  %v1281 = vunpack.c.l.bf16 %v1101
  %v1282 = vunpack.c.l.bf16 %v1102
  %v1283 = vunpack.c.l.bf16 %v1103
  %v1284 = vunpack.c.l.bf16 %v1104
  %v1285 = vunpack.c.l.bf16 %v1105
  %v1286 = vunpack.c.l.bf16 %v1106
  %v1287 = vunpack.c.l.bf16 %v1107
  %v1288 = vunpack.c.l.bf16 %v1108
  %v1289 = vunpack.c.l.bf16 %v1109
  %v1290 = vmax.f32 %v1110, %v1200
  %v1291 = vmax.f32 %v1111, %v1201
  %v1292 = vmax.f32 %v1112, %v1202
  %v1293 = vmax.f32 %v1113, %v1203
  %v1294 = vmax.f32 %v1114, %v1204
  %v1295 = vmax.f32 %v1115, %v1205
  %v1296 = vmax.f32 %v1116, %v1206
  %v1297 = vmax.f32 %v1117, %v1207
  %v1298 = vmax.f32 %v1118, %v1208
  %v1299 = vmax.f32 %v1119, %v1209
  %v1300 = vmax.f32 %v1120, %v1210
  %v1301 = vmax.f32 %v1121, %v1211
  %v1302 = vmax.f32 %v1122, %v1212
  %v1303 = vmax.f32 %v1123, %v1213
  %v1304 = vmax.f32 %v1124, %v1214
  %v1305 = vmax.f32 %v1125, %v1215
  %v1306 = vmax.f32 %v1126, %v1216
  %v1307 = vmax.f32 %v1127, %v1217
  %v1308 = vmax.f32 %v1128, %v1218
  %v1309 = vmax.f32 %v1129, %v1219
  %v1310 = vmax.f32 %v1130, %v1220
  %v1311 = vmax.f32 %v1131, %v1221
  %v1312 = vmax.f32 %v1132, %v1222
  %v1313 = vmax.f32 %v1133, %v1223
  %v1314 = vmax.f32 %v1134, %v1224
  %v1315 = vmax.f32 %v1135, %v1225
  %v1316 = vmax.f32 %v1136, %v1226
  %v1317 = vmax.f32 %v1137, %v1227
  %v1318 = vmax.f32 %v1138, %v1228
  %v1319 = vmax.f32 %v1139, %v1229
  %v1320 = vmax.f32 %v1140, %v1230
  %v1321 = vmax.f32 %v1141, %v1231
  %v1322 = vmax.f32 %v1142, %v1232
  %v1323 = vmax.f32 %v1143, %v1233
  %v1324 = vmax.f32 %v1144, %v1234
  %v1325 = vmax.f32 %v1145, %v1235
  %v1326 = vmax.f32 %v1146, %v1236
  %v1327 = vmax.f32 %v1147, %v1237
  %v1328 = vmax.f32 %v1148, %v1238
  %v1329 = vmax.f32 %v1149, %v1239
  %v1330 = vmax.f32 %v1150, %v1240
  %v1331 = vmax.f32 %v1151, %v1241
  %v1332 = vmax.f32 %v1152, %v1242
  %v1333 = vmax.f32 %v1153, %v1243
  %v1334 = vmax.f32 %v1154, %v1244
  %v1335 = vmax.f32 %v1155, %v1245
  %v1336 = vmax.f32 %v1156, %v1246
  %v1337 = vmax.f32 %v1157, %v1247
  %v1338 = vmax.f32 %v1158, %v1248
  %v1339 = vmax.f32 %v1159, %v1249
  %v1340 = vmax.f32 %v1160, %v1250
  %v1341 = vmax.f32 %v1161, %v1251
  %v1342 = vmax.f32 %v1162, %v1252
  %v1343 = vmax.f32 %v1163, %v1253
  %v1344 = vmax.f32 %v1164, %v1254
  %v1345 = vmax.f32 %v1165, %v1255
  %v1346 = vmax.f32 %v1166, %v1256
  %v1347 = vmax.f32 %v1167, %v1257
  %v1348 = vmax.f32 %v1168, %v1258
  %v1349 = vmax.f32 %v1169, %v1259
  %v1350 = vmax.f32 %v1170, %v1260
  %v1351 = vmax.f32 %v1171, %v1261
  %v1352 = vmax.f32 %v1172, %v1262
  %v1353 = vmax.f32 %v1173, %v1263
  %v1354 = vmax.f32 %v1174, %v1264
  %v1355 = vmax.f32 %v1175, %v1265
  %v1356 = vmax.f32 %v1176, %v1266
  %v1357 = vmax.f32 %v1177, %v1267
  %v1358 = vmax.f32 %v1178, %v1268
  %v1359 = vmax.f32 %v1179, %v1269
  %v1360 = vmax.f32 %v1180, %v1270
  %v1361 = vmax.f32 %v1181, %v1271
  %v1362 = vmax.f32 %v1182, %v1272
  %v1363 = vmax.f32 %v1183, %v1273
  %v1364 = vmax.f32 %v1184, %v1274
  %v1365 = vmax.f32 %v1185, %v1275
  %v1366 = vmax.f32 %v1186, %v1276
  %v1367 = vmax.f32 %v1187, %v1277
  %v1368 = vmax.f32 %v1188, %v1278
  %v1369 = vmax.f32 %v1189, %v1279
  %v1370 = vmax.f32 %v1190, %v1280
  %v1371 = vmax.f32 %v1191, %v1281
  %v1372 = vmax.f32 %v1192, %v1282
  %v1373 = vmax.f32 %v1193, %v1283
  %v1374 = vmax.f32 %v1194, %v1284
  %v1375 = vmax.f32 %v1195, %v1285
  %v1376 = vmax.f32 %v1196, %v1286
  %v1377 = vmax.f32 %v1197, %v1287
  %v1378 = vmax.f32 %v1198, %v1288
  %v1379 = vmax.f32 %v1199, %v1289
  %v1380 = vpack.c.bf16 %v1290, %v1290
  %v1381 = vpack.c.bf16 %v1291, %v1291
  %v1382 = vpack.c.bf16 %v1292, %v1292
  %v1383 = vpack.c.bf16 %v1293, %v1293
  %v1384 = vpack.c.bf16 %v1294, %v1294
  %v1385 = vpack.c.bf16 %v1295, %v1295
  %v1386 = vpack.c.bf16 %v1296, %v1296
  %v1387 = vpack.c.bf16 %v1297, %v1297
  %v1388 = vpack.c.bf16 %v1298, %v1298
  %v1389 = vpack.c.bf16 %v1299, %v1299
  %v1390 = vpack.c.bf16 %v1300, %v1300
  %v1391 = vpack.c.bf16 %v1301, %v1301
  %v1392 = vpack.c.bf16 %v1302, %v1302
  %v1393 = vpack.c.bf16 %v1303, %v1303
  %v1394 = vpack.c.bf16 %v1304, %v1304
  %v1395 = vpack.c.bf16 %v1305, %v1305
  %v1396 = vpack.c.bf16 %v1306, %v1306
  %v1397 = vpack.c.bf16 %v1307, %v1307
  %v1398 = vpack.c.bf16 %v1308, %v1308
  %v1399 = vpack.c.bf16 %v1309, %v1309
  %v1400 = vpack.c.bf16 %v1310, %v1310
  %v1401 = vpack.c.bf16 %v1311, %v1311
  %v1402 = vpack.c.bf16 %v1312, %v1312
  %v1403 = vpack.c.bf16 %v1313, %v1313
  %v1404 = vpack.c.bf16 %v1314, %v1314
  %v1405 = vpack.c.bf16 %v1315, %v1315
  %v1406 = vpack.c.bf16 %v1316, %v1316
  %v1407 = vpack.c.bf16 %v1317, %v1317
  %v1408 = vpack.c.bf16 %v1318, %v1318
  %v1409 = vpack.c.bf16 %v1319, %v1319
  %v1410 = vpack.c.bf16 %v1320, %v1320
  %v1411 = vpack.c.bf16 %v1321, %v1321
  %v1412 = vpack.c.bf16 %v1322, %v1322
  %v1413 = vpack.c.bf16 %v1323, %v1323
  %v1414 = vpack.c.bf16 %v1324, %v1324
  %v1415 = vpack.c.bf16 %v1325, %v1325
  %v1416 = vpack.c.bf16 %v1326, %v1326
  %v1417 = vpack.c.bf16 %v1327, %v1327
  %v1418 = vpack.c.bf16 %v1328, %v1328
  %v1419 = vpack.c.bf16 %v1329, %v1329
  %v1420 = vpack.c.bf16 %v1330, %v1330
  %v1421 = vpack.c.bf16 %v1331, %v1331
  %v1422 = vpack.c.bf16 %v1332, %v1332
  %v1423 = vpack.c.bf16 %v1333, %v1333
  %v1424 = vpack.c.bf16 %v1334, %v1334
  %v1425 = vpack.c.bf16 %v1335, %v1335
  %v1426 = vpack.c.bf16 %v1336, %v1336
  %v1427 = vpack.c.bf16 %v1337, %v1337
  %v1428 = vpack.c.bf16 %v1338, %v1338
  %v1429 = vpack.c.bf16 %v1339, %v1339
  %v1430 = vpack.c.bf16 %v1340, %v1340
  %v1431 = vpack.c.bf16 %v1341, %v1341
  %v1432 = vpack.c.bf16 %v1342, %v1342
  %v1433 = vpack.c.bf16 %v1343, %v1343
  %v1434 = vpack.c.bf16 %v1344, %v1344
  %v1435 = vpack.c.bf16 %v1345, %v1345
  %v1436 = vpack.c.bf16 %v1346, %v1346
  %v1437 = vpack.c.bf16 %v1347, %v1347
  %v1438 = vpack.c.bf16 %v1348, %v1348
  %v1439 = vpack.c.bf16 %v1349, %v1349
  %v1440 = vpack.c.bf16 %v1350, %v1350
  %v1441 = vpack.c.bf16 %v1351, %v1351
  %v1442 = vpack.c.bf16 %v1352, %v1352
  %v1443 = vpack.c.bf16 %v1353, %v1353
  %v1444 = vpack.c.bf16 %v1354, %v1354
  %v1445 = vpack.c.bf16 %v1355, %v1355
  %v1446 = vpack.c.bf16 %v1356, %v1356
  %v1447 = vpack.c.bf16 %v1357, %v1357
  %v1448 = vpack.c.bf16 %v1358, %v1358
  %v1449 = vpack.c.bf16 %v1359, %v1359
  %v1450 = vpack.c.bf16 %v1360, %v1360
  %v1451 = vpack.c.bf16 %v1361, %v1361
  %v1452 = vpack.c.bf16 %v1362, %v1362
  %v1453 = vpack.c.bf16 %v1363, %v1363
  %v1454 = vpack.c.bf16 %v1364, %v1364
  %v1455 = vpack.c.bf16 %v1365, %v1365
  %v1456 = vpack.c.bf16 %v1366, %v1366
  %v1457 = vpack.c.bf16 %v1367, %v1367
  %v1458 = vpack.c.bf16 %v1368, %v1368
  %v1459 = vpack.c.bf16 %v1369, %v1369
  %v1460 = vpack.c.bf16 %v1370, %v1370
  %v1461 = vpack.c.bf16 %v1371, %v1371
  %v1462 = vpack.c.bf16 %v1372, %v1372
  %v1463 = vpack.c.bf16 %v1373, %v1373
  %v1464 = vpack.c.bf16 %v1374, %v1374
  %v1465 = vpack.c.bf16 %v1375, %v1375
  %v1466 = vpack.c.bf16 %v1376, %v1376
  %v1467 = vpack.c.bf16 %v1377, %v1377
  %v1468 = vpack.c.bf16 %v1378, %v1378
  %v1469 = vpack.c.bf16 %v1379, %v1379
  %v1470 = vunpack.c.l.bf16 %v1380
  %v1471 = vunpack.c.l.bf16 %v1381
  %v1472 = vunpack.c.l.bf16 %v1382
  %v1473 = vunpack.c.l.bf16 %v1383
  %v1474 = vunpack.c.l.bf16 %v1384
  %v1475 = vunpack.c.l.bf16 %v1385
  %v1476 = vunpack.c.l.bf16 %v1386
  %v1477 = vunpack.c.l.bf16 %v1387
  %v1478 = vunpack.c.l.bf16 %v1388
  %v1479 = vunpack.c.l.bf16 %v1389
  %v1480 = vunpack.c.l.bf16 %v1390
  %v1481 = vunpack.c.l.bf16 %v1391
  %v1482 = vunpack.c.l.bf16 %v1392
  %v1483 = vunpack.c.l.bf16 %v1393
  %v1484 = vunpack.c.l.bf16 %v1394
  %v1485 = vunpack.c.l.bf16 %v1395
  %v1486 = vunpack.c.l.bf16 %v1396
  %v1487 = vunpack.c.l.bf16 %v1397
  %v1488 = vunpack.c.l.bf16 %v1398
  %v1489 = vunpack.c.l.bf16 %v1399
  %v1490 = vunpack.c.l.bf16 %v1400
  %v1491 = vunpack.c.l.bf16 %v1401
  %v1492 = vunpack.c.l.bf16 %v1402
  %v1493 = vunpack.c.l.bf16 %v1403
  %v1494 = vunpack.c.l.bf16 %v1404
  %v1495 = vunpack.c.l.bf16 %v1405
  %v1496 = vunpack.c.l.bf16 %v1406
  %v1497 = vunpack.c.l.bf16 %v1407
  %v1498 = vunpack.c.l.bf16 %v1408
  %v1499 = vunpack.c.l.bf16 %v1409
  %v1500 = vunpack.c.l.bf16 %v1410
  %v1501 = vunpack.c.l.bf16 %v1411
  %v1502 = vunpack.c.l.bf16 %v1412
  %v1503 = vunpack.c.l.bf16 %v1413
  %v1504 = vunpack.c.l.bf16 %v1414
  %v1505 = vunpack.c.l.bf16 %v1415
  %v1506 = vunpack.c.l.bf16 %v1416
  %v1507 = vunpack.c.l.bf16 %v1417
  %v1508 = vunpack.c.l.bf16 %v1418
  %v1509 = vunpack.c.l.bf16 %v1419
  %v1510 = vunpack.c.l.bf16 %v1420
  %v1511 = vunpack.c.l.bf16 %v1421
  %v1512 = vunpack.c.l.bf16 %v1422
  %v1513 = vunpack.c.l.bf16 %v1423
  %v1514 = vunpack.c.l.bf16 %v1424
  %v1515 = vunpack.c.l.bf16 %v1425
  %v1516 = vunpack.c.l.bf16 %v1426
  %v1517 = vunpack.c.l.bf16 %v1427
  %v1518 = vunpack.c.l.bf16 %v1428
  %v1519 = vunpack.c.l.bf16 %v1429
  %v1520 = vunpack.c.l.bf16 %v1430
  %v1521 = vunpack.c.l.bf16 %v1431
  %v1522 = vunpack.c.l.bf16 %v1432
  %v1523 = vunpack.c.l.bf16 %v1433
  %v1524 = vunpack.c.l.bf16 %v1434
  %v1525 = vunpack.c.l.bf16 %v1435
  %v1526 = vunpack.c.l.bf16 %v1436
  %v1527 = vunpack.c.l.bf16 %v1437
  %v1528 = vunpack.c.l.bf16 %v1438
  %v1529 = vunpack.c.l.bf16 %v1439
  %v1530 = vunpack.c.l.bf16 %v1440
  %v1531 = vunpack.c.l.bf16 %v1441
  %v1532 = vunpack.c.l.bf16 %v1442
  %v1533 = vunpack.c.l.bf16 %v1443
  %v1534 = vunpack.c.l.bf16 %v1444
  %v1535 = vunpack.c.l.bf16 %v1445
  %v1536 = vunpack.c.l.bf16 %v1446
  %v1537 = vunpack.c.l.bf16 %v1447
  %v1538 = vunpack.c.l.bf16 %v1448
  %v1539 = vunpack.c.l.bf16 %v1449
  %v1540 = vunpack.c.l.bf16 %v1450
  %v1541 = vunpack.c.l.bf16 %v1451
  %v1542 = vunpack.c.l.bf16 %v1452
  %v1543 = vunpack.c.l.bf16 %v1453
  %v1544 = vunpack.c.l.bf16 %v1454
  %v1545 = vunpack.c.l.bf16 %v1455
  %v1546 = vunpack.c.l.bf16 %v1456
  %v1547 = vunpack.c.l.bf16 %v1457
  %v1548 = vunpack.c.l.bf16 %v1458
  %v1549 = vunpack.c.l.bf16 %v1459
  %v1550 = vunpack.c.l.bf16 %v1460
  %v1551 = vunpack.c.l.bf16 %v1461
  %v1552 = vunpack.c.l.bf16 %v1462
  %v1553 = vunpack.c.l.bf16 %v1463
  %v1554 = vunpack.c.l.bf16 %v1464
  %v1555 = vunpack.c.l.bf16 %v1465
  %v1556 = vunpack.c.l.bf16 %v1466
  %v1557 = vunpack.c.l.bf16 %v1467
  %v1558 = vunpack.c.l.bf16 %v1468
  %v1559 = vunpack.c.l.bf16 %v1469
  %v1560 = vmax.f32 %v1470, 0.0
  %v1561 = vmax.f32 %v1471, 0.0
  %v1562 = vmax.f32 %v1472, 0.0
  %v1563 = vmax.f32 %v1473, 0.0
  %v1564 = vmax.f32 %v1474, 0.0
  %v1565 = vmax.f32 %v1475, 0.0
  %v1566 = vmax.f32 %v1476, 0.0
  %v1567 = vmax.f32 %v1477, 0.0
  %v1568 = vmax.f32 %v1478, 0.0
  %v1569 = vmax.f32 %v1479, 0.0
  %v1570 = vmax.f32 %v1480, 0.0
  %v1571 = vmax.f32 %v1481, 0.0
  %v1572 = vmax.f32 %v1482, 0.0
  %v1573 = vmax.f32 %v1483, 0.0
  %v1574 = vmax.f32 %v1484, 0.0
  %v1575 = vmax.f32 %v1485, 0.0
  %v1576 = vmax.f32 %v1486, 0.0
  %v1577 = vmax.f32 %v1487, 0.0
  %v1578 = vmax.f32 %v1488, 0.0
  %v1579 = vmax.f32 %v1489, 0.0
  %v1580 = vmax.f32 %v1490, 0.0
  %v1581 = vmax.f32 %v1491, 0.0
  %v1582 = vmax.f32 %v1492, 0.0
  %v1583 = vmax.f32 %v1493, 0.0
  %v1584 = vmax.f32 %v1494, 0.0
  %v1585 = vmax.f32 %v1495, 0.0
  %v1586 = vmax.f32 %v1496, 0.0
  %v1587 = vmax.f32 %v1497, 0.0
  %v1588 = vmax.f32 %v1498, 0.0
  %v1589 = vmax.f32 %v1499, 0.0
  %v1590 = vmax.f32 %v1500, 0.0
  %v1591 = vmax.f32 %v1501, 0.0
  %v1592 = vmax.f32 %v1502, 0.0
  %v1593 = vmax.f32 %v1503, 0.0
  %v1594 = vmax.f32 %v1504, 0.0
  %v1595 = vmax.f32 %v1505, 0.0
  %v1596 = vmax.f32 %v1506, 0.0
  %v1597 = vmax.f32 %v1507, 0.0
  %v1598 = vmax.f32 %v1508, 0.0
  %v1599 = vmax.f32 %v1509, 0.0
  %v1600 = vmax.f32 %v1510, 0.0
  %v1601 = vmax.f32 %v1511, 0.0
  %v1602 = vmax.f32 %v1512, 0.0
  %v1603 = vmax.f32 %v1513, 0.0
  %v1604 = vmax.f32 %v1514, 0.0
  %v1605 = vmax.f32 %v1515, 0.0
  %v1606 = vmax.f32 %v1516, 0.0
  %v1607 = vmax.f32 %v1517, 0.0
  %v1608 = vmax.f32 %v1518, 0.0
  %v1609 = vmax.f32 %v1519, 0.0
  %v1610 = vmax.f32 %v1520, 0.0
  %v1611 = vmax.f32 %v1521, 0.0
  %v1612 = vmax.f32 %v1522, 0.0
  %v1613 = vmax.f32 %v1523, 0.0
  %v1614 = vmax.f32 %v1524, 0.0
  %v1615 = vmax.f32 %v1525, 0.0
  %v1616 = vmax.f32 %v1526, 0.0
  %v1617 = vmax.f32 %v1527, 0.0
  %v1618 = vmax.f32 %v1528, 0.0
  %v1619 = vmax.f32 %v1529, 0.0
  %v1620 = vmax.f32 %v1530, 0.0
  %v1621 = vmax.f32 %v1531, 0.0
  %v1622 = vmax.f32 %v1532, 0.0
  %v1623 = vmax.f32 %v1533, 0.0
  %v1624 = vmax.f32 %v1534, 0.0
  %v1625 = vmax.f32 %v1535, 0.0
  %v1626 = vmax.f32 %v1536, 0.0
  %v1627 = vmax.f32 %v1537, 0.0
  %v1628 = vmax.f32 %v1538, 0.0
  %v1629 = vmax.f32 %v1539, 0.0
  %v1630 = vmax.f32 %v1540, 0.0
  %v1631 = vmax.f32 %v1541, 0.0
  %v1632 = vmax.f32 %v1542, 0.0
  %v1633 = vmax.f32 %v1543, 0.0
  %v1634 = vmax.f32 %v1544, 0.0
  %v1635 = vmax.f32 %v1545, 0.0
  %v1636 = vmax.f32 %v1546, 0.0
  %v1637 = vmax.f32 %v1547, 0.0
  %v1638 = vmax.f32 %v1548, 0.0
  %v1639 = vmax.f32 %v1549, 0.0
  %v1640 = vmax.f32 %v1550, 0.0
  %v1641 = vmax.f32 %v1551, 0.0
  %v1642 = vmax.f32 %v1552, 0.0
  %v1643 = vmax.f32 %v1553, 0.0
  %v1644 = vmax.f32 %v1554, 0.0
  %v1645 = vmax.f32 %v1555, 0.0
  %v1646 = vmax.f32 %v1556, 0.0
  %v1647 = vmax.f32 %v1557, 0.0
  %v1648 = vmax.f32 %v1558, 0.0
  %v1649 = vmax.f32 %v1559, 0.0
  %v1650 = vpack.c.bf16 %v1561, %v1560
  %v1651 = vpack.c.bf16 %v1563, %v1562
  %v1652 = vpack.c.bf16 %v1565, %v1564
  %v1653 = vpack.c.bf16 %v1567, %v1566
  %v1654 = vpack.c.bf16 %v1569, %v1568
  %v1655 = vpack.c.bf16 %v1571, %v1570
  %v1656 = vpack.c.bf16 %v1573, %v1572
  %v1657 = vpack.c.bf16 %v1575, %v1574
  %v1658 = vpack.c.bf16 %v1577, %v1576
  %v1659 = vpack.c.bf16 %v1579, %v1578
  %v1660 = vpack.c.bf16 %v1581, %v1580
  %v1661 = vpack.c.bf16 %v1583, %v1582
  %v1662 = vpack.c.bf16 %v1585, %v1584
  %v1663 = vpack.c.bf16 %v1587, %v1586
  %v1664 = vpack.c.bf16 %v1589, %v1588
  %v1665 = vpack.c.bf16 %v1591, %v1590
  %v1666 = vpack.c.bf16 %v1593, %v1592
  %v1667 = vpack.c.bf16 %v1595, %v1594
  %v1668 = vpack.c.bf16 %v1597, %v1596
  %v1669 = vpack.c.bf16 %v1599, %v1598
  %v1670 = vpack.c.bf16 %v1601, %v1600
  %v1671 = vpack.c.bf16 %v1603, %v1602
  %v1672 = vpack.c.bf16 %v1605, %v1604
  %v1673 = vpack.c.bf16 %v1607, %v1606
  %v1674 = vpack.c.bf16 %v1609, %v1608
  %v1675 = vpack.c.bf16 %v1611, %v1610
  %v1676 = vpack.c.bf16 %v1613, %v1612
  %v1677 = vpack.c.bf16 %v1615, %v1614
  %v1678 = vpack.c.bf16 %v1617, %v1616
  %v1679 = vpack.c.bf16 %v1619, %v1618
  %v1680 = vpack.c.bf16 %v1621, %v1620
  %v1681 = vpack.c.bf16 %v1623, %v1622
  %v1682 = vpack.c.bf16 %v1625, %v1624
  %v1683 = vpack.c.bf16 %v1627, %v1626
  %v1684 = vpack.c.bf16 %v1629, %v1628
  %v1685 = vpack.c.bf16 %v1631, %v1630
  %v1686 = vpack.c.bf16 %v1633, %v1632
  %v1687 = vpack.c.bf16 %v1635, %v1634
  %v1688 = vpack.c.bf16 %v1637, %v1636
  %v1689 = vpack.c.bf16 %v1639, %v1638
  %v1690 = vpack.c.bf16 %v1641, %v1640
  %v1691 = vpack.c.bf16 %v1643, %v1642
  %v1692 = vpack.c.bf16 %v1645, %v1644
  %v1693 = vpack.c.bf16 %v1647, %v1646
  %v1694 = vpack.c.bf16 %v1649, %v1648
  %v1695 = vld [vmem:[%s4] sm:$0xff]
  %v1696 = vld [vmem:[%s4 + $0x8] sm:$0xff]
  %v1697 = vld [vmem:[%s4 + $0x10] sm:$0xff]
  %v1698 = vld [vmem:[%s4 + $0x18] sm:$0xff]
  %v1699 = vld [vmem:[%s4 + $0x20] sm:$0xff]
  %v1700 = vld [vmem:[%s4 + $0x28] sm:$0xff]
  %v1701 = vld [vmem:[%s4 + $0x30] sm:$0xff]
  %v1702 = vld [vmem:[%s4 + $0x38] sm:$0xff]
  %v1703 = vld [vmem:[%s4 + $0x40] sm:$0xff]
  %v1704 = vld [vmem:[%s4 + $0x48] sm:$0xff]
  %v1705 = vld [vmem:[%s4 + $0x50] sm:$0xff]
  %v1706 = vld [vmem:[%s4 + $0x58] sm:$0xff]
  %v1707 = vld [vmem:[%s4 + $0x60] sm:$0xff]
  %v1708 = vld [vmem:[%s4 + $0x68] sm:$0xff]
  %v1709 = vld [vmem:[%s4 + $0x70] sm:$0xff]
  %v1710 = vld [vmem:[%s4 + $0x78] sm:$0xff]
  %v1711 = vld [vmem:[%s4 + $0x80] sm:$0xff]
  %v1712 = vld [vmem:[%s4 + $0x88] sm:$0xff]
  %v1713 = vld [vmem:[%s4 + $0x90] sm:$0x11]
  %v1714 = vld [vmem:[%s4 + $0x98] sm:$0x11]
  %v1715 = vld [vmem:[%s4 + $0xa0] sm:$0x11]
  %v1716 = vld [vmem:[%s5] sm:$0xff]
  %v1717 = vld [vmem:[%s5 + $0x8] sm:$0xff]
  %v1718 = vld [vmem:[%s5 + $0x10] sm:$0xff]
  %v1719 = vld [vmem:[%s5 + $0x18] sm:$0xff]
  %v1720 = vld [vmem:[%s5 + $0x20] sm:$0xff]
  %v1721 = vld [vmem:[%s5 + $0x28] sm:$0xff]
  %v1722 = vld [vmem:[%s5 + $0x30] sm:$0x3]
  %1724 = vset.pattern.permute.xlu0 0
  %1725 = vperm.xlu0 %1724, %v1716
  %v1726 = vpop.permute.xlu0 %1725
  %1729 = vset.pattern.permute.xlu0 0
  %1730 = vperm.xlu0 %1729, %v1717
  %v1731 = vpop.permute.xlu0 %1730
  %1734 = vset.pattern.permute.xlu0 0
  %1735 = vperm.xlu0 %1734, %v1718
  %v1736 = vpop.permute.xlu0 %1735
  %1739 = vset.pattern.permute.xlu0 0
  %1740 = vperm.xlu0 %1739, %v1719
  %v1741 = vpop.permute.xlu0 %1740
  %1744 = vset.pattern.permute.xlu0 0
  %1745 = vperm.xlu0 %1744, %v1720
  %v1746 = vpop.permute.xlu0 %1745
  %1749 = vset.pattern.permute.xlu0 0
  %1750 = vperm.xlu0 %1749, %v1721
  %v1751 = vpop.permute.xlu0 %1750
  %1754 = vset.pattern.permute.xlu0 0
  %1755 = vperm.xlu0 %1754, %v1722
  %v1756 = vpop.permute.xlu0 %1755
  %v1779 = vunpack.c.l.b16 %v1695
  %v1780 = vunpack.c.h.b16 %v1695
  %v1781 = vunpack.c.l.b16 %v1696
  %v1782 = vunpack.c.h.b16 %v1696
  %v1783 = vunpack.c.l.b16 %v1697
  %v1784 = vunpack.c.h.b16 %v1697
  %v1785 = vunpack.c.l.b16 %v1698
  %v1786 = vunpack.c.h.b16 %v1698
  %v1787 = vunpack.c.l.b16 %v1699
  %v1788 = vunpack.c.h.b16 %v1699
  %v1789 = vunpack.c.l.b16 %v1700
  %v1790 = vunpack.c.h.b16 %v1700
  %v1791 = vunpack.c.l.b16 %v1701
  %v1792 = vunpack.c.h.b16 %v1701
  %v1793 = vunpack.c.l.b16 %v1702
  %v1794 = vunpack.c.h.b16 %v1702
  %v1795 = vunpack.c.l.b16 %v1703
  %v1796 = vunpack.c.h.b16 %v1703
  %v1797 = vunpack.c.l.b16 %v1704
  %v1798 = vunpack.c.h.b16 %v1704
  %v1799 = vunpack.c.l.b16 %v1705
  %v1800 = vunpack.c.h.b16 %v1705
  %v1801 = vunpack.c.l.b16 %v1706
  %v1802 = vunpack.c.h.b16 %v1706
  %v1803 = vunpack.c.l.b16 %v1707
  %v1804 = vunpack.c.h.b16 %v1707
  %v1805 = vunpack.c.l.b16 %v1708
  %v1806 = vunpack.c.h.b16 %v1708
  %v1807 = vunpack.c.l.b16 %v1709
  %v1808 = vunpack.c.h.b16 %v1709
  %v1809 = vunpack.c.l.b16 %v1710
  %v1810 = vunpack.c.h.b16 %v1710
  %v1811 = vunpack.c.l.b16 %v1711
  %v1812 = vunpack.c.h.b16 %v1711
  %v1813 = vunpack.c.l.b16 %v1712
  %v1814 = vunpack.c.h.b16 %v1712
  %v1815 = vunpack.c.l.b16 %v1713
  %v1816 = vunpack.c.h.b16 %v1713
  %v1817 = vunpack.c.l.b16 %v1714
  %v1818 = vunpack.c.h.b16 %v1714
  %v1819 = vunpack.c.l.b16 %v1715
  %v1820 = vunpack.c.h.b16 %v1715
  %v1821 = vpack.c.b16 %v1785, %v1779
  %v1822 = vpack.c.b16 %v1786, %v1780
  %v1823 = vpack.c.b16 %v1787, %v1781
  %v1824 = vpack.c.b16 %v1788, %v1782
  %v1825 = vpack.c.b16 %v1789, %v1783
  %v1826 = vpack.c.b16 %v1790, %v1784
  %v1827 = vpack.c.b16 %v1797, %v1791
  %v1828 = vpack.c.b16 %v1798, %v1792
  %v1829 = vpack.c.b16 %v1799, %v1793
  %v1830 = vpack.c.b16 %v1800, %v1794
  %v1831 = vpack.c.b16 %v1801, %v1795
  %v1832 = vpack.c.b16 %v1802, %v1796
  %v1833 = vpack.c.b16 %v1809, %v1803
  %v1834 = vpack.c.b16 %v1810, %v1804
  %v1835 = vpack.c.b16 %v1811, %v1805
  %v1836 = vpack.c.b16 %v1812, %v1806
  %v1837 = vpack.c.b16 %v1813, %v1807
  %v1838 = vpack.c.b16 %v1814, %v1808
  %v1839 = vpack.c.b16 %v1815, %v1815
  %v1840 = vpack.c.b16 %v1816, %v1816
  %v1841 = vpack.c.b16 %v1817, %v1817
  %v1842 = vpack.c.b16 %v1818, %v1818
  %v1843 = vpack.c.b16 %v1819, %v1819
  %v1844 = vpack.c.b16 %v1820, %v1820
  %vm1865 = vcmask 654336
  %v1867 = vsel %vm1865, %v1826, 0
  %v1870 = vsel %vm1865, %v1832, 0
  %v1873 = vsel %vm1865, %v1838, 0
  %v1876 = vsel %vm1865, %v1844, 0
  %1878 = vmatpush.bf16.msra.mxu0 %v1657
  %1879 = vmatpush.bf16.msra.mxu0 %v1656
  %1880 = vmatpush.bf16.msra.mxu0 %v1655
  %1881 = vmatpush.bf16.msra.mxu0 %v1654
  %1882 = vmatpush.bf16.msra.mxu0 %v1653
  %1883 = vmatpush.bf16.msra.mxu0 %v1652
  %1884 = vmatpush.bf16.msra.mxu0 %v1651
  %1885 = vmatpush.bf16.msra.mxu0 %v1650
  %1886 = vmatmul.bf16.gmra.mxu0 %v1821
  %v1887 = vpop.f32.mrf.mxu0
  %v1888 = vadd.f32 %v1726, %v1887
  %v1889 = vpop.f32.mrf.mxu0
  %v1890 = vadd.f32 %v1731, %v1889
  %1891 = vmatmul.bf16.gmra.mxu0 %v1827
  %v1892 = vpop.f32.mrf.mxu0
  %v1893 = vadd.f32 %v1736, %v1892
  %v1894 = vpop.f32.mrf.mxu0
  %v1895 = vadd.f32 %v1741, %v1894
  %1896 = vmatmul.bf16.gmra.mxu0 %v1833
  %v1897 = vpop.f32.mrf.mxu0
  %v1898 = vadd.f32 %v1746, %v1897
  %v1899 = vpop.f32.mrf.mxu0
  %v1900 = vadd.f32 %v1751, %v1899
  %1901 = vmatmul.bf16.gmra.mxu0 %v1839
  %v1902 = vpop.f32.mrf.mxu0
  %v1903 = vadd.f32 %v1756, %v1902
  %v1904 = vpop.f32.mrf.mxu0
  %1905 = vdwg.mxu0
  %1906 = vmatpush.bf16.msra.mxu0 %v1665
  %1907 = vmatpush.bf16.msra.mxu0 %v1664
  %1908 = vmatpush.bf16.msra.mxu0 %v1663
  %1909 = vmatpush.bf16.msra.mxu0 %v1662
  %1910 = vmatpush.bf16.msra.mxu0 %v1661
  %1911 = vmatpush.bf16.msra.mxu0 %v1660
  %1912 = vmatpush.bf16.msra.mxu0 %v1659
  %1913 = vmatpush.bf16.msra.mxu0 %v1658
  %1914 = vmatmul.bf16.gmra.mxu0 %v1822
  %v1915 = vpop.f32.mrf.mxu0
  %v1916 = vadd.f32 %v1888, %v1915
  %v1917 = vpop.f32.mrf.mxu0
  %v1918 = vadd.f32 %v1890, %v1917
  %1919 = vmatmul.bf16.gmra.mxu0 %v1828
  %v1920 = vpop.f32.mrf.mxu0
  %v1921 = vadd.f32 %v1893, %v1920
  %v1922 = vpop.f32.mrf.mxu0
  %v1923 = vadd.f32 %v1895, %v1922
  %1924 = vmatmul.bf16.gmra.mxu0 %v1834
  %v1925 = vpop.f32.mrf.mxu0
  %v1926 = vadd.f32 %v1898, %v1925
  %v1927 = vpop.f32.mrf.mxu0
  %v1928 = vadd.f32 %v1900, %v1927
  %1929 = vmatmul.bf16.gmra.mxu0 %v1840
  %v1930 = vpop.f32.mrf.mxu0
  %v1931 = vadd.f32 %v1903, %v1930
  %v1932 = vpop.f32.mrf.mxu0
  %1933 = vdwg.mxu0
  %1934 = vmatpush.bf16.msra.mxu0 %v1673
  %1935 = vmatpush.bf16.msra.mxu0 %v1672
  %1936 = vmatpush.bf16.msra.mxu0 %v1671
  %1937 = vmatpush.bf16.msra.mxu0 %v1670
  %1938 = vmatpush.bf16.msra.mxu0 %v1669
  %1939 = vmatpush.bf16.msra.mxu0 %v1668
  %1940 = vmatpush.bf16.msra.mxu0 %v1667
  %1941 = vmatpush.bf16.msra.mxu0 %v1666
  %1942 = vmatmul.bf16.gmra.mxu0 %v1823
  %v1943 = vpop.f32.mrf.mxu0
  %v1944 = vadd.f32 %v1916, %v1943
  %v1945 = vpop.f32.mrf.mxu0
  %v1946 = vadd.f32 %v1918, %v1945
  %1947 = vmatmul.bf16.gmra.mxu0 %v1829
  %v1948 = vpop.f32.mrf.mxu0
  %v1949 = vadd.f32 %v1921, %v1948
  %v1950 = vpop.f32.mrf.mxu0
  %v1951 = vadd.f32 %v1923, %v1950
  %1952 = vmatmul.bf16.gmra.mxu0 %v1835
  %v1953 = vpop.f32.mrf.mxu0
  %v1954 = vadd.f32 %v1926, %v1953
  %v1955 = vpop.f32.mrf.mxu0
  %v1956 = vadd.f32 %v1928, %v1955
  %1957 = vmatmul.bf16.gmra.mxu0 %v1841
  %v1958 = vpop.f32.mrf.mxu0
  %v1959 = vadd.f32 %v1931, %v1958
  %v1960 = vpop.f32.mrf.mxu0
  %1961 = vdwg.mxu0
  %1962 = vmatpush.bf16.msra.mxu0 %v1681
  %1963 = vmatpush.bf16.msra.mxu0 %v1680
  %1964 = vmatpush.bf16.msra.mxu0 %v1679
  %1965 = vmatpush.bf16.msra.mxu0 %v1678
  %1966 = vmatpush.bf16.msra.mxu0 %v1677
  %1967 = vmatpush.bf16.msra.mxu0 %v1676
  %1968 = vmatpush.bf16.msra.mxu0 %v1675
  %1969 = vmatpush.bf16.msra.mxu0 %v1674
  %1970 = vmatmul.bf16.gmra.mxu0 %v1824
  %v1971 = vpop.f32.mrf.mxu0
  %v1972 = vadd.f32 %v1944, %v1971
  %v1973 = vpop.f32.mrf.mxu0
  %v1974 = vadd.f32 %v1946, %v1973
  %1975 = vmatmul.bf16.gmra.mxu0 %v1830
  %v1976 = vpop.f32.mrf.mxu0
  %v1977 = vadd.f32 %v1949, %v1976
  %v1978 = vpop.f32.mrf.mxu0
  %v1979 = vadd.f32 %v1951, %v1978
  %1980 = vmatmul.bf16.gmra.mxu0 %v1836
  %v1981 = vpop.f32.mrf.mxu0
  %v1982 = vadd.f32 %v1954, %v1981
  %v1983 = vpop.f32.mrf.mxu0
  %v1984 = vadd.f32 %v1956, %v1983
  %1985 = vmatmul.bf16.gmra.mxu0 %v1842
  %v1986 = vpop.f32.mrf.mxu0
  %v1987 = vadd.f32 %v1959, %v1986
  %v1988 = vpop.f32.mrf.mxu0
  %1989 = vdwg.mxu0
  %1990 = vmatpush.bf16.msra.mxu0 %v1689
  %1991 = vmatpush.bf16.msra.mxu0 %v1688
  %1992 = vmatpush.bf16.msra.mxu0 %v1687
  %1993 = vmatpush.bf16.msra.mxu0 %v1686
  %1994 = vmatpush.bf16.msra.mxu0 %v1685
  %1995 = vmatpush.bf16.msra.mxu0 %v1684
  %1996 = vmatpush.bf16.msra.mxu0 %v1683
  %1997 = vmatpush.bf16.msra.mxu0 %v1682
  %1998 = vmatmul.bf16.gmra.mxu0 %v1825
  %v1999 = vpop.f32.mrf.mxu0
  %v2000 = vadd.f32 %v1972, %v1999
  %v2001 = vpop.f32.mrf.mxu0
  %v2002 = vadd.f32 %v1974, %v2001
  %2003 = vmatmul.bf16.gmra.mxu0 %v1831
  %v2004 = vpop.f32.mrf.mxu0
  %v2005 = vadd.f32 %v1977, %v2004
  %v2006 = vpop.f32.mrf.mxu0
  %v2007 = vadd.f32 %v1979, %v2006
  %2008 = vmatmul.bf16.gmra.mxu0 %v1837
  %v2009 = vpop.f32.mrf.mxu0
  %v2010 = vadd.f32 %v1982, %v2009
  %v2011 = vpop.f32.mrf.mxu0
  %v2012 = vadd.f32 %v1984, %v2011
  %2013 = vmatmul.bf16.gmra.mxu0 %v1843
  %v2014 = vpop.f32.mrf.mxu0
  %v2015 = vadd.f32 %v1987, %v2014
  %v2016 = vpop.f32.mrf.mxu0
  %2017 = vdwg.mxu0
  %2018 = vmatpush.bf16.msra.mxu0 0
  %2019 = vmatpush.bf16.msra.mxu0 0
  %2020 = vmatpush.bf16.msra.mxu0 0
  %2021 = vmatpush.bf16.msra.mxu0 %v1694
  %2022 = vmatpush.bf16.msra.mxu0 %v1693
  %2023 = vmatpush.bf16.msra.mxu0 %v1692
  %2024 = vmatpush.bf16.msra.mxu0 %v1691
  %2025 = vmatpush.bf16.msra.mxu0 %v1690
  %2026 = vmatmul.bf16.gmra.mxu0 %v1867
  %v2027 = vpop.f32.mrf.mxu0
  %v2028 = vadd.f32 %v2000, %v2027
  %v2029 = vpop.f32.mrf.mxu0
  %v2030 = vadd.f32 %v2002, %v2029
  %2031 = vmatmul.bf16.gmra.mxu0 %v1870
  %v2032 = vpop.f32.mrf.mxu0
  %v2033 = vadd.f32 %v2005, %v2032
  %v2034 = vpop.f32.mrf.mxu0
  %v2035 = vadd.f32 %v2007, %v2034
  %2036 = vmatmul.bf16.gmra.mxu0 %v1873
  %v2037 = vpop.f32.mrf.mxu0
  %v2038 = vadd.f32 %v2010, %v2037
  %v2039 = vpop.f32.mrf.mxu0
  %v2040 = vadd.f32 %v2012, %v2039
  %2041 = vmatmul.bf16.gmra.mxu0 %v1876
  %v2042 = vpop.f32.mrf.mxu0
  %v2043 = vadd.f32 %v2015, %v2042
  %v2044 = vpop.f32.mrf.mxu0
  %2045 = vdwg.mxu0
  %v2046 = vmax.f32 %v2028, 0.0
  %v2047 = vmax.f32 %v2030, 0.0
  %v2048 = vmax.f32 %v2033, 0.0
  %v2049 = vmax.f32 %v2035, 0.0
  %v2050 = vmax.f32 %v2038, 0.0
  %v2051 = vmax.f32 %v2040, 0.0
  %v2052 = vmax.f32 %v2043, 0.0
  %v2053 = vpack.c.bf16 %v2047, %v2046
  %v2054 = vpack.c.bf16 %v2049, %v2048
  %v2055 = vpack.c.bf16 %v2051, %v2050
  %v2056 = vpack.c.bf16 %v2052, %v2052
  %v2057 = vld [vmem:[%s6] sm:$0x3]
  %v2058 = vld [vmem:[%s7] sm:$0xf]
  %2060 = vset.pattern.permute.xlu0 0
  %2061 = vperm.xlu0 %2060, %v2058
  %v2062 = vpop.permute.xlu0 %2061
  %vm2064 = vcmask 408576
  %v2066 = vsel %vm2064, %v2057, 0
  %vm2068 = vcmask 1040384
  %v2070 = vsel %vm2068, %v2056, 0
  %2072 = vmatpush.bf16.msra.mxu0 0
  %2073 = vmatpush.bf16.msra.mxu0 0
  %2074 = vmatpush.bf16.msra.mxu0 0
  %2075 = vmatpush.bf16.msra.mxu0 0
  %2076 = vmatpush.bf16.msra.mxu0 %v2070
  %2077 = vmatpush.bf16.msra.mxu0 %v2055
  %2078 = vmatpush.bf16.msra.mxu0 %v2054
  %2079 = vmatpush.bf16.msra.mxu0 %v2053
  %2080 = vmatmul.bf16.gmra.mxu0 %v2066
  %v2081 = vpop.f32.mrf.mxu0
  %v2082 = vadd.f32 %v2062, %v2081
  %v2083 = vpop.f32.mrf.mxu0
  %2084 = vdwg.mxu0
  %vm2085 = vcmask 11264
  %v2086 = vsel %vm2085, %v2082, -inf
  %v2087 = vrot.slane %v2086, 4
  %v2088 = vmax.f32 %v2086, %v2087
  %v2089 = vrot.slane %v2088, 2
  %v2090 = vmax.f32 %v2088, %v2089
  %v2091 = vrot.slane %v2090, 1
  %v2092 = vmax.f32 %v2090, %v2091
  %v2093 = vsub.f32 %v2082, %v2092
  %v2094 = vmul.f32 %v2093, 1.442695
  %v2095 = vpow.pop %v2094
  %v2096 = vsel %vm2085, %v2095, 0.0
  %v2097 = vrot.slane %v2096, 4
  %v2098 = vadd.f32 %v2096, %v2097
  %v2099 = vrot.slane %v2098, 2
  %v2100 = vadd.f32 %v2098, %v2099
  %v2101 = vrot.slane %v2100, 1
  %v2102 = vadd.f32 %v2100, %v2101
  %v2103 = vlog2.pop %v2102
  %v2104 = vmul.f32 %v2103, 0.6931472
  %v2105 = vsub.f32 %v2093, %v2104
  %2106 = vst.msk [vmem:[%s8] sm:$0xf] %vm2085, %v2105
  // Predicated region
  $region34: #{net1_forward.7} parent=0 // pred_check
    _
  $region35: #{net1_forward.7} parent=0 // pred_check_branch
    %2108 = sbr.rel (0) target = $region37
  $region36: #{net1_forward.7} parent=0 // pred_region
    _
  $region37: #{net1_forward.7} parent=0 // pred_fallthru
    _
  // Predicated region
  $region38: #{net1_forward.7} parent=0 // pred_check
    _
  $region39: #{net1_forward.7} parent=0 // pred_check_branch
    %2110 = sbr.rel (0) target = $region41
  $region40: #{net1_forward.7} parent=0 // pred_region
    _
  $region41: #{net1_forward.7} parent=0 // pred_fallthru
    _

</llo_original>
